<compile_context>
chip_gen: v7x
topology: tpu7x:2x2x1
jax: 0.10.0
libtpu: 0.0.40
codegen_flags: <defaults>
</compile_context>

<pallas_src>
import math
import numpy as np
import jax
import jax.numpy as jnp
from jax.experimental import pallas as pl
from jax.experimental.pallas import tpu as pltpu

ARCH_O = [4, 'M', 8, 'M', 16, 16, 'M', 32, 32, 'M', 32, 32, 'M']
BN_EPS = 1e-5

_VMEM = pl.BlockSpec(memory_space=pltpu.MemorySpace.VMEM)


def _plan():
    return tuple(('pool' if v == 'M' else 'conv') for v in ARCH_O) + ('fc',)


# ----------------- constant operand construction (host-side, numpy) -----------------

def _conv_mats(wconv, N, H, W, Cin, Cout):
    """wconv: numpy (3,3,Cin,Cout).  Returns:
       srs (2, N*H, N*H)       row-shift 0/1 matrices for dy=-1,+1 (zero rows at edges)
       ts  (3, W*Cin, W*Cout)  block-banded conv weights for dy=-1,0,+1
       avg (W*Cout, W*Cout)    per-channel averaging matrix (includes 1/(N*H*W))
    """
    eyeN = np.eye(N, dtype=np.float32)
    srs = np.stack([np.kron(eyeN, np.eye(H, k=dy, dtype=np.float32))
                    for dy in (-1, 1)]).astype(np.float32)
    ts = np.zeros((3, W * Cin, W * Cout), np.float32)
    for idy, dy in enumerate((-1, 0, 1)):
        for dx in (-1, 0, 1):
            for w in range(W):
                wp = w + dx
                if 0 <= wp < W:
                    ts[idy, wp * Cin:(wp + 1) * Cin, w * Cout:(w + 1) * Cout] = \
                        wconv[dy + 1, dx + 1]
    avg = np.kron(np.ones((W, W), np.float32),
                  np.eye(Cout, dtype=np.float32)) / float(N * H * W)
    return srs, ts, avg.astype(np.float32)


def _pool_mats(N, H, W, C):
    """0/1 selection matrices for 2x2 stride-2 max pooling in the (N*H, W*C) layout."""
    Ho, Wo = H // 2, W // 2
    prs = np.zeros((2, N * Ho, N * H), np.float32)
    pcs = np.zeros((2, W * C, Wo * C), np.float32)
    eyeN = np.eye(N, dtype=np.float32)
    eyeC = np.eye(C, dtype=np.float32)
    for d in range(2):
        R = np.zeros((Ho, H), np.float32)
        R[np.arange(Ho), 2 * np.arange(Ho) + d] = 1.0
        prs[d] = np.kron(eyeN, R)
        S = np.zeros((W, Wo), np.float32)
        S[2 * np.arange(Wo) + d, np.arange(Wo)] = 1.0
        pcs[d] = np.kron(S, eyeC)
    return prs, pcs


def init_params(key, N, width=1, num_classes=10, H=32, W=32, in_c=3):
    """Deterministic synthetic parameters matching VGG_S('O','cifar10') init, plus the
    fused-kernel constant operand list (in the exact order the kernel consumes them).
    Conv biases are not generated: with training-mode BN they are exactly cancelled."""
    conv_ws, mats = [], []
    h, w, cin = H, W, in_c
    for v in ARCH_O:
        if v == 'M':
            prs, pcs = _pool_mats(N, h, w, cin)
            mats += [prs, pcs]
            h //= 2
            w //= 2
        else:
            cout = int(v * width)
            key, kw = jax.random.split(key)
            std = math.sqrt(2.0 / (3 * 3 * cout))          # as in _weight_initialization
            wconv = np.asarray(
                jax.random.normal(kw, (3, 3, cin, cout), jnp.float32)) * std
            conv_ws.append(wconv.astype(np.float32))
            srs, ts, avg = _conv_mats(wconv, N, h, w, cin, cout)
            mats += [srs, ts, avg]
            cin = cout
    key, kw, kb = jax.random.split(key, 3)
    fan_in = int(32 * width)
    bound = 1.0 / math.sqrt(fan_in)                        # default nn.Linear init range
    fc_w = np.asarray(jax.random.uniform(kw, (fan_in, num_classes), jnp.float32,
                                         -bound, bound))
    fc_b = np.asarray(jax.random.uniform(kb, (1, num_classes), jnp.float32,
                                         -bound, bound))
    mats += [fc_w, fc_b]
    mats = [jnp.asarray(m, jnp.float32) for m in mats]
    return conv_ws, (fc_w, fc_b), mats


# --------------------------------- fused kernel --------------------------------------

def _make_kernel(plan):
    def kernel(*refs):
        # refs = (x_ref, <per-layer constant refs...>, out_ref); everything in VMEM.
        out_ref = refs[-1]
        x = refs[0][...]                                   # (N*H, W*Cin) feature slab
        i = 1
        for op in plan:
            if op == 'conv':
                srs, ts, avg = refs[i], refs[i + 1], refs[i + 2]
                i += 3
                # vertical taps via row-shift matmuls (zero rows = vertical padding)
                x_up = jnp.dot(srs[0], x, preferred_element_type=jnp.float32)
                x_dn = jnp.dot(srs[1], x, preferred_element_type=jnp.float32)
                # banded weights fold the dx taps + horizontal padding; K <= 128
                acc = (jnp.dot(x_up, ts[0], preferred_element_type=jnp.float32)
                       + jnp.dot(x, ts[1], preferred_element_type=jnp.float32)
                       + jnp.dot(x_dn, ts[2], preferred_element_type=jnp.float32))
                # BatchNorm (training-mode batch stats, gamma=1, beta=0), one pass
                s1 = jnp.sum(acc, axis=0, keepdims=True)              # (1, W*Cout)
                s2 = jnp.sum(acc * acc, axis=0, keepdims=True)
                mean = jnp.dot(s1, avg[...], preferred_element_type=jnp.float32)
                ex2 = jnp.dot(s2, avg[...], preferred_element_type=jnp.float32)
                var = jnp.maximum(ex2 - mean * mean, 0.0)
                x = jnp.maximum((acc - mean) * jax.lax.rsqrt(var + BN_EPS), 0.0)
            elif op == 'pool':
                prs, pcs = refs[i], refs[i + 1]
                i += 2
                v = jnp.maximum(
                    jnp.dot(prs[0], x, preferred_element_type=jnp.float32),
                    jnp.dot(prs[1], x, preferred_element_type=jnp.float32))
                x = jnp.maximum(
                    jnp.dot(v, pcs[0], preferred_element_type=jnp.float32),
                    jnp.dot(v, pcs[1], preferred_element_type=jnp.float32))
            else:  # 'fc'
                fw, fb = refs[i], refs[i + 1]
                i += 2
                x = jnp.dot(x, fw[...], preferred_element_type=jnp.float32) + fb[...]
        out_ref[...] = x
    return kernel


def vgg_s_forward(x_nchw, mats, num_classes=10):
    """x_nchw: (N, 3, 32, 32) float32 (PyTorch NCHW) -> (N, num_classes) logits.
    The whole forward runs inside one pallas_call."""
    N, C, H, W = x_nchw.shape
    x2d = jnp.transpose(x_nchw, (0, 2, 3, 1)).reshape(N * H, W * C)
    return pl.pallas_call(
        _make_kernel(_plan()),
        out_shape=jax.ShapeDtypeStruct((N, num_classes), jnp.float32),
        in_specs=[_VMEM] * (1 + len(mats)),
        out_specs=_VMEM,
    )(x2d, *mats)


# ----------------------------- pure-JAX reference ------------------------------------

def _reference_forward(x_nchw, conv_ws, fc_w, fc_b):
    x = jnp.transpose(x_nchw, (0, 2, 3, 1))                # NHWC
    ci = 0
    for v in ARCH_O:
        if v == 'M':
            x = jnp.maximum(x[:, 0::2], x[:, 1::2])
            x = jnp.maximum(x[:, :, 0::2], x[:, :, 1::2])
        else:
            wt = jnp.asarray(conv_ws[ci]); ci += 1
            N, H, W, Cin = x.shape
            xp = jnp.pad(x, ((0, 0), (1, 1), (1, 1), (0, 0)))
            acc = jnp.zeros((N, H, W, wt.shape[-1]), jnp.float32)
            for ky in range(3):
                for kx in range(3):
                    acc = acc + jnp.einsum('nhwc,cd->nhwd',
                                           xp[:, ky:ky + H, kx:kx + W, :], wt[ky, kx])
            m = jnp.mean(acc, axis=(0, 1, 2), keepdims=True)
            var = jnp.mean(jnp.square(acc - m), axis=(0, 1, 2), keepdims=True)
            x = jnp.maximum((acc - m) * jax.lax.rsqrt(var + BN_EPS), 0.0)
    feat = x.reshape(x.shape[0], -1)
    return feat @ jnp.asarray(fc_w) + jnp.asarray(fc_b)


if __name__ == "__main__":
    key = jax.random.PRNGKey(0)
    key, kx, kp = jax.random.split(key, 3)
    N = 2
    x = jax.random.normal(kx, (N, 3, 32, 32), jnp.float32)   # CIFAR-sized NCHW input
    conv_ws, (fc_w, fc_b), mats = init_params(kp, N=N, width=1, num_classes=10)

    logits = vgg_s_forward(x, mats)
    jax.block_until_ready(logits)
    assert logits.shape == (N, 10) and logits.dtype == jnp.float32
    assert bool(jnp.all(jnp.isfinite(logits)))

    # Sanity check against a pure-JAX/XLA reference (loose tolerance: MXU matmul
    # precision differs between the Pallas and XLA paths).
    ref = _reference_forward(x, conv_ws, fc_w, fc_b)
    err = float(jnp.max(jnp.abs(logits - ref)))
    tol = 1e-1 + 1e-1 * float(jnp.max(jnp.abs(ref)))
    assert err < tol, f"kernel/reference mismatch: max abs err {err} (tol {tol})"
    print("KERNEL_OK")
</pallas_src>

<mosaic_0001>
module attributes {stable_mosaic.version = 11 : i64} {
  func.func @kernel(%arg0: memref<64x96xf32, #tpu.memory_space<vmem>>, %arg1: memref<2x64x64xf32, #tpu.memory_space<vmem>>, %arg2: memref<3x96x128xf32, #tpu.memory_space<vmem>>, %arg3: memref<128x128xf32, #tpu.memory_space<vmem>>, %arg4: memref<2x32x64xf32, #tpu.memory_space<vmem>>, %arg5: memref<2x128x64xf32, #tpu.memory_space<vmem>>, %arg6: memref<2x32x32xf32, #tpu.memory_space<vmem>>, %arg7: memref<3x64x128xf32, #tpu.memory_space<vmem>>, %arg8: memref<128x128xf32, #tpu.memory_space<vmem>>, %arg9: memref<2x16x32xf32, #tpu.memory_space<vmem>>, %arg10: memref<2x128x64xf32, #tpu.memory_space<vmem>>, %arg11: memref<2x16x16xf32, #tpu.memory_space<vmem>>, %arg12: memref<3x64x128xf32, #tpu.memory_space<vmem>>, %arg13: memref<128x128xf32, #tpu.memory_space<vmem>>, %arg14: memref<2x16x16xf32, #tpu.memory_space<vmem>>, %arg15: memref<3x128x128xf32, #tpu.memory_space<vmem>>, %arg16: memref<128x128xf32, #tpu.memory_space<vmem>>, %arg17: memref<2x8x16xf32, #tpu.memory_space<vmem>>, %arg18: memref<2x128x64xf32, #tpu.memory_space<vmem>>, %arg19: memref<2x8x8xf32, #tpu.memory_space<vmem>>, %arg20: memref<3x64x128xf32, #tpu.memory_space<vmem>>, %arg21: memref<128x128xf32, #tpu.memory_space<vmem>>, %arg22: memref<2x8x8xf32, #tpu.memory_space<vmem>>, %arg23: memref<3x128x128xf32, #tpu.memory_space<vmem>>, %arg24: memref<128x128xf32, #tpu.memory_space<vmem>>, %arg25: memref<2x4x8xf32, #tpu.memory_space<vmem>>, %arg26: memref<2x128x64xf32, #tpu.memory_space<vmem>>, %arg27: memref<2x4x4xf32, #tpu.memory_space<vmem>>, %arg28: memref<3x64x64xf32, #tpu.memory_space<vmem>>, %arg29: memref<64x64xf32, #tpu.memory_space<vmem>>, %arg30: memref<2x4x4xf32, #tpu.memory_space<vmem>>, %arg31: memref<3x64x64xf32, #tpu.memory_space<vmem>>, %arg32: memref<64x64xf32, #tpu.memory_space<vmem>>, %arg33: memref<2x2x4xf32, #tpu.memory_space<vmem>>, %arg34: memref<2x64x32xf32, #tpu.memory_space<vmem>>, %arg35: memref<32x10xf32, #tpu.memory_space<vmem>>, %arg36: memref<1x10xf32, #tpu.memory_space<vmem>>, %arg37: memref<2x10xf32, #tpu.memory_space<vmem>>) attributes {dimension_semantics = [], scalar_prefetch = 0 : i64, scratch_operands = 0 : i64, tpu.core_type = #tpu.core_type<tc>} {
    %c0 = arith.constant 0 : index
    %c0_0 = arith.constant 0 : index
    %0 = vector.load %arg0[%c0, %c0_0] : memref<64x96xf32, #tpu.memory_space<vmem>>, vector<64x96xf32>
    %c0_1 = arith.constant 0 : index
    %c0_2 = arith.constant 0 : index
    %c0_3 = arith.constant 0 : index
    %1 = vector.load %arg1[%c0_1, %c0_2, %c0_3] : memref<2x64x64xf32, #tpu.memory_space<vmem>>, vector<1x64x64xf32>
    %2 = vector.shape_cast %1 : vector<1x64x64xf32> to vector<64x64xf32>
    %cst = arith.constant dense<0.000000e+00> : vector<64x96xf32>
    %3 = tpu.matmul %2, %0, %cst {dimension_numbers = #tpu.dot_dimension_numbers<[1], [0], [0], [1], [0, 0, 1, 1], [], []>} : vector<64x64xf32>, vector<64x96xf32>, vector<64x96xf32> -> vector<64x96xf32>
    %c1 = arith.constant 1 : index
    %c0_4 = arith.constant 0 : index
    %c0_5 = arith.constant 0 : index
    %4 = vector.load %arg1[%c1, %c0_4, %c0_5] : memref<2x64x64xf32, #tpu.memory_space<vmem>>, vector<1x64x64xf32>
    %5 = vector.shape_cast %4 : vector<1x64x64xf32> to vector<64x64xf32>
    %cst_6 = arith.constant dense<0.000000e+00> : vector<64x96xf32>
    %6 = tpu.matmul %5, %0, %cst_6 {dimension_numbers = #tpu.dot_dimension_numbers<[1], [0], [0], [1], [0, 0, 1, 1], [], []>} : vector<64x64xf32>, vector<64x96xf32>, vector<64x96xf32> -> vector<64x96xf32>
    %c0_7 = arith.constant 0 : index
    %c0_8 = arith.constant 0 : index
    %c0_9 = arith.constant 0 : index
    %7 = vector.load %arg2[%c0_7, %c0_8, %c0_9] : memref<3x96x128xf32, #tpu.memory_space<vmem>>, vector<1x96x128xf32>
    %8 = vector.shape_cast %7 : vector<1x96x128xf32> to vector<96x128xf32>
    %cst_10 = arith.constant dense<0.000000e+00> : vector<64x128xf32>
    %9 = tpu.matmul %3, %8, %cst_10 {dimension_numbers = #tpu.dot_dimension_numbers<[1], [0], [0], [1], [0, 0, 1, 1], [], []>} : vector<64x96xf32>, vector<96x128xf32>, vector<64x128xf32> -> vector<64x128xf32>
    %c1_11 = arith.constant 1 : index
    %c0_12 = arith.constant 0 : index
    %c0_13 = arith.constant 0 : index
    %10 = vector.load %arg2[%c1_11, %c0_12, %c0_13] : memref<3x96x128xf32, #tpu.memory_space<vmem>>, vector<1x96x128xf32>
    %11 = vector.shape_cast %10 : vector<1x96x128xf32> to vector<96x128xf32>
    %cst_14 = arith.constant dense<0.000000e+00> : vector<64x128xf32>
    %12 = tpu.matmul %0, %11, %cst_14 {dimension_numbers = #tpu.dot_dimension_numbers<[1], [0], [0], [1], [0, 0, 1, 1], [], []>} : vector<64x96xf32>, vector<96x128xf32>, vector<64x128xf32> -> vector<64x128xf32>
    %13 = arith.addf %9, %12 : vector<64x128xf32>
    %c2 = arith.constant 2 : index
    %c0_15 = arith.constant 0 : index
    %c0_16 = arith.constant 0 : index
    %14 = vector.load %arg2[%c2, %c0_15, %c0_16] : memref<3x96x128xf32, #tpu.memory_space<vmem>>, vector<1x96x128xf32>
    %15 = vector.shape_cast %14 : vector<1x96x128xf32> to vector<96x128xf32>
    %cst_17 = arith.constant dense<0.000000e+00> : vector<64x128xf32>
    %16 = tpu.matmul %6, %15, %cst_17 {dimension_numbers = #tpu.dot_dimension_numbers<[1], [0], [0], [1], [0, 0, 1, 1], [], []>} : vector<64x96xf32>, vector<96x128xf32>, vector<64x128xf32> -> vector<64x128xf32>
    %17 = arith.addf %13, %16 : vector<64x128xf32>
    %cst_18 = arith.constant dense<0.000000e+00> : vector<128xf32>
    %18 = vector.multi_reduction <add>, %17, %cst_18 [0] : vector<64x128xf32> to vector<128xf32>
    %19 = vector.shape_cast %18 : vector<128xf32> to vector<1x128xf32>
    %20 = arith.mulf %17, %17 : vector<64x128xf32>
    %cst_19 = arith.constant dense<0.000000e+00> : vector<128xf32>
    %21 = vector.multi_reduction <add>, %20, %cst_19 [0] : vector<64x128xf32> to vector<128xf32>
    %22 = vector.shape_cast %21 : vector<128xf32> to vector<1x128xf32>
    %c0_20 = arith.constant 0 : index
    %c0_21 = arith.constant 0 : index
    %23 = vector.load %arg3[%c0_20, %c0_21] : memref<128x128xf32, #tpu.memory_space<vmem>>, vector<128x128xf32>
    %cst_22 = arith.constant dense<0.000000e+00> : vector<1x128xf32>
    %24 = tpu.matmul %19, %23, %cst_22 {dimension_numbers = #tpu.dot_dimension_numbers<[1], [0], [0], [1], [0, 0, 1, 1], [], []>} : vector<1x128xf32>, vector<128x128xf32>, vector<1x128xf32> -> vector<1x128xf32>
    %c0_23 = arith.constant 0 : index
    %c0_24 = arith.constant 0 : index
    %25 = vector.load %arg3[%c0_23, %c0_24] : memref<128x128xf32, #tpu.memory_space<vmem>>, vector<128x128xf32>
    %cst_25 = arith.constant dense<0.000000e+00> : vector<1x128xf32>
    %26 = tpu.matmul %22, %25, %cst_25 {dimension_numbers = #tpu.dot_dimension_numbers<[1], [0], [0], [1], [0, 0, 1, 1], [], []>} : vector<1x128xf32>, vector<128x128xf32>, vector<1x128xf32> -> vector<1x128xf32>
    %27 = arith.mulf %24, %24 : vector<1x128xf32>
    %28 = arith.subf %26, %27 : vector<1x128xf32>
    %cst_26 = arith.constant 0.000000e+00 : f32
    %29 = vector.broadcast %cst_26 : f32 to vector<1x128xf32>
    %30 = arith.maximumf %28, %29 : vector<1x128xf32>
    %31 = vector.broadcast %24 : vector<1x128xf32> to vector<64x128xf32>
    %32 = arith.subf %17, %31 : vector<64x128xf32>
    %cst_27 = arith.constant 9.99999974E-6 : f32
    %33 = vector.broadcast %cst_27 : f32 to vector<1x128xf32>
    %34 = arith.addf %30, %33 : vector<1x128xf32>
    %35 = math.rsqrt %34 : vector<1x128xf32>
    %36 = vector.broadcast %35 : vector<1x128xf32> to vector<64x128xf32>
    %37 = arith.mulf %32, %36 : vector<64x128xf32>
    %cst_28 = arith.constant 0.000000e+00 : f32
    %38 = vector.broadcast %cst_28 : f32 to vector<64x128xf32>
    %39 = arith.maximumf %37, %38 : vector<64x128xf32>
    %c0_29 = arith.constant 0 : index
    %c0_30 = arith.constant 0 : index
    %c0_31 = arith.constant 0 : index
    %40 = vector.load %arg4[%c0_29, %c0_30, %c0_31] : memref<2x32x64xf32, #tpu.memory_space<vmem>>, vector<1x32x64xf32>
    %41 = vector.shape_cast %40 : vector<1x32x64xf32> to vector<32x64xf32>
    %cst_32 = arith.constant dense<0.000000e+00> : vector<32x128xf32>
    %42 = tpu.matmul %41, %39, %cst_32 {dimension_numbers = #tpu.dot_dimension_numbers<[1], [0], [0], [1], [0, 0, 1, 1], [], []>} : vector<32x64xf32>, vector<64x128xf32>, vector<32x128xf32> -> vector<32x128xf32>
    %c1_33 = arith.constant 1 : index
    %c0_34 = arith.constant 0 : index
    %c0_35 = arith.constant 0 : index
    %43 = vector.load %arg4[%c1_33, %c0_34, %c0_35] : memref<2x32x64xf32, #tpu.memory_space<vmem>>, vector<1x32x64xf32>
    %44 = vector.shape_cast %43 : vector<1x32x64xf32> to vector<32x64xf32>
    %cst_36 = arith.constant dense<0.000000e+00> : vector<32x128xf32>
    %45 = tpu.matmul %44, %39, %cst_36 {dimension_numbers = #tpu.dot_dimension_numbers<[1], [0], [0], [1], [0, 0, 1, 1], [], []>} : vector<32x64xf32>, vector<64x128xf32>, vector<32x128xf32> -> vector<32x128xf32>
    %46 = arith.maximumf %42, %45 : vector<32x128xf32>
    %c0_37 = arith.constant 0 : index
    %c0_38 = arith.constant 0 : index
    %c0_39 = arith.constant 0 : index
    %47 = vector.load %arg5[%c0_37, %c0_38, %c0_39] : memref<2x128x64xf32, #tpu.memory_space<vmem>>, vector<1x128x64xf32>
    %48 = vector.shape_cast %47 : vector<1x128x64xf32> to vector<128x64xf32>
    %cst_40 = arith.constant dense<0.000000e+00> : vector<32x64xf32>
    %49 = tpu.matmul %46, %48, %cst_40 {dimension_numbers = #tpu.dot_dimension_numbers<[1], [0], [0], [1], [0, 0, 1, 1], [], []>} : vector<32x128xf32>, vector<128x64xf32>, vector<32x64xf32> -> vector<32x64xf32>
    %c1_41 = arith.constant 1 : index
    %c0_42 = arith.constant 0 : index
    %c0_43 = arith.constant 0 : index
    %50 = vector.load %arg5[%c1_41, %c0_42, %c0_43] : memref<2x128x64xf32, #tpu.memory_space<vmem>>, vector<1x128x64xf32>
    %51 = vector.shape_cast %50 : vector<1x128x64xf32> to vector<128x64xf32>
    %cst_44 = arith.constant dense<0.000000e+00> : vector<32x64xf32>
    %52 = tpu.matmul %46, %51, %cst_44 {dimension_numbers = #tpu.dot_dimension_numbers<[1], [0], [0], [1], [0, 0, 1, 1], [], []>} : vector<32x128xf32>, vector<128x64xf32>, vector<32x64xf32> -> vector<32x64xf32>
    %53 = arith.maximumf %49, %52 : vector<32x64xf32>
    %c0_45 = arith.constant 0 : index
    %c0_46 = arith.constant 0 : index
    %c0_47 = arith.constant 0 : index
    %54 = vector.load %arg6[%c0_45, %c0_46, %c0_47] : memref<2x32x32xf32, #tpu.memory_space<vmem>>, vector<1x32x32xf32>
    %55 = vector.shape_cast %54 : vector<1x32x32xf32> to vector<32x32xf32>
    %cst_48 = arith.constant dense<0.000000e+00> : vector<32x64xf32>
    %56 = tpu.matmul %55, %53, %cst_48 {dimension_numbers = #tpu.dot_dimension_numbers<[1], [0], [0], [1], [0, 0, 1, 1], [], []>} : vector<32x32xf32>, vector<32x64xf32>, vector<32x64xf32> -> vector<32x64xf32>
    %c1_49 = arith.constant 1 : index
    %c0_50 = arith.constant 0 : index
    %c0_51 = arith.constant 0 : index
    %57 = vector.load %arg6[%c1_49, %c0_50, %c0_51] : memref<2x32x32xf32, #tpu.memory_space<vmem>>, vector<1x32x32xf32>
    %58 = vector.shape_cast %57 : vector<1x32x32xf32> to vector<32x32xf32>
    %cst_52 = arith.constant dense<0.000000e+00> : vector<32x64xf32>
    %59 = tpu.matmul %58, %53, %cst_52 {dimension_numbers = #tpu.dot_dimension_numbers<[1], [0], [0], [1], [0, 0, 1, 1], [], []>} : vector<32x32xf32>, vector<32x64xf32>, vector<32x64xf32> -> vector<32x64xf32>
    %c0_53 = arith.constant 0 : index
    %c0_54 = arith.constant 0 : index
    %c0_55 = arith.constant 0 : index
    %60 = vector.load %arg7[%c0_53, %c0_54, %c0_55] : memref<3x64x128xf32, #tpu.memory_space<vmem>>, vector<1x64x128xf32>
    %61 = vector.shape_cast %60 : vector<1x64x128xf32> to vector<64x128xf32>
    %cst_56 = arith.constant dense<0.000000e+00> : vector<32x128xf32>
    %62 = tpu.matmul %56, %61, %cst_56 {dimension_numbers = #tpu.dot_dimension_numbers<[1], [0], [0], [1], [0, 0, 1, 1], [], []>} : vector<32x64xf32>, vector<64x128xf32>, vector<32x128xf32> -> vector<32x128xf32>
    %c1_57 = arith.constant 1 : index
    %c0_58 = arith.constant 0 : index
    %c0_59 = arith.constant 0 : index
    %63 = vector.load %arg7[%c1_57, %c0_58, %c0_59] : memref<3x64x128xf32, #tpu.memory_space<vmem>>, vector<1x64x128xf32>
    %64 = vector.shape_cast %63 : vector<1x64x128xf32> to vector<64x128xf32>
    %cst_60 = arith.constant dense<0.000000e+00> : vector<32x128xf32>
    %65 = tpu.matmul %53, %64, %cst_60 {dimension_numbers = #tpu.dot_dimension_numbers<[1], [0], [0], [1], [0, 0, 1, 1], [], []>} : vector<32x64xf32>, vector<64x128xf32>, vector<32x128xf32> -> vector<32x128xf32>
    %66 = arith.addf %62, %65 : vector<32x128xf32>
    %c2_61 = arith.constant 2 : index
    %c0_62 = arith.constant 0 : index
    %c0_63 = arith.constant 0 : index
    %67 = vector.load %arg7[%c2_61, %c0_62, %c0_63] : memref<3x64x128xf32, #tpu.memory_space<vmem>>, vector<1x64x128xf32>
    %68 = vector.shape_cast %67 : vector<1x64x128xf32> to vector<64x128xf32>
    %cst_64 = arith.constant dense<0.000000e+00> : vector<32x128xf32>
    %69 = tpu.matmul %59, %68, %cst_64 {dimension_numbers = #tpu.dot_dimension_numbers<[1], [0], [0], [1], [0, 0, 1, 1], [], []>} : vector<32x64xf32>, vector<64x128xf32>, vector<32x128xf32> -> vector<32x128xf32>
    %70 = arith.addf %66, %69 : vector<32x128xf32>
    %cst_65 = arith.constant dense<0.000000e+00> : vector<128xf32>
    %71 = vector.multi_reduction <add>, %70, %cst_65 [0] : vector<32x128xf32> to vector<128xf32>
    %72 = vector.shape_cast %71 : vector<128xf32> to vector<1x128xf32>
    %73 = arith.mulf %70, %70 : vector<32x128xf32>
    %cst_66 = arith.constant dense<0.000000e+00> : vector<128xf32>
    %74 = vector.multi_reduction <add>, %73, %cst_66 [0] : vector<32x128xf32> to vector<128xf32>
    %75 = vector.shape_cast %74 : vector<128xf32> to vector<1x128xf32>
    %c0_67 = arith.constant 0 : index
    %c0_68 = arith.constant 0 : index
    %76 = vector.load %arg8[%c0_67, %c0_68] : memref<128x128xf32, #tpu.memory_space<vmem>>, vector<128x128xf32>
    %cst_69 = arith.constant dense<0.000000e+00> : vector<1x128xf32>
    %77 = tpu.matmul %72, %76, %cst_69 {dimension_numbers = #tpu.dot_dimension_numbers<[1], [0], [0], [1], [0, 0, 1, 1], [], []>} : vector<1x128xf32>, vector<128x128xf32>, vector<1x128xf32> -> vector<1x128xf32>
    %c0_70 = arith.constant 0 : index
    %c0_71 = arith.constant 0 : index
    %78 = vector.load %arg8[%c0_70, %c0_71] : memref<128x128xf32, #tpu.memory_space<vmem>>, vector<128x128xf32>
    %cst_72 = arith.constant dense<0.000000e+00> : vector<1x128xf32>
    %79 = tpu.matmul %75, %78, %cst_72 {dimension_numbers = #tpu.dot_dimension_numbers<[1], [0], [0], [1], [0, 0, 1, 1], [], []>} : vector<1x128xf32>, vector<128x128xf32>, vector<1x128xf32> -> vector<1x128xf32>
    %80 = arith.mulf %77, %77 : vector<1x128xf32>
    %81 = arith.subf %79, %80 : vector<1x128xf32>
    %cst_73 = arith.constant 0.000000e+00 : f32
    %82 = vector.broadcast %cst_73 : f32 to vector<1x128xf32>
    %83 = arith.maximumf %81, %82 : vector<1x128xf32>
    %84 = vector.broadcast %77 : vector<1x128xf32> to vector<32x128xf32>
    %85 = arith.subf %70, %84 : vector<32x128xf32>
    %cst_74 = arith.constant 9.99999974E-6 : f32
    %86 = vector.broadcast %cst_74 : f32 to vector<1x128xf32>
    %87 = arith.addf %83, %86 : vector<1x128xf32>
    %88 = math.rsqrt %87 : vector<1x128xf32>
    %89 = vector.broadcast %88 : vector<1x128xf32> to vector<32x128xf32>
    %90 = arith.mulf %85, %89 : vector<32x128xf32>
    %cst_75 = arith.constant 0.000000e+00 : f32
    %91 = vector.broadcast %cst_75 : f32 to vector<32x128xf32>
    %92 = arith.maximumf %90, %91 : vector<32x128xf32>
    %c0_76 = arith.constant 0 : index
    %c0_77 = arith.constant 0 : index
    %c0_78 = arith.constant 0 : index
    %93 = vector.load %arg9[%c0_76, %c0_77, %c0_78] : memref<2x16x32xf32, #tpu.memory_space<vmem>>, vector<1x16x32xf32>
    %94 = vector.shape_cast %93 : vector<1x16x32xf32> to vector<16x32xf32>
    %cst_79 = arith.constant dense<0.000000e+00> : vector<16x128xf32>
    %95 = tpu.matmul %94, %92, %cst_79 {dimension_numbers = #tpu.dot_dimension_numbers<[1], [0], [0], [1], [0, 0, 1, 1], [], []>} : vector<16x32xf32>, vector<32x128xf32>, vector<16x128xf32> -> vector<16x128xf32>
    %c1_80 = arith.constant 1 : index
    %c0_81 = arith.constant 0 : index
    %c0_82 = arith.constant 0 : index
    %96 = vector.load %arg9[%c1_80, %c0_81, %c0_82] : memref<2x16x32xf32, #tpu.memory_space<vmem>>, vector<1x16x32xf32>
    %97 = vector.shape_cast %96 : vector<1x16x32xf32> to vector<16x32xf32>
    %cst_83 = arith.constant dense<0.000000e+00> : vector<16x128xf32>
    %98 = tpu.matmul %97, %92, %cst_83 {dimension_numbers = #tpu.dot_dimension_numbers<[1], [0], [0], [1], [0, 0, 1, 1], [], []>} : vector<16x32xf32>, vector<32x128xf32>, vector<16x128xf32> -> vector<16x128xf32>
    %99 = arith.maximumf %95, %98 : vector<16x128xf32>
    %c0_84 = arith.constant 0 : index
    %c0_85 = arith.constant 0 : index
    %c0_86 = arith.constant 0 : index
    %100 = vector.load %arg10[%c0_84, %c0_85, %c0_86] : memref<2x128x64xf32, #tpu.memory_space<vmem>>, vector<1x128x64xf32>
    %101 = vector.shape_cast %100 : vector<1x128x64xf32> to vector<128x64xf32>
    %cst_87 = arith.constant dense<0.000000e+00> : vector<16x64xf32>
    %102 = tpu.matmul %99, %101, %cst_87 {dimension_numbers = #tpu.dot_dimension_numbers<[1], [0], [0], [1], [0, 0, 1, 1], [], []>} : vector<16x128xf32>, vector<128x64xf32>, vector<16x64xf32> -> vector<16x64xf32>
    %c1_88 = arith.constant 1 : index
    %c0_89 = arith.constant 0 : index
    %c0_90 = arith.constant 0 : index
    %103 = vector.load %arg10[%c1_88, %c0_89, %c0_90] : memref<2x128x64xf32, #tpu.memory_space<vmem>>, vector<1x128x64xf32>
    %104 = vector.shape_cast %103 : vector<1x128x64xf32> to vector<128x64xf32>
    %cst_91 = arith.constant dense<0.000000e+00> : vector<16x64xf32>
    %105 = tpu.matmul %99, %104, %cst_91 {dimension_numbers = #tpu.dot_dimension_numbers<[1], [0], [0], [1], [0, 0, 1, 1], [], []>} : vector<16x128xf32>, vector<128x64xf32>, vector<16x64xf32> -> vector<16x64xf32>
    %106 = arith.maximumf %102, %105 : vector<16x64xf32>
    %c0_92 = arith.constant 0 : index
    %c0_93 = arith.constant 0 : index
    %c0_94 = arith.constant 0 : index
    %107 = vector.load %arg11[%c0_92, %c0_93, %c0_94] : memref<2x16x16xf32, #tpu.memory_space<vmem>>, vector<1x16x16xf32>
    %108 = vector.shape_cast %107 : vector<1x16x16xf32> to vector<16x16xf32>
    %cst_95 = arith.constant dense<0.000000e+00> : vector<16x64xf32>
    %109 = tpu.matmul %108, %106, %cst_95 {dimension_numbers = #tpu.dot_dimension_numbers<[1], [0], [0], [1], [0, 0, 1, 1], [], []>} : vector<16x16xf32>, vector<16x64xf32>, vector<16x64xf32> -> vector<16x64xf32>
    %c1_96 = arith.constant 1 : index
    %c0_97 = arith.constant 0 : index
    %c0_98 = arith.constant 0 : index
    %110 = vector.load %arg11[%c1_96, %c0_97, %c0_98] : memref<2x16x16xf32, #tpu.memory_space<vmem>>, vector<1x16x16xf32>
    %111 = vector.shape_cast %110 : vector<1x16x16xf32> to vector<16x16xf32>
    %cst_99 = arith.constant dense<0.000000e+00> : vector<16x64xf32>
    %112 = tpu.matmul %111, %106, %cst_99 {dimension_numbers = #tpu.dot_dimension_numbers<[1], [0], [0], [1], [0, 0, 1, 1], [], []>} : vector<16x16xf32>, vector<16x64xf32>, vector<16x64xf32> -> vector<16x64xf32>
    %c0_100 = arith.constant 0 : index
    %c0_101 = arith.constant 0 : index
    %c0_102 = arith.constant 0 : index
    %113 = vector.load %arg12[%c0_100, %c0_101, %c0_102] : memref<3x64x128xf32, #tpu.memory_space<vmem>>, vector<1x64x128xf32>
    %114 = vector.shape_cast %113 : vector<1x64x128xf32> to vector<64x128xf32>
    %cst_103 = arith.constant dense<0.000000e+00> : vector<16x128xf32>
    %115 = tpu.matmul %109, %114, %cst_103 {dimension_numbers = #tpu.dot_dimension_numbers<[1], [0], [0], [1], [0, 0, 1, 1], [], []>} : vector<16x64xf32>, vector<64x128xf32>, vector<16x128xf32> -> vector<16x128xf32>
    %c1_104 = arith.constant 1 : index
    %c0_105 = arith.constant 0 : index
    %c0_106 = arith.constant 0 : index
    %116 = vector.load %arg12[%c1_104, %c0_105, %c0_106] : memref<3x64x128xf32, #tpu.memory_space<vmem>>, vector<1x64x128xf32>
    %117 = vector.shape_cast %116 : vector<1x64x128xf32> to vector<64x128xf32>
    %cst_107 = arith.constant dense<0.000000e+00> : vector<16x128xf32>
    %118 = tpu.matmul %106, %117, %cst_107 {dimension_numbers = #tpu.dot_dimension_numbers<[1], [0], [0], [1], [0, 0, 1, 1], [], []>} : vector<16x64xf32>, vector<64x128xf32>, vector<16x128xf32> -> vector<16x128xf32>
    %119 = arith.addf %115, %118 : vector<16x128xf32>
    %c2_108 = arith.constant 2 : index
    %c0_109 = arith.constant 0 : index
    %c0_110 = arith.constant 0 : index
    %120 = vector.load %arg12[%c2_108, %c0_109, %c0_110] : memref<3x64x128xf32, #tpu.memory_space<vmem>>, vector<1x64x128xf32>
    %121 = vector.shape_cast %120 : vector<1x64x128xf32> to vector<64x128xf32>
    %cst_111 = arith.constant dense<0.000000e+00> : vector<16x128xf32>
    %122 = tpu.matmul %112, %121, %cst_111 {dimension_numbers = #tpu.dot_dimension_numbers<[1], [0], [0], [1], [0, 0, 1, 1], [], []>} : vector<16x64xf32>, vector<64x128xf32>, vector<16x128xf32> -> vector<16x128xf32>
    %123 = arith.addf %119, %122 : vector<16x128xf32>
    %cst_112 = arith.constant dense<0.000000e+00> : vector<128xf32>
    %124 = vector.multi_reduction <add>, %123, %cst_112 [0] : vector<16x128xf32> to vector<128xf32>
    %125 = vector.shape_cast %124 : vector<128xf32> to vector<1x128xf32>
    %126 = arith.mulf %123, %123 : vector<16x128xf32>
    %cst_113 = arith.constant dense<0.000000e+00> : vector<128xf32>
    %127 = vector.multi_reduction <add>, %126, %cst_113 [0] : vector<16x128xf32> to vector<128xf32>
    %128 = vector.shape_cast %127 : vector<128xf32> to vector<1x128xf32>
    %c0_114 = arith.constant 0 : index
    %c0_115 = arith.constant 0 : index
    %129 = vector.load %arg13[%c0_114, %c0_115] : memref<128x128xf32, #tpu.memory_space<vmem>>, vector<128x128xf32>
    %cst_116 = arith.constant dense<0.000000e+00> : vector<1x128xf32>
    %130 = tpu.matmul %125, %129, %cst_116 {dimension_numbers = #tpu.dot_dimension_numbers<[1], [0], [0], [1], [0, 0, 1, 1], [], []>} : vector<1x128xf32>, vector<128x128xf32>, vector<1x128xf32> -> vector<1x128xf32>
    %c0_117 = arith.constant 0 : index
    %c0_118 = arith.constant 0 : index
    %131 = vector.load %arg13[%c0_117, %c0_118] : memref<128x128xf32, #tpu.memory_space<vmem>>, vector<128x128xf32>
    %cst_119 = arith.constant dense<0.000000e+00> : vector<1x128xf32>
    %132 = tpu.matmul %128, %131, %cst_119 {dimension_numbers = #tpu.dot_dimension_numbers<[1], [0], [0], [1], [0, 0, 1, 1], [], []>} : vector<1x128xf32>, vector<128x128xf32>, vector<1x128xf32> -> vector<1x128xf32>
    %133 = arith.mulf %130, %130 : vector<1x128xf32>
    %134 = arith.subf %132, %133 : vector<1x128xf32>
    %cst_120 = arith.constant 0.000000e+00 : f32
    %135 = vector.broadcast %cst_120 : f32 to vector<1x128xf32>
    %136 = arith.maximumf %134, %135 : vector<1x128xf32>
    %137 = vector.broadcast %130 : vector<1x128xf32> to vector<16x128xf32>
    %138 = arith.subf %123, %137 : vector<16x128xf32>
    %cst_121 = arith.constant 9.99999974E-6 : f32
    %139 = vector.broadcast %cst_121 : f32 to vector<1x128xf32>
    %140 = arith.addf %136, %139 : vector<1x128xf32>
    %141 = math.rsqrt %140 : vector<1x128xf32>
    %142 = vector.broadcast %141 : vector<1x128xf32> to vector<16x128xf32>
    %143 = arith.mulf %138, %142 : vector<16x128xf32>
    %cst_122 = arith.constant 0.000000e+00 : f32
    %144 = vector.broadcast %cst_122 : f32 to vector<16x128xf32>
    %145 = arith.maximumf %143, %144 : vector<16x128xf32>
    %c0_123 = arith.constant 0 : index
    %c0_124 = arith.constant 0 : index
    %c0_125 = arith.constant 0 : index
    %146 = vector.load %arg14[%c0_123, %c0_124, %c0_125] : memref<2x16x16xf32, #tpu.memory_space<vmem>>, vector<1x16x16xf32>
    %147 = vector.shape_cast %146 : vector<1x16x16xf32> to vector<16x16xf32>
    %cst_126 = arith.constant dense<0.000000e+00> : vector<16x128xf32>
    %148 = tpu.matmul %147, %145, %cst_126 {dimension_numbers = #tpu.dot_dimension_numbers<[1], [0], [0], [1], [0, 0, 1, 1], [], []>} : vector<16x16xf32>, vector<16x128xf32>, vector<16x128xf32> -> vector<16x128xf32>
    %c1_127 = arith.constant 1 : index
    %c0_128 = arith.constant 0 : index
    %c0_129 = arith.constant 0 : index
    %149 = vector.load %arg14[%c1_127, %c0_128, %c0_129] : memref<2x16x16xf32, #tpu.memory_space<vmem>>, vector<1x16x16xf32>
    %150 = vector.shape_cast %149 : vector<1x16x16xf32> to vector<16x16xf32>
    %cst_130 = arith.constant dense<0.000000e+00> : vector<16x128xf32>
    %151 = tpu.matmul %150, %145, %cst_130 {dimension_numbers = #tpu.dot_dimension_numbers<[1], [0], [0], [1], [0, 0, 1, 1], [], []>} : vector<16x16xf32>, vector<16x128xf32>, vector<16x128xf32> -> vector<16x128xf32>
    %c0_131 = arith.constant 0 : index
    %c0_132 = arith.constant 0 : index
    %c0_133 = arith.constant 0 : index
    %152 = vector.load %arg15[%c0_131, %c0_132, %c0_133] : memref<3x128x128xf32, #tpu.memory_space<vmem>>, vector<1x128x128xf32>
    %153 = vector.shape_cast %152 : vector<1x128x128xf32> to vector<128x128xf32>
    %cst_134 = arith.constant dense<0.000000e+00> : vector<16x128xf32>
    %154 = tpu.matmul %148, %153, %cst_134 {dimension_numbers = #tpu.dot_dimension_numbers<[1], [0], [0], [1], [0, 0, 1, 1], [], []>} : vector<16x128xf32>, vector<128x128xf32>, vector<16x128xf32> -> vector<16x128xf32>
    %c1_135 = arith.constant 1 : index
    %c0_136 = arith.constant 0 : index
    %c0_137 = arith.constant 0 : index
    %155 = vector.load %arg15[%c1_135, %c0_136, %c0_137] : memref<3x128x128xf32, #tpu.memory_space<vmem>>, vector<1x128x128xf32>
    %156 = vector.shape_cast %155 : vector<1x128x128xf32> to vector<128x128xf32>
    %cst_138 = arith.constant dense<0.000000e+00> : vector<16x128xf32>
    %157 = tpu.matmul %145, %156, %cst_138 {dimension_numbers = #tpu.dot_dimension_numbers<[1], [0], [0], [1], [0, 0, 1, 1], [], []>} : vector<16x128xf32>, vector<128x128xf32>, vector<16x128xf32> -> vector<16x128xf32>
    %158 = arith.addf %154, %157 : vector<16x128xf32>
    %c2_139 = arith.constant 2 : index
    %c0_140 = arith.constant 0 : index
    %c0_141 = arith.constant 0 : index
    %159 = vector.load %arg15[%c2_139, %c0_140, %c0_141] : memref<3x128x128xf32, #tpu.memory_space<vmem>>, vector<1x128x128xf32>
    %160 = vector.shape_cast %159 : vector<1x128x128xf32> to vector<128x128xf32>
    %cst_142 = arith.constant dense<0.000000e+00> : vector<16x128xf32>
    %161 = tpu.matmul %151, %160, %cst_142 {dimension_numbers = #tpu.dot_dimension_numbers<[1], [0], [0], [1], [0, 0, 1, 1], [], []>} : vector<16x128xf32>, vector<128x128xf32>, vector<16x128xf32> -> vector<16x128xf32>
    %162 = arith.addf %158, %161 : vector<16x128xf32>
    %cst_143 = arith.constant dense<0.000000e+00> : vector<128xf32>
    %163 = vector.multi_reduction <add>, %162, %cst_143 [0] : vector<16x128xf32> to vector<128xf32>
    %164 = vector.shape_cast %163 : vector<128xf32> to vector<1x128xf32>
    %165 = arith.mulf %162, %162 : vector<16x128xf32>
    %cst_144 = arith.constant dense<0.000000e+00> : vector<128xf32>
    %166 = vector.multi_reduction <add>, %165, %cst_144 [0] : vector<16x128xf32> to vector<128xf32>
    %167 = vector.shape_cast %166 : vector<128xf32> to vector<1x128xf32>
    %c0_145 = arith.constant 0 : index
    %c0_146 = arith.constant 0 : index
    %168 = vector.load %arg16[%c0_145, %c0_146] : memref<128x128xf32, #tpu.memory_space<vmem>>, vector<128x128xf32>
    %cst_147 = arith.constant dense<0.000000e+00> : vector<1x128xf32>
    %169 = tpu.matmul %164, %168, %cst_147 {dimension_numbers = #tpu.dot_dimension_numbers<[1], [0], [0], [1], [0, 0, 1, 1], [], []>} : vector<1x128xf32>, vector<128x128xf32>, vector<1x128xf32> -> vector<1x128xf32>
    %c0_148 = arith.constant 0 : index
    %c0_149 = arith.constant 0 : index
    %170 = vector.load %arg16[%c0_148, %c0_149] : memref<128x128xf32, #tpu.memory_space<vmem>>, vector<128x128xf32>
    %cst_150 = arith.constant dense<0.000000e+00> : vector<1x128xf32>
    %171 = tpu.matmul %167, %170, %cst_150 {dimension_numbers = #tpu.dot_dimension_numbers<[1], [0], [0], [1], [0, 0, 1, 1], [], []>} : vector<1x128xf32>, vector<128x128xf32>, vector<1x128xf32> -> vector<1x128xf32>
    %172 = arith.mulf %169, %169 : vector<1x128xf32>
    %173 = arith.subf %171, %172 : vector<1x128xf32>
    %cst_151 = arith.constant 0.000000e+00 : f32
    %174 = vector.broadcast %cst_151 : f32 to vector<1x128xf32>
    %175 = arith.maximumf %173, %174 : vector<1x128xf32>
    %176 = vector.broadcast %169 : vector<1x128xf32> to vector<16x128xf32>
    %177 = arith.subf %162, %176 : vector<16x128xf32>
    %cst_152 = arith.constant 9.99999974E-6 : f32
    %178 = vector.broadcast %cst_152 : f32 to vector<1x128xf32>
    %179 = arith.addf %175, %178 : vector<1x128xf32>
    %180 = math.rsqrt %179 : vector<1x128xf32>
    %181 = vector.broadcast %180 : vector<1x128xf32> to vector<16x128xf32>
    %182 = arith.mulf %177, %181 : vector<16x128xf32>
    %cst_153 = arith.constant 0.000000e+00 : f32
    %183 = vector.broadcast %cst_153 : f32 to vector<16x128xf32>
    %184 = arith.maximumf %182, %183 : vector<16x128xf32>
    %c0_154 = arith.constant 0 : index
    %c0_155 = arith.constant 0 : index
    %c0_156 = arith.constant 0 : index
    %185 = vector.load %arg17[%c0_154, %c0_155, %c0_156] : memref<2x8x16xf32, #tpu.memory_space<vmem>>, vector<1x8x16xf32>
    %186 = vector.shape_cast %185 : vector<1x8x16xf32> to vector<8x16xf32>
    %cst_157 = arith.constant dense<0.000000e+00> : vector<8x128xf32>
    %187 = tpu.matmul %186, %184, %cst_157 {dimension_numbers = #tpu.dot_dimension_numbers<[1], [0], [0], [1], [0, 0, 1, 1], [], []>} : vector<8x16xf32>, vector<16x128xf32>, vector<8x128xf32> -> vector<8x128xf32>
    %c1_158 = arith.constant 1 : index
    %c0_159 = arith.constant 0 : index
    %c0_160 = arith.constant 0 : index
    %188 = vector.load %arg17[%c1_158, %c0_159, %c0_160] : memref<2x8x16xf32, #tpu.memory_space<vmem>>, vector<1x8x16xf32>
    %189 = vector.shape_cast %188 : vector<1x8x16xf32> to vector<8x16xf32>
    %cst_161 = arith.constant dense<0.000000e+00> : vector<8x128xf32>
    %190 = tpu.matmul %189, %184, %cst_161 {dimension_numbers = #tpu.dot_dimension_numbers<[1], [0], [0], [1], [0, 0, 1, 1], [], []>} : vector<8x16xf32>, vector<16x128xf32>, vector<8x128xf32> -> vector<8x128xf32>
    %191 = arith.maximumf %187, %190 : vector<8x128xf32>
    %c0_162 = arith.constant 0 : index
    %c0_163 = arith.constant 0 : index
    %c0_164 = arith.constant 0 : index
    %192 = vector.load %arg18[%c0_162, %c0_163, %c0_164] : memref<2x128x64xf32, #tpu.memory_space<vmem>>, vector<1x128x64xf32>
    %193 = vector.shape_cast %192 : vector<1x128x64xf32> to vector<128x64xf32>
    %cst_165 = arith.constant dense<0.000000e+00> : vector<8x64xf32>
    %194 = tpu.matmul %191, %193, %cst_165 {dimension_numbers = #tpu.dot_dimension_numbers<[1], [0], [0], [1], [0, 0, 1, 1], [], []>} : vector<8x128xf32>, vector<128x64xf32>, vector<8x64xf32> -> vector<8x64xf32>
    %c1_166 = arith.constant 1 : index
    %c0_167 = arith.constant 0 : index
    %c0_168 = arith.constant 0 : index
    %195 = vector.load %arg18[%c1_166, %c0_167, %c0_168] : memref<2x128x64xf32, #tpu.memory_space<vmem>>, vector<1x128x64xf32>
    %196 = vector.shape_cast %195 : vector<1x128x64xf32> to vector<128x64xf32>
    %cst_169 = arith.constant dense<0.000000e+00> : vector<8x64xf32>
    %197 = tpu.matmul %191, %196, %cst_169 {dimension_numbers = #tpu.dot_dimension_numbers<[1], [0], [0], [1], [0, 0, 1, 1], [], []>} : vector<8x128xf32>, vector<128x64xf32>, vector<8x64xf32> -> vector<8x64xf32>
    %198 = arith.maximumf %194, %197 : vector<8x64xf32>
    %c0_170 = arith.constant 0 : index
    %c0_171 = arith.constant 0 : index
    %c0_172 = arith.constant 0 : index
    %199 = vector.load %arg19[%c0_170, %c0_171, %c0_172] : memref<2x8x8xf32, #tpu.memory_space<vmem>>, vector<1x8x8xf32>
    %200 = vector.shape_cast %199 : vector<1x8x8xf32> to vector<8x8xf32>
    %cst_173 = arith.constant dense<0.000000e+00> : vector<8x64xf32>
    %201 = tpu.matmul %200, %198, %cst_173 {dimension_numbers = #tpu.dot_dimension_numbers<[1], [0], [0], [1], [0, 0, 1, 1], [], []>} : vector<8x8xf32>, vector<8x64xf32>, vector<8x64xf32> -> vector<8x64xf32>
    %c1_174 = arith.constant 1 : index
    %c0_175 = arith.constant 0 : index
    %c0_176 = arith.constant 0 : index
    %202 = vector.load %arg19[%c1_174, %c0_175, %c0_176] : memref<2x8x8xf32, #tpu.memory_space<vmem>>, vector<1x8x8xf32>
    %203 = vector.shape_cast %202 : vector<1x8x8xf32> to vector<8x8xf32>
    %cst_177 = arith.constant dense<0.000000e+00> : vector<8x64xf32>
    %204 = tpu.matmul %203, %198, %cst_177 {dimension_numbers = #tpu.dot_dimension_numbers<[1], [0], [0], [1], [0, 0, 1, 1], [], []>} : vector<8x8xf32>, vector<8x64xf32>, vector<8x64xf32> -> vector<8x64xf32>
    %c0_178 = arith.constant 0 : index
    %c0_179 = arith.constant 0 : index
    %c0_180 = arith.constant 0 : index
    %205 = vector.load %arg20[%c0_178, %c0_179, %c0_180] : memref<3x64x128xf32, #tpu.memory_space<vmem>>, vector<1x64x128xf32>
    %206 = vector.shape_cast %205 : vector<1x64x128xf32> to vector<64x128xf32>
    %cst_181 = arith.constant dense<0.000000e+00> : vector<8x128xf32>
    %207 = tpu.matmul %201, %206, %cst_181 {dimension_numbers = #tpu.dot_dimension_numbers<[1], [0], [0], [1], [0, 0, 1, 1], [], []>} : vector<8x64xf32>, vector<64x128xf32>, vector<8x128xf32> -> vector<8x128xf32>
    %c1_182 = arith.constant 1 : index
    %c0_183 = arith.constant 0 : index
    %c0_184 = arith.constant 0 : index
    %208 = vector.load %arg20[%c1_182, %c0_183, %c0_184] : memref<3x64x128xf32, #tpu.memory_space<vmem>>, vector<1x64x128xf32>
    %209 = vector.shape_cast %208 : vector<1x64x128xf32> to vector<64x128xf32>
    %cst_185 = arith.constant dense<0.000000e+00> : vector<8x128xf32>
    %210 = tpu.matmul %198, %209, %cst_185 {dimension_numbers = #tpu.dot_dimension_numbers<[1], [0], [0], [1], [0, 0, 1, 1], [], []>} : vector<8x64xf32>, vector<64x128xf32>, vector<8x128xf32> -> vector<8x128xf32>
    %211 = arith.addf %207, %210 : vector<8x128xf32>
    %c2_186 = arith.constant 2 : index
    %c0_187 = arith.constant 0 : index
    %c0_188 = arith.constant 0 : index
    %212 = vector.load %arg20[%c2_186, %c0_187, %c0_188] : memref<3x64x128xf32, #tpu.memory_space<vmem>>, vector<1x64x128xf32>
    %213 = vector.shape_cast %212 : vector<1x64x128xf32> to vector<64x128xf32>
    %cst_189 = arith.constant dense<0.000000e+00> : vector<8x128xf32>
    %214 = tpu.matmul %204, %213, %cst_189 {dimension_numbers = #tpu.dot_dimension_numbers<[1], [0], [0], [1], [0, 0, 1, 1], [], []>} : vector<8x64xf32>, vector<64x128xf32>, vector<8x128xf32> -> vector<8x128xf32>
    %215 = arith.addf %211, %214 : vector<8x128xf32>
    %cst_190 = arith.constant dense<0.000000e+00> : vector<128xf32>
    %216 = vector.multi_reduction <add>, %215, %cst_190 [0] : vector<8x128xf32> to vector<128xf32>
    %217 = vector.shape_cast %216 : vector<128xf32> to vector<1x128xf32>
    %218 = arith.mulf %215, %215 : vector<8x128xf32>
    %cst_191 = arith.constant dense<0.000000e+00> : vector<128xf32>
    %219 = vector.multi_reduction <add>, %218, %cst_191 [0] : vector<8x128xf32> to vector<128xf32>
    %220 = vector.shape_cast %219 : vector<128xf32> to vector<1x128xf32>
    %c0_192 = arith.constant 0 : index
    %c0_193 = arith.constant 0 : index
    %221 = vector.load %arg21[%c0_192, %c0_193] : memref<128x128xf32, #tpu.memory_space<vmem>>, vector<128x128xf32>
    %cst_194 = arith.constant dense<0.000000e+00> : vector<1x128xf32>
    %222 = tpu.matmul %217, %221, %cst_194 {dimension_numbers = #tpu.dot_dimension_numbers<[1], [0], [0], [1], [0, 0, 1, 1], [], []>} : vector<1x128xf32>, vector<128x128xf32>, vector<1x128xf32> -> vector<1x128xf32>
    %c0_195 = arith.constant 0 : index
    %c0_196 = arith.constant 0 : index
    %223 = vector.load %arg21[%c0_195, %c0_196] : memref<128x128xf32, #tpu.memory_space<vmem>>, vector<128x128xf32>
    %cst_197 = arith.constant dense<0.000000e+00> : vector<1x128xf32>
    %224 = tpu.matmul %220, %223, %cst_197 {dimension_numbers = #tpu.dot_dimension_numbers<[1], [0], [0], [1], [0, 0, 1, 1], [], []>} : vector<1x128xf32>, vector<128x128xf32>, vector<1x128xf32> -> vector<1x128xf32>
    %225 = arith.mulf %222, %222 : vector<1x128xf32>
    %226 = arith.subf %224, %225 : vector<1x128xf32>
    %cst_198 = arith.constant 0.000000e+00 : f32
    %227 = vector.broadcast %cst_198 : f32 to vector<1x128xf32>
    %228 = arith.maximumf %226, %227 : vector<1x128xf32>
    %229 = vector.broadcast %222 : vector<1x128xf32> to vector<8x128xf32>
    %230 = arith.subf %215, %229 : vector<8x128xf32>
    %cst_199 = arith.constant 9.99999974E-6 : f32
    %231 = vector.broadcast %cst_199 : f32 to vector<1x128xf32>
    %232 = arith.addf %228, %231 : vector<1x128xf32>
    %233 = math.rsqrt %232 : vector<1x128xf32>
    %234 = vector.broadcast %233 : vector<1x128xf32> to vector<8x128xf32>
    %235 = arith.mulf %230, %234 : vector<8x128xf32>
    %cst_200 = arith.constant 0.000000e+00 : f32
    %236 = vector.broadcast %cst_200 : f32 to vector<8x128xf32>
    %237 = arith.maximumf %235, %236 : vector<8x128xf32>
    %c0_201 = arith.constant 0 : index
    %c0_202 = arith.constant 0 : index
    %c0_203 = arith.constant 0 : index
    %238 = vector.load %arg22[%c0_201, %c0_202, %c0_203] : memref<2x8x8xf32, #tpu.memory_space<vmem>>, vector<1x8x8xf32>
    %239 = vector.shape_cast %238 : vector<1x8x8xf32> to vector<8x8xf32>
    %cst_204 = arith.constant dense<0.000000e+00> : vector<8x128xf32>
    %240 = tpu.matmul %239, %237, %cst_204 {dimension_numbers = #tpu.dot_dimension_numbers<[1], [0], [0], [1], [0, 0, 1, 1], [], []>} : vector<8x8xf32>, vector<8x128xf32>, vector<8x128xf32> -> vector<8x128xf32>
    %c1_205 = arith.constant 1 : index
    %c0_206 = arith.constant 0 : index
    %c0_207 = arith.constant 0 : index
    %241 = vector.load %arg22[%c1_205, %c0_206, %c0_207] : memref<2x8x8xf32, #tpu.memory_space<vmem>>, vector<1x8x8xf32>
    %242 = vector.shape_cast %241 : vector<1x8x8xf32> to vector<8x8xf32>
    %cst_208 = arith.constant dense<0.000000e+00> : vector<8x128xf32>
    %243 = tpu.matmul %242, %237, %cst_208 {dimension_numbers = #tpu.dot_dimension_numbers<[1], [0], [0], [1], [0, 0, 1, 1], [], []>} : vector<8x8xf32>, vector<8x128xf32>, vector<8x128xf32> -> vector<8x128xf32>
    %c0_209 = arith.constant 0 : index
    %c0_210 = arith.constant 0 : index
    %c0_211 = arith.constant 0 : index
    %244 = vector.load %arg23[%c0_209, %c0_210, %c0_211] : memref<3x128x128xf32, #tpu.memory_space<vmem>>, vector<1x128x128xf32>
    %245 = vector.shape_cast %244 : vector<1x128x128xf32> to vector<128x128xf32>
    %cst_212 = arith.constant dense<0.000000e+00> : vector<8x128xf32>
    %246 = tpu.matmul %240, %245, %cst_212 {dimension_numbers = #tpu.dot_dimension_numbers<[1], [0], [0], [1], [0, 0, 1, 1], [], []>} : vector<8x128xf32>, vector<128x128xf32>, vector<8x128xf32> -> vector<8x128xf32>
    %c1_213 = arith.constant 1 : index
    %c0_214 = arith.constant 0 : index
    %c0_215 = arith.constant 0 : index
    %247 = vector.load %arg23[%c1_213, %c0_214, %c0_215] : memref<3x128x128xf32, #tpu.memory_space<vmem>>, vector<1x128x128xf32>
    %248 = vector.shape_cast %247 : vector<1x128x128xf32> to vector<128x128xf32>
    %cst_216 = arith.constant dense<0.000000e+00> : vector<8x128xf32>
    %249 = tpu.matmul %237, %248, %cst_216 {dimension_numbers = #tpu.dot_dimension_numbers<[1], [0], [0], [1], [0, 0, 1, 1], [], []>} : vector<8x128xf32>, vector<128x128xf32>, vector<8x128xf32> -> vector<8x128xf32>
    %250 = arith.addf %246, %249 : vector<8x128xf32>
    %c2_217 = arith.constant 2 : index
    %c0_218 = arith.constant 0 : index
    %c0_219 = arith.constant 0 : index
    %251 = vector.load %arg23[%c2_217, %c0_218, %c0_219] : memref<3x128x128xf32, #tpu.memory_space<vmem>>, vector<1x128x128xf32>
    %252 = vector.shape_cast %251 : vector<1x128x128xf32> to vector<128x128xf32>
    %cst_220 = arith.constant dense<0.000000e+00> : vector<8x128xf32>
    %253 = tpu.matmul %243, %252, %cst_220 {dimension_numbers = #tpu.dot_dimension_numbers<[1], [0], [0], [1], [0, 0, 1, 1], [], []>} : vector<8x128xf32>, vector<128x128xf32>, vector<8x128xf32> -> vector<8x128xf32>
    %254 = arith.addf %250, %253 : vector<8x128xf32>
    %cst_221 = arith.constant dense<0.000000e+00> : vector<128xf32>
    %255 = vector.multi_reduction <add>, %254, %cst_221 [0] : vector<8x128xf32> to vector<128xf32>
    %256 = vector.shape_cast %255 : vector<128xf32> to vector<1x128xf32>
    %257 = arith.mulf %254, %254 : vector<8x128xf32>
    %cst_222 = arith.constant dense<0.000000e+00> : vector<128xf32>
    %258 = vector.multi_reduction <add>, %257, %cst_222 [0] : vector<8x128xf32> to vector<128xf32>
    %259 = vector.shape_cast %258 : vector<128xf32> to vector<1x128xf32>
    %c0_223 = arith.constant 0 : index
    %c0_224 = arith.constant 0 : index
    %260 = vector.load %arg24[%c0_223, %c0_224] : memref<128x128xf32, #tpu.memory_space<vmem>>, vector<128x128xf32>
    %cst_225 = arith.constant dense<0.000000e+00> : vector<1x128xf32>
    %261 = tpu.matmul %256, %260, %cst_225 {dimension_numbers = #tpu.dot_dimension_numbers<[1], [0], [0], [1], [0, 0, 1, 1], [], []>} : vector<1x128xf32>, vector<128x128xf32>, vector<1x128xf32> -> vector<1x128xf32>
    %c0_226 = arith.constant 0 : index
    %c0_227 = arith.constant 0 : index
    %262 = vector.load %arg24[%c0_226, %c0_227] : memref<128x128xf32, #tpu.memory_space<vmem>>, vector<128x128xf32>
    %cst_228 = arith.constant dense<0.000000e+00> : vector<1x128xf32>
    %263 = tpu.matmul %259, %262, %cst_228 {dimension_numbers = #tpu.dot_dimension_numbers<[1], [0], [0], [1], [0, 0, 1, 1], [], []>} : vector<1x128xf32>, vector<128x128xf32>, vector<1x128xf32> -> vector<1x128xf32>
    %264 = arith.mulf %261, %261 : vector<1x128xf32>
    %265 = arith.subf %263, %264 : vector<1x128xf32>
    %cst_229 = arith.constant 0.000000e+00 : f32
    %266 = vector.broadcast %cst_229 : f32 to vector<1x128xf32>
    %267 = arith.maximumf %265, %266 : vector<1x128xf32>
    %268 = vector.broadcast %261 : vector<1x128xf32> to vector<8x128xf32>
    %269 = arith.subf %254, %268 : vector<8x128xf32>
    %cst_230 = arith.constant 9.99999974E-6 : f32
    %270 = vector.broadcast %cst_230 : f32 to vector<1x128xf32>
    %271 = arith.addf %267, %270 : vector<1x128xf32>
    %272 = math.rsqrt %271 : vector<1x128xf32>
    %273 = vector.broadcast %272 : vector<1x128xf32> to vector<8x128xf32>
    %274 = arith.mulf %269, %273 : vector<8x128xf32>
    %cst_231 = arith.constant 0.000000e+00 : f32
    %275 = vector.broadcast %cst_231 : f32 to vector<8x128xf32>
    %276 = arith.maximumf %274, %275 : vector<8x128xf32>
    %c0_232 = arith.constant 0 : index
    %c0_233 = arith.constant 0 : index
    %c0_234 = arith.constant 0 : index
    %277 = vector.load %arg25[%c0_232, %c0_233, %c0_234] : memref<2x4x8xf32, #tpu.memory_space<vmem>>, vector<1x4x8xf32>
    %278 = vector.shape_cast %277 : vector<1x4x8xf32> to vector<4x8xf32>
    %cst_235 = arith.constant dense<0.000000e+00> : vector<4x128xf32>
    %279 = tpu.matmul %278, %276, %cst_235 {dimension_numbers = #tpu.dot_dimension_numbers<[1], [0], [0], [1], [0, 0, 1, 1], [], []>} : vector<4x8xf32>, vector<8x128xf32>, vector<4x128xf32> -> vector<4x128xf32>
    %c1_236 = arith.constant 1 : index
    %c0_237 = arith.constant 0 : index
    %c0_238 = arith.constant 0 : index
    %280 = vector.load %arg25[%c1_236, %c0_237, %c0_238] : memref<2x4x8xf32, #tpu.memory_space<vmem>>, vector<1x4x8xf32>
    %281 = vector.shape_cast %280 : vector<1x4x8xf32> to vector<4x8xf32>
    %cst_239 = arith.constant dense<0.000000e+00> : vector<4x128xf32>
    %282 = tpu.matmul %281, %276, %cst_239 {dimension_numbers = #tpu.dot_dimension_numbers<[1], [0], [0], [1], [0, 0, 1, 1], [], []>} : vector<4x8xf32>, vector<8x128xf32>, vector<4x128xf32> -> vector<4x128xf32>
    %283 = arith.maximumf %279, %282 : vector<4x128xf32>
    %c0_240 = arith.constant 0 : index
    %c0_241 = arith.constant 0 : index
    %c0_242 = arith.constant 0 : index
    %284 = vector.load %arg26[%c0_240, %c0_241, %c0_242] : memref<2x128x64xf32, #tpu.memory_space<vmem>>, vector<1x128x64xf32>
    %285 = vector.shape_cast %284 : vector<1x128x64xf32> to vector<128x64xf32>
    %cst_243 = arith.constant dense<0.000000e+00> : vector<4x64xf32>
    %286 = tpu.matmul %283, %285, %cst_243 {dimension_numbers = #tpu.dot_dimension_numbers<[1], [0], [0], [1], [0, 0, 1, 1], [], []>} : vector<4x128xf32>, vector<128x64xf32>, vector<4x64xf32> -> vector<4x64xf32>
    %c1_244 = arith.constant 1 : index
    %c0_245 = arith.constant 0 : index
    %c0_246 = arith.constant 0 : index
    %287 = vector.load %arg26[%c1_244, %c0_245, %c0_246] : memref<2x128x64xf32, #tpu.memory_space<vmem>>, vector<1x128x64xf32>
    %288 = vector.shape_cast %287 : vector<1x128x64xf32> to vector<128x64xf32>
    %cst_247 = arith.constant dense<0.000000e+00> : vector<4x64xf32>
    %289 = tpu.matmul %283, %288, %cst_247 {dimension_numbers = #tpu.dot_dimension_numbers<[1], [0], [0], [1], [0, 0, 1, 1], [], []>} : vector<4x128xf32>, vector<128x64xf32>, vector<4x64xf32> -> vector<4x64xf32>
    %290 = arith.maximumf %286, %289 : vector<4x64xf32>
    %c0_248 = arith.constant 0 : index
    %c0_249 = arith.constant 0 : index
    %c0_250 = arith.constant 0 : index
    %291 = vector.load %arg27[%c0_248, %c0_249, %c0_250] : memref<2x4x4xf32, #tpu.memory_space<vmem>>, vector<1x4x4xf32>
    %292 = vector.shape_cast %291 : vector<1x4x4xf32> to vector<4x4xf32>
    %cst_251 = arith.constant dense<0.000000e+00> : vector<4x64xf32>
    %293 = tpu.matmul %292, %290, %cst_251 {dimension_numbers = #tpu.dot_dimension_numbers<[1], [0], [0], [1], [0, 0, 1, 1], [], []>} : vector<4x4xf32>, vector<4x64xf32>, vector<4x64xf32> -> vector<4x64xf32>
    %c1_252 = arith.constant 1 : index
    %c0_253 = arith.constant 0 : index
    %c0_254 = arith.constant 0 : index
    %294 = vector.load %arg27[%c1_252, %c0_253, %c0_254] : memref<2x4x4xf32, #tpu.memory_space<vmem>>, vector<1x4x4xf32>
    %295 = vector.shape_cast %294 : vector<1x4x4xf32> to vector<4x4xf32>
    %cst_255 = arith.constant dense<0.000000e+00> : vector<4x64xf32>
    %296 = tpu.matmul %295, %290, %cst_255 {dimension_numbers = #tpu.dot_dimension_numbers<[1], [0], [0], [1], [0, 0, 1, 1], [], []>} : vector<4x4xf32>, vector<4x64xf32>, vector<4x64xf32> -> vector<4x64xf32>
    %c0_256 = arith.constant 0 : index
    %c0_257 = arith.constant 0 : index
    %c0_258 = arith.constant 0 : index
    %297 = vector.load %arg28[%c0_256, %c0_257, %c0_258] : memref<3x64x64xf32, #tpu.memory_space<vmem>>, vector<1x64x64xf32>
    %298 = vector.shape_cast %297 : vector<1x64x64xf32> to vector<64x64xf32>
    %cst_259 = arith.constant dense<0.000000e+00> : vector<4x64xf32>
    %299 = tpu.matmul %293, %298, %cst_259 {dimension_numbers = #tpu.dot_dimension_numbers<[1], [0], [0], [1], [0, 0, 1, 1], [], []>} : vector<4x64xf32>, vector<64x64xf32>, vector<4x64xf32> -> vector<4x64xf32>
    %c1_260 = arith.constant 1 : index
    %c0_261 = arith.constant 0 : index
    %c0_262 = arith.constant 0 : index
    %300 = vector.load %arg28[%c1_260, %c0_261, %c0_262] : memref<3x64x64xf32, #tpu.memory_space<vmem>>, vector<1x64x64xf32>
    %301 = vector.shape_cast %300 : vector<1x64x64xf32> to vector<64x64xf32>
    %cst_263 = arith.constant dense<0.000000e+00> : vector<4x64xf32>
    %302 = tpu.matmul %290, %301, %cst_263 {dimension_numbers = #tpu.dot_dimension_numbers<[1], [0], [0], [1], [0, 0, 1, 1], [], []>} : vector<4x64xf32>, vector<64x64xf32>, vector<4x64xf32> -> vector<4x64xf32>
    %303 = arith.addf %299, %302 : vector<4x64xf32>
    %c2_264 = arith.constant 2 : index
    %c0_265 = arith.constant 0 : index
    %c0_266 = arith.constant 0 : index
    %304 = vector.load %arg28[%c2_264, %c0_265, %c0_266] : memref<3x64x64xf32, #tpu.memory_space<vmem>>, vector<1x64x64xf32>
    %305 = vector.shape_cast %304 : vector<1x64x64xf32> to vector<64x64xf32>
    %cst_267 = arith.constant dense<0.000000e+00> : vector<4x64xf32>
    %306 = tpu.matmul %296, %305, %cst_267 {dimension_numbers = #tpu.dot_dimension_numbers<[1], [0], [0], [1], [0, 0, 1, 1], [], []>} : vector<4x64xf32>, vector<64x64xf32>, vector<4x64xf32> -> vector<4x64xf32>
    %307 = arith.addf %303, %306 : vector<4x64xf32>
    %cst_268 = arith.constant dense<0.000000e+00> : vector<64xf32>
    %308 = vector.multi_reduction <add>, %307, %cst_268 [0] : vector<4x64xf32> to vector<64xf32>
    %309 = vector.shape_cast %308 : vector<64xf32> to vector<1x64xf32>
    %310 = arith.mulf %307, %307 : vector<4x64xf32>
    %cst_269 = arith.constant dense<0.000000e+00> : vector<64xf32>
    %311 = vector.multi_reduction <add>, %310, %cst_269 [0] : vector<4x64xf32> to vector<64xf32>
    %312 = vector.shape_cast %311 : vector<64xf32> to vector<1x64xf32>
    %c0_270 = arith.constant 0 : index
    %c0_271 = arith.constant 0 : index
    %313 = vector.load %arg29[%c0_270, %c0_271] : memref<64x64xf32, #tpu.memory_space<vmem>>, vector<64x64xf32>
    %cst_272 = arith.constant dense<0.000000e+00> : vector<1x64xf32>
    %314 = tpu.matmul %309, %313, %cst_272 {dimension_numbers = #tpu.dot_dimension_numbers<[1], [0], [0], [1], [0, 0, 1, 1], [], []>} : vector<1x64xf32>, vector<64x64xf32>, vector<1x64xf32> -> vector<1x64xf32>
    %c0_273 = arith.constant 0 : index
    %c0_274 = arith.constant 0 : index
    %315 = vector.load %arg29[%c0_273, %c0_274] : memref<64x64xf32, #tpu.memory_space<vmem>>, vector<64x64xf32>
    %cst_275 = arith.constant dense<0.000000e+00> : vector<1x64xf32>
    %316 = tpu.matmul %312, %315, %cst_275 {dimension_numbers = #tpu.dot_dimension_numbers<[1], [0], [0], [1], [0, 0, 1, 1], [], []>} : vector<1x64xf32>, vector<64x64xf32>, vector<1x64xf32> -> vector<1x64xf32>
    %317 = arith.mulf %314, %314 : vector<1x64xf32>
    %318 = arith.subf %316, %317 : vector<1x64xf32>
    %cst_276 = arith.constant 0.000000e+00 : f32
    %319 = vector.broadcast %cst_276 : f32 to vector<1x64xf32>
    %320 = arith.maximumf %318, %319 : vector<1x64xf32>
    %321 = vector.broadcast %314 : vector<1x64xf32> to vector<4x64xf32>
    %322 = arith.subf %307, %321 : vector<4x64xf32>
    %cst_277 = arith.constant 9.99999974E-6 : f32
    %323 = vector.broadcast %cst_277 : f32 to vector<1x64xf32>
    %324 = arith.addf %320, %323 : vector<1x64xf32>
    %325 = math.rsqrt %324 : vector<1x64xf32>
    %326 = vector.broadcast %325 : vector<1x64xf32> to vector<4x64xf32>
    %327 = arith.mulf %322, %326 : vector<4x64xf32>
    %cst_278 = arith.constant 0.000000e+00 : f32
    %328 = vector.broadcast %cst_278 : f32 to vector<4x64xf32>
    %329 = arith.maximumf %327, %328 : vector<4x64xf32>
    %c0_279 = arith.constant 0 : index
    %c0_280 = arith.constant 0 : index
    %c0_281 = arith.constant 0 : index
    %330 = vector.load %arg30[%c0_279, %c0_280, %c0_281] : memref<2x4x4xf32, #tpu.memory_space<vmem>>, vector<1x4x4xf32>
    %331 = vector.shape_cast %330 : vector<1x4x4xf32> to vector<4x4xf32>
    %cst_282 = arith.constant dense<0.000000e+00> : vector<4x64xf32>
    %332 = tpu.matmul %331, %329, %cst_282 {dimension_numbers = #tpu.dot_dimension_numbers<[1], [0], [0], [1], [0, 0, 1, 1], [], []>} : vector<4x4xf32>, vector<4x64xf32>, vector<4x64xf32> -> vector<4x64xf32>
    %c1_283 = arith.constant 1 : index
    %c0_284 = arith.constant 0 : index
    %c0_285 = arith.constant 0 : index
    %333 = vector.load %arg30[%c1_283, %c0_284, %c0_285] : memref<2x4x4xf32, #tpu.memory_space<vmem>>, vector<1x4x4xf32>
    %334 = vector.shape_cast %333 : vector<1x4x4xf32> to vector<4x4xf32>
    %cst_286 = arith.constant dense<0.000000e+00> : vector<4x64xf32>
    %335 = tpu.matmul %334, %329, %cst_286 {dimension_numbers = #tpu.dot_dimension_numbers<[1], [0], [0], [1], [0, 0, 1, 1], [], []>} : vector<4x4xf32>, vector<4x64xf32>, vector<4x64xf32> -> vector<4x64xf32>
    %c0_287 = arith.constant 0 : index
    %c0_288 = arith.constant 0 : index
    %c0_289 = arith.constant 0 : index
    %336 = vector.load %arg31[%c0_287, %c0_288, %c0_289] : memref<3x64x64xf32, #tpu.memory_space<vmem>>, vector<1x64x64xf32>
    %337 = vector.shape_cast %336 : vector<1x64x64xf32> to vector<64x64xf32>
    %cst_290 = arith.constant dense<0.000000e+00> : vector<4x64xf32>
    %338 = tpu.matmul %332, %337, %cst_290 {dimension_numbers = #tpu.dot_dimension_numbers<[1], [0], [0], [1], [0, 0, 1, 1], [], []>} : vector<4x64xf32>, vector<64x64xf32>, vector<4x64xf32> -> vector<4x64xf32>
    %c1_291 = arith.constant 1 : index
    %c0_292 = arith.constant 0 : index
    %c0_293 = arith.constant 0 : index
    %339 = vector.load %arg31[%c1_291, %c0_292, %c0_293] : memref<3x64x64xf32, #tpu.memory_space<vmem>>, vector<1x64x64xf32>
    %340 = vector.shape_cast %339 : vector<1x64x64xf32> to vector<64x64xf32>
    %cst_294 = arith.constant dense<0.000000e+00> : vector<4x64xf32>
    %341 = tpu.matmul %329, %340, %cst_294 {dimension_numbers = #tpu.dot_dimension_numbers<[1], [0], [0], [1], [0, 0, 1, 1], [], []>} : vector<4x64xf32>, vector<64x64xf32>, vector<4x64xf32> -> vector<4x64xf32>
    %342 = arith.addf %338, %341 : vector<4x64xf32>
    %c2_295 = arith.constant 2 : index
    %c0_296 = arith.constant 0 : index
    %c0_297 = arith.constant 0 : index
    %343 = vector.load %arg31[%c2_295, %c0_296, %c0_297] : memref<3x64x64xf32, #tpu.memory_space<vmem>>, vector<1x64x64xf32>
    %344 = vector.shape_cast %343 : vector<1x64x64xf32> to vector<64x64xf32>
    %cst_298 = arith.constant dense<0.000000e+00> : vector<4x64xf32>
    %345 = tpu.matmul %335, %344, %cst_298 {dimension_numbers = #tpu.dot_dimension_numbers<[1], [0], [0], [1], [0, 0, 1, 1], [], []>} : vector<4x64xf32>, vector<64x64xf32>, vector<4x64xf32> -> vector<4x64xf32>
    %346 = arith.addf %342, %345 : vector<4x64xf32>
    %cst_299 = arith.constant dense<0.000000e+00> : vector<64xf32>
    %347 = vector.multi_reduction <add>, %346, %cst_299 [0] : vector<4x64xf32> to vector<64xf32>
    %348 = vector.shape_cast %347 : vector<64xf32> to vector<1x64xf32>
    %349 = arith.mulf %346, %346 : vector<4x64xf32>
    %cst_300 = arith.constant dense<0.000000e+00> : vector<64xf32>
    %350 = vector.multi_reduction <add>, %349, %cst_300 [0] : vector<4x64xf32> to vector<64xf32>
    %351 = vector.shape_cast %350 : vector<64xf32> to vector<1x64xf32>
    %c0_301 = arith.constant 0 : index
    %c0_302 = arith.constant 0 : index
    %352 = vector.load %arg32[%c0_301, %c0_302] : memref<64x64xf32, #tpu.memory_space<vmem>>, vector<64x64xf32>
    %cst_303 = arith.constant dense<0.000000e+00> : vector<1x64xf32>
    %353 = tpu.matmul %348, %352, %cst_303 {dimension_numbers = #tpu.dot_dimension_numbers<[1], [0], [0], [1], [0, 0, 1, 1], [], []>} : vector<1x64xf32>, vector<64x64xf32>, vector<1x64xf32> -> vector<1x64xf32>
    %c0_304 = arith.constant 0 : index
    %c0_305 = arith.constant 0 : index
    %354 = vector.load %arg32[%c0_304, %c0_305] : memref<64x64xf32, #tpu.memory_space<vmem>>, vector<64x64xf32>
    %cst_306 = arith.constant dense<0.000000e+00> : vector<1x64xf32>
    %355 = tpu.matmul %351, %354, %cst_306 {dimension_numbers = #tpu.dot_dimension_numbers<[1], [0], [0], [1], [0, 0, 1, 1], [], []>} : vector<1x64xf32>, vector<64x64xf32>, vector<1x64xf32> -> vector<1x64xf32>
    %356 = arith.mulf %353, %353 : vector<1x64xf32>
    %357 = arith.subf %355, %356 : vector<1x64xf32>
    %cst_307 = arith.constant 0.000000e+00 : f32
    %358 = vector.broadcast %cst_307 : f32 to vector<1x64xf32>
    %359 = arith.maximumf %357, %358 : vector<1x64xf32>
    %360 = vector.broadcast %353 : vector<1x64xf32> to vector<4x64xf32>
    %361 = arith.subf %346, %360 : vector<4x64xf32>
    %cst_308 = arith.constant 9.99999974E-6 : f32
    %362 = vector.broadcast %cst_308 : f32 to vector<1x64xf32>
    %363 = arith.addf %359, %362 : vector<1x64xf32>
    %364 = math.rsqrt %363 : vector<1x64xf32>
    %365 = vector.broadcast %364 : vector<1x64xf32> to vector<4x64xf32>
    %366 = arith.mulf %361, %365 : vector<4x64xf32>
    %cst_309 = arith.constant 0.000000e+00 : f32
    %367 = vector.broadcast %cst_309 : f32 to vector<4x64xf32>
    %368 = arith.maximumf %366, %367 : vector<4x64xf32>
    %c0_310 = arith.constant 0 : index
    %c0_311 = arith.constant 0 : index
    %c0_312 = arith.constant 0 : index
    %369 = vector.load %arg33[%c0_310, %c0_311, %c0_312] : memref<2x2x4xf32, #tpu.memory_space<vmem>>, vector<1x2x4xf32>
    %370 = vector.shape_cast %369 : vector<1x2x4xf32> to vector<2x4xf32>
    %cst_313 = arith.constant dense<0.000000e+00> : vector<2x64xf32>
    %371 = tpu.matmul %370, %368, %cst_313 {dimension_numbers = #tpu.dot_dimension_numbers<[1], [0], [0], [1], [0, 0, 1, 1], [], []>} : vector<2x4xf32>, vector<4x64xf32>, vector<2x64xf32> -> vector<2x64xf32>
    %c1_314 = arith.constant 1 : index
    %c0_315 = arith.constant 0 : index
    %c0_316 = arith.constant 0 : index
    %372 = vector.load %arg33[%c1_314, %c0_315, %c0_316] : memref<2x2x4xf32, #tpu.memory_space<vmem>>, vector<1x2x4xf32>
    %373 = vector.shape_cast %372 : vector<1x2x4xf32> to vector<2x4xf32>
    %cst_317 = arith.constant dense<0.000000e+00> : vector<2x64xf32>
    %374 = tpu.matmul %373, %368, %cst_317 {dimension_numbers = #tpu.dot_dimension_numbers<[1], [0], [0], [1], [0, 0, 1, 1], [], []>} : vector<2x4xf32>, vector<4x64xf32>, vector<2x64xf32> -> vector<2x64xf32>
    %375 = arith.maximumf %371, %374 : vector<2x64xf32>
    %c0_318 = arith.constant 0 : index
    %c0_319 = arith.constant 0 : index
    %c0_320 = arith.constant 0 : index
    %376 = vector.load %arg34[%c0_318, %c0_319, %c0_320] : memref<2x64x32xf32, #tpu.memory_space<vmem>>, vector<1x64x32xf32>
    %377 = vector.shape_cast %376 : vector<1x64x32xf32> to vector<64x32xf32>
    %cst_321 = arith.constant dense<0.000000e+00> : vector<2x32xf32>
    %378 = tpu.matmul %375, %377, %cst_321 {dimension_numbers = #tpu.dot_dimension_numbers<[1], [0], [0], [1], [0, 0, 1, 1], [], []>} : vector<2x64xf32>, vector<64x32xf32>, vector<2x32xf32> -> vector<2x32xf32>
    %c1_322 = arith.constant 1 : index
    %c0_323 = arith.constant 0 : index
    %c0_324 = arith.constant 0 : index
    %379 = vector.load %arg34[%c1_322, %c0_323, %c0_324] : memref<2x64x32xf32, #tpu.memory_space<vmem>>, vector<1x64x32xf32>
    %380 = vector.shape_cast %379 : vector<1x64x32xf32> to vector<64x32xf32>
    %cst_325 = arith.constant dense<0.000000e+00> : vector<2x32xf32>
    %381 = tpu.matmul %375, %380, %cst_325 {dimension_numbers = #tpu.dot_dimension_numbers<[1], [0], [0], [1], [0, 0, 1, 1], [], []>} : vector<2x64xf32>, vector<64x32xf32>, vector<2x32xf32> -> vector<2x32xf32>
    %382 = arith.maximumf %378, %381 : vector<2x32xf32>
    %c0_326 = arith.constant 0 : index
    %c0_327 = arith.constant 0 : index
    %383 = vector.load %arg35[%c0_326, %c0_327] : memref<32x10xf32, #tpu.memory_space<vmem>>, vector<32x10xf32>
    %cst_328 = arith.constant dense<0.000000e+00> : vector<2x10xf32>
    %384 = tpu.matmul %382, %383, %cst_328 {dimension_numbers = #tpu.dot_dimension_numbers<[1], [0], [0], [1], [0, 0, 1, 1], [], []>} : vector<2x32xf32>, vector<32x10xf32>, vector<2x10xf32> -> vector<2x10xf32>
    %c0_329 = arith.constant 0 : index
    %c0_330 = arith.constant 0 : index
    %385 = vector.load %arg36[%c0_329, %c0_330] : memref<1x10xf32, #tpu.memory_space<vmem>>, vector<1x10xf32>
    %386 = vector.broadcast %385 : vector<1x10xf32> to vector<2x10xf32>
    %387 = arith.addf %384, %386 : vector<2x10xf32>
    %c0_331 = arith.constant 0 : index
    %c0_332 = arith.constant 0 : index
    %388 = vector.load %arg37[%c0_331, %c0_332] : memref<2x10xf32, #tpu.memory_space<vmem>>, vector<2x10xf32>
    tpu.vector_store %arg37[%c0_331, %c0_332], %387 {strides = array<i32>} : memref<2x10xf32, #tpu.memory_space<vmem>>, vector<2x10xf32>,
    return
  }
}

</mosaic_0001>

<llo_original>
// kernel: tpu_custom_call.1
$region0: #{tpu_custom_call.1}
  #allocation0 [shape = 'u32[]', space=smem, size = 0x4, offset = 0x4, fixed_abs, tag = 'smem constant byte address 0x4 - core index']
  #allocation1 [shape = 'u32[144,128]{1,0:T(1,128)}', space=vmem, size = 0x12000, scoped, tag = 'internal scratch']
  %s0 = inlined_call_operand.smem [shape: u32[38], index: -1, kind: input, shape index: {}]
  %s1 = sld [smem:[%s0]]
  %s2 = scalar_lea.smem %s0, 1
  %s3 = sld [smem:[%s2]]
  %s4 = scalar_lea.smem %s0, 2
  %s5 = sld [smem:[%s4]]
  %s6 = scalar_lea.smem %s0, 3
  %s7 = sld [smem:[%s6]]
  %s8 = scalar_lea.smem %s0, 4
  %s9 = sld [smem:[%s8]]
  %s10 = scalar_lea.smem %s0, 5
  %s11 = sld [smem:[%s10]]
  %s12 = scalar_lea.smem %s0, 6
  %s13 = sld [smem:[%s12]]
  %s14 = scalar_lea.smem %s0, 7
  %s15 = sld [smem:[%s14]]
  %s16 = scalar_lea.smem %s0, 8
  %s17 = sld [smem:[%s16]]
  %s18 = scalar_lea.smem %s0, 9
  %s19 = sld [smem:[%s18]]
  %s20 = scalar_lea.smem %s0, 10
  %s21 = sld [smem:[%s20]]
  %s22 = scalar_lea.smem %s0, 11
  %s23 = sld [smem:[%s22]]
  %s24 = scalar_lea.smem %s0, 12
  %s25 = sld [smem:[%s24]]
  %s26 = scalar_lea.smem %s0, 13
  %s27 = sld [smem:[%s26]]
  %s28 = scalar_lea.smem %s0, 14
  %s29 = sld [smem:[%s28]]
  %s30 = scalar_lea.smem %s0, 15
  %s31 = sld [smem:[%s30]]
  %s32 = scalar_lea.smem %s0, 16
  %s33 = sld [smem:[%s32]]
  %s34 = scalar_lea.smem %s0, 17
  %s35 = sld [smem:[%s34]]
  %s36 = scalar_lea.smem %s0, 18
  %s37 = sld [smem:[%s36]]
  %s38 = scalar_lea.smem %s0, 19
  %s39 = sld [smem:[%s38]]
  %s40 = scalar_lea.smem %s0, 20
  %s41 = sld [smem:[%s40]]
  %s42 = scalar_lea.smem %s0, 21
  %s43 = sld [smem:[%s42]]
  %s44 = scalar_lea.smem %s0, 22
  %s45 = sld [smem:[%s44]]
  %s46 = scalar_lea.smem %s0, 23
  %s47 = sld [smem:[%s46]]
  %s48 = scalar_lea.smem %s0, 24
  %s49 = sld [smem:[%s48]]
  %s50 = scalar_lea.smem %s0, 25
  %s51 = sld [smem:[%s50]]
  %s52 = scalar_lea.smem %s0, 26
  %s53 = sld [smem:[%s52]]
  %s54 = scalar_lea.smem %s0, 27
  %s55 = sld [smem:[%s54]]
  %s56 = scalar_lea.smem %s0, 28
  %s57 = sld [smem:[%s56]]
  %s58 = scalar_lea.smem %s0, 29
  %s59 = sld [smem:[%s58]]
  %s60 = scalar_lea.smem %s0, 30
  %s61 = sld [smem:[%s60]]
  %s62 = scalar_lea.smem %s0, 31
  %s63 = sld [smem:[%s62]]
  %s64 = scalar_lea.smem %s0, 32
  %s65 = sld [smem:[%s64]]
  %s66 = scalar_lea.smem %s0, 33
  %s67 = sld [smem:[%s66]]
  %s68 = scalar_lea.smem %s0, 34
  %s69 = sld [smem:[%s68]]
  %s70 = scalar_lea.smem %s0, 35
  %s71 = sld [smem:[%s70]]
  %s72 = scalar_lea.smem %s0, 36
  %s73 = sld [smem:[%s72]]
  %s74 = scalar_lea.smem %s0, 37
  %s75 = sld [smem:[%s74]]
  %s76 = sld [smem:[#allocation0]]
  $region246: #{tpu_custom_call.1} parent=0
    _
  %s78 = ssub.s32 1, %s76
  %s79 = scalar_select 0, %s78, %s76
  $region1: #{tpu_custom_call.1} parent=0
    #allocation2 [shape = 'u8[32768]{0}', space=vmem, size = 0x8000, scoped, tag = 'input window, operand 0, single buffered']
    #allocation3 [shape = 's32[1]{0}', space=sflag, size = 0x4, scoped, tag = 'scoped memory for tpu_custom_call.1']
    #allocation4 [shape = 's32[1]{0}', space=sflag, size = 0x4, scoped, tag = 'scoped memory for tpu_custom_call.1']
    #allocation5 [shape = 'u8[65536]{0}', space=vmem, size = 0x10000, scoped, tag = 'input window, operand 1, single buffered']
    #allocation6 [shape = 's32[1]{0}', space=sflag, size = 0x4, scoped, tag = 'scoped memory for tpu_custom_call.1']
    #allocation7 [shape = 'u8[65536]{0}', space=vmem, size = 0x10000, scoped, tag = 'input window, operand 3, single buffered']
    #allocation8 [shape = 'u8[32768]{0}', space=vmem, size = 0x8000, scoped, tag = 'input window, operand 4, single buffered']
    #allocation9 [shape = 's32[1]{0}', space=sflag, size = 0x4, scoped, tag = 'scoped memory for tpu_custom_call.1']
    #allocation10 [shape = 'u8[32768]{0}', space=vmem, size = 0x8000, scoped, tag = 'input window, operand 6, single buffered']
    #allocation11 [shape = 'u8[65536]{0}', space=vmem, size = 0x10000, scoped, tag = 'input window, operand 8, single buffered']
    #allocation12 [shape = 's32[1]{0}', space=sflag, size = 0x4, scoped, tag = 'scoped memory for tpu_custom_call.1']
    #allocation13 [shape = 'u8[16384]{0}', space=vmem, size = 0x4000, scoped, tag = 'input window, operand 9, single buffered']
    #allocation14 [shape = 'u8[16384]{0}', space=vmem, size = 0x4000, scoped, tag = 'input window, operand 11, single buffered']
    #allocation15 [shape = 's32[1]{0}', space=sflag, size = 0x4, scoped, tag = 'scoped memory for tpu_custom_call.1']
    #allocation16 [shape = 'u8[65536]{0}', space=vmem, size = 0x10000, scoped, tag = 'input window, operand 13, single buffered']
    #allocation17 [shape = 'u8[16384]{0}', space=vmem, size = 0x4000, scoped, tag = 'input window, operand 14, single buffered']
    #allocation18 [shape = 's32[1]{0}', space=sflag, size = 0x4, scoped, tag = 'scoped memory for tpu_custom_call.1']
    #allocation19 [shape = 'u8[65536]{0}', space=vmem, size = 0x10000, scoped, tag = 'input window, operand 16, single buffered']
    #allocation20 [shape = 'u8[8192]{0}', space=vmem, size = 0x2000, scoped, tag = 'input window, operand 17, single buffered']
    #allocation21 [shape = 's32[1]{0}', space=sflag, size = 0x4, scoped, tag = 'scoped memory for tpu_custom_call.1']
    #allocation22 [shape = 'u8[8192]{0}', space=vmem, size = 0x2000, scoped, tag = 'input window, operand 19, single buffered']
    #allocation23 [shape = 'u8[65536]{0}', space=vmem, size = 0x10000, scoped, tag = 'input window, operand 21, single buffered']
    #allocation24 [shape = 's32[1]{0}', space=sflag, size = 0x4, scoped, tag = 'scoped memory for tpu_custom_call.1']
    #allocation25 [shape = 'u8[8192]{0}', space=vmem, size = 0x2000, scoped, tag = 'input window, operand 22, single buffered']
    #allocation26 [shape = 'u8[65536]{0}', space=vmem, size = 0x10000, scoped, tag = 'input window, operand 24, single buffered']
    #allocation27 [shape = 's32[1]{0}', space=sflag, size = 0x4, scoped, tag = 'scoped memory for tpu_custom_call.1']
    #allocation28 [shape = 'u8[4096]{0}', space=vmem, size = 0x1000, scoped, tag = 'input window, operand 25, single buffered']
    #allocation29 [shape = 'u8[4096]{0}', space=vmem, size = 0x1000, scoped, tag = 'input window, operand 27, single buffered']
    #allocation30 [shape = 's32[1]{0}', space=sflag, size = 0x4, scoped, tag = 'scoped memory for tpu_custom_call.1']
    #allocation31 [shape = 'u8[32768]{0}', space=vmem, size = 0x8000, scoped, tag = 'input window, operand 29, single buffered']
    #allocation32 [shape = 'u8[4096]{0}', space=vmem, size = 0x1000, scoped, tag = 'input window, operand 30, single buffered']
    #allocation33 [shape = 's32[1]{0}', space=sflag, size = 0x4, scoped, tag = 'scoped memory for tpu_custom_call.1']
    #allocation34 [shape = 'u8[98304]{0}', space=vmem, size = 0x18000, scoped, tag = 'input window, operand 31, single buffered']
    #allocation35 [shape = 'u8[2048]{0}', space=vmem, size = 0x800, scoped, tag = 'input window, operand 33, single buffered']
    #allocation36 [shape = 's32[1]{0}', space=sflag, size = 0x4, scoped, tag = 'scoped memory for tpu_custom_call.1']
    #allocation37 [shape = 'u8[1024]{0}', space=vmem, size = 0x400, scoped, tag = 'output window, operand 0, single buffered']
    %80 = vsyncpa [#allocation3], 0
    %81 = vsyncpa [#allocation6], 0
    %82 = vsyncpa [#allocation9], 0
    %83 = vsyncpa [#allocation12], 0
    %84 = vsyncpa [#allocation15], 0
    %85 = vsyncpa [#allocation18], 0
    %86 = vsyncpa [#allocation21], 0
    %87 = vsyncpa [#allocation24], 0
    %88 = vsyncpa [#allocation27], 0
    %89 = vsyncpa [#allocation30], 0
    %90 = vsyncpa [#allocation33], 0
    %91 = vsyncpa [#allocation36], 0
    %92 = vsyncpa [#allocation4], 0
    // Predicated region
    $region2: #{tpu_custom_call.1} parent=1 // pred_check
      _
    $region3: #{tpu_custom_call.1} parent=1 // pred_check_branch
      %94 = sbr.rel (0) target = $region5
    $region4: #{tpu_custom_call.1} parent=1 // pred_region
      %s96 = ssub.s32 1024, 1024
      %97 = vsyncadd [#allocation3], %s96
      %s98 = sshll.u32 [#allocation2], 4
      %s99 = int_to_ptr.vmem [resolvable:$true] %s98
      %104 = dma.hbm_to_vmem [thread:$0]  %s1, 1024, %s99, [#allocation3], 128, 128, 8
    $region5: #{tpu_custom_call.1} parent=1 // pred_fallthru
      _
    // Predicated region
    $region6: #{tpu_custom_call.1} parent=1 // pred_check
      _
    $region7: #{tpu_custom_call.1} parent=1 // pred_check_branch
      %106 = sbr.rel (0) target = $region9
    $region8: #{tpu_custom_call.1} parent=1 // pred_region
      %s108 = ssub.s32 2048, 2048
      %109 = vsyncadd [#allocation6], %s108
      %s110 = sshll.u32 [#allocation5], 4
      %s111 = int_to_ptr.vmem [resolvable:$true] %s110
      %116 = dma.hbm_to_vmem [thread:$0]  %s3, 2048, %s111, [#allocation6], 128, 128, 8
    $region9: #{tpu_custom_call.1} parent=1 // pred_fallthru
      _
    // Predicated region
    $region10: #{tpu_custom_call.1} parent=1 // pred_check
      _
    $region11: #{tpu_custom_call.1} parent=1 // pred_check_branch
      %118 = sbr.rel (0) target = $region13
    $region12: #{tpu_custom_call.1} parent=1 // pred_region
      _
    $region13: #{tpu_custom_call.1} parent=1 // pred_fallthru
      _
    // Predicated region
    $region14: #{tpu_custom_call.1} parent=1 // pred_check
      _
    $region15: #{tpu_custom_call.1} parent=1 // pred_check_branch
      %120 = sbr.rel (0) target = $region17
    $region16: #{tpu_custom_call.1} parent=1 // pred_region
      %s122 = ssub.s32 2048, 2048
      %123 = vsyncadd [#allocation6], %s122
      %s124 = sshll.u32 [#allocation7], 4
      %s125 = int_to_ptr.vmem [resolvable:$true] %s124
      %130 = dma.hbm_to_vmem [thread:$0]  %s7, 2048, %s125, [#allocation6], 128, 128, 8
    $region17: #{tpu_custom_call.1} parent=1 // pred_fallthru
      _
    // Predicated region
    $region18: #{tpu_custom_call.1} parent=1 // pred_check
      _
    $region19: #{tpu_custom_call.1} parent=1 // pred_check_branch
      %132 = sbr.rel (0) target = $region21
    $region20: #{tpu_custom_call.1} parent=1 // pred_region
      %s134 = ssub.s32 1024, 1024
      %135 = vsyncadd [#allocation9], %s134
      %s136 = sshll.u32 [#allocation8], 4
      %s137 = int_to_ptr.vmem [resolvable:$true] %s136
      %142 = dma.hbm_to_vmem [thread:$0]  %s9, 1024, %s137, [#allocation9], 128, 128, 8
    $region21: #{tpu_custom_call.1} parent=1 // pred_fallthru
      _
    // Predicated region
    $region22: #{tpu_custom_call.1} parent=1 // pred_check
      _
    $region23: #{tpu_custom_call.1} parent=1 // pred_check_branch
      %144 = sbr.rel (0) target = $region25
    $region24: #{tpu_custom_call.1} parent=1 // pred_region
      _
    $region25: #{tpu_custom_call.1} parent=1 // pred_fallthru
      _
    // Predicated region
    $region26: #{tpu_custom_call.1} parent=1 // pred_check
      _
    $region27: #{tpu_custom_call.1} parent=1 // pred_check_branch
      %146 = sbr.rel (0) target = $region29
    $region28: #{tpu_custom_call.1} parent=1 // pred_region
      %s148 = ssub.s32 1024, 1024
      %149 = vsyncadd [#allocation9], %s148
      %s150 = sshll.u32 [#allocation10], 4
      %s151 = int_to_ptr.vmem [resolvable:$true] %s150
      %156 = dma.hbm_to_vmem [thread:$0]  %s13, 1024, %s151, [#allocation9], 128, 128, 8
    $region29: #{tpu_custom_call.1} parent=1 // pred_fallthru
      _
    // Predicated region
    $region30: #{tpu_custom_call.1} parent=1 // pred_check
      _
    $region31: #{tpu_custom_call.1} parent=1 // pred_check_branch
      %158 = sbr.rel (0) target = $region33
    $region32: #{tpu_custom_call.1} parent=1 // pred_region
      _
    $region33: #{tpu_custom_call.1} parent=1 // pred_fallthru
      _
    // Predicated region
    $region34: #{tpu_custom_call.1} parent=1 // pred_check
      _
    $region35: #{tpu_custom_call.1} parent=1 // pred_check_branch
      %160 = sbr.rel (0) target = $region37
    $region36: #{tpu_custom_call.1} parent=1 // pred_region
      %s162 = ssub.s32 2048, 2048
      %163 = vsyncadd [#allocation12], %s162
      %s164 = sshll.u32 [#allocation11], 4
      %s165 = int_to_ptr.vmem [resolvable:$true] %s164
      %170 = dma.hbm_to_vmem [thread:$0]  %s17, 2048, %s165, [#allocation12], 128, 128, 8
    $region37: #{tpu_custom_call.1} parent=1 // pred_fallthru
      _
    // Predicated region
    $region38: #{tpu_custom_call.1} parent=1 // pred_check
      _
    $region39: #{tpu_custom_call.1} parent=1 // pred_check_branch
      %172 = sbr.rel (0) target = $region41
    $region40: #{tpu_custom_call.1} parent=1 // pred_region
      %s174 = ssub.s32 512, 512
      %175 = vsyncadd [#allocation12], %s174
      %s176 = sshll.u32 [#allocation13], 4
      %s177 = int_to_ptr.vmem [resolvable:$true] %s176
      %182 = dma.hbm_to_vmem [thread:$0]  %s19, 512, %s177, [#allocation12], 128, 128, 8
    $region41: #{tpu_custom_call.1} parent=1 // pred_fallthru
      _
    // Predicated region
    $region42: #{tpu_custom_call.1} parent=1 // pred_check
      _
    $region43: #{tpu_custom_call.1} parent=1 // pred_check_branch
      %184 = sbr.rel (0) target = $region45
    $region44: #{tpu_custom_call.1} parent=1 // pred_region
      _
    $region45: #{tpu_custom_call.1} parent=1 // pred_fallthru
      _
    // Predicated region
    $region46: #{tpu_custom_call.1} parent=1 // pred_check
      _
    $region47: #{tpu_custom_call.1} parent=1 // pred_check_branch
      %186 = sbr.rel (0) target = $region49
    $region48: #{tpu_custom_call.1} parent=1 // pred_region
      %s188 = ssub.s32 512, 512
      %189 = vsyncadd [#allocation15], %s188
      %s190 = sshll.u32 [#allocation14], 4
      %s191 = int_to_ptr.vmem [resolvable:$true] %s190
      %196 = dma.hbm_to_vmem [thread:$0]  %s23, 512, %s191, [#allocation15], 128, 128, 8
    $region49: #{tpu_custom_call.1} parent=1 // pred_fallthru
      _
    // Predicated region
    $region50: #{tpu_custom_call.1} parent=1 // pred_check
      _
    $region51: #{tpu_custom_call.1} parent=1 // pred_check_branch
      %198 = sbr.rel (0) target = $region53
    $region52: #{tpu_custom_call.1} parent=1 // pred_region
      _
    $region53: #{tpu_custom_call.1} parent=1 // pred_fallthru
      _
    // Predicated region
    $region54: #{tpu_custom_call.1} parent=1 // pred_check
      _
    $region55: #{tpu_custom_call.1} parent=1 // pred_check_branch
      %200 = sbr.rel (0) target = $region57
    $region56: #{tpu_custom_call.1} parent=1 // pred_region
      %s202 = ssub.s32 2048, 2048
      %203 = vsyncadd [#allocation15], %s202
      %s204 = sshll.u32 [#allocation16], 4
      %s205 = int_to_ptr.vmem [resolvable:$true] %s204
      %210 = dma.hbm_to_vmem [thread:$0]  %s27, 2048, %s205, [#allocation15], 128, 128, 8
    $region57: #{tpu_custom_call.1} parent=1 // pred_fallthru
      _
    // Predicated region
    $region58: #{tpu_custom_call.1} parent=1 // pred_check
      _
    $region59: #{tpu_custom_call.1} parent=1 // pred_check_branch
      %212 = sbr.rel (0) target = $region61
    $region60: #{tpu_custom_call.1} parent=1 // pred_region
      %s214 = ssub.s32 512, 512
      %215 = vsyncadd [#allocation18], %s214
      %s216 = sshll.u32 [#allocation17], 4
      %s217 = int_to_ptr.vmem [resolvable:$true] %s216
      %222 = dma.hbm_to_vmem [thread:$0]  %s29, 512, %s217, [#allocation18], 128, 128, 8
    $region61: #{tpu_custom_call.1} parent=1 // pred_fallthru
      _
    // Predicated region
    $region62: #{tpu_custom_call.1} parent=1 // pred_check
      _
    $region63: #{tpu_custom_call.1} parent=1 // pred_check_branch
      %224 = sbr.rel (0) target = $region65
    $region64: #{tpu_custom_call.1} parent=1 // pred_region
      _
    $region65: #{tpu_custom_call.1} parent=1 // pred_fallthru
      _
    // Predicated region
    $region66: #{tpu_custom_call.1} parent=1 // pred_check
      _
    $region67: #{tpu_custom_call.1} parent=1 // pred_check_branch
      %226 = sbr.rel (0) target = $region69
    $region68: #{tpu_custom_call.1} parent=1 // pred_region
      %s228 = ssub.s32 2048, 2048
      %229 = vsyncadd [#allocation18], %s228
      %s230 = sshll.u32 [#allocation19], 4
      %s231 = int_to_ptr.vmem [resolvable:$true] %s230
      %236 = dma.hbm_to_vmem [thread:$0]  %s33, 2048, %s231, [#allocation18], 128, 128, 8
    $region69: #{tpu_custom_call.1} parent=1 // pred_fallthru
      _
    // Predicated region
    $region70: #{tpu_custom_call.1} parent=1 // pred_check
      _
    $region71: #{tpu_custom_call.1} parent=1 // pred_check_branch
      %238 = sbr.rel (0) target = $region73
    $region72: #{tpu_custom_call.1} parent=1 // pred_region
      %s240 = ssub.s32 256, 256
      %241 = vsyncadd [#allocation21], %s240
      %s242 = sshll.u32 [#allocation20], 4
      %s243 = int_to_ptr.vmem [resolvable:$true] %s242
      %248 = dma.hbm_to_vmem [thread:$0]  %s35, 256, %s243, [#allocation21], 128, 128, 8
    $region73: #{tpu_custom_call.1} parent=1 // pred_fallthru
      _
    // Predicated region
    $region74: #{tpu_custom_call.1} parent=1 // pred_check
      _
    $region75: #{tpu_custom_call.1} parent=1 // pred_check_branch
      %250 = sbr.rel (0) target = $region77
    $region76: #{tpu_custom_call.1} parent=1 // pred_region
      _
    $region77: #{tpu_custom_call.1} parent=1 // pred_fallthru
      _
    // Predicated region
    $region78: #{tpu_custom_call.1} parent=1 // pred_check
      _
    $region79: #{tpu_custom_call.1} parent=1 // pred_check_branch
      %252 = sbr.rel (0) target = $region81
    $region80: #{tpu_custom_call.1} parent=1 // pred_region
      %s254 = ssub.s32 256, 256
      %255 = vsyncadd [#allocation21], %s254
      %s256 = sshll.u32 [#allocation22], 4
      %s257 = int_to_ptr.vmem [resolvable:$true] %s256
      %262 = dma.hbm_to_vmem [thread:$0]  %s39, 256, %s257, [#allocation21], 128, 128, 8
    $region81: #{tpu_custom_call.1} parent=1 // pred_fallthru
      _
    // Predicated region
    $region82: #{tpu_custom_call.1} parent=1 // pred_check
      _
    $region83: #{tpu_custom_call.1} parent=1 // pred_check_branch
      %264 = sbr.rel (0) target = $region85
    $region84: #{tpu_custom_call.1} parent=1 // pred_region
      _
    $region85: #{tpu_custom_call.1} parent=1 // pred_fallthru
      _
    // Predicated region
    $region86: #{tpu_custom_call.1} parent=1 // pred_check
      _
    $region87: #{tpu_custom_call.1} parent=1 // pred_check_branch
      %266 = sbr.rel (0) target = $region89
    $region88: #{tpu_custom_call.1} parent=1 // pred_region
      %s268 = ssub.s32 2048, 2048
      %269 = vsyncadd [#allocation24], %s268
      %s270 = sshll.u32 [#allocation23], 4
      %s271 = int_to_ptr.vmem [resolvable:$true] %s270
      %276 = dma.hbm_to_vmem [thread:$0]  %s43, 2048, %s271, [#allocation24], 128, 128, 8
    $region89: #{tpu_custom_call.1} parent=1 // pred_fallthru
      _
    // Predicated region
    $region90: #{tpu_custom_call.1} parent=1 // pred_check
      _
    $region91: #{tpu_custom_call.1} parent=1 // pred_check_branch
      %278 = sbr.rel (0) target = $region93
    $region92: #{tpu_custom_call.1} parent=1 // pred_region
      %s280 = ssub.s32 256, 256
      %281 = vsyncadd [#allocation24], %s280
      %s282 = sshll.u32 [#allocation25], 4
      %s283 = int_to_ptr.vmem [resolvable:$true] %s282
      %288 = dma.hbm_to_vmem [thread:$0]  %s45, 256, %s283, [#allocation24], 128, 128, 8
    $region93: #{tpu_custom_call.1} parent=1 // pred_fallthru
      _
    // Predicated region
    $region94: #{tpu_custom_call.1} parent=1 // pred_check
      _
    $region95: #{tpu_custom_call.1} parent=1 // pred_check_branch
      %290 = sbr.rel (0) target = $region97
    $region96: #{tpu_custom_call.1} parent=1 // pred_region
      _
    $region97: #{tpu_custom_call.1} parent=1 // pred_fallthru
      _
    // Predicated region
    $region98: #{tpu_custom_call.1} parent=1 // pred_check
      _
    $region99: #{tpu_custom_call.1} parent=1 // pred_check_branch
      %292 = sbr.rel (0) target = $region101
    $region100: #{tpu_custom_call.1} parent=1 // pred_region
      %s294 = ssub.s32 2048, 2048
      %295 = vsyncadd [#allocation27], %s294
      %s296 = sshll.u32 [#allocation26], 4
      %s297 = int_to_ptr.vmem [resolvable:$true] %s296
      %302 = dma.hbm_to_vmem [thread:$0]  %s49, 2048, %s297, [#allocation27], 128, 128, 8
    $region101: #{tpu_custom_call.1} parent=1 // pred_fallthru
      _
    // Predicated region
    $region102: #{tpu_custom_call.1} parent=1 // pred_check
      _
    $region103: #{tpu_custom_call.1} parent=1 // pred_check_branch
      %304 = sbr.rel (0) target = $region105
    $region104: #{tpu_custom_call.1} parent=1 // pred_region
      %s306 = ssub.s32 128, 128
      %307 = vsyncadd [#allocation27], %s306
      %s308 = sshll.u32 [#allocation28], 4
      %s309 = int_to_ptr.vmem [resolvable:$true] %s308
      %314 = dma.hbm_to_vmem [thread:$0]  %s51, 128, %s309, [#allocation27], 64, 64, 4
    $region105: #{tpu_custom_call.1} parent=1 // pred_fallthru
      _
    // Predicated region
    $region106: #{tpu_custom_call.1} parent=1 // pred_check
      _
    $region107: #{tpu_custom_call.1} parent=1 // pred_check_branch
      %316 = sbr.rel (0) target = $region109
    $region108: #{tpu_custom_call.1} parent=1 // pred_region
      _
    $region109: #{tpu_custom_call.1} parent=1 // pred_fallthru
      _
    // Predicated region
    $region110: #{tpu_custom_call.1} parent=1 // pred_check
      _
    $region111: #{tpu_custom_call.1} parent=1 // pred_check_branch
      %318 = sbr.rel (0) target = $region113
    $region112: #{tpu_custom_call.1} parent=1 // pred_region
      %s320 = ssub.s32 128, 128
      %321 = vsyncadd [#allocation30], %s320
      %s322 = sshll.u32 [#allocation29], 4
      %s323 = int_to_ptr.vmem [resolvable:$true] %s322
      %328 = dma.hbm_to_vmem [thread:$0]  %s55, 128, %s323, [#allocation30], 64, 64, 4
    $region113: #{tpu_custom_call.1} parent=1 // pred_fallthru
      _
    // Predicated region
    $region114: #{tpu_custom_call.1} parent=1 // pred_check
      _
    $region115: #{tpu_custom_call.1} parent=1 // pred_check_branch
      %330 = sbr.rel (0) target = $region117
    $region116: #{tpu_custom_call.1} parent=1 // pred_region
      _
    $region117: #{tpu_custom_call.1} parent=1 // pred_fallthru
      _
    // Predicated region
    $region118: #{tpu_custom_call.1} parent=1 // pred_check
      _
    $region119: #{tpu_custom_call.1} parent=1 // pred_check_branch
      %332 = sbr.rel (0) target = $region121
    $region120: #{tpu_custom_call.1} parent=1 // pred_region
      %s334 = ssub.s32 1024, 1024
      %335 = vsyncadd [#allocation30], %s334
      %s336 = sshll.u32 [#allocation31], 4
      %s337 = int_to_ptr.vmem [resolvable:$true] %s336
      %342 = dma.hbm_to_vmem [thread:$0]  %s59, 1024, %s337, [#allocation30], 128, 128, 8
    $region121: #{tpu_custom_call.1} parent=1 // pred_fallthru
      _
    // Predicated region
    $region122: #{tpu_custom_call.1} parent=1 // pred_check
      _
    $region123: #{tpu_custom_call.1} parent=1 // pred_check_branch
      %344 = sbr.rel (0) target = $region125
    $region124: #{tpu_custom_call.1} parent=1 // pred_region
      %s346 = ssub.s32 128, 128
      %347 = vsyncadd [#allocation33], %s346
      %s348 = sshll.u32 [#allocation32], 4
      %s349 = int_to_ptr.vmem [resolvable:$true] %s348
      %354 = dma.hbm_to_vmem [thread:$0]  %s61, 128, %s349, [#allocation33], 64, 64, 4
    $region125: #{tpu_custom_call.1} parent=1 // pred_fallthru
      _
    // Predicated region
    $region126: #{tpu_custom_call.1} parent=1 // pred_check
      _
    $region127: #{tpu_custom_call.1} parent=1 // pred_check_branch
      %356 = sbr.rel (0) target = $region129
    $region128: #{tpu_custom_call.1} parent=1 // pred_region
      %s358 = ssub.s32 3072, 3072
      %359 = vsyncadd [#allocation33], %s358
      %s360 = sshll.u32 [#allocation34], 4
      %s361 = int_to_ptr.vmem [resolvable:$true] %s360
      %366 = dma.hbm_to_vmem [thread:$0]  %s63, 3072, %s361, [#allocation33], 128, 128, 8
    $region129: #{tpu_custom_call.1} parent=1 // pred_fallthru
      _
    // Predicated region
    $region130: #{tpu_custom_call.1} parent=1 // pred_check
      _
    $region131: #{tpu_custom_call.1} parent=1 // pred_check_branch
      %368 = sbr.rel (0) target = $region133
    $region132: #{tpu_custom_call.1} parent=1 // pred_region
      _
    $region133: #{tpu_custom_call.1} parent=1 // pred_fallthru
      _
    // Predicated region
    $region134: #{tpu_custom_call.1} parent=1 // pred_check
      _
    $region135: #{tpu_custom_call.1} parent=1 // pred_check_branch
      %370 = sbr.rel (0) target = $region137
    $region136: #{tpu_custom_call.1} parent=1 // pred_region
      %s372 = ssub.s32 64, 64
      %373 = vsyncadd [#allocation36], %s372
      %s374 = sshll.u32 [#allocation35], 4
      %s375 = int_to_ptr.vmem [resolvable:$true] %s374
      %380 = dma.hbm_to_vmem [thread:$0]  %s67, 64, %s375, [#allocation36], 32, 32, 2
    $region137: #{tpu_custom_call.1} parent=1 // pred_fallthru
      _
    // Predicated region
    $region138: #{tpu_custom_call.1} parent=1 // pred_check
      _
    $region139: #{tpu_custom_call.1} parent=1 // pred_check_branch
      %382 = sbr.rel (0) target = $region141
    $region140: #{tpu_custom_call.1} parent=1 // pred_region
      _
    $region141: #{tpu_custom_call.1} parent=1 // pred_fallthru
      _
    // Predicated region
    $region142: #{tpu_custom_call.1} parent=1 // pred_check
      _
    $region143: #{tpu_custom_call.1} parent=1 // pred_check_branch
      %384 = sbr.rel (0) target = $region145
    $region144: #{tpu_custom_call.1} parent=1 // pred_region
      _
    $region145: #{tpu_custom_call.1} parent=1 // pred_fallthru
      _
    // Predicated region
    $region146: #{tpu_custom_call.1} parent=1 // pred_check
      _
    $region147: #{tpu_custom_call.1} parent=1 // pred_check_branch
      %386 = sbr.rel (0) target = $region149
    $region148: #{tpu_custom_call.1} parent=1 // pred_region
      _
    $region149: #{tpu_custom_call.1} parent=1 // pred_fallthru
      _
    // Predicated region
    $region150: #{tpu_custom_call.1} parent=1 // pred_check
      _
    $region151: #{tpu_custom_call.1} parent=1 // pred_check_branch
      %388 = sbr.rel (0) target = $region153
    $region152: #{tpu_custom_call.1} parent=1 // pred_region
      %389 = dma.done [#allocation3], 1024
    $region153: #{tpu_custom_call.1} parent=1 // pred_fallthru
      _
    // Predicated region
    $region154: #{tpu_custom_call.1} parent=1 // pred_check
      _
    $region155: #{tpu_custom_call.1} parent=1 // pred_check_branch
      %391 = sbr.rel (0) target = $region157
    $region156: #{tpu_custom_call.1} parent=1 // pred_region
      %392 = dma.done [#allocation6], 2048
    $region157: #{tpu_custom_call.1} parent=1 // pred_fallthru
      _
    // Predicated region
    $region158: #{tpu_custom_call.1} parent=1 // pred_check
      _
    $region159: #{tpu_custom_call.1} parent=1 // pred_check_branch
      %394 = sbr.rel (0) target = $region161
    $region160: #{tpu_custom_call.1} parent=1 // pred_region
      %395 = dma.done [#allocation6], 2048
    $region161: #{tpu_custom_call.1} parent=1 // pred_fallthru
      _
    // Predicated region
    $region162: #{tpu_custom_call.1} parent=1 // pred_check
      _
    $region163: #{tpu_custom_call.1} parent=1 // pred_check_branch
      %397 = sbr.rel (0) target = $region165
    $region164: #{tpu_custom_call.1} parent=1 // pred_region
      %398 = dma.done [#allocation9], 1024
    $region165: #{tpu_custom_call.1} parent=1 // pred_fallthru
      _
    // Predicated region
    $region166: #{tpu_custom_call.1} parent=1 // pred_check
      _
    $region167: #{tpu_custom_call.1} parent=1 // pred_check_branch
      %400 = sbr.rel (0) target = $region169
    $region168: #{tpu_custom_call.1} parent=1 // pred_region
      %401 = dma.done [#allocation9], 1024
    $region169: #{tpu_custom_call.1} parent=1 // pred_fallthru
      _
    // Predicated region
    $region170: #{tpu_custom_call.1} parent=1 // pred_check
      _
    $region171: #{tpu_custom_call.1} parent=1 // pred_check_branch
      %403 = sbr.rel (0) target = $region173
    $region172: #{tpu_custom_call.1} parent=1 // pred_region
      %404 = dma.done [#allocation12], 2048
    $region173: #{tpu_custom_call.1} parent=1 // pred_fallthru
      _
    // Predicated region
    $region174: #{tpu_custom_call.1} parent=1 // pred_check
      _
    $region175: #{tpu_custom_call.1} parent=1 // pred_check_branch
      %406 = sbr.rel (0) target = $region177
    $region176: #{tpu_custom_call.1} parent=1 // pred_region
      %407 = dma.done [#allocation12], 512
    $region177: #{tpu_custom_call.1} parent=1 // pred_fallthru
      _
    // Predicated region
    $region178: #{tpu_custom_call.1} parent=1 // pred_check
      _
    $region179: #{tpu_custom_call.1} parent=1 // pred_check_branch
      %409 = sbr.rel (0) target = $region181
    $region180: #{tpu_custom_call.1} parent=1 // pred_region
      %410 = dma.done [#allocation15], 512
    $region181: #{tpu_custom_call.1} parent=1 // pred_fallthru
      _
    // Predicated region
    $region182: #{tpu_custom_call.1} parent=1 // pred_check
      _
    $region183: #{tpu_custom_call.1} parent=1 // pred_check_branch
      %412 = sbr.rel (0) target = $region185
    $region184: #{tpu_custom_call.1} parent=1 // pred_region
      %413 = dma.done [#allocation15], 2048
    $region185: #{tpu_custom_call.1} parent=1 // pred_fallthru
      _
    // Predicated region
    $region186: #{tpu_custom_call.1} parent=1 // pred_check
      _
    $region187: #{tpu_custom_call.1} parent=1 // pred_check_branch
      %415 = sbr.rel (0) target = $region189
    $region188: #{tpu_custom_call.1} parent=1 // pred_region
      %416 = dma.done [#allocation18], 512
    $region189: #{tpu_custom_call.1} parent=1 // pred_fallthru
      _
    // Predicated region
    $region190: #{tpu_custom_call.1} parent=1 // pred_check
      _
    $region191: #{tpu_custom_call.1} parent=1 // pred_check_branch
      %418 = sbr.rel (0) target = $region193
    $region192: #{tpu_custom_call.1} parent=1 // pred_region
      %419 = dma.done [#allocation18], 2048
    $region193: #{tpu_custom_call.1} parent=1 // pred_fallthru
      _
    // Predicated region
    $region194: #{tpu_custom_call.1} parent=1 // pred_check
      _
    $region195: #{tpu_custom_call.1} parent=1 // pred_check_branch
      %421 = sbr.rel (0) target = $region197
    $region196: #{tpu_custom_call.1} parent=1 // pred_region
      %422 = dma.done [#allocation21], 256
    $region197: #{tpu_custom_call.1} parent=1 // pred_fallthru
      _
    // Predicated region
    $region198: #{tpu_custom_call.1} parent=1 // pred_check
      _
    $region199: #{tpu_custom_call.1} parent=1 // pred_check_branch
      %424 = sbr.rel (0) target = $region201
    $region200: #{tpu_custom_call.1} parent=1 // pred_region
      %425 = dma.done [#allocation21], 256
    $region201: #{tpu_custom_call.1} parent=1 // pred_fallthru
      _
    // Predicated region
    $region202: #{tpu_custom_call.1} parent=1 // pred_check
      _
    $region203: #{tpu_custom_call.1} parent=1 // pred_check_branch
      %427 = sbr.rel (0) target = $region205
    $region204: #{tpu_custom_call.1} parent=1 // pred_region
      %428 = dma.done [#allocation24], 2048
    $region205: #{tpu_custom_call.1} parent=1 // pred_fallthru
      _
    // Predicated region
    $region206: #{tpu_custom_call.1} parent=1 // pred_check
      _
    $region207: #{tpu_custom_call.1} parent=1 // pred_check_branch
      %430 = sbr.rel (0) target = $region209
    $region208: #{tpu_custom_call.1} parent=1 // pred_region
      %431 = dma.done [#allocation24], 256
    $region209: #{tpu_custom_call.1} parent=1 // pred_fallthru
      _
    // Predicated region
    $region210: #{tpu_custom_call.1} parent=1 // pred_check
      _
    $region211: #{tpu_custom_call.1} parent=1 // pred_check_branch
      %433 = sbr.rel (0) target = $region213
    $region212: #{tpu_custom_call.1} parent=1 // pred_region
      %434 = dma.done [#allocation27], 2048
    $region213: #{tpu_custom_call.1} parent=1 // pred_fallthru
      _
    // Predicated region
    $region214: #{tpu_custom_call.1} parent=1 // pred_check
      _
    $region215: #{tpu_custom_call.1} parent=1 // pred_check_branch
      %436 = sbr.rel (0) target = $region217
    $region216: #{tpu_custom_call.1} parent=1 // pred_region
      %437 = dma.done [#allocation27], 128
    $region217: #{tpu_custom_call.1} parent=1 // pred_fallthru
      _
    // Predicated region
    $region218: #{tpu_custom_call.1} parent=1 // pred_check
      _
    $region219: #{tpu_custom_call.1} parent=1 // pred_check_branch
      %439 = sbr.rel (0) target = $region221
    $region220: #{tpu_custom_call.1} parent=1 // pred_region
      %440 = dma.done [#allocation30], 128
    $region221: #{tpu_custom_call.1} parent=1 // pred_fallthru
      _
    // Predicated region
    $region222: #{tpu_custom_call.1} parent=1 // pred_check
      _
    $region223: #{tpu_custom_call.1} parent=1 // pred_check_branch
      %442 = sbr.rel (0) target = $region225
    $region224: #{tpu_custom_call.1} parent=1 // pred_region
      %443 = dma.done [#allocation30], 1024
    $region225: #{tpu_custom_call.1} parent=1 // pred_fallthru
      _
    // Predicated region
    $region226: #{tpu_custom_call.1} parent=1 // pred_check
      _
    $region227: #{tpu_custom_call.1} parent=1 // pred_check_branch
      %445 = sbr.rel (0) target = $region229
    $region228: #{tpu_custom_call.1} parent=1 // pred_region
      %446 = dma.done [#allocation33], 128
    $region229: #{tpu_custom_call.1} parent=1 // pred_fallthru
      _
    // Predicated region
    $region230: #{tpu_custom_call.1} parent=1 // pred_check
      _
    $region231: #{tpu_custom_call.1} parent=1 // pred_check_branch
      %448 = sbr.rel (0) target = $region233
    $region232: #{tpu_custom_call.1} parent=1 // pred_region
      %449 = dma.done [#allocation33], 3072
    $region233: #{tpu_custom_call.1} parent=1 // pred_fallthru
      _
    // Predicated region
    $region234: #{tpu_custom_call.1} parent=1 // pred_check
      _
    $region235: #{tpu_custom_call.1} parent=1 // pred_check_branch
      %451 = sbr.rel (0) target = $region237
    $region236: #{tpu_custom_call.1} parent=1 // pred_region
      %452 = dma.done [#allocation36], 64
    $region237: #{tpu_custom_call.1} parent=1 // pred_fallthru
      _
    %v453 = vld [vmem:[#allocation2] sm:$0xff]
    %v454 = vld [vmem:[#allocation2 + $0x8] sm:$0xff]
    %v455 = vld [vmem:[#allocation2 + $0x10] sm:$0xff]
    %v456 = vld [vmem:[#allocation2 + $0x18] sm:$0xff]
    %v457 = vld [vmem:[#allocation2 + $0x20] sm:$0xff]
    %v458 = vld [vmem:[#allocation2 + $0x28] sm:$0xff]
    %v459 = vld [vmem:[#allocation2 + $0x30] sm:$0xff]
    %v460 = vld [vmem:[#allocation2 + $0x38] sm:$0xff]
    %v461 = vld [vmem:[#allocation5] sm:$0xff]
    %v462 = vld [vmem:[#allocation5 + $0x8] sm:$0xff]
    %v463 = vld [vmem:[#allocation5 + $0x10] sm:$0xff]
    %v464 = vld [vmem:[#allocation5 + $0x18] sm:$0xff]
    %v465 = vld [vmem:[#allocation5 + $0x20] sm:$0xff]
    %v466 = vld [vmem:[#allocation5 + $0x28] sm:$0xff]
    %v467 = vld [vmem:[#allocation5 + $0x30] sm:$0xff]
    %v468 = vld [vmem:[#allocation5 + $0x38] sm:$0xff]
    %vm469 = vcmask 523264
    %v471 = vsel %vm469, %v461, 0
    %v474 = vsel %vm469, %v462, 0
    %v477 = vsel %vm469, %v463, 0
    %v480 = vsel %vm469, %v464, 0
    %v483 = vsel %vm469, %v465, 0
    %v486 = vsel %vm469, %v466, 0
    %v489 = vsel %vm469, %v467, 0
    %v492 = vsel %vm469, %v468, 0
    %494 = vmatprep.subr.mxu0 0.0
    %495 = vmatpush1.msra.mxu0 %v453
    %496 = vmatprep.subr.mxu0 0.0
    %497 = vmatpush1.msra.mxu0 %v454
    %498 = vmatprep.subr.mxu0 0.0
    %499 = vmatpush1.msra.mxu0 %v455
    %500 = vmatprep.subr.mxu0 0.0
    %501 = vmatpush1.msra.mxu0 %v456
    %502 = vmatprep.subr.mxu0 0.0
    %503 = vmatpush1.msra.mxu0 %v457
    %504 = vmatprep.subr.mxu0 0.0
    %505 = vmatpush1.msra.mxu0 %v458
    %506 = vmatprep.subr.mxu0 0.0
    %507 = vmatpush1.msra.mxu0 %v459
    %508 = vmatprep.subr.mxu0 0.0
    %509 = vmatpush1.msra.mxu0 %v460
    %510 = vmatprep.subr.mxu0 0.0
    %511 = vmatpush1.msra.mxu0 0.0
    %512 = vmatprep.subr.mxu0 0.0
    %513 = vmatpush1.msra.mxu0 0.0
    %514 = vmatprep.subr.mxu0 0.0
    %515 = vmatpush1.msra.mxu0 0.0
    %516 = vmatprep.subr.mxu0 0.0
    %517 = vmatpush1.msra.mxu0 0.0
    %518 = vmatprep.subr.mxu0 0.0
    %519 = vmatpush1.msra.mxu0 0.0
    %520 = vmatprep.subr.mxu0 0.0
    %521 = vmatpush1.msra.mxu0 0.0
    %522 = vmatprep.subr.mxu0 0.0
    %523 = vmatpush1.msra.mxu0 0.0
    %524 = vmatprep.subr.mxu0 0.0
    %525 = vmatpush1.msra.mxu0 0.0
    %526 = vmatprep.subr.mxu0 0.0
    %527 = vmatpush1.msra.mxu0 0.0
    %528 = vmatprep.subr.mxu0 0.0
    %529 = vmatpush1.msra.mxu0 0.0
    %530 = vmatprep.subr.mxu0 0.0
    %531 = vmatpush1.msra.mxu0 0.0
    %532 = vmatprep.subr.mxu0 0.0
    %533 = vmatpush1.msra.mxu0 0.0
    %534 = vmatprep.subr.mxu0 0.0
    %535 = vmatpush1.msra.mxu0 0.0
    %536 = vmatprep.subr.mxu0 0.0
    %537 = vmatpush1.msra.mxu0 0.0
    %538 = vmatprep.subr.mxu0 0.0
    %539 = vmatpush1.msra.mxu0 0.0
    %540 = vmatprep.subr.mxu0 0.0
    %541 = vmatpush1.msra.mxu0 0.0
    %542 = vmatprep.subr.mxu0 0.0
    %543 = vmatpush1.msra.mxu0 0.0
    %544 = vmatprep.subr.mxu0 0.0
    %545 = vmatpush1.msra.mxu0 0.0
    %546 = vmatprep.subr.mxu0 0.0
    %547 = vmatpush1.msra.mxu0 0.0
    %548 = vmatprep.subr.mxu0 0.0
    %549 = vmatpush1.msra.mxu0 0.0
    %550 = vmatprep.subr.mxu0 0.0
    %551 = vmatpush1.msra.mxu0 0.0
    %552 = vmatprep.subr.mxu0 0.0
    %553 = vmatpush1.msra.mxu0 0.0
    %554 = vmatprep.subr.mxu0 0.0
    %555 = vmatpush1.msra.mxu0 0.0
    %556 = vmatprep.subr.mxu0 0.0
    %557 = vmatpush1.msra.mxu0 0.0
    %558 = vmatprep.mubr.f32.mxu0 0.0
    %559 = vmatmul.mubr.f32.gmra.mrb[0].mxu0 %v471
    %v560 = vpop.f32.mrb[0].mxu0
    %v561 = vadd.f32 0.0, %v560
    %v562 = vpop.f32.mrb[0].mxu0
    %563 = vmatprep.mubr.f32.mxu0 0.0
    %564 = vmatmul.mubr.f32.gmra.mrb[0].mxu0 %v474
    %v565 = vpop.f32.mrb[0].mxu0
    %v566 = vadd.f32 0.0, %v565
    %v567 = vpop.f32.mrb[0].mxu0
    %568 = vmatprep.mubr.f32.mxu0 0.0
    %569 = vmatmul.mubr.f32.gmra.mrb[0].mxu0 %v477
    %v570 = vpop.f32.mrb[0].mxu0
    %v571 = vadd.f32 0.0, %v570
    %v572 = vpop.f32.mrb[0].mxu0
    %573 = vmatprep.mubr.f32.mxu0 0.0
    %574 = vmatmul.mubr.f32.gmra.mrb[0].mxu0 %v480
    %v575 = vpop.f32.mrb[0].mxu0
    %v576 = vadd.f32 0.0, %v575
    %v577 = vpop.f32.mrb[0].mxu0
    %578 = vmatprep.mubr.f32.mxu0 0.0
    %579 = vmatmul.mubr.f32.gmra.mrb[0].mxu0 %v483
    %v580 = vpop.f32.mrb[0].mxu0
    %v581 = vadd.f32 0.0, %v580
    %v582 = vpop.f32.mrb[0].mxu0
    %583 = vmatprep.mubr.f32.mxu0 0.0
    %584 = vmatmul.mubr.f32.gmra.mrb[0].mxu0 %v486
    %v585 = vpop.f32.mrb[0].mxu0
    %v586 = vadd.f32 0.0, %v585
    %v587 = vpop.f32.mrb[0].mxu0
    %588 = vmatprep.mubr.f32.mxu0 0.0
    %589 = vmatmul.mubr.f32.gmra.mrb[0].mxu0 %v489
    %v590 = vpop.f32.mrb[0].mxu0
    %v591 = vadd.f32 0.0, %v590
    %v592 = vpop.f32.mrb[0].mxu0
    %593 = vmatprep.mubr.f32.mxu0 0.0
    %594 = vmatmul.mubr.f32.gmra.mrb[0].mxu0 %v492
    %v595 = vpop.f32.mrb[0].mxu0
    %v596 = vadd.f32 0.0, %v595
    %v597 = vpop.f32.mrb[0].mxu0
    %598 = vdwg.mxu0
    %s599 = scalar_lea.vmem [#allocation5], 64
    %v600 = vld [vmem:[%s599] sm:$0xff]
    %v601 = vld [vmem:[%s599 + $0x8] sm:$0xff]
    %v602 = vld [vmem:[%s599 + $0x10] sm:$0xff]
    %v603 = vld [vmem:[%s599 + $0x18] sm:$0xff]
    %v604 = vld [vmem:[%s599 + $0x20] sm:$0xff]
    %v605 = vld [vmem:[%s599 + $0x28] sm:$0xff]
    %v606 = vld [vmem:[%s599 + $0x30] sm:$0xff]
    %v607 = vld [vmem:[%s599 + $0x38] sm:$0xff]
    %v609 = vsel %vm469, %v600, 0
    %v612 = vsel %vm469, %v601, 0
    %v615 = vsel %vm469, %v602, 0
    %v618 = vsel %vm469, %v603, 0
    %v621 = vsel %vm469, %v604, 0
    %v624 = vsel %vm469, %v605, 0
    %v627 = vsel %vm469, %v606, 0
    %v630 = vsel %vm469, %v607, 0
    %632 = vmatprep.subr.mxu0 0.0
    %633 = vmatpush1.msra.mxu0 %v453
    %634 = vmatprep.subr.mxu0 0.0
    %635 = vmatpush1.msra.mxu0 %v454
    %636 = vmatprep.subr.mxu0 0.0
    %637 = vmatpush1.msra.mxu0 %v455
    %638 = vmatprep.subr.mxu0 0.0
    %639 = vmatpush1.msra.mxu0 %v456
    %640 = vmatprep.subr.mxu0 0.0
    %641 = vmatpush1.msra.mxu0 %v457
    %642 = vmatprep.subr.mxu0 0.0
    %643 = vmatpush1.msra.mxu0 %v458
    %644 = vmatprep.subr.mxu0 0.0
    %645 = vmatpush1.msra.mxu0 %v459
    %646 = vmatprep.subr.mxu0 0.0
    %647 = vmatpush1.msra.mxu0 %v460
    %648 = vmatprep.subr.mxu0 0.0
    %649 = vmatpush1.msra.mxu0 0.0
    %650 = vmatprep.subr.mxu0 0.0
    %651 = vmatpush1.msra.mxu0 0.0
    %652 = vmatprep.subr.mxu0 0.0
    %653 = vmatpush1.msra.mxu0 0.0
    %654 = vmatprep.subr.mxu0 0.0
    %655 = vmatpush1.msra.mxu0 0.0
    %656 = vmatprep.subr.mxu0 0.0
    %657 = vmatpush1.msra.mxu0 0.0
    %658 = vmatprep.subr.mxu0 0.0
    %659 = vmatpush1.msra.mxu0 0.0
    %660 = vmatprep.subr.mxu0 0.0
    %661 = vmatpush1.msra.mxu0 0.0
    %662 = vmatprep.subr.mxu0 0.0
    %663 = vmatpush1.msra.mxu0 0.0
    %664 = vmatprep.subr.mxu0 0.0
    %665 = vmatpush1.msra.mxu0 0.0
    %666 = vmatprep.subr.mxu0 0.0
    %667 = vmatpush1.msra.mxu0 0.0
    %668 = vmatprep.subr.mxu0 0.0
    %669 = vmatpush1.msra.mxu0 0.0
    %670 = vmatprep.subr.mxu0 0.0
    %671 = vmatpush1.msra.mxu0 0.0
    %672 = vmatprep.subr.mxu0 0.0
    %673 = vmatpush1.msra.mxu0 0.0
    %674 = vmatprep.subr.mxu0 0.0
    %675 = vmatpush1.msra.mxu0 0.0
    %676 = vmatprep.subr.mxu0 0.0
    %677 = vmatpush1.msra.mxu0 0.0
    %678 = vmatprep.subr.mxu0 0.0
    %679 = vmatpush1.msra.mxu0 0.0
    %680 = vmatprep.subr.mxu0 0.0
    %681 = vmatpush1.msra.mxu0 0.0
    %682 = vmatprep.subr.mxu0 0.0
    %683 = vmatpush1.msra.mxu0 0.0
    %684 = vmatprep.subr.mxu0 0.0
    %685 = vmatpush1.msra.mxu0 0.0
    %686 = vmatprep.subr.mxu0 0.0
    %687 = vmatpush1.msra.mxu0 0.0
    %688 = vmatprep.subr.mxu0 0.0
    %689 = vmatpush1.msra.mxu0 0.0
    %690 = vmatprep.subr.mxu0 0.0
    %691 = vmatpush1.msra.mxu0 0.0
    %692 = vmatprep.subr.mxu0 0.0
    %693 = vmatpush1.msra.mxu0 0.0
    %694 = vmatprep.subr.mxu0 0.0
    %695 = vmatpush1.msra.mxu0 0.0
    %696 = vmatprep.mubr.f32.mxu0 0.0
    %697 = vmatmul.mubr.f32.gmra.mrb[0].mxu0 %v609
    %v698 = vpop.f32.mrb[0].mxu0
    %v699 = vadd.f32 0.0, %v698
    %v700 = vpop.f32.mrb[0].mxu0
    %701 = vmatprep.mubr.f32.mxu0 0.0
    %702 = vmatmul.mubr.f32.gmra.mrb[0].mxu0 %v612
    %v703 = vpop.f32.mrb[0].mxu0
    %v704 = vadd.f32 0.0, %v703
    %v705 = vpop.f32.mrb[0].mxu0
    %706 = vmatprep.mubr.f32.mxu0 0.0
    %707 = vmatmul.mubr.f32.gmra.mrb[0].mxu0 %v615
    %v708 = vpop.f32.mrb[0].mxu0
    %v709 = vadd.f32 0.0, %v708
    %v710 = vpop.f32.mrb[0].mxu0
    %711 = vmatprep.mubr.f32.mxu0 0.0
    %712 = vmatmul.mubr.f32.gmra.mrb[0].mxu0 %v618
    %v713 = vpop.f32.mrb[0].mxu0
    %v714 = vadd.f32 0.0, %v713
    %v715 = vpop.f32.mrb[0].mxu0
    %716 = vmatprep.mubr.f32.mxu0 0.0
    %717 = vmatmul.mubr.f32.gmra.mrb[0].mxu0 %v621
    %v718 = vpop.f32.mrb[0].mxu0
    %v719 = vadd.f32 0.0, %v718
    %v720 = vpop.f32.mrb[0].mxu0
    %721 = vmatprep.mubr.f32.mxu0 0.0
    %722 = vmatmul.mubr.f32.gmra.mrb[0].mxu0 %v624
    %v723 = vpop.f32.mrb[0].mxu0
    %v724 = vadd.f32 0.0, %v723
    %v725 = vpop.f32.mrb[0].mxu0
    %726 = vmatprep.mubr.f32.mxu0 0.0
    %727 = vmatmul.mubr.f32.gmra.mrb[0].mxu0 %v627
    %v728 = vpop.f32.mrb[0].mxu0
    %v729 = vadd.f32 0.0, %v728
    %v730 = vpop.f32.mrb[0].mxu0
    %731 = vmatprep.mubr.f32.mxu0 0.0
    %732 = vmatmul.mubr.f32.gmra.mrb[0].mxu0 %v630
    %v733 = vpop.f32.mrb[0].mxu0
    %v734 = vadd.f32 0.0, %v733
    %v735 = vpop.f32.mrb[0].mxu0
    %736 = vdwg.mxu0
    %v737 = vld [vmem:[%s5] sm:$0xff]
    %v738 = vld [vmem:[%s5 + $0x8] sm:$0xff]
    %v739 = vld [vmem:[%s5 + $0x10] sm:$0xff]
    %v740 = vld [vmem:[%s5 + $0x18] sm:$0xff]
    %v741 = vld [vmem:[%s5 + $0x20] sm:$0xff]
    %v742 = vld [vmem:[%s5 + $0x28] sm:$0xff]
    %v743 = vld [vmem:[%s5 + $0x30] sm:$0xff]
    %v744 = vld [vmem:[%s5 + $0x38] sm:$0xff]
    %v745 = vld [vmem:[%s5 + $0x40] sm:$0xff]
    %v746 = vld [vmem:[%s5 + $0x48] sm:$0xff]
    %v747 = vld [vmem:[%s5 + $0x50] sm:$0xff]
    %v748 = vld [vmem:[%s5 + $0x58] sm:$0xff]
    %s749 = scalar_lea.vmem %s5, 96
    %v750 = vld [vmem:[%s749] sm:$0xff]
    %v751 = vld [vmem:[%s749 + $0x8] sm:$0xff]
    %v752 = vld [vmem:[%s749 + $0x10] sm:$0xff]
    %v753 = vld [vmem:[%s749 + $0x18] sm:$0xff]
    %v754 = vld [vmem:[%s749 + $0x20] sm:$0xff]
    %v755 = vld [vmem:[%s749 + $0x28] sm:$0xff]
    %v756 = vld [vmem:[%s749 + $0x30] sm:$0xff]
    %v757 = vld [vmem:[%s749 + $0x38] sm:$0xff]
    %v758 = vld [vmem:[%s749 + $0x40] sm:$0xff]
    %v759 = vld [vmem:[%s749 + $0x48] sm:$0xff]
    %v760 = vld [vmem:[%s749 + $0x50] sm:$0xff]
    %v761 = vld [vmem:[%s749 + $0x58] sm:$0xff]
    %vm762 = vcmask 785408
    %v764 = vsel %vm762, %v453, 0
    %v767 = vsel %vm762, %v454, 0
    %v770 = vsel %vm762, %v455, 0
    %v773 = vsel %vm762, %v456, 0
    %v776 = vsel %vm762, %v457, 0
    %v779 = vsel %vm762, %v458, 0
    %v782 = vsel %vm762, %v459, 0
    %v785 = vsel %vm762, %v460, 0
    %787 = vmatprep.subr.mxu0 0.0
    %788 = vmatpush1.msra.mxu0 %v750
    %789 = vmatprep.subr.mxu0 0.0
    %790 = vmatpush1.msra.mxu0 %v751
    %791 = vmatprep.subr.mxu0 0.0
    %792 = vmatpush1.msra.mxu0 %v752
    %793 = vmatprep.subr.mxu0 0.0
    %794 = vmatpush1.msra.mxu0 %v753
    %795 = vmatprep.subr.mxu0 0.0
    %796 = vmatpush1.msra.mxu0 %v754
    %797 = vmatprep.subr.mxu0 0.0
    %798 = vmatpush1.msra.mxu0 %v755
    %799 = vmatprep.subr.mxu0 0.0
    %800 = vmatpush1.msra.mxu0 %v756
    %801 = vmatprep.subr.mxu0 0.0
    %802 = vmatpush1.msra.mxu0 %v757
    %803 = vmatprep.subr.mxu0 0.0
    %804 = vmatpush1.msra.mxu0 %v758
    %805 = vmatprep.subr.mxu0 0.0
    %806 = vmatpush1.msra.mxu0 %v759
    %807 = vmatprep.subr.mxu0 0.0
    %808 = vmatpush1.msra.mxu0 %v760
    %809 = vmatprep.subr.mxu0 0.0
    %810 = vmatpush1.msra.mxu0 %v761
    %811 = vmatprep.subr.mxu0 0.0
    %812 = vmatpush1.msra.mxu0 0.0
    %813 = vmatprep.subr.mxu0 0.0
    %814 = vmatpush1.msra.mxu0 0.0
    %815 = vmatprep.subr.mxu0 0.0
    %816 = vmatpush1.msra.mxu0 0.0
    %817 = vmatprep.subr.mxu0 0.0
    %818 = vmatpush1.msra.mxu0 0.0
    %819 = vmatprep.subr.mxu0 0.0
    %820 = vmatpush1.msra.mxu0 0.0
    %821 = vmatprep.subr.mxu0 0.0
    %822 = vmatpush1.msra.mxu0 0.0
    %823 = vmatprep.subr.mxu0 0.0
    %824 = vmatpush1.msra.mxu0 0.0
    %825 = vmatprep.subr.mxu0 0.0
    %826 = vmatpush1.msra.mxu0 0.0
    %827 = vmatprep.subr.mxu0 0.0
    %828 = vmatpush1.msra.mxu0 0.0
    %829 = vmatprep.subr.mxu0 0.0
    %830 = vmatpush1.msra.mxu0 0.0
    %831 = vmatprep.subr.mxu0 0.0
    %832 = vmatpush1.msra.mxu0 0.0
    %833 = vmatprep.subr.mxu0 0.0
    %834 = vmatpush1.msra.mxu0 0.0
    %835 = vmatprep.subr.mxu0 0.0
    %836 = vmatpush1.msra.mxu0 0.0
    %837 = vmatprep.subr.mxu0 0.0
    %838 = vmatpush1.msra.mxu0 0.0
    %839 = vmatprep.subr.mxu0 0.0
    %840 = vmatpush1.msra.mxu0 0.0
    %841 = vmatprep.subr.mxu0 0.0
    %842 = vmatpush1.msra.mxu0 0.0
    %843 = vmatprep.subr.mxu0 0.0
    %844 = vmatpush1.msra.mxu0 0.0
    %845 = vmatprep.subr.mxu0 0.0
    %846 = vmatpush1.msra.mxu0 0.0
    %847 = vmatprep.subr.mxu0 0.0
    %848 = vmatpush1.msra.mxu0 0.0
    %849 = vmatprep.subr.mxu0 0.0
    %850 = vmatpush1.msra.mxu0 0.0
    %851 = vmatprep.mubr.f32.mxu0 0.0
    %852 = vmatmul.mubr.f32.gmra.mrb[0].mxu0 %v764
    %v853 = vpop.f32.mrb[0].mxu0
    %v854 = vadd.f32 0.0, %v853
    %v855 = vpop.f32.mrb[0].mxu0
    %856 = vmatprep.mubr.f32.mxu0 0.0
    %857 = vmatmul.mubr.f32.gmra.mrb[0].mxu0 %v767
    %v858 = vpop.f32.mrb[0].mxu0
    %v859 = vadd.f32 0.0, %v858
    %v860 = vpop.f32.mrb[0].mxu0
    %861 = vmatprep.mubr.f32.mxu0 0.0
    %862 = vmatmul.mubr.f32.gmra.mrb[0].mxu0 %v770
    %v863 = vpop.f32.mrb[0].mxu0
    %v864 = vadd.f32 0.0, %v863
    %v865 = vpop.f32.mrb[0].mxu0
    %866 = vmatprep.mubr.f32.mxu0 0.0
    %867 = vmatmul.mubr.f32.gmra.mrb[0].mxu0 %v773
    %v868 = vpop.f32.mrb[0].mxu0
    %v869 = vadd.f32 0.0, %v868
    %v870 = vpop.f32.mrb[0].mxu0
    %871 = vmatprep.mubr.f32.mxu0 0.0
    %872 = vmatmul.mubr.f32.gmra.mrb[0].mxu0 %v776
    %v873 = vpop.f32.mrb[0].mxu0
    %v874 = vadd.f32 0.0, %v873
    %v875 = vpop.f32.mrb[0].mxu0
    %876 = vmatprep.mubr.f32.mxu0 0.0
    %877 = vmatmul.mubr.f32.gmra.mrb[0].mxu0 %v779
    %v878 = vpop.f32.mrb[0].mxu0
    %v879 = vadd.f32 0.0, %v878
    %v880 = vpop.f32.mrb[0].mxu0
    %881 = vmatprep.mubr.f32.mxu0 0.0
    %882 = vmatmul.mubr.f32.gmra.mrb[0].mxu0 %v782
    %v883 = vpop.f32.mrb[0].mxu0
    %v884 = vadd.f32 0.0, %v883
    %v885 = vpop.f32.mrb[0].mxu0
    %886 = vmatprep.mubr.f32.mxu0 0.0
    %887 = vmatmul.mubr.f32.gmra.mrb[0].mxu0 %v785
    %v888 = vpop.f32.mrb[0].mxu0
    %v889 = vadd.f32 0.0, %v888
    %v890 = vpop.f32.mrb[0].mxu0
    %891 = vdwg.mxu0
    %v893 = vsel %vm762, %v561, 0
    %v896 = vsel %vm762, %v566, 0
    %v899 = vsel %vm762, %v571, 0
    %v902 = vsel %vm762, %v576, 0
    %v905 = vsel %vm762, %v581, 0
    %v908 = vsel %vm762, %v586, 0
    %v911 = vsel %vm762, %v591, 0
    %v914 = vsel %vm762, %v596, 0
    %916 = vmatprep.subr.mxu0 0.0
    %917 = vmatpush1.msra.mxu0 %v737
    %918 = vmatprep.subr.mxu0 0.0
    %919 = vmatpush1.msra.mxu0 %v738
    %920 = vmatprep.subr.mxu0 0.0
    %921 = vmatpush1.msra.mxu0 %v739
    %922 = vmatprep.subr.mxu0 0.0
    %923 = vmatpush1.msra.mxu0 %v740
    %924 = vmatprep.subr.mxu0 0.0
    %925 = vmatpush1.msra.mxu0 %v741
    %926 = vmatprep.subr.mxu0 0.0
    %927 = vmatpush1.msra.mxu0 %v742
    %928 = vmatprep.subr.mxu0 0.0
    %929 = vmatpush1.msra.mxu0 %v743
    %930 = vmatprep.subr.mxu0 0.0
    %931 = vmatpush1.msra.mxu0 %v744
    %932 = vmatprep.subr.mxu0 0.0
    %933 = vmatpush1.msra.mxu0 %v745
    %934 = vmatprep.subr.mxu0 0.0
    %935 = vmatpush1.msra.mxu0 %v746
    %936 = vmatprep.subr.mxu0 0.0
    %937 = vmatpush1.msra.mxu0 %v747
    %938 = vmatprep.subr.mxu0 0.0
    %939 = vmatpush1.msra.mxu0 %v748
    %940 = vmatprep.subr.mxu0 0.0
    %941 = vmatpush1.msra.mxu0 0.0
    %942 = vmatprep.subr.mxu0 0.0
    %943 = vmatpush1.msra.mxu0 0.0
    %944 = vmatprep.subr.mxu0 0.0
    %945 = vmatpush1.msra.mxu0 0.0
    %946 = vmatprep.subr.mxu0 0.0
    %947 = vmatpush1.msra.mxu0 0.0
    %948 = vmatprep.subr.mxu0 0.0
    %949 = vmatpush1.msra.mxu0 0.0
    %950 = vmatprep.subr.mxu0 0.0
    %951 = vmatpush1.msra.mxu0 0.0
    %952 = vmatprep.subr.mxu0 0.0
    %953 = vmatpush1.msra.mxu0 0.0
    %954 = vmatprep.subr.mxu0 0.0
    %955 = vmatpush1.msra.mxu0 0.0
    %956 = vmatprep.subr.mxu0 0.0
    %957 = vmatpush1.msra.mxu0 0.0
    %958 = vmatprep.subr.mxu0 0.0
    %959 = vmatpush1.msra.mxu0 0.0
    %960 = vmatprep.subr.mxu0 0.0
    %961 = vmatpush1.msra.mxu0 0.0
    %962 = vmatprep.subr.mxu0 0.0
    %963 = vmatpush1.msra.mxu0 0.0
    %964 = vmatprep.subr.mxu0 0.0
    %965 = vmatpush1.msra.mxu0 0.0
    %966 = vmatprep.subr.mxu0 0.0
    %967 = vmatpush1.msra.mxu0 0.0
    %968 = vmatprep.subr.mxu0 0.0
    %969 = vmatpush1.msra.mxu0 0.0
    %970 = vmatprep.subr.mxu0 0.0
    %971 = vmatpush1.msra.mxu0 0.0
    %972 = vmatprep.subr.mxu0 0.0
    %973 = vmatpush1.msra.mxu0 0.0
    %974 = vmatprep.subr.mxu0 0.0
    %975 = vmatpush1.msra.mxu0 0.0
    %976 = vmatprep.subr.mxu0 0.0
    %977 = vmatpush1.msra.mxu0 0.0
    %978 = vmatprep.subr.mxu0 0.0
    %979 = vmatpush1.msra.mxu0 0.0
    %980 = vmatprep.mubr.f32.mxu0 0.0
    %981 = vmatmul.mubr.f32.gmra.mrb[0].mxu0 %v893
    %v982 = vpop.f32.mrb[0].mxu0
    %v983 = vadd.f32 %v854, %v982
    %v984 = vpop.f32.mrb[0].mxu0
    %985 = vmatprep.mubr.f32.mxu0 0.0
    %986 = vmatmul.mubr.f32.gmra.mrb[0].mxu0 %v896
    %v987 = vpop.f32.mrb[0].mxu0
    %v988 = vadd.f32 %v859, %v987
    %v989 = vpop.f32.mrb[0].mxu0
    %990 = vmatprep.mubr.f32.mxu0 0.0
    %991 = vmatmul.mubr.f32.gmra.mrb[0].mxu0 %v899
    %v992 = vpop.f32.mrb[0].mxu0
    %v993 = vadd.f32 %v864, %v992
    %v994 = vpop.f32.mrb[0].mxu0
    %995 = vmatprep.mubr.f32.mxu0 0.0
    %996 = vmatmul.mubr.f32.gmra.mrb[0].mxu0 %v902
    %v997 = vpop.f32.mrb[0].mxu0
    %v998 = vadd.f32 %v869, %v997
    %v999 = vpop.f32.mrb[0].mxu0
    %1000 = vmatprep.mubr.f32.mxu0 0.0
    %1001 = vmatmul.mubr.f32.gmra.mrb[0].mxu0 %v905
    %v1002 = vpop.f32.mrb[0].mxu0
    %v1003 = vadd.f32 %v874, %v1002
    %v1004 = vpop.f32.mrb[0].mxu0
    %1005 = vmatprep.mubr.f32.mxu0 0.0
    %1006 = vmatmul.mubr.f32.gmra.mrb[0].mxu0 %v908
    %v1007 = vpop.f32.mrb[0].mxu0
    %v1008 = vadd.f32 %v879, %v1007
    %v1009 = vpop.f32.mrb[0].mxu0
    %1010 = vmatprep.mubr.f32.mxu0 0.0
    %1011 = vmatmul.mubr.f32.gmra.mrb[0].mxu0 %v911
    %v1012 = vpop.f32.mrb[0].mxu0
    %v1013 = vadd.f32 %v884, %v1012
    %v1014 = vpop.f32.mrb[0].mxu0
    %1015 = vmatprep.mubr.f32.mxu0 0.0
    %1016 = vmatmul.mubr.f32.gmra.mrb[0].mxu0 %v914
    %v1017 = vpop.f32.mrb[0].mxu0
    %v1018 = vadd.f32 %v889, %v1017
    %v1019 = vpop.f32.mrb[0].mxu0
    %1020 = vdwg.mxu0
    %s1021 = scalar_lea.vmem %s5, 192
    %v1022 = vld [vmem:[%s1021] sm:$0xff]
    %v1023 = vld [vmem:[%s1021 + $0x8] sm:$0xff]
    %v1024 = vld [vmem:[%s1021 + $0x10] sm:$0xff]
    %v1025 = vld [vmem:[%s1021 + $0x18] sm:$0xff]
    %v1026 = vld [vmem:[%s1021 + $0x20] sm:$0xff]
    %v1027 = vld [vmem:[%s1021 + $0x28] sm:$0xff]
    %v1028 = vld [vmem:[%s1021 + $0x30] sm:$0xff]
    %v1029 = vld [vmem:[%s1021 + $0x38] sm:$0xff]
    %v1030 = vld [vmem:[%s1021 + $0x40] sm:$0xff]
    %v1031 = vld [vmem:[%s1021 + $0x48] sm:$0xff]
    %v1032 = vld [vmem:[%s1021 + $0x50] sm:$0xff]
    %v1033 = vld [vmem:[%s1021 + $0x58] sm:$0xff]
    %v1035 = vsel %vm762, %v699, 0
    %v1038 = vsel %vm762, %v704, 0
    %v1041 = vsel %vm762, %v709, 0
    %v1044 = vsel %vm762, %v714, 0
    %v1047 = vsel %vm762, %v719, 0
    %v1050 = vsel %vm762, %v724, 0
    %v1053 = vsel %vm762, %v729, 0
    %v1056 = vsel %vm762, %v734, 0
    %1058 = vmatprep.subr.mxu0 0.0
    %1059 = vmatpush1.msra.mxu0 %v1022
    %1060 = vmatprep.subr.mxu0 0.0
    %1061 = vmatpush1.msra.mxu0 %v1023
    %1062 = vmatprep.subr.mxu0 0.0
    %1063 = vmatpush1.msra.mxu0 %v1024
    %1064 = vmatprep.subr.mxu0 0.0
    %1065 = vmatpush1.msra.mxu0 %v1025
    %1066 = vmatprep.subr.mxu0 0.0
    %1067 = vmatpush1.msra.mxu0 %v1026
    %1068 = vmatprep.subr.mxu0 0.0
    %1069 = vmatpush1.msra.mxu0 %v1027
    %1070 = vmatprep.subr.mxu0 0.0
    %1071 = vmatpush1.msra.mxu0 %v1028
    %1072 = vmatprep.subr.mxu0 0.0
    %1073 = vmatpush1.msra.mxu0 %v1029
    %1074 = vmatprep.subr.mxu0 0.0
    %1075 = vmatpush1.msra.mxu0 %v1030
    %1076 = vmatprep.subr.mxu0 0.0
    %1077 = vmatpush1.msra.mxu0 %v1031
    %1078 = vmatprep.subr.mxu0 0.0
    %1079 = vmatpush1.msra.mxu0 %v1032
    %1080 = vmatprep.subr.mxu0 0.0
    %1081 = vmatpush1.msra.mxu0 %v1033
    %1082 = vmatprep.subr.mxu0 0.0
    %1083 = vmatpush1.msra.mxu0 0.0
    %1084 = vmatprep.subr.mxu0 0.0
    %1085 = vmatpush1.msra.mxu0 0.0
    %1086 = vmatprep.subr.mxu0 0.0
    %1087 = vmatpush1.msra.mxu0 0.0
    %1088 = vmatprep.subr.mxu0 0.0
    %1089 = vmatpush1.msra.mxu0 0.0
    %1090 = vmatprep.subr.mxu0 0.0
    %1091 = vmatpush1.msra.mxu0 0.0
    %1092 = vmatprep.subr.mxu0 0.0
    %1093 = vmatpush1.msra.mxu0 0.0
    %1094 = vmatprep.subr.mxu0 0.0
    %1095 = vmatpush1.msra.mxu0 0.0
    %1096 = vmatprep.subr.mxu0 0.0
    %1097 = vmatpush1.msra.mxu0 0.0
    %1098 = vmatprep.subr.mxu0 0.0
    %1099 = vmatpush1.msra.mxu0 0.0
    %1100 = vmatprep.subr.mxu0 0.0
    %1101 = vmatpush1.msra.mxu0 0.0
    %1102 = vmatprep.subr.mxu0 0.0
    %1103 = vmatpush1.msra.mxu0 0.0
    %1104 = vmatprep.subr.mxu0 0.0
    %1105 = vmatpush1.msra.mxu0 0.0
    %1106 = vmatprep.subr.mxu0 0.0
    %1107 = vmatpush1.msra.mxu0 0.0
    %1108 = vmatprep.subr.mxu0 0.0
    %1109 = vmatpush1.msra.mxu0 0.0
    %1110 = vmatprep.subr.mxu0 0.0
    %1111 = vmatpush1.msra.mxu0 0.0
    %1112 = vmatprep.subr.mxu0 0.0
    %1113 = vmatpush1.msra.mxu0 0.0
    %1114 = vmatprep.subr.mxu0 0.0
    %1115 = vmatpush1.msra.mxu0 0.0
    %1116 = vmatprep.subr.mxu0 0.0
    %1117 = vmatpush1.msra.mxu0 0.0
    %1118 = vmatprep.subr.mxu0 0.0
    %1119 = vmatpush1.msra.mxu0 0.0
    %1120 = vmatprep.subr.mxu0 0.0
    %1121 = vmatpush1.msra.mxu0 0.0
    %1122 = vmatprep.mubr.f32.mxu0 0.0
    %1123 = vmatmul.mubr.f32.gmra.mrb[0].mxu0 %v1035
    %v1124 = vpop.f32.mrb[0].mxu0
    %v1125 = vadd.f32 0.0, %v1124
    %v1126 = vpop.f32.mrb[0].mxu0
    %1127 = vmatprep.mubr.f32.mxu0 0.0
    %1128 = vmatmul.mubr.f32.gmra.mrb[0].mxu0 %v1038
    %v1129 = vpop.f32.mrb[0].mxu0
    %v1130 = vadd.f32 0.0, %v1129
    %v1131 = vpop.f32.mrb[0].mxu0
    %1132 = vmatprep.mubr.f32.mxu0 0.0
    %1133 = vmatmul.mubr.f32.gmra.mrb[0].mxu0 %v1041
    %v1134 = vpop.f32.mrb[0].mxu0
    %v1135 = vadd.f32 0.0, %v1134
    %v1136 = vpop.f32.mrb[0].mxu0
    %1137 = vmatprep.mubr.f32.mxu0 0.0
    %1138 = vmatmul.mubr.f32.gmra.mrb[0].mxu0 %v1044
    %v1139 = vpop.f32.mrb[0].mxu0
    %v1140 = vadd.f32 0.0, %v1139
    %v1141 = vpop.f32.mrb[0].mxu0
    %1142 = vmatprep.mubr.f32.mxu0 0.0
    %1143 = vmatmul.mubr.f32.gmra.mrb[0].mxu0 %v1047
    %v1144 = vpop.f32.mrb[0].mxu0
    %v1145 = vadd.f32 0.0, %v1144
    %v1146 = vpop.f32.mrb[0].mxu0
    %1147 = vmatprep.mubr.f32.mxu0 0.0
    %1148 = vmatmul.mubr.f32.gmra.mrb[0].mxu0 %v1050
    %v1149 = vpop.f32.mrb[0].mxu0
    %v1150 = vadd.f32 0.0, %v1149
    %v1151 = vpop.f32.mrb[0].mxu0
    %1152 = vmatprep.mubr.f32.mxu0 0.0
    %1153 = vmatmul.mubr.f32.gmra.mrb[0].mxu0 %v1053
    %v1154 = vpop.f32.mrb[0].mxu0
    %v1155 = vadd.f32 0.0, %v1154
    %v1156 = vpop.f32.mrb[0].mxu0
    %1157 = vmatprep.mubr.f32.mxu0 0.0
    %1158 = vmatmul.mubr.f32.gmra.mrb[0].mxu0 %v1056
    %v1159 = vpop.f32.mrb[0].mxu0
    %v1160 = vadd.f32 0.0, %v1159
    %v1161 = vpop.f32.mrb[0].mxu0
    %1162 = vdwg.mxu0
    %v1163 = vadd.f32 %v983, %v1125
    %v1164 = vadd.f32 %v988, %v1130
    %v1165 = vadd.f32 %v993, %v1135
    %v1166 = vadd.f32 %v998, %v1140
    %v1167 = vadd.f32 %v1003, %v1145
    %v1168 = vadd.f32 %v1008, %v1150
    %v1169 = vadd.f32 %v1013, %v1155
    %v1170 = vadd.f32 %v1018, %v1160
    %v1171 = vadd.f32 %v1163, %v1164
    %v1172 = vadd.f32 %v1171, %v1165
    %v1173 = vadd.f32 %v1172, %v1166
    %v1174 = vadd.f32 %v1173, %v1167
    %v1175 = vadd.f32 %v1174, %v1168
    %v1176 = vadd.f32 %v1175, %v1169
    %v1177 = vadd.f32 %v1176, %v1170
    %v1178 = vrot.slane %v1177, 4
    %v1179 = vadd.f32 %v1177, %v1178
    %v1180 = vrot.slane %v1179, 2
    %v1181 = vadd.f32 %v1179, %v1180
    %v1182 = vrot.slane %v1181, 1
    %v1183 = vadd.f32 %v1181, %v1182
    %v1184 = vmul.f32 %v1163, %v1163
    %v1185 = vmul.f32 %v1164, %v1164
    %v1186 = vmul.f32 %v1165, %v1165
    %v1187 = vmul.f32 %v1166, %v1166
    %v1188 = vmul.f32 %v1167, %v1167
    %v1189 = vmul.f32 %v1168, %v1168
    %v1190 = vmul.f32 %v1169, %v1169
    %v1191 = vmul.f32 %v1170, %v1170
    %v1192 = vadd.f32 %v1184, %v1185
    %v1193 = vadd.f32 %v1192, %v1186
    %v1194 = vadd.f32 %v1193, %v1187
    %v1195 = vadd.f32 %v1194, %v1188
    %v1196 = vadd.f32 %v1195, %v1189
    %v1197 = vadd.f32 %v1196, %v1190
    %v1198 = vadd.f32 %v1197, %v1191
    %v1199 = vrot.slane %v1198, 4
    %v1200 = vadd.f32 %v1198, %v1199
    %v1201 = vrot.slane %v1200, 2
    %v1202 = vadd.f32 %v1200, %v1201
    %v1203 = vrot.slane %v1202, 1
    %v1204 = vadd.f32 %v1202, %v1203
    %v1205 = vld [vmem:[#allocation7] sm:$0xff]
    %v1206 = vld [vmem:[#allocation7 + $0x8] sm:$0xff]
    %v1207 = vld [vmem:[#allocation7 + $0x10] sm:$0xff]
    %v1208 = vld [vmem:[#allocation7 + $0x18] sm:$0xff]
    %v1209 = vld [vmem:[#allocation7 + $0x20] sm:$0xff]
    %v1210 = vld [vmem:[#allocation7 + $0x28] sm:$0xff]
    %v1211 = vld [vmem:[#allocation7 + $0x30] sm:$0xff]
    %v1212 = vld [vmem:[#allocation7 + $0x38] sm:$0xff]
    %v1213 = vld [vmem:[#allocation7 + $0x40] sm:$0xff]
    %v1214 = vld [vmem:[#allocation7 + $0x48] sm:$0xff]
    %v1215 = vld [vmem:[#allocation7 + $0x50] sm:$0xff]
    %v1216 = vld [vmem:[#allocation7 + $0x58] sm:$0xff]
    %v1217 = vld [vmem:[#allocation7 + $0x60] sm:$0xff]
    %v1218 = vld [vmem:[#allocation7 + $0x68] sm:$0xff]
    %v1219 = vld [vmem:[#allocation7 + $0x70] sm:$0xff]
    %v1220 = vld [vmem:[#allocation7 + $0x78] sm:$0xff]
    %1221 = vmatprep.subr.mxu0 0.0
    %1222 = vmatpush1.msra.mxu0 %v1205
    %1223 = vmatprep.subr.mxu0 0.0
    %1224 = vmatpush1.msra.mxu0 %v1206
    %1225 = vmatprep.subr.mxu0 0.0
    %1226 = vmatpush1.msra.mxu0 %v1207
    %1227 = vmatprep.subr.mxu0 0.0
    %1228 = vmatpush1.msra.mxu0 %v1208
    %1229 = vmatprep.subr.mxu0 0.0
    %1230 = vmatpush1.msra.mxu0 %v1209
    %1231 = vmatprep.subr.mxu0 0.0
    %1232 = vmatpush1.msra.mxu0 %v1210
    %1233 = vmatprep.subr.mxu0 0.0
    %1234 = vmatpush1.msra.mxu0 %v1211
    %1235 = vmatprep.subr.mxu0 0.0
    %1236 = vmatpush1.msra.mxu0 %v1212
    %1237 = vmatprep.subr.mxu0 0.0
    %1238 = vmatpush1.msra.mxu0 %v1213
    %1239 = vmatprep.subr.mxu0 0.0
    %1240 = vmatpush1.msra.mxu0 %v1214
    %1241 = vmatprep.subr.mxu0 0.0
    %1242 = vmatpush1.msra.mxu0 %v1215
    %1243 = vmatprep.subr.mxu0 0.0
    %1244 = vmatpush1.msra.mxu0 %v1216
    %1245 = vmatprep.subr.mxu0 0.0
    %1246 = vmatpush1.msra.mxu0 %v1217
    %1247 = vmatprep.subr.mxu0 0.0
    %1248 = vmatpush1.msra.mxu0 %v1218
    %1249 = vmatprep.subr.mxu0 0.0
    %1250 = vmatpush1.msra.mxu0 %v1219
    %1251 = vmatprep.subr.mxu0 0.0
    %1252 = vmatpush1.msra.mxu0 %v1220
    %1253 = vmatprep.subr.mxu0 0.0
    %1254 = vmatpush1.msra.mxu0 0.0
    %1255 = vmatprep.subr.mxu0 0.0
    %1256 = vmatpush1.msra.mxu0 0.0
    %1257 = vmatprep.subr.mxu0 0.0
    %1258 = vmatpush1.msra.mxu0 0.0
    %1259 = vmatprep.subr.mxu0 0.0
    %1260 = vmatpush1.msra.mxu0 0.0
    %1261 = vmatprep.subr.mxu0 0.0
    %1262 = vmatpush1.msra.mxu0 0.0
    %1263 = vmatprep.subr.mxu0 0.0
    %1264 = vmatpush1.msra.mxu0 0.0
    %1265 = vmatprep.subr.mxu0 0.0
    %1266 = vmatpush1.msra.mxu0 0.0
    %1267 = vmatprep.subr.mxu0 0.0
    %1268 = vmatpush1.msra.mxu0 0.0
    %1269 = vmatprep.subr.mxu0 0.0
    %1270 = vmatpush1.msra.mxu0 0.0
    %1271 = vmatprep.subr.mxu0 0.0
    %1272 = vmatpush1.msra.mxu0 0.0
    %1273 = vmatprep.subr.mxu0 0.0
    %1274 = vmatpush1.msra.mxu0 0.0
    %1275 = vmatprep.subr.mxu0 0.0
    %1276 = vmatpush1.msra.mxu0 0.0
    %1277 = vmatprep.subr.mxu0 0.0
    %1278 = vmatpush1.msra.mxu0 0.0
    %1279 = vmatprep.subr.mxu0 0.0
    %1280 = vmatpush1.msra.mxu0 0.0
    %1281 = vmatprep.subr.mxu0 0.0
    %1282 = vmatpush1.msra.mxu0 0.0
    %1283 = vmatprep.subr.mxu0 0.0
    %1284 = vmatpush1.msra.mxu0 0.0
    %1285 = vmatprep.mubr.f32.mxu0 0.0
    %1286 = vmatmul.mubr.f32.gmra.mrb[0].mxu0 %v1183
    %v1287 = vpop.f32.mrb[0].mxu0
    %v1288 = vadd.f32 0.0, %v1287
    %v1289 = vpop.f32.mrb[0].mxu0
    %1290 = vdwg.mxu0
    %1291 = vmatprep.subr.mxu0 0.0
    %1292 = vmatpush1.msra.mxu0 %v1205
    %1293 = vmatprep.subr.mxu0 0.0
    %1294 = vmatpush1.msra.mxu0 %v1206
    %1295 = vmatprep.subr.mxu0 0.0
    %1296 = vmatpush1.msra.mxu0 %v1207
    %1297 = vmatprep.subr.mxu0 0.0
    %1298 = vmatpush1.msra.mxu0 %v1208
    %1299 = vmatprep.subr.mxu0 0.0
    %1300 = vmatpush1.msra.mxu0 %v1209
    %1301 = vmatprep.subr.mxu0 0.0
    %1302 = vmatpush1.msra.mxu0 %v1210
    %1303 = vmatprep.subr.mxu0 0.0
    %1304 = vmatpush1.msra.mxu0 %v1211
    %1305 = vmatprep.subr.mxu0 0.0
    %1306 = vmatpush1.msra.mxu0 %v1212
    %1307 = vmatprep.subr.mxu0 0.0
    %1308 = vmatpush1.msra.mxu0 %v1213
    %1309 = vmatprep.subr.mxu0 0.0
    %1310 = vmatpush1.msra.mxu0 %v1214
    %1311 = vmatprep.subr.mxu0 0.0
    %1312 = vmatpush1.msra.mxu0 %v1215
    %1313 = vmatprep.subr.mxu0 0.0
    %1314 = vmatpush1.msra.mxu0 %v1216
    %1315 = vmatprep.subr.mxu0 0.0
    %1316 = vmatpush1.msra.mxu0 %v1217
    %1317 = vmatprep.subr.mxu0 0.0
    %1318 = vmatpush1.msra.mxu0 %v1218
    %1319 = vmatprep.subr.mxu0 0.0
    %1320 = vmatpush1.msra.mxu0 %v1219
    %1321 = vmatprep.subr.mxu0 0.0
    %1322 = vmatpush1.msra.mxu0 %v1220
    %1323 = vmatprep.subr.mxu0 0.0
    %1324 = vmatpush1.msra.mxu0 0.0
    %1325 = vmatprep.subr.mxu0 0.0
    %1326 = vmatpush1.msra.mxu0 0.0
    %1327 = vmatprep.subr.mxu0 0.0
    %1328 = vmatpush1.msra.mxu0 0.0
    %1329 = vmatprep.subr.mxu0 0.0
    %1330 = vmatpush1.msra.mxu0 0.0
    %1331 = vmatprep.subr.mxu0 0.0
    %1332 = vmatpush1.msra.mxu0 0.0
    %1333 = vmatprep.subr.mxu0 0.0
    %1334 = vmatpush1.msra.mxu0 0.0
    %1335 = vmatprep.subr.mxu0 0.0
    %1336 = vmatpush1.msra.mxu0 0.0
    %1337 = vmatprep.subr.mxu0 0.0
    %1338 = vmatpush1.msra.mxu0 0.0
    %1339 = vmatprep.subr.mxu0 0.0
    %1340 = vmatpush1.msra.mxu0 0.0
    %1341 = vmatprep.subr.mxu0 0.0
    %1342 = vmatpush1.msra.mxu0 0.0
    %1343 = vmatprep.subr.mxu0 0.0
    %1344 = vmatpush1.msra.mxu0 0.0
    %1345 = vmatprep.subr.mxu0 0.0
    %1346 = vmatpush1.msra.mxu0 0.0
    %1347 = vmatprep.subr.mxu0 0.0
    %1348 = vmatpush1.msra.mxu0 0.0
    %1349 = vmatprep.subr.mxu0 0.0
    %1350 = vmatpush1.msra.mxu0 0.0
    %1351 = vmatprep.subr.mxu0 0.0
    %1352 = vmatpush1.msra.mxu0 0.0
    %1353 = vmatprep.subr.mxu0 0.0
    %1354 = vmatpush1.msra.mxu0 0.0
    %1355 = vmatprep.mubr.f32.mxu0 0.0
    %1356 = vmatmul.mubr.f32.gmra.mrb[0].mxu0 %v1204
    %v1357 = vpop.f32.mrb[0].mxu0
    %v1358 = vadd.f32 0.0, %v1357
    %v1359 = vpop.f32.mrb[0].mxu0
    %1360 = vdwg.mxu0
    %v1361 = vmul.f32 %v1288, %v1288
    %v1362 = vsub.f32 %v1358, %v1361
    %v1363 = vmax.f32 %v1362, 0.0
    %v1364 = vlaneseq
    %v1365 = vshrl.u32 %v1364, 7
    %v1366 = vsub.s32 0, %v1365
    %v1367 = vrot.slane %v1288, %v1366
    %v1368 = vsub.f32 %v1163, %v1367
    %v1369 = vsub.f32 %v1164, %v1367
    %v1370 = vsub.f32 %v1165, %v1367
    %v1371 = vsub.f32 %v1166, %v1367
    %v1372 = vsub.f32 %v1167, %v1367
    %v1373 = vsub.f32 %v1168, %v1367
    %v1374 = vsub.f32 %v1169, %v1367
    %v1375 = vsub.f32 %v1170, %v1367
    %v1376 = vadd.f32 %v1363, 1e-05
    %v1377 = vrsqrt.pop %v1376
    %v1378 = vlaneseq
    %v1379 = vshrl.u32 %v1378, 7
    %v1380 = vsub.s32 0, %v1379
    %v1381 = vrot.slane %v1377, %v1380
    %v1382 = vmul.f32 %v1368, %v1381
    %v1383 = vmul.f32 %v1369, %v1381
    %v1384 = vmul.f32 %v1370, %v1381
    %v1385 = vmul.f32 %v1371, %v1381
    %v1386 = vmul.f32 %v1372, %v1381
    %v1387 = vmul.f32 %v1373, %v1381
    %v1388 = vmul.f32 %v1374, %v1381
    %v1389 = vmul.f32 %v1375, %v1381
    %v1390 = vmax.f32 %v1382, 0.0
    %v1391 = vmax.f32 %v1383, 0.0
    %v1392 = vmax.f32 %v1384, 0.0
    %v1393 = vmax.f32 %v1385, 0.0
    %v1394 = vmax.f32 %v1386, 0.0
    %v1395 = vmax.f32 %v1387, 0.0
    %v1396 = vmax.f32 %v1388, 0.0
    %v1397 = vmax.f32 %v1389, 0.0
    %v1398 = vld [vmem:[#allocation8] sm:$0xff]
    %v1399 = vld [vmem:[#allocation8 + $0x8] sm:$0xff]
    %v1400 = vld [vmem:[#allocation8 + $0x10] sm:$0xff]
    %v1401 = vld [vmem:[#allocation8 + $0x18] sm:$0xff]
    %v1403 = vsel %vm469, %v1398, 0
    %v1406 = vsel %vm469, %v1399, 0
    %v1409 = vsel %vm469, %v1400, 0
    %v1412 = vsel %vm469, %v1401, 0
    %1414 = vmatprep.subr.mxu0 0.0
    %1415 = vmatpush1.msra.mxu0 %v1390
    %1416 = vmatprep.subr.mxu0 0.0
    %1417 = vmatpush1.msra.mxu0 %v1391
    %1418 = vmatprep.subr.mxu0 0.0
    %1419 = vmatpush1.msra.mxu0 %v1392
    %1420 = vmatprep.subr.mxu0 0.0
    %1421 = vmatpush1.msra.mxu0 %v1393
    %1422 = vmatprep.subr.mxu0 0.0
    %1423 = vmatpush1.msra.mxu0 %v1394
    %1424 = vmatprep.subr.mxu0 0.0
    %1425 = vmatpush1.msra.mxu0 %v1395
    %1426 = vmatprep.subr.mxu0 0.0
    %1427 = vmatpush1.msra.mxu0 %v1396
    %1428 = vmatprep.subr.mxu0 0.0
    %1429 = vmatpush1.msra.mxu0 %v1397
    %1430 = vmatprep.subr.mxu0 0.0
    %1431 = vmatpush1.msra.mxu0 0.0
    %1432 = vmatprep.subr.mxu0 0.0
    %1433 = vmatpush1.msra.mxu0 0.0
    %1434 = vmatprep.subr.mxu0 0.0
    %1435 = vmatpush1.msra.mxu0 0.0
    %1436 = vmatprep.subr.mxu0 0.0
    %1437 = vmatpush1.msra.mxu0 0.0
    %1438 = vmatprep.subr.mxu0 0.0
    %1439 = vmatpush1.msra.mxu0 0.0
    %1440 = vmatprep.subr.mxu0 0.0
    %1441 = vmatpush1.msra.mxu0 0.0
    %1442 = vmatprep.subr.mxu0 0.0
    %1443 = vmatpush1.msra.mxu0 0.0
    %1444 = vmatprep.subr.mxu0 0.0
    %1445 = vmatpush1.msra.mxu0 0.0
    %1446 = vmatprep.subr.mxu0 0.0
    %1447 = vmatpush1.msra.mxu0 0.0
    %1448 = vmatprep.subr.mxu0 0.0
    %1449 = vmatpush1.msra.mxu0 0.0
    %1450 = vmatprep.subr.mxu0 0.0
    %1451 = vmatpush1.msra.mxu0 0.0
    %1452 = vmatprep.subr.mxu0 0.0
    %1453 = vmatpush1.msra.mxu0 0.0
    %1454 = vmatprep.subr.mxu0 0.0
    %1455 = vmatpush1.msra.mxu0 0.0
    %1456 = vmatprep.subr.mxu0 0.0
    %1457 = vmatpush1.msra.mxu0 0.0
    %1458 = vmatprep.subr.mxu0 0.0
    %1459 = vmatpush1.msra.mxu0 0.0
    %1460 = vmatprep.subr.mxu0 0.0
    %1461 = vmatpush1.msra.mxu0 0.0
    %1462 = vmatprep.subr.mxu0 0.0
    %1463 = vmatpush1.msra.mxu0 0.0
    %1464 = vmatprep.subr.mxu0 0.0
    %1465 = vmatpush1.msra.mxu0 0.0
    %1466 = vmatprep.subr.mxu0 0.0
    %1467 = vmatpush1.msra.mxu0 0.0
    %1468 = vmatprep.subr.mxu0 0.0
    %1469 = vmatpush1.msra.mxu0 0.0
    %1470 = vmatprep.subr.mxu0 0.0
    %1471 = vmatpush1.msra.mxu0 0.0
    %1472 = vmatprep.subr.mxu0 0.0
    %1473 = vmatpush1.msra.mxu0 0.0
    %1474 = vmatprep.subr.mxu0 0.0
    %1475 = vmatpush1.msra.mxu0 0.0
    %1476 = vmatprep.subr.mxu0 0.0
    %1477 = vmatpush1.msra.mxu0 0.0
    %1478 = vmatprep.mubr.f32.mxu0 0.0
    %1479 = vmatmul.mubr.f32.gmra.mrb[0].mxu0 %v1403
    %v1480 = vpop.f32.mrb[0].mxu0
    %v1481 = vadd.f32 0.0, %v1480
    %v1482 = vpop.f32.mrb[0].mxu0
    %1483 = vmatprep.mubr.f32.mxu0 0.0
    %1484 = vmatmul.mubr.f32.gmra.mrb[0].mxu0 %v1406
    %v1485 = vpop.f32.mrb[0].mxu0
    %v1486 = vadd.f32 0.0, %v1485
    %v1487 = vpop.f32.mrb[0].mxu0
    %1488 = vmatprep.mubr.f32.mxu0 0.0
    %1489 = vmatmul.mubr.f32.gmra.mrb[0].mxu0 %v1409
    %v1490 = vpop.f32.mrb[0].mxu0
    %v1491 = vadd.f32 0.0, %v1490
    %v1492 = vpop.f32.mrb[0].mxu0
    %1493 = vmatprep.mubr.f32.mxu0 0.0
    %1494 = vmatmul.mubr.f32.gmra.mrb[0].mxu0 %v1412
    %v1495 = vpop.f32.mrb[0].mxu0
    %v1496 = vadd.f32 0.0, %v1495
    %v1497 = vpop.f32.mrb[0].mxu0
    %1498 = vdwg.mxu0
    %s1499 = scalar_lea.vmem [#allocation8], 32
    %v1500 = vld [vmem:[%s1499] sm:$0xff]
    %v1501 = vld [vmem:[%s1499 + $0x8] sm:$0xff]
    %v1502 = vld [vmem:[%s1499 + $0x10] sm:$0xff]
    %v1503 = vld [vmem:[%s1499 + $0x18] sm:$0xff]
    %v1505 = vsel %vm469, %v1500, 0
    %v1508 = vsel %vm469, %v1501, 0
    %v1511 = vsel %vm469, %v1502, 0
    %v1514 = vsel %vm469, %v1503, 0
    %1516 = vmatprep.subr.mxu0 0.0
    %1517 = vmatpush1.msra.mxu0 %v1390
    %1518 = vmatprep.subr.mxu0 0.0
    %1519 = vmatpush1.msra.mxu0 %v1391
    %1520 = vmatprep.subr.mxu0 0.0
    %1521 = vmatpush1.msra.mxu0 %v1392
    %1522 = vmatprep.subr.mxu0 0.0
    %1523 = vmatpush1.msra.mxu0 %v1393
    %1524 = vmatprep.subr.mxu0 0.0
    %1525 = vmatpush1.msra.mxu0 %v1394
    %1526 = vmatprep.subr.mxu0 0.0
    %1527 = vmatpush1.msra.mxu0 %v1395
    %1528 = vmatprep.subr.mxu0 0.0
    %1529 = vmatpush1.msra.mxu0 %v1396
    %1530 = vmatprep.subr.mxu0 0.0
    %1531 = vmatpush1.msra.mxu0 %v1397
    %1532 = vmatprep.subr.mxu0 0.0
    %1533 = vmatpush1.msra.mxu0 0.0
    %1534 = vmatprep.subr.mxu0 0.0
    %1535 = vmatpush1.msra.mxu0 0.0
    %1536 = vmatprep.subr.mxu0 0.0
    %1537 = vmatpush1.msra.mxu0 0.0
    %1538 = vmatprep.subr.mxu0 0.0
    %1539 = vmatpush1.msra.mxu0 0.0
    %1540 = vmatprep.subr.mxu0 0.0
    %1541 = vmatpush1.msra.mxu0 0.0
    %1542 = vmatprep.subr.mxu0 0.0
    %1543 = vmatpush1.msra.mxu0 0.0
    %1544 = vmatprep.subr.mxu0 0.0
    %1545 = vmatpush1.msra.mxu0 0.0
    %1546 = vmatprep.subr.mxu0 0.0
    %1547 = vmatpush1.msra.mxu0 0.0
    %1548 = vmatprep.subr.mxu0 0.0
    %1549 = vmatpush1.msra.mxu0 0.0
    %1550 = vmatprep.subr.mxu0 0.0
    %1551 = vmatpush1.msra.mxu0 0.0
    %1552 = vmatprep.subr.mxu0 0.0
    %1553 = vmatpush1.msra.mxu0 0.0
    %1554 = vmatprep.subr.mxu0 0.0
    %1555 = vmatpush1.msra.mxu0 0.0
    %1556 = vmatprep.subr.mxu0 0.0
    %1557 = vmatpush1.msra.mxu0 0.0
    %1558 = vmatprep.subr.mxu0 0.0
    %1559 = vmatpush1.msra.mxu0 0.0
    %1560 = vmatprep.subr.mxu0 0.0
    %1561 = vmatpush1.msra.mxu0 0.0
    %1562 = vmatprep.subr.mxu0 0.0
    %1563 = vmatpush1.msra.mxu0 0.0
    %1564 = vmatprep.subr.mxu0 0.0
    %1565 = vmatpush1.msra.mxu0 0.0
    %1566 = vmatprep.subr.mxu0 0.0
    %1567 = vmatpush1.msra.mxu0 0.0
    %1568 = vmatprep.subr.mxu0 0.0
    %1569 = vmatpush1.msra.mxu0 0.0
    %1570 = vmatprep.subr.mxu0 0.0
    %1571 = vmatpush1.msra.mxu0 0.0
    %1572 = vmatprep.subr.mxu0 0.0
    %1573 = vmatpush1.msra.mxu0 0.0
    %1574 = vmatprep.subr.mxu0 0.0
    %1575 = vmatpush1.msra.mxu0 0.0
    %1576 = vmatprep.subr.mxu0 0.0
    %1577 = vmatpush1.msra.mxu0 0.0
    %1578 = vmatprep.subr.mxu0 0.0
    %1579 = vmatpush1.msra.mxu0 0.0
    %1580 = vmatprep.mubr.f32.mxu0 0.0
    %1581 = vmatmul.mubr.f32.gmra.mrb[0].mxu0 %v1505
    %v1582 = vpop.f32.mrb[0].mxu0
    %v1583 = vadd.f32 0.0, %v1582
    %v1584 = vpop.f32.mrb[0].mxu0
    %1585 = vmatprep.mubr.f32.mxu0 0.0
    %1586 = vmatmul.mubr.f32.gmra.mrb[0].mxu0 %v1508
    %v1587 = vpop.f32.mrb[0].mxu0
    %v1588 = vadd.f32 0.0, %v1587
    %v1589 = vpop.f32.mrb[0].mxu0
    %1590 = vmatprep.mubr.f32.mxu0 0.0
    %1591 = vmatmul.mubr.f32.gmra.mrb[0].mxu0 %v1511
    %v1592 = vpop.f32.mrb[0].mxu0
    %v1593 = vadd.f32 0.0, %v1592
    %v1594 = vpop.f32.mrb[0].mxu0
    %1595 = vmatprep.mubr.f32.mxu0 0.0
    %1596 = vmatmul.mubr.f32.gmra.mrb[0].mxu0 %v1514
    %v1597 = vpop.f32.mrb[0].mxu0
    %v1598 = vadd.f32 0.0, %v1597
    %v1599 = vpop.f32.mrb[0].mxu0
    %1600 = vdwg.mxu0
    %v1601 = vmax.f32 %v1481, %v1583
    %v1602 = vmax.f32 %v1486, %v1588
    %v1603 = vmax.f32 %v1491, %v1593
    %v1604 = vmax.f32 %v1496, %v1598
    %v1605 = vld [vmem:[%s11] sm:$0xff]
    %v1606 = vld [vmem:[%s11 + $0x8] sm:$0xff]
    %v1607 = vld [vmem:[%s11 + $0x10] sm:$0xff]
    %v1608 = vld [vmem:[%s11 + $0x18] sm:$0xff]
    %v1609 = vld [vmem:[%s11 + $0x20] sm:$0xff]
    %v1610 = vld [vmem:[%s11 + $0x28] sm:$0xff]
    %v1611 = vld [vmem:[%s11 + $0x30] sm:$0xff]
    %v1612 = vld [vmem:[%s11 + $0x38] sm:$0xff]
    %v1613 = vld [vmem:[%s11 + $0x40] sm:$0xff]
    %v1614 = vld [vmem:[%s11 + $0x48] sm:$0xff]
    %v1615 = vld [vmem:[%s11 + $0x50] sm:$0xff]
    %v1616 = vld [vmem:[%s11 + $0x58] sm:$0xff]
    %v1617 = vld [vmem:[%s11 + $0x60] sm:$0xff]
    %v1618 = vld [vmem:[%s11 + $0x68] sm:$0xff]
    %v1619 = vld [vmem:[%s11 + $0x70] sm:$0xff]
    %v1620 = vld [vmem:[%s11 + $0x78] sm:$0xff]
    %1621 = vmatprep.subr.mxu0 0.0
    %1622 = vmatpush1.msra.mxu0 %v1605
    %1623 = vmatprep.subr.mxu0 0.0
    %1624 = vmatpush1.msra.mxu0 %v1606
    %1625 = vmatprep.subr.mxu0 0.0
    %1626 = vmatpush1.msra.mxu0 %v1607
    %1627 = vmatprep.subr.mxu0 0.0
    %1628 = vmatpush1.msra.mxu0 %v1608
    %1629 = vmatprep.subr.mxu0 0.0
    %1630 = vmatpush1.msra.mxu0 %v1609
    %1631 = vmatprep.subr.mxu0 0.0
    %1632 = vmatpush1.msra.mxu0 %v1610
    %1633 = vmatprep.subr.mxu0 0.0
    %1634 = vmatpush1.msra.mxu0 %v1611
    %1635 = vmatprep.subr.mxu0 0.0
    %1636 = vmatpush1.msra.mxu0 %v1612
    %1637 = vmatprep.subr.mxu0 0.0
    %1638 = vmatpush1.msra.mxu0 %v1613
    %1639 = vmatprep.subr.mxu0 0.0
    %1640 = vmatpush1.msra.mxu0 %v1614
    %1641 = vmatprep.subr.mxu0 0.0
    %1642 = vmatpush1.msra.mxu0 %v1615
    %1643 = vmatprep.subr.mxu0 0.0
    %1644 = vmatpush1.msra.mxu0 %v1616
    %1645 = vmatprep.subr.mxu0 0.0
    %1646 = vmatpush1.msra.mxu0 %v1617
    %1647 = vmatprep.subr.mxu0 0.0
    %1648 = vmatpush1.msra.mxu0 %v1618
    %1649 = vmatprep.subr.mxu0 0.0
    %1650 = vmatpush1.msra.mxu0 %v1619
    %1651 = vmatprep.subr.mxu0 0.0
    %1652 = vmatpush1.msra.mxu0 %v1620
    %1653 = vmatprep.subr.mxu0 0.0
    %1654 = vmatpush1.msra.mxu0 0.0
    %1655 = vmatprep.subr.mxu0 0.0
    %1656 = vmatpush1.msra.mxu0 0.0
    %1657 = vmatprep.subr.mxu0 0.0
    %1658 = vmatpush1.msra.mxu0 0.0
    %1659 = vmatprep.subr.mxu0 0.0
    %1660 = vmatpush1.msra.mxu0 0.0
    %1661 = vmatprep.subr.mxu0 0.0
    %1662 = vmatpush1.msra.mxu0 0.0
    %1663 = vmatprep.subr.mxu0 0.0
    %1664 = vmatpush1.msra.mxu0 0.0
    %1665 = vmatprep.subr.mxu0 0.0
    %1666 = vmatpush1.msra.mxu0 0.0
    %1667 = vmatprep.subr.mxu0 0.0
    %1668 = vmatpush1.msra.mxu0 0.0
    %1669 = vmatprep.subr.mxu0 0.0
    %1670 = vmatpush1.msra.mxu0 0.0
    %1671 = vmatprep.subr.mxu0 0.0
    %1672 = vmatpush1.msra.mxu0 0.0
    %1673 = vmatprep.subr.mxu0 0.0
    %1674 = vmatpush1.msra.mxu0 0.0
    %1675 = vmatprep.subr.mxu0 0.0
    %1676 = vmatpush1.msra.mxu0 0.0
    %1677 = vmatprep.subr.mxu0 0.0
    %1678 = vmatpush1.msra.mxu0 0.0
    %1679 = vmatprep.subr.mxu0 0.0
    %1680 = vmatpush1.msra.mxu0 0.0
    %1681 = vmatprep.subr.mxu0 0.0
    %1682 = vmatpush1.msra.mxu0 0.0
    %1683 = vmatprep.subr.mxu0 0.0
    %1684 = vmatpush1.msra.mxu0 0.0
    %1685 = vmatprep.mubr.f32.mxu0 0.0
    %1686 = vmatmul.mubr.f32.gmra.mrb[0].mxu0 %v1601
    %v1687 = vpop.f32.mrb[0].mxu0
    %v1688 = vadd.f32 0.0, %v1687
    %v1689 = vpop.f32.mrb[0].mxu0
    %1690 = vmatprep.mubr.f32.mxu0 0.0
    %1691 = vmatmul.mubr.f32.gmra.mrb[0].mxu0 %v1602
    %v1692 = vpop.f32.mrb[0].mxu0
    %v1693 = vadd.f32 0.0, %v1692
    %v1694 = vpop.f32.mrb[0].mxu0
    %1695 = vmatprep.mubr.f32.mxu0 0.0
    %1696 = vmatmul.mubr.f32.gmra.mrb[0].mxu0 %v1603
    %v1697 = vpop.f32.mrb[0].mxu0
    %v1698 = vadd.f32 0.0, %v1697
    %v1699 = vpop.f32.mrb[0].mxu0
    %1700 = vmatprep.mubr.f32.mxu0 0.0
    %1701 = vmatmul.mubr.f32.gmra.mrb[0].mxu0 %v1604
    %v1702 = vpop.f32.mrb[0].mxu0
    %v1703 = vadd.f32 0.0, %v1702
    %v1704 = vpop.f32.mrb[0].mxu0
    %1705 = vdwg.mxu0
    %s1706 = scalar_lea.vmem %s11, 128
    %v1707 = vld [vmem:[%s1706] sm:$0xff]
    %v1708 = vld [vmem:[%s1706 + $0x8] sm:$0xff]
    %v1709 = vld [vmem:[%s1706 + $0x10] sm:$0xff]
    %v1710 = vld [vmem:[%s1706 + $0x18] sm:$0xff]
    %v1711 = vld [vmem:[%s1706 + $0x20] sm:$0xff]
    %v1712 = vld [vmem:[%s1706 + $0x28] sm:$0xff]
    %v1713 = vld [vmem:[%s1706 + $0x30] sm:$0xff]
    %v1714 = vld [vmem:[%s1706 + $0x38] sm:$0xff]
    %v1715 = vld [vmem:[%s1706 + $0x40] sm:$0xff]
    %v1716 = vld [vmem:[%s1706 + $0x48] sm:$0xff]
    %v1717 = vld [vmem:[%s1706 + $0x50] sm:$0xff]
    %v1718 = vld [vmem:[%s1706 + $0x58] sm:$0xff]
    %v1719 = vld [vmem:[%s1706 + $0x60] sm:$0xff]
    %v1720 = vld [vmem:[%s1706 + $0x68] sm:$0xff]
    %v1721 = vld [vmem:[%s1706 + $0x70] sm:$0xff]
    %v1722 = vld [vmem:[%s1706 + $0x78] sm:$0xff]
    %1723 = vmatprep.subr.mxu0 0.0
    %1724 = vmatpush1.msra.mxu0 %v1707
    %1725 = vmatprep.subr.mxu0 0.0
    %1726 = vmatpush1.msra.mxu0 %v1708
    %1727 = vmatprep.subr.mxu0 0.0
    %1728 = vmatpush1.msra.mxu0 %v1709
    %1729 = vmatprep.subr.mxu0 0.0
    %1730 = vmatpush1.msra.mxu0 %v1710
    %1731 = vmatprep.subr.mxu0 0.0
    %1732 = vmatpush1.msra.mxu0 %v1711
    %1733 = vmatprep.subr.mxu0 0.0
    %1734 = vmatpush1.msra.mxu0 %v1712
    %1735 = vmatprep.subr.mxu0 0.0
    %1736 = vmatpush1.msra.mxu0 %v1713
    %1737 = vmatprep.subr.mxu0 0.0
    %1738 = vmatpush1.msra.mxu0 %v1714
    %1739 = vmatprep.subr.mxu0 0.0
    %1740 = vmatpush1.msra.mxu0 %v1715
    %1741 = vmatprep.subr.mxu0 0.0
    %1742 = vmatpush1.msra.mxu0 %v1716
    %1743 = vmatprep.subr.mxu0 0.0
    %1744 = vmatpush1.msra.mxu0 %v1717
    %1745 = vmatprep.subr.mxu0 0.0
    %1746 = vmatpush1.msra.mxu0 %v1718
    %1747 = vmatprep.subr.mxu0 0.0
    %1748 = vmatpush1.msra.mxu0 %v1719
    %1749 = vmatprep.subr.mxu0 0.0
    %1750 = vmatpush1.msra.mxu0 %v1720
    %1751 = vmatprep.subr.mxu0 0.0
    %1752 = vmatpush1.msra.mxu0 %v1721
    %1753 = vmatprep.subr.mxu0 0.0
    %1754 = vmatpush1.msra.mxu0 %v1722
    %1755 = vmatprep.subr.mxu0 0.0
    %1756 = vmatpush1.msra.mxu0 0.0
    %1757 = vmatprep.subr.mxu0 0.0
    %1758 = vmatpush1.msra.mxu0 0.0
    %1759 = vmatprep.subr.mxu0 0.0
    %1760 = vmatpush1.msra.mxu0 0.0
    %1761 = vmatprep.subr.mxu0 0.0
    %1762 = vmatpush1.msra.mxu0 0.0
    %1763 = vmatprep.subr.mxu0 0.0
    %1764 = vmatpush1.msra.mxu0 0.0
    %1765 = vmatprep.subr.mxu0 0.0
    %1766 = vmatpush1.msra.mxu0 0.0
    %1767 = vmatprep.subr.mxu0 0.0
    %1768 = vmatpush1.msra.mxu0 0.0
    %1769 = vmatprep.subr.mxu0 0.0
    %1770 = vmatpush1.msra.mxu0 0.0
    %1771 = vmatprep.subr.mxu0 0.0
    %1772 = vmatpush1.msra.mxu0 0.0
    %1773 = vmatprep.subr.mxu0 0.0
    %1774 = vmatpush1.msra.mxu0 0.0
    %1775 = vmatprep.subr.mxu0 0.0
    %1776 = vmatpush1.msra.mxu0 0.0
    %1777 = vmatprep.subr.mxu0 0.0
    %1778 = vmatpush1.msra.mxu0 0.0
    %1779 = vmatprep.subr.mxu0 0.0
    %1780 = vmatpush1.msra.mxu0 0.0
    %1781 = vmatprep.subr.mxu0 0.0
    %1782 = vmatpush1.msra.mxu0 0.0
    %1783 = vmatprep.subr.mxu0 0.0
    %1784 = vmatpush1.msra.mxu0 0.0
    %1785 = vmatprep.subr.mxu0 0.0
    %1786 = vmatpush1.msra.mxu0 0.0
    %1787 = vmatprep.mubr.f32.mxu0 0.0
    %1788 = vmatmul.mubr.f32.gmra.mrb[0].mxu0 %v1601
    %v1789 = vpop.f32.mrb[0].mxu0
    %v1790 = vadd.f32 0.0, %v1789
    %v1791 = vpop.f32.mrb[0].mxu0
    %1792 = vmatprep.mubr.f32.mxu0 0.0
    %1793 = vmatmul.mubr.f32.gmra.mrb[0].mxu0 %v1602
    %v1794 = vpop.f32.mrb[0].mxu0
    %v1795 = vadd.f32 0.0, %v1794
    %v1796 = vpop.f32.mrb[0].mxu0
    %1797 = vmatprep.mubr.f32.mxu0 0.0
    %1798 = vmatmul.mubr.f32.gmra.mrb[0].mxu0 %v1603
    %v1799 = vpop.f32.mrb[0].mxu0
    %v1800 = vadd.f32 0.0, %v1799
    %v1801 = vpop.f32.mrb[0].mxu0
    %1802 = vmatprep.mubr.f32.mxu0 0.0
    %1803 = vmatmul.mubr.f32.gmra.mrb[0].mxu0 %v1604
    %v1804 = vpop.f32.mrb[0].mxu0
    %v1805 = vadd.f32 0.0, %v1804
    %v1806 = vpop.f32.mrb[0].mxu0
    %1807 = vdwg.mxu0
    %v1808 = vmax.f32 %v1688, %v1790
    %v1809 = vmax.f32 %v1693, %v1795
    %v1810 = vmax.f32 %v1698, %v1800
    %v1811 = vmax.f32 %v1703, %v1805
    %v1812 = vld [vmem:[#allocation10] sm:$0xff]
    %v1813 = vld [vmem:[#allocation10 + $0x8] sm:$0xff]
    %v1814 = vld [vmem:[#allocation10 + $0x10] sm:$0xff]
    %v1815 = vld [vmem:[#allocation10 + $0x18] sm:$0xff]
    %vm1816 = vcmask 261120
    %v1818 = vsel %vm1816, %v1812, 0
    %v1821 = vsel %vm1816, %v1813, 0
    %v1824 = vsel %vm1816, %v1814, 0
    %v1827 = vsel %vm1816, %v1815, 0
    %1829 = vmatprep.subr.mxu0 0.0
    %1830 = vmatpush1.msra.mxu0 %v1808
    %1831 = vmatprep.subr.mxu0 0.0
    %1832 = vmatpush1.msra.mxu0 %v1809
    %1833 = vmatprep.subr.mxu0 0.0
    %1834 = vmatpush1.msra.mxu0 %v1810
    %1835 = vmatprep.subr.mxu0 0.0
    %1836 = vmatpush1.msra.mxu0 %v1811
    %1837 = vmatprep.subr.mxu0 0.0
    %1838 = vmatpush1.msra.mxu0 0.0
    %1839 = vmatprep.subr.mxu0 0.0
    %1840 = vmatpush1.msra.mxu0 0.0
    %1841 = vmatprep.subr.mxu0 0.0
    %1842 = vmatpush1.msra.mxu0 0.0
    %1843 = vmatprep.subr.mxu0 0.0
    %1844 = vmatpush1.msra.mxu0 0.0
    %1845 = vmatprep.subr.mxu0 0.0
    %1846 = vmatpush1.msra.mxu0 0.0
    %1847 = vmatprep.subr.mxu0 0.0
    %1848 = vmatpush1.msra.mxu0 0.0
    %1849 = vmatprep.subr.mxu0 0.0
    %1850 = vmatpush1.msra.mxu0 0.0
    %1851 = vmatprep.subr.mxu0 0.0
    %1852 = vmatpush1.msra.mxu0 0.0
    %1853 = vmatprep.subr.mxu0 0.0
    %1854 = vmatpush1.msra.mxu0 0.0
    %1855 = vmatprep.subr.mxu0 0.0
    %1856 = vmatpush1.msra.mxu0 0.0
    %1857 = vmatprep.subr.mxu0 0.0
    %1858 = vmatpush1.msra.mxu0 0.0
    %1859 = vmatprep.subr.mxu0 0.0
    %1860 = vmatpush1.msra.mxu0 0.0
    %1861 = vmatprep.subr.mxu0 0.0
    %1862 = vmatpush1.msra.mxu0 0.0
    %1863 = vmatprep.subr.mxu0 0.0
    %1864 = vmatpush1.msra.mxu0 0.0
    %1865 = vmatprep.subr.mxu0 0.0
    %1866 = vmatpush1.msra.mxu0 0.0
    %1867 = vmatprep.subr.mxu0 0.0
    %1868 = vmatpush1.msra.mxu0 0.0
    %1869 = vmatprep.subr.mxu0 0.0
    %1870 = vmatpush1.msra.mxu0 0.0
    %1871 = vmatprep.subr.mxu0 0.0
    %1872 = vmatpush1.msra.mxu0 0.0
    %1873 = vmatprep.subr.mxu0 0.0
    %1874 = vmatpush1.msra.mxu0 0.0
    %1875 = vmatprep.subr.mxu0 0.0
    %1876 = vmatpush1.msra.mxu0 0.0
    %1877 = vmatprep.subr.mxu0 0.0
    %1878 = vmatpush1.msra.mxu0 0.0
    %1879 = vmatprep.subr.mxu0 0.0
    %1880 = vmatpush1.msra.mxu0 0.0
    %1881 = vmatprep.subr.mxu0 0.0
    %1882 = vmatpush1.msra.mxu0 0.0
    %1883 = vmatprep.subr.mxu0 0.0
    %1884 = vmatpush1.msra.mxu0 0.0
    %1885 = vmatprep.subr.mxu0 0.0
    %1886 = vmatpush1.msra.mxu0 0.0
    %1887 = vmatprep.subr.mxu0 0.0
    %1888 = vmatpush1.msra.mxu0 0.0
    %1889 = vmatprep.subr.mxu0 0.0
    %1890 = vmatpush1.msra.mxu0 0.0
    %1891 = vmatprep.subr.mxu0 0.0
    %1892 = vmatpush1.msra.mxu0 0.0
    %1893 = vmatprep.mubr.f32.mxu0 0.0
    %1894 = vmatmul.mubr.f32.gmra.mrb[0].mxu0 %v1818
    %v1895 = vpop.f32.mrb[0].mxu0
    %v1896 = vadd.f32 0.0, %v1895
    %v1897 = vpop.f32.mrb[0].mxu0
    %1898 = vmatprep.mubr.f32.mxu0 0.0
    %1899 = vmatmul.mubr.f32.gmra.mrb[0].mxu0 %v1821
    %v1900 = vpop.f32.mrb[0].mxu0
    %v1901 = vadd.f32 0.0, %v1900
    %v1902 = vpop.f32.mrb[0].mxu0
    %1903 = vmatprep.mubr.f32.mxu0 0.0
    %1904 = vmatmul.mubr.f32.gmra.mrb[0].mxu0 %v1824
    %v1905 = vpop.f32.mrb[0].mxu0
    %v1906 = vadd.f32 0.0, %v1905
    %v1907 = vpop.f32.mrb[0].mxu0
    %1908 = vmatprep.mubr.f32.mxu0 0.0
    %1909 = vmatmul.mubr.f32.gmra.mrb[0].mxu0 %v1827
    %v1910 = vpop.f32.mrb[0].mxu0
    %v1911 = vadd.f32 0.0, %v1910
    %v1912 = vpop.f32.mrb[0].mxu0
    %1913 = vdwg.mxu0
    %s1914 = scalar_lea.vmem [#allocation10], 32
    %v1915 = vld [vmem:[%s1914] sm:$0xff]
    %v1916 = vld [vmem:[%s1914 + $0x8] sm:$0xff]
    %v1917 = vld [vmem:[%s1914 + $0x10] sm:$0xff]
    %v1918 = vld [vmem:[%s1914 + $0x18] sm:$0xff]
    %v1920 = vsel %vm1816, %v1915, 0
    %v1923 = vsel %vm1816, %v1916, 0
    %v1926 = vsel %vm1816, %v1917, 0
    %v1929 = vsel %vm1816, %v1918, 0
    %1931 = vmatprep.subr.mxu0 0.0
    %1932 = vmatpush1.msra.mxu0 %v1808
    %1933 = vmatprep.subr.mxu0 0.0
    %1934 = vmatpush1.msra.mxu0 %v1809
    %1935 = vmatprep.subr.mxu0 0.0
    %1936 = vmatpush1.msra.mxu0 %v1810
    %1937 = vmatprep.subr.mxu0 0.0
    %1938 = vmatpush1.msra.mxu0 %v1811
    %1939 = vmatprep.subr.mxu0 0.0
    %1940 = vmatpush1.msra.mxu0 0.0
    %1941 = vmatprep.subr.mxu0 0.0
    %1942 = vmatpush1.msra.mxu0 0.0
    %1943 = vmatprep.subr.mxu0 0.0
    %1944 = vmatpush1.msra.mxu0 0.0
    %1945 = vmatprep.subr.mxu0 0.0
    %1946 = vmatpush1.msra.mxu0 0.0
    %1947 = vmatprep.subr.mxu0 0.0
    %1948 = vmatpush1.msra.mxu0 0.0
    %1949 = vmatprep.subr.mxu0 0.0
    %1950 = vmatpush1.msra.mxu0 0.0
    %1951 = vmatprep.subr.mxu0 0.0
    %1952 = vmatpush1.msra.mxu0 0.0
    %1953 = vmatprep.subr.mxu0 0.0
    %1954 = vmatpush1.msra.mxu0 0.0
    %1955 = vmatprep.subr.mxu0 0.0
    %1956 = vmatpush1.msra.mxu0 0.0
    %1957 = vmatprep.subr.mxu0 0.0
    %1958 = vmatpush1.msra.mxu0 0.0
    %1959 = vmatprep.subr.mxu0 0.0
    %1960 = vmatpush1.msra.mxu0 0.0
    %1961 = vmatprep.subr.mxu0 0.0
    %1962 = vmatpush1.msra.mxu0 0.0
    %1963 = vmatprep.subr.mxu0 0.0
    %1964 = vmatpush1.msra.mxu0 0.0
    %1965 = vmatprep.subr.mxu0 0.0
    %1966 = vmatpush1.msra.mxu0 0.0
    %1967 = vmatprep.subr.mxu0 0.0
    %1968 = vmatpush1.msra.mxu0 0.0
    %1969 = vmatprep.subr.mxu0 0.0
    %1970 = vmatpush1.msra.mxu0 0.0
    %1971 = vmatprep.subr.mxu0 0.0
    %1972 = vmatpush1.msra.mxu0 0.0
    %1973 = vmatprep.subr.mxu0 0.0
    %1974 = vmatpush1.msra.mxu0 0.0
    %1975 = vmatprep.subr.mxu0 0.0
    %1976 = vmatpush1.msra.mxu0 0.0
    %1977 = vmatprep.subr.mxu0 0.0
    %1978 = vmatpush1.msra.mxu0 0.0
    %1979 = vmatprep.subr.mxu0 0.0
    %1980 = vmatpush1.msra.mxu0 0.0
    %1981 = vmatprep.subr.mxu0 0.0
    %1982 = vmatpush1.msra.mxu0 0.0
    %1983 = vmatprep.subr.mxu0 0.0
    %1984 = vmatpush1.msra.mxu0 0.0
    %1985 = vmatprep.subr.mxu0 0.0
    %1986 = vmatpush1.msra.mxu0 0.0
    %1987 = vmatprep.subr.mxu0 0.0
    %1988 = vmatpush1.msra.mxu0 0.0
    %1989 = vmatprep.subr.mxu0 0.0
    %1990 = vmatpush1.msra.mxu0 0.0
    %1991 = vmatprep.subr.mxu0 0.0
    %1992 = vmatpush1.msra.mxu0 0.0
    %1993 = vmatprep.subr.mxu0 0.0
    %1994 = vmatpush1.msra.mxu0 0.0
    %1995 = vmatprep.mubr.f32.mxu0 0.0
    %1996 = vmatmul.mubr.f32.gmra.mrb[0].mxu0 %v1920
    %v1997 = vpop.f32.mrb[0].mxu0
    %v1998 = vadd.f32 0.0, %v1997
    %v1999 = vpop.f32.mrb[0].mxu0
    %2000 = vmatprep.mubr.f32.mxu0 0.0
    %2001 = vmatmul.mubr.f32.gmra.mrb[0].mxu0 %v1923
    %v2002 = vpop.f32.mrb[0].mxu0
    %v2003 = vadd.f32 0.0, %v2002
    %v2004 = vpop.f32.mrb[0].mxu0
    %2005 = vmatprep.mubr.f32.mxu0 0.0
    %2006 = vmatmul.mubr.f32.gmra.mrb[0].mxu0 %v1926
    %v2007 = vpop.f32.mrb[0].mxu0
    %v2008 = vadd.f32 0.0, %v2007
    %v2009 = vpop.f32.mrb[0].mxu0
    %2010 = vmatprep.mubr.f32.mxu0 0.0
    %2011 = vmatmul.mubr.f32.gmra.mrb[0].mxu0 %v1929
    %v2012 = vpop.f32.mrb[0].mxu0
    %v2013 = vadd.f32 0.0, %v2012
    %v2014 = vpop.f32.mrb[0].mxu0
    %2015 = vdwg.mxu0
    %v2016 = vld [vmem:[%s15] sm:$0xff]
    %v2017 = vld [vmem:[%s15 + $0x8] sm:$0xff]
    %v2018 = vld [vmem:[%s15 + $0x10] sm:$0xff]
    %v2019 = vld [vmem:[%s15 + $0x18] sm:$0xff]
    %v2020 = vld [vmem:[%s15 + $0x20] sm:$0xff]
    %v2021 = vld [vmem:[%s15 + $0x28] sm:$0xff]
    %v2022 = vld [vmem:[%s15 + $0x30] sm:$0xff]
    %v2023 = vld [vmem:[%s15 + $0x38] sm:$0xff]
    %s2024 = scalar_lea.vmem %s15, 64
    %v2025 = vld [vmem:[%s2024] sm:$0xff]
    %v2026 = vld [vmem:[%s2024 + $0x8] sm:$0xff]
    %v2027 = vld [vmem:[%s2024 + $0x10] sm:$0xff]
    %v2028 = vld [vmem:[%s2024 + $0x18] sm:$0xff]
    %v2029 = vld [vmem:[%s2024 + $0x20] sm:$0xff]
    %v2030 = vld [vmem:[%s2024 + $0x28] sm:$0xff]
    %v2031 = vld [vmem:[%s2024 + $0x30] sm:$0xff]
    %v2032 = vld [vmem:[%s2024 + $0x38] sm:$0xff]
    %v2034 = vsel %vm469, %v1808, 0
    %v2037 = vsel %vm469, %v1809, 0
    %v2040 = vsel %vm469, %v1810, 0
    %v2043 = vsel %vm469, %v1811, 0
    %2045 = vmatprep.subr.mxu0 0.0
    %2046 = vmatpush1.msra.mxu0 %v2025
    %2047 = vmatprep.subr.mxu0 0.0
    %2048 = vmatpush1.msra.mxu0 %v2026
    %2049 = vmatprep.subr.mxu0 0.0
    %2050 = vmatpush1.msra.mxu0 %v2027
    %2051 = vmatprep.subr.mxu0 0.0
    %2052 = vmatpush1.msra.mxu0 %v2028
    %2053 = vmatprep.subr.mxu0 0.0
    %2054 = vmatpush1.msra.mxu0 %v2029
    %2055 = vmatprep.subr.mxu0 0.0
    %2056 = vmatpush1.msra.mxu0 %v2030
    %2057 = vmatprep.subr.mxu0 0.0
    %2058 = vmatpush1.msra.mxu0 %v2031
    %2059 = vmatprep.subr.mxu0 0.0
    %2060 = vmatpush1.msra.mxu0 %v2032
    %2061 = vmatprep.subr.mxu0 0.0
    %2062 = vmatpush1.msra.mxu0 0.0
    %2063 = vmatprep.subr.mxu0 0.0
    %2064 = vmatpush1.msra.mxu0 0.0
    %2065 = vmatprep.subr.mxu0 0.0
    %2066 = vmatpush1.msra.mxu0 0.0
    %2067 = vmatprep.subr.mxu0 0.0
    %2068 = vmatpush1.msra.mxu0 0.0
    %2069 = vmatprep.subr.mxu0 0.0
    %2070 = vmatpush1.msra.mxu0 0.0
    %2071 = vmatprep.subr.mxu0 0.0
    %2072 = vmatpush1.msra.mxu0 0.0
    %2073 = vmatprep.subr.mxu0 0.0
    %2074 = vmatpush1.msra.mxu0 0.0
    %2075 = vmatprep.subr.mxu0 0.0
    %2076 = vmatpush1.msra.mxu0 0.0
    %2077 = vmatprep.subr.mxu0 0.0
    %2078 = vmatpush1.msra.mxu0 0.0
    %2079 = vmatprep.subr.mxu0 0.0
    %2080 = vmatpush1.msra.mxu0 0.0
    %2081 = vmatprep.subr.mxu0 0.0
    %2082 = vmatpush1.msra.mxu0 0.0
    %2083 = vmatprep.subr.mxu0 0.0
    %2084 = vmatpush1.msra.mxu0 0.0
    %2085 = vmatprep.subr.mxu0 0.0
    %2086 = vmatpush1.msra.mxu0 0.0
    %2087 = vmatprep.subr.mxu0 0.0
    %2088 = vmatpush1.msra.mxu0 0.0
    %2089 = vmatprep.subr.mxu0 0.0
    %2090 = vmatpush1.msra.mxu0 0.0
    %2091 = vmatprep.subr.mxu0 0.0
    %2092 = vmatpush1.msra.mxu0 0.0
    %2093 = vmatprep.subr.mxu0 0.0
    %2094 = vmatpush1.msra.mxu0 0.0
    %2095 = vmatprep.subr.mxu0 0.0
    %2096 = vmatpush1.msra.mxu0 0.0
    %2097 = vmatprep.subr.mxu0 0.0
    %2098 = vmatpush1.msra.mxu0 0.0
    %2099 = vmatprep.subr.mxu0 0.0
    %2100 = vmatpush1.msra.mxu0 0.0
    %2101 = vmatprep.subr.mxu0 0.0
    %2102 = vmatpush1.msra.mxu0 0.0
    %2103 = vmatprep.subr.mxu0 0.0
    %2104 = vmatpush1.msra.mxu0 0.0
    %2105 = vmatprep.subr.mxu0 0.0
    %2106 = vmatpush1.msra.mxu0 0.0
    %2107 = vmatprep.subr.mxu0 0.0
    %2108 = vmatpush1.msra.mxu0 0.0
    %2109 = vmatprep.mubr.f32.mxu0 0.0
    %2110 = vmatmul.mubr.f32.gmra.mrb[0].mxu0 %v2034
    %v2111 = vpop.f32.mrb[0].mxu0
    %v2112 = vadd.f32 0.0, %v2111
    %v2113 = vpop.f32.mrb[0].mxu0
    %2114 = vmatprep.mubr.f32.mxu0 0.0
    %2115 = vmatmul.mubr.f32.gmra.mrb[0].mxu0 %v2037
    %v2116 = vpop.f32.mrb[0].mxu0
    %v2117 = vadd.f32 0.0, %v2116
    %v2118 = vpop.f32.mrb[0].mxu0
    %2119 = vmatprep.mubr.f32.mxu0 0.0
    %2120 = vmatmul.mubr.f32.gmra.mrb[0].mxu0 %v2040
    %v2121 = vpop.f32.mrb[0].mxu0
    %v2122 = vadd.f32 0.0, %v2121
    %v2123 = vpop.f32.mrb[0].mxu0
    %2124 = vmatprep.mubr.f32.mxu0 0.0
    %2125 = vmatmul.mubr.f32.gmra.mrb[0].mxu0 %v2043
    %v2126 = vpop.f32.mrb[0].mxu0
    %v2127 = vadd.f32 0.0, %v2126
    %v2128 = vpop.f32.mrb[0].mxu0
    %2129 = vdwg.mxu0
    %v2131 = vsel %vm469, %v1896, 0
    %v2134 = vsel %vm469, %v1901, 0
    %v2137 = vsel %vm469, %v1906, 0
    %v2140 = vsel %vm469, %v1911, 0
    %2142 = vmatprep.subr.mxu0 0.0
    %2143 = vmatpush1.msra.mxu0 %v2016
    %2144 = vmatprep.subr.mxu0 0.0
    %2145 = vmatpush1.msra.mxu0 %v2017
    %2146 = vmatprep.subr.mxu0 0.0
    %2147 = vmatpush1.msra.mxu0 %v2018
    %2148 = vmatprep.subr.mxu0 0.0
    %2149 = vmatpush1.msra.mxu0 %v2019
    %2150 = vmatprep.subr.mxu0 0.0
    %2151 = vmatpush1.msra.mxu0 %v2020
    %2152 = vmatprep.subr.mxu0 0.0
    %2153 = vmatpush1.msra.mxu0 %v2021
    %2154 = vmatprep.subr.mxu0 0.0
    %2155 = vmatpush1.msra.mxu0 %v2022
    %2156 = vmatprep.subr.mxu0 0.0
    %2157 = vmatpush1.msra.mxu0 %v2023
    %2158 = vmatprep.subr.mxu0 0.0
    %2159 = vmatpush1.msra.mxu0 0.0
    %2160 = vmatprep.subr.mxu0 0.0
    %2161 = vmatpush1.msra.mxu0 0.0
    %2162 = vmatprep.subr.mxu0 0.0
    %2163 = vmatpush1.msra.mxu0 0.0
    %2164 = vmatprep.subr.mxu0 0.0
    %2165 = vmatpush1.msra.mxu0 0.0
    %2166 = vmatprep.subr.mxu0 0.0
    %2167 = vmatpush1.msra.mxu0 0.0
    %2168 = vmatprep.subr.mxu0 0.0
    %2169 = vmatpush1.msra.mxu0 0.0
    %2170 = vmatprep.subr.mxu0 0.0
    %2171 = vmatpush1.msra.mxu0 0.0
    %2172 = vmatprep.subr.mxu0 0.0
    %2173 = vmatpush1.msra.mxu0 0.0
    %2174 = vmatprep.subr.mxu0 0.0
    %2175 = vmatpush1.msra.mxu0 0.0
    %2176 = vmatprep.subr.mxu0 0.0
    %2177 = vmatpush1.msra.mxu0 0.0
    %2178 = vmatprep.subr.mxu0 0.0
    %2179 = vmatpush1.msra.mxu0 0.0
    %2180 = vmatprep.subr.mxu0 0.0
    %2181 = vmatpush1.msra.mxu0 0.0
    %2182 = vmatprep.subr.mxu0 0.0
    %2183 = vmatpush1.msra.mxu0 0.0
    %2184 = vmatprep.subr.mxu0 0.0
    %2185 = vmatpush1.msra.mxu0 0.0
    %2186 = vmatprep.subr.mxu0 0.0
    %2187 = vmatpush1.msra.mxu0 0.0
    %2188 = vmatprep.subr.mxu0 0.0
    %2189 = vmatpush1.msra.mxu0 0.0
    %2190 = vmatprep.subr.mxu0 0.0
    %2191 = vmatpush1.msra.mxu0 0.0
    %2192 = vmatprep.subr.mxu0 0.0
    %2193 = vmatpush1.msra.mxu0 0.0
    %2194 = vmatprep.subr.mxu0 0.0
    %2195 = vmatpush1.msra.mxu0 0.0
    %2196 = vmatprep.subr.mxu0 0.0
    %2197 = vmatpush1.msra.mxu0 0.0
    %2198 = vmatprep.subr.mxu0 0.0
    %2199 = vmatpush1.msra.mxu0 0.0
    %2200 = vmatprep.subr.mxu0 0.0
    %2201 = vmatpush1.msra.mxu0 0.0
    %2202 = vmatprep.subr.mxu0 0.0
    %2203 = vmatpush1.msra.mxu0 0.0
    %2204 = vmatprep.subr.mxu0 0.0
    %2205 = vmatpush1.msra.mxu0 0.0
    %2206 = vmatprep.mubr.f32.mxu0 0.0
    %2207 = vmatmul.mubr.f32.gmra.mrb[0].mxu0 %v2131
    %v2208 = vpop.f32.mrb[0].mxu0
    %v2209 = vadd.f32 %v2112, %v2208
    %v2210 = vpop.f32.mrb[0].mxu0
    %2211 = vmatprep.mubr.f32.mxu0 0.0
    %2212 = vmatmul.mubr.f32.gmra.mrb[0].mxu0 %v2134
    %v2213 = vpop.f32.mrb[0].mxu0
    %v2214 = vadd.f32 %v2117, %v2213
    %v2215 = vpop.f32.mrb[0].mxu0
    %2216 = vmatprep.mubr.f32.mxu0 0.0
    %2217 = vmatmul.mubr.f32.gmra.mrb[0].mxu0 %v2137
    %v2218 = vpop.f32.mrb[0].mxu0
    %v2219 = vadd.f32 %v2122, %v2218
    %v2220 = vpop.f32.mrb[0].mxu0
    %2221 = vmatprep.mubr.f32.mxu0 0.0
    %2222 = vmatmul.mubr.f32.gmra.mrb[0].mxu0 %v2140
    %v2223 = vpop.f32.mrb[0].mxu0
    %v2224 = vadd.f32 %v2127, %v2223
    %v2225 = vpop.f32.mrb[0].mxu0
    %2226 = vdwg.mxu0
    %s2227 = scalar_lea.vmem %s15, 128
    %v2228 = vld [vmem:[%s2227] sm:$0xff]
    %v2229 = vld [vmem:[%s2227 + $0x8] sm:$0xff]
    %v2230 = vld [vmem:[%s2227 + $0x10] sm:$0xff]
    %v2231 = vld [vmem:[%s2227 + $0x18] sm:$0xff]
    %v2232 = vld [vmem:[%s2227 + $0x20] sm:$0xff]
    %v2233 = vld [vmem:[%s2227 + $0x28] sm:$0xff]
    %v2234 = vld [vmem:[%s2227 + $0x30] sm:$0xff]
    %v2235 = vld [vmem:[%s2227 + $0x38] sm:$0xff]
    %v2237 = vsel %vm469, %v1998, 0
    %v2240 = vsel %vm469, %v2003, 0
    %v2243 = vsel %vm469, %v2008, 0
    %v2246 = vsel %vm469, %v2013, 0
    %2248 = vmatprep.subr.mxu0 0.0
    %2249 = vmatpush1.msra.mxu0 %v2228
    %2250 = vmatprep.subr.mxu0 0.0
    %2251 = vmatpush1.msra.mxu0 %v2229
    %2252 = vmatprep.subr.mxu0 0.0
    %2253 = vmatpush1.msra.mxu0 %v2230
    %2254 = vmatprep.subr.mxu0 0.0
    %2255 = vmatpush1.msra.mxu0 %v2231
    %2256 = vmatprep.subr.mxu0 0.0
    %2257 = vmatpush1.msra.mxu0 %v2232
    %2258 = vmatprep.subr.mxu0 0.0
    %2259 = vmatpush1.msra.mxu0 %v2233
    %2260 = vmatprep.subr.mxu0 0.0
    %2261 = vmatpush1.msra.mxu0 %v2234
    %2262 = vmatprep.subr.mxu0 0.0
    %2263 = vmatpush1.msra.mxu0 %v2235
    %2264 = vmatprep.subr.mxu0 0.0
    %2265 = vmatpush1.msra.mxu0 0.0
    %2266 = vmatprep.subr.mxu0 0.0
    %2267 = vmatpush1.msra.mxu0 0.0
    %2268 = vmatprep.subr.mxu0 0.0
    %2269 = vmatpush1.msra.mxu0 0.0
    %2270 = vmatprep.subr.mxu0 0.0
    %2271 = vmatpush1.msra.mxu0 0.0
    %2272 = vmatprep.subr.mxu0 0.0
    %2273 = vmatpush1.msra.mxu0 0.0
    %2274 = vmatprep.subr.mxu0 0.0
    %2275 = vmatpush1.msra.mxu0 0.0
    %2276 = vmatprep.subr.mxu0 0.0
    %2277 = vmatpush1.msra.mxu0 0.0
    %2278 = vmatprep.subr.mxu0 0.0
    %2279 = vmatpush1.msra.mxu0 0.0
    %2280 = vmatprep.subr.mxu0 0.0
    %2281 = vmatpush1.msra.mxu0 0.0
    %2282 = vmatprep.subr.mxu0 0.0
    %2283 = vmatpush1.msra.mxu0 0.0
    %2284 = vmatprep.subr.mxu0 0.0
    %2285 = vmatpush1.msra.mxu0 0.0
    %2286 = vmatprep.subr.mxu0 0.0
    %2287 = vmatpush1.msra.mxu0 0.0
    %2288 = vmatprep.subr.mxu0 0.0
    %2289 = vmatpush1.msra.mxu0 0.0
    %2290 = vmatprep.subr.mxu0 0.0
    %2291 = vmatpush1.msra.mxu0 0.0
    %2292 = vmatprep.subr.mxu0 0.0
    %2293 = vmatpush1.msra.mxu0 0.0
    %2294 = vmatprep.subr.mxu0 0.0
    %2295 = vmatpush1.msra.mxu0 0.0
    %2296 = vmatprep.subr.mxu0 0.0
    %2297 = vmatpush1.msra.mxu0 0.0
    %2298 = vmatprep.subr.mxu0 0.0
    %2299 = vmatpush1.msra.mxu0 0.0
    %2300 = vmatprep.subr.mxu0 0.0
    %2301 = vmatpush1.msra.mxu0 0.0
    %2302 = vmatprep.subr.mxu0 0.0
    %2303 = vmatpush1.msra.mxu0 0.0
    %2304 = vmatprep.subr.mxu0 0.0
    %2305 = vmatpush1.msra.mxu0 0.0
    %2306 = vmatprep.subr.mxu0 0.0
    %2307 = vmatpush1.msra.mxu0 0.0
    %2308 = vmatprep.subr.mxu0 0.0
    %2309 = vmatpush1.msra.mxu0 0.0
    %2310 = vmatprep.subr.mxu0 0.0
    %2311 = vmatpush1.msra.mxu0 0.0
    %2312 = vmatprep.mubr.f32.mxu0 0.0
    %2313 = vmatmul.mubr.f32.gmra.mrb[0].mxu0 %v2237
    %v2314 = vpop.f32.mrb[0].mxu0
    %v2315 = vadd.f32 0.0, %v2314
    %v2316 = vpop.f32.mrb[0].mxu0
    %2317 = vmatprep.mubr.f32.mxu0 0.0
    %2318 = vmatmul.mubr.f32.gmra.mrb[0].mxu0 %v2240
    %v2319 = vpop.f32.mrb[0].mxu0
    %v2320 = vadd.f32 0.0, %v2319
    %v2321 = vpop.f32.mrb[0].mxu0
    %2322 = vmatprep.mubr.f32.mxu0 0.0
    %2323 = vmatmul.mubr.f32.gmra.mrb[0].mxu0 %v2243
    %v2324 = vpop.f32.mrb[0].mxu0
    %v2325 = vadd.f32 0.0, %v2324
    %v2326 = vpop.f32.mrb[0].mxu0
    %2327 = vmatprep.mubr.f32.mxu0 0.0
    %2328 = vmatmul.mubr.f32.gmra.mrb[0].mxu0 %v2246
    %v2329 = vpop.f32.mrb[0].mxu0
    %v2330 = vadd.f32 0.0, %v2329
    %v2331 = vpop.f32.mrb[0].mxu0
    %2332 = vdwg.mxu0
    %v2333 = vadd.f32 %v2209, %v2315
    %v2334 = vadd.f32 %v2214, %v2320
    %v2335 = vadd.f32 %v2219, %v2325
    %v2336 = vadd.f32 %v2224, %v2330
    %v2337 = vadd.f32 %v2333, %v2334
    %v2338 = vadd.f32 %v2337, %v2335
    %v2339 = vadd.f32 %v2338, %v2336
    %v2340 = vrot.slane %v2339, 4
    %v2341 = vadd.f32 %v2339, %v2340
    %v2342 = vrot.slane %v2341, 2
    %v2343 = vadd.f32 %v2341, %v2342
    %v2344 = vrot.slane %v2343, 1
    %v2345 = vadd.f32 %v2343, %v2344
    %v2346 = vmul.f32 %v2333, %v2333
    %v2347 = vmul.f32 %v2334, %v2334
    %v2348 = vmul.f32 %v2335, %v2335
    %v2349 = vmul.f32 %v2336, %v2336
    %v2350 = vadd.f32 %v2346, %v2347
    %v2351 = vadd.f32 %v2350, %v2348
    %v2352 = vadd.f32 %v2351, %v2349
    %v2353 = vrot.slane %v2352, 4
    %v2354 = vadd.f32 %v2352, %v2353
    %v2355 = vrot.slane %v2354, 2
    %v2356 = vadd.f32 %v2354, %v2355
    %v2357 = vrot.slane %v2356, 1
    %v2358 = vadd.f32 %v2356, %v2357
    %v2359 = vld [vmem:[#allocation11] sm:$0xff]
    %v2360 = vld [vmem:[#allocation11 + $0x8] sm:$0xff]
    %v2361 = vld [vmem:[#allocation11 + $0x10] sm:$0xff]
    %v2362 = vld [vmem:[#allocation11 + $0x18] sm:$0xff]
    %v2363 = vld [vmem:[#allocation11 + $0x20] sm:$0xff]
    %v2364 = vld [vmem:[#allocation11 + $0x28] sm:$0xff]
    %v2365 = vld [vmem:[#allocation11 + $0x30] sm:$0xff]
    %v2366 = vld [vmem:[#allocation11 + $0x38] sm:$0xff]
    %v2367 = vld [vmem:[#allocation11 + $0x40] sm:$0xff]
    %v2368 = vld [vmem:[#allocation11 + $0x48] sm:$0xff]
    %v2369 = vld [vmem:[#allocation11 + $0x50] sm:$0xff]
    %v2370 = vld [vmem:[#allocation11 + $0x58] sm:$0xff]
    %v2371 = vld [vmem:[#allocation11 + $0x60] sm:$0xff]
    %v2372 = vld [vmem:[#allocation11 + $0x68] sm:$0xff]
    %v2373 = vld [vmem:[#allocation11 + $0x70] sm:$0xff]
    %v2374 = vld [vmem:[#allocation11 + $0x78] sm:$0xff]
    %2375 = vmatprep.subr.mxu0 0.0
    %2376 = vmatpush1.msra.mxu0 %v2359
    %2377 = vmatprep.subr.mxu0 0.0
    %2378 = vmatpush1.msra.mxu0 %v2360
    %2379 = vmatprep.subr.mxu0 0.0
    %2380 = vmatpush1.msra.mxu0 %v2361
    %2381 = vmatprep.subr.mxu0 0.0
    %2382 = vmatpush1.msra.mxu0 %v2362
    %2383 = vmatprep.subr.mxu0 0.0
    %2384 = vmatpush1.msra.mxu0 %v2363
    %2385 = vmatprep.subr.mxu0 0.0
    %2386 = vmatpush1.msra.mxu0 %v2364
    %2387 = vmatprep.subr.mxu0 0.0
    %2388 = vmatpush1.msra.mxu0 %v2365
    %2389 = vmatprep.subr.mxu0 0.0
    %2390 = vmatpush1.msra.mxu0 %v2366
    %2391 = vmatprep.subr.mxu0 0.0
    %2392 = vmatpush1.msra.mxu0 %v2367
    %2393 = vmatprep.subr.mxu0 0.0
    %2394 = vmatpush1.msra.mxu0 %v2368
    %2395 = vmatprep.subr.mxu0 0.0
    %2396 = vmatpush1.msra.mxu0 %v2369
    %2397 = vmatprep.subr.mxu0 0.0
    %2398 = vmatpush1.msra.mxu0 %v2370
    %2399 = vmatprep.subr.mxu0 0.0
    %2400 = vmatpush1.msra.mxu0 %v2371
    %2401 = vmatprep.subr.mxu0 0.0
    %2402 = vmatpush1.msra.mxu0 %v2372
    %2403 = vmatprep.subr.mxu0 0.0
    %2404 = vmatpush1.msra.mxu0 %v2373
    %2405 = vmatprep.subr.mxu0 0.0
    %2406 = vmatpush1.msra.mxu0 %v2374
    %2407 = vmatprep.subr.mxu0 0.0
    %2408 = vmatpush1.msra.mxu0 0.0
    %2409 = vmatprep.subr.mxu0 0.0
    %2410 = vmatpush1.msra.mxu0 0.0
    %2411 = vmatprep.subr.mxu0 0.0
    %2412 = vmatpush1.msra.mxu0 0.0
    %2413 = vmatprep.subr.mxu0 0.0
    %2414 = vmatpush1.msra.mxu0 0.0
    %2415 = vmatprep.subr.mxu0 0.0
    %2416 = vmatpush1.msra.mxu0 0.0
    %2417 = vmatprep.subr.mxu0 0.0
    %2418 = vmatpush1.msra.mxu0 0.0
    %2419 = vmatprep.subr.mxu0 0.0
    %2420 = vmatpush1.msra.mxu0 0.0
    %2421 = vmatprep.subr.mxu0 0.0
    %2422 = vmatpush1.msra.mxu0 0.0
    %2423 = vmatprep.subr.mxu0 0.0
    %2424 = vmatpush1.msra.mxu0 0.0
    %2425 = vmatprep.subr.mxu0 0.0
    %2426 = vmatpush1.msra.mxu0 0.0
    %2427 = vmatprep.subr.mxu0 0.0
    %2428 = vmatpush1.msra.mxu0 0.0
    %2429 = vmatprep.subr.mxu0 0.0
    %2430 = vmatpush1.msra.mxu0 0.0
    %2431 = vmatprep.subr.mxu0 0.0
    %2432 = vmatpush1.msra.mxu0 0.0
    %2433 = vmatprep.subr.mxu0 0.0
    %2434 = vmatpush1.msra.mxu0 0.0
    %2435 = vmatprep.subr.mxu0 0.0
    %2436 = vmatpush1.msra.mxu0 0.0
    %2437 = vmatprep.subr.mxu0 0.0
    %2438 = vmatpush1.msra.mxu0 0.0
    %2439 = vmatprep.mubr.f32.mxu0 0.0
    %2440 = vmatmul.mubr.f32.gmra.mrb[0].mxu0 %v2345
    %v2441 = vpop.f32.mrb[0].mxu0
    %v2442 = vadd.f32 0.0, %v2441
    %v2443 = vpop.f32.mrb[0].mxu0
    %2444 = vdwg.mxu0
    %2445 = vmatprep.subr.mxu0 0.0
    %2446 = vmatpush1.msra.mxu0 %v2359
    %2447 = vmatprep.subr.mxu0 0.0
    %2448 = vmatpush1.msra.mxu0 %v2360
    %2449 = vmatprep.subr.mxu0 0.0
    %2450 = vmatpush1.msra.mxu0 %v2361
    %2451 = vmatprep.subr.mxu0 0.0
    %2452 = vmatpush1.msra.mxu0 %v2362
    %2453 = vmatprep.subr.mxu0 0.0
    %2454 = vmatpush1.msra.mxu0 %v2363
    %2455 = vmatprep.subr.mxu0 0.0
    %2456 = vmatpush1.msra.mxu0 %v2364
    %2457 = vmatprep.subr.mxu0 0.0
    %2458 = vmatpush1.msra.mxu0 %v2365
    %2459 = vmatprep.subr.mxu0 0.0
    %2460 = vmatpush1.msra.mxu0 %v2366
    %2461 = vmatprep.subr.mxu0 0.0
    %2462 = vmatpush1.msra.mxu0 %v2367
    %2463 = vmatprep.subr.mxu0 0.0
    %2464 = vmatpush1.msra.mxu0 %v2368
    %2465 = vmatprep.subr.mxu0 0.0
    %2466 = vmatpush1.msra.mxu0 %v2369
    %2467 = vmatprep.subr.mxu0 0.0
    %2468 = vmatpush1.msra.mxu0 %v2370
    %2469 = vmatprep.subr.mxu0 0.0
    %2470 = vmatpush1.msra.mxu0 %v2371
    %2471 = vmatprep.subr.mxu0 0.0
    %2472 = vmatpush1.msra.mxu0 %v2372
    %2473 = vmatprep.subr.mxu0 0.0
    %2474 = vmatpush1.msra.mxu0 %v2373
    %2475 = vmatprep.subr.mxu0 0.0
    %2476 = vmatpush1.msra.mxu0 %v2374
    %2477 = vmatprep.subr.mxu0 0.0
    %2478 = vmatpush1.msra.mxu0 0.0
    %2479 = vmatprep.subr.mxu0 0.0
    %2480 = vmatpush1.msra.mxu0 0.0
    %2481 = vmatprep.subr.mxu0 0.0
    %2482 = vmatpush1.msra.mxu0 0.0
    %2483 = vmatprep.subr.mxu0 0.0
    %2484 = vmatpush1.msra.mxu0 0.0
    %2485 = vmatprep.subr.mxu0 0.0
    %2486 = vmatpush1.msra.mxu0 0.0
    %2487 = vmatprep.subr.mxu0 0.0
    %2488 = vmatpush1.msra.mxu0 0.0
    %2489 = vmatprep.subr.mxu0 0.0
    %2490 = vmatpush1.msra.mxu0 0.0
    %2491 = vmatprep.subr.mxu0 0.0
    %2492 = vmatpush1.msra.mxu0 0.0
    %2493 = vmatprep.subr.mxu0 0.0
    %2494 = vmatpush1.msra.mxu0 0.0
    %2495 = vmatprep.subr.mxu0 0.0
    %2496 = vmatpush1.msra.mxu0 0.0
    %2497 = vmatprep.subr.mxu0 0.0
    %2498 = vmatpush1.msra.mxu0 0.0
    %2499 = vmatprep.subr.mxu0 0.0
    %2500 = vmatpush1.msra.mxu0 0.0
    %2501 = vmatprep.subr.mxu0 0.0
    %2502 = vmatpush1.msra.mxu0 0.0
    %2503 = vmatprep.subr.mxu0 0.0
    %2504 = vmatpush1.msra.mxu0 0.0
    %2505 = vmatprep.subr.mxu0 0.0
    %2506 = vmatpush1.msra.mxu0 0.0
    %2507 = vmatprep.subr.mxu0 0.0
    %2508 = vmatpush1.msra.mxu0 0.0
    %2509 = vmatprep.mubr.f32.mxu0 0.0
    %2510 = vmatmul.mubr.f32.gmra.mrb[0].mxu0 %v2358
    %v2511 = vpop.f32.mrb[0].mxu0
    %v2512 = vadd.f32 0.0, %v2511
    %v2513 = vpop.f32.mrb[0].mxu0
    %2514 = vdwg.mxu0
    %v2515 = vmul.f32 %v2442, %v2442
    %v2516 = vsub.f32 %v2512, %v2515
    %v2517 = vmax.f32 %v2516, 0.0
    %v2518 = vlaneseq
    %v2519 = vshrl.u32 %v2518, 7
    %v2520 = vsub.s32 0, %v2519
    %v2521 = vrot.slane %v2442, %v2520
    %v2522 = vsub.f32 %v2333, %v2521
    %v2523 = vsub.f32 %v2334, %v2521
    %v2524 = vsub.f32 %v2335, %v2521
    %v2525 = vsub.f32 %v2336, %v2521
    %v2526 = vadd.f32 %v2517, 1e-05
    %v2527 = vrsqrt.pop %v2526
    %v2528 = vlaneseq
    %v2529 = vshrl.u32 %v2528, 7
    %v2530 = vsub.s32 0, %v2529
    %v2531 = vrot.slane %v2527, %v2530
    %v2532 = vmul.f32 %v2522, %v2531
    %v2533 = vmul.f32 %v2523, %v2531
    %v2534 = vmul.f32 %v2524, %v2531
    %v2535 = vmul.f32 %v2525, %v2531
    %v2536 = vmax.f32 %v2532, 0.0
    %v2537 = vmax.f32 %v2533, 0.0
    %v2538 = vmax.f32 %v2534, 0.0
    %v2539 = vmax.f32 %v2535, 0.0
    %v2540 = vld [vmem:[#allocation13] sm:$0xff]
    %v2541 = vld [vmem:[#allocation13 + $0x8] sm:$0xff]
    %v2543 = vsel %vm1816, %v2540, 0
    %v2546 = vsel %vm1816, %v2541, 0
    %2548 = vmatprep.subr.mxu0 0.0
    %2549 = vmatpush1.msra.mxu0 %v2536
    %2550 = vmatprep.subr.mxu0 0.0
    %2551 = vmatpush1.msra.mxu0 %v2537
    %2552 = vmatprep.subr.mxu0 0.0
    %2553 = vmatpush1.msra.mxu0 %v2538
    %2554 = vmatprep.subr.mxu0 0.0
    %2555 = vmatpush1.msra.mxu0 %v2539
    %2556 = vmatprep.subr.mxu0 0.0
    %2557 = vmatpush1.msra.mxu0 0.0
    %2558 = vmatprep.subr.mxu0 0.0
    %2559 = vmatpush1.msra.mxu0 0.0
    %2560 = vmatprep.subr.mxu0 0.0
    %2561 = vmatpush1.msra.mxu0 0.0
    %2562 = vmatprep.subr.mxu0 0.0
    %2563 = vmatpush1.msra.mxu0 0.0
    %2564 = vmatprep.subr.mxu0 0.0
    %2565 = vmatpush1.msra.mxu0 0.0
    %2566 = vmatprep.subr.mxu0 0.0
    %2567 = vmatpush1.msra.mxu0 0.0
    %2568 = vmatprep.subr.mxu0 0.0
    %2569 = vmatpush1.msra.mxu0 0.0
    %2570 = vmatprep.subr.mxu0 0.0
    %2571 = vmatpush1.msra.mxu0 0.0
    %2572 = vmatprep.subr.mxu0 0.0
    %2573 = vmatpush1.msra.mxu0 0.0
    %2574 = vmatprep.subr.mxu0 0.0
    %2575 = vmatpush1.msra.mxu0 0.0
    %2576 = vmatprep.subr.mxu0 0.0
    %2577 = vmatpush1.msra.mxu0 0.0
    %2578 = vmatprep.subr.mxu0 0.0
    %2579 = vmatpush1.msra.mxu0 0.0
    %2580 = vmatprep.subr.mxu0 0.0
    %2581 = vmatpush1.msra.mxu0 0.0
    %2582 = vmatprep.subr.mxu0 0.0
    %2583 = vmatpush1.msra.mxu0 0.0
    %2584 = vmatprep.subr.mxu0 0.0
    %2585 = vmatpush1.msra.mxu0 0.0
    %2586 = vmatprep.subr.mxu0 0.0
    %2587 = vmatpush1.msra.mxu0 0.0
    %2588 = vmatprep.subr.mxu0 0.0
    %2589 = vmatpush1.msra.mxu0 0.0
    %2590 = vmatprep.subr.mxu0 0.0
    %2591 = vmatpush1.msra.mxu0 0.0
    %2592 = vmatprep.subr.mxu0 0.0
    %2593 = vmatpush1.msra.mxu0 0.0
    %2594 = vmatprep.subr.mxu0 0.0
    %2595 = vmatpush1.msra.mxu0 0.0
    %2596 = vmatprep.subr.mxu0 0.0
    %2597 = vmatpush1.msra.mxu0 0.0
    %2598 = vmatprep.subr.mxu0 0.0
    %2599 = vmatpush1.msra.mxu0 0.0
    %2600 = vmatprep.subr.mxu0 0.0
    %2601 = vmatpush1.msra.mxu0 0.0
    %2602 = vmatprep.subr.mxu0 0.0
    %2603 = vmatpush1.msra.mxu0 0.0
    %2604 = vmatprep.subr.mxu0 0.0
    %2605 = vmatpush1.msra.mxu0 0.0
    %2606 = vmatprep.subr.mxu0 0.0
    %2607 = vmatpush1.msra.mxu0 0.0
    %2608 = vmatprep.subr.mxu0 0.0
    %2609 = vmatpush1.msra.mxu0 0.0
    %2610 = vmatprep.subr.mxu0 0.0
    %2611 = vmatpush1.msra.mxu0 0.0
    %2612 = vmatprep.mubr.f32.mxu0 0.0
    %2613 = vmatmul.mubr.f32.gmra.mrb[0].mxu0 %v2543
    %v2614 = vpop.f32.mrb[0].mxu0
    %v2615 = vadd.f32 0.0, %v2614
    %v2616 = vpop.f32.mrb[0].mxu0
    %2617 = vmatprep.mubr.f32.mxu0 0.0
    %2618 = vmatmul.mubr.f32.gmra.mrb[0].mxu0 %v2546
    %v2619 = vpop.f32.mrb[0].mxu0
    %v2620 = vadd.f32 0.0, %v2619
    %v2621 = vpop.f32.mrb[0].mxu0
    %2622 = vdwg.mxu0
    %s2623 = scalar_lea.vmem [#allocation13], 16
    %v2624 = vld [vmem:[%s2623] sm:$0xff]
    %v2625 = vld [vmem:[%s2623 + $0x8] sm:$0xff]
    %v2627 = vsel %vm1816, %v2624, 0
    %v2630 = vsel %vm1816, %v2625, 0
    %2632 = vmatprep.subr.mxu0 0.0
    %2633 = vmatpush1.msra.mxu0 %v2536
    %2634 = vmatprep.subr.mxu0 0.0
    %2635 = vmatpush1.msra.mxu0 %v2537
    %2636 = vmatprep.subr.mxu0 0.0
    %2637 = vmatpush1.msra.mxu0 %v2538
    %2638 = vmatprep.subr.mxu0 0.0
    %2639 = vmatpush1.msra.mxu0 %v2539
    %2640 = vmatprep.subr.mxu0 0.0
    %2641 = vmatpush1.msra.mxu0 0.0
    %2642 = vmatprep.subr.mxu0 0.0
    %2643 = vmatpush1.msra.mxu0 0.0
    %2644 = vmatprep.subr.mxu0 0.0
    %2645 = vmatpush1.msra.mxu0 0.0
    %2646 = vmatprep.subr.mxu0 0.0
    %2647 = vmatpush1.msra.mxu0 0.0
    %2648 = vmatprep.subr.mxu0 0.0
    %2649 = vmatpush1.msra.mxu0 0.0
    %2650 = vmatprep.subr.mxu0 0.0
    %2651 = vmatpush1.msra.mxu0 0.0
    %2652 = vmatprep.subr.mxu0 0.0
    %2653 = vmatpush1.msra.mxu0 0.0
    %2654 = vmatprep.subr.mxu0 0.0
    %2655 = vmatpush1.msra.mxu0 0.0
    %2656 = vmatprep.subr.mxu0 0.0
    %2657 = vmatpush1.msra.mxu0 0.0
    %2658 = vmatprep.subr.mxu0 0.0
    %2659 = vmatpush1.msra.mxu0 0.0
    %2660 = vmatprep.subr.mxu0 0.0
    %2661 = vmatpush1.msra.mxu0 0.0
    %2662 = vmatprep.subr.mxu0 0.0
    %2663 = vmatpush1.msra.mxu0 0.0
    %2664 = vmatprep.subr.mxu0 0.0
    %2665 = vmatpush1.msra.mxu0 0.0
    %2666 = vmatprep.subr.mxu0 0.0
    %2667 = vmatpush1.msra.mxu0 0.0
    %2668 = vmatprep.subr.mxu0 0.0
    %2669 = vmatpush1.msra.mxu0 0.0
    %2670 = vmatprep.subr.mxu0 0.0
    %2671 = vmatpush1.msra.mxu0 0.0
    %2672 = vmatprep.subr.mxu0 0.0
    %2673 = vmatpush1.msra.mxu0 0.0
    %2674 = vmatprep.subr.mxu0 0.0
    %2675 = vmatpush1.msra.mxu0 0.0
    %2676 = vmatprep.subr.mxu0 0.0
    %2677 = vmatpush1.msra.mxu0 0.0
    %2678 = vmatprep.subr.mxu0 0.0
    %2679 = vmatpush1.msra.mxu0 0.0
    %2680 = vmatprep.subr.mxu0 0.0
    %2681 = vmatpush1.msra.mxu0 0.0
    %2682 = vmatprep.subr.mxu0 0.0
    %2683 = vmatpush1.msra.mxu0 0.0
    %2684 = vmatprep.subr.mxu0 0.0
    %2685 = vmatpush1.msra.mxu0 0.0
    %2686 = vmatprep.subr.mxu0 0.0
    %2687 = vmatpush1.msra.mxu0 0.0
    %2688 = vmatprep.subr.mxu0 0.0
    %2689 = vmatpush1.msra.mxu0 0.0
    %2690 = vmatprep.subr.mxu0 0.0
    %2691 = vmatpush1.msra.mxu0 0.0
    %2692 = vmatprep.subr.mxu0 0.0
    %2693 = vmatpush1.msra.mxu0 0.0
    %2694 = vmatprep.subr.mxu0 0.0
    %2695 = vmatpush1.msra.mxu0 0.0
    %2696 = vmatprep.mubr.f32.mxu0 0.0
    %2697 = vmatmul.mubr.f32.gmra.mrb[0].mxu0 %v2627
    %v2698 = vpop.f32.mrb[0].mxu0
    %v2699 = vadd.f32 0.0, %v2698
    %v2700 = vpop.f32.mrb[0].mxu0
    %2701 = vmatprep.mubr.f32.mxu0 0.0
    %2702 = vmatmul.mubr.f32.gmra.mrb[0].mxu0 %v2630
    %v2703 = vpop.f32.mrb[0].mxu0
    %v2704 = vadd.f32 0.0, %v2703
    %v2705 = vpop.f32.mrb[0].mxu0
    %2706 = vdwg.mxu0
    %v2707 = vmax.f32 %v2615, %v2699
    %v2708 = vmax.f32 %v2620, %v2704
    %v2709 = vld [vmem:[%s21] sm:$0xff]
    %v2710 = vld [vmem:[%s21 + $0x8] sm:$0xff]
    %v2711 = vld [vmem:[%s21 + $0x10] sm:$0xff]
    %v2712 = vld [vmem:[%s21 + $0x18] sm:$0xff]
    %v2713 = vld [vmem:[%s21 + $0x20] sm:$0xff]
    %v2714 = vld [vmem:[%s21 + $0x28] sm:$0xff]
    %v2715 = vld [vmem:[%s21 + $0x30] sm:$0xff]
    %v2716 = vld [vmem:[%s21 + $0x38] sm:$0xff]
    %v2717 = vld [vmem:[%s21 + $0x40] sm:$0xff]
    %v2718 = vld [vmem:[%s21 + $0x48] sm:$0xff]
    %v2719 = vld [vmem:[%s21 + $0x50] sm:$0xff]
    %v2720 = vld [vmem:[%s21 + $0x58] sm:$0xff]
    %v2721 = vld [vmem:[%s21 + $0x60] sm:$0xff]
    %v2722 = vld [vmem:[%s21 + $0x68] sm:$0xff]
    %v2723 = vld [vmem:[%s21 + $0x70] sm:$0xff]
    %v2724 = vld [vmem:[%s21 + $0x78] sm:$0xff]
    %2725 = vmatprep.subr.mxu0 0.0
    %2726 = vmatpush1.msra.mxu0 %v2709
    %2727 = vmatprep.subr.mxu0 0.0
    %2728 = vmatpush1.msra.mxu0 %v2710
    %2729 = vmatprep.subr.mxu0 0.0
    %2730 = vmatpush1.msra.mxu0 %v2711
    %2731 = vmatprep.subr.mxu0 0.0
    %2732 = vmatpush1.msra.mxu0 %v2712
    %2733 = vmatprep.subr.mxu0 0.0
    %2734 = vmatpush1.msra.mxu0 %v2713
    %2735 = vmatprep.subr.mxu0 0.0
    %2736 = vmatpush1.msra.mxu0 %v2714
    %2737 = vmatprep.subr.mxu0 0.0
    %2738 = vmatpush1.msra.mxu0 %v2715
    %2739 = vmatprep.subr.mxu0 0.0
    %2740 = vmatpush1.msra.mxu0 %v2716
    %2741 = vmatprep.subr.mxu0 0.0
    %2742 = vmatpush1.msra.mxu0 %v2717
    %2743 = vmatprep.subr.mxu0 0.0
    %2744 = vmatpush1.msra.mxu0 %v2718
    %2745 = vmatprep.subr.mxu0 0.0
    %2746 = vmatpush1.msra.mxu0 %v2719
    %2747 = vmatprep.subr.mxu0 0.0
    %2748 = vmatpush1.msra.mxu0 %v2720
    %2749 = vmatprep.subr.mxu0 0.0
    %2750 = vmatpush1.msra.mxu0 %v2721
    %2751 = vmatprep.subr.mxu0 0.0
    %2752 = vmatpush1.msra.mxu0 %v2722
    %2753 = vmatprep.subr.mxu0 0.0
    %2754 = vmatpush1.msra.mxu0 %v2723
    %2755 = vmatprep.subr.mxu0 0.0
    %2756 = vmatpush1.msra.mxu0 %v2724
    %2757 = vmatprep.subr.mxu0 0.0
    %2758 = vmatpush1.msra.mxu0 0.0
    %2759 = vmatprep.subr.mxu0 0.0
    %2760 = vmatpush1.msra.mxu0 0.0
    %2761 = vmatprep.subr.mxu0 0.0
    %2762 = vmatpush1.msra.mxu0 0.0
    %2763 = vmatprep.subr.mxu0 0.0
    %2764 = vmatpush1.msra.mxu0 0.0
    %2765 = vmatprep.subr.mxu0 0.0
    %2766 = vmatpush1.msra.mxu0 0.0
    %2767 = vmatprep.subr.mxu0 0.0
    %2768 = vmatpush1.msra.mxu0 0.0
    %2769 = vmatprep.subr.mxu0 0.0
    %2770 = vmatpush1.msra.mxu0 0.0
    %2771 = vmatprep.subr.mxu0 0.0
    %2772 = vmatpush1.msra.mxu0 0.0
    %2773 = vmatprep.subr.mxu0 0.0
    %2774 = vmatpush1.msra.mxu0 0.0
    %2775 = vmatprep.subr.mxu0 0.0
    %2776 = vmatpush1.msra.mxu0 0.0
    %2777 = vmatprep.subr.mxu0 0.0
    %2778 = vmatpush1.msra.mxu0 0.0
    %2779 = vmatprep.subr.mxu0 0.0
    %2780 = vmatpush1.msra.mxu0 0.0
    %2781 = vmatprep.subr.mxu0 0.0
    %2782 = vmatpush1.msra.mxu0 0.0
    %2783 = vmatprep.subr.mxu0 0.0
    %2784 = vmatpush1.msra.mxu0 0.0
    %2785 = vmatprep.subr.mxu0 0.0
    %2786 = vmatpush1.msra.mxu0 0.0
    %2787 = vmatprep.subr.mxu0 0.0
    %2788 = vmatpush1.msra.mxu0 0.0
    %2789 = vmatprep.mubr.f32.mxu0 0.0
    %2790 = vmatmul.mubr.f32.gmra.mrb[0].mxu0 %v2707
    %v2791 = vpop.f32.mrb[0].mxu0
    %v2792 = vadd.f32 0.0, %v2791
    %v2793 = vpop.f32.mrb[0].mxu0
    %2794 = vmatprep.mubr.f32.mxu0 0.0
    %2795 = vmatmul.mubr.f32.gmra.mrb[0].mxu0 %v2708
    %v2796 = vpop.f32.mrb[0].mxu0
    %v2797 = vadd.f32 0.0, %v2796
    %v2798 = vpop.f32.mrb[0].mxu0
    %2799 = vdwg.mxu0
    %s2800 = scalar_lea.vmem %s21, 128
    %v2801 = vld [vmem:[%s2800] sm:$0xff]
    %v2802 = vld [vmem:[%s2800 + $0x8] sm:$0xff]
    %v2803 = vld [vmem:[%s2800 + $0x10] sm:$0xff]
    %v2804 = vld [vmem:[%s2800 + $0x18] sm:$0xff]
    %v2805 = vld [vmem:[%s2800 + $0x20] sm:$0xff]
    %v2806 = vld [vmem:[%s2800 + $0x28] sm:$0xff]
    %v2807 = vld [vmem:[%s2800 + $0x30] sm:$0xff]
    %v2808 = vld [vmem:[%s2800 + $0x38] sm:$0xff]
    %v2809 = vld [vmem:[%s2800 + $0x40] sm:$0xff]
    %v2810 = vld [vmem:[%s2800 + $0x48] sm:$0xff]
    %v2811 = vld [vmem:[%s2800 + $0x50] sm:$0xff]
    %v2812 = vld [vmem:[%s2800 + $0x58] sm:$0xff]
    %v2813 = vld [vmem:[%s2800 + $0x60] sm:$0xff]
    %v2814 = vld [vmem:[%s2800 + $0x68] sm:$0xff]
    %v2815 = vld [vmem:[%s2800 + $0x70] sm:$0xff]
    %v2816 = vld [vmem:[%s2800 + $0x78] sm:$0xff]
    %2817 = vmatprep.subr.mxu0 0.0
    %2818 = vmatpush1.msra.mxu0 %v2801
    %2819 = vmatprep.subr.mxu0 0.0
    %2820 = vmatpush1.msra.mxu0 %v2802
    %2821 = vmatprep.subr.mxu0 0.0
    %2822 = vmatpush1.msra.mxu0 %v2803
    %2823 = vmatprep.subr.mxu0 0.0
    %2824 = vmatpush1.msra.mxu0 %v2804
    %2825 = vmatprep.subr.mxu0 0.0
    %2826 = vmatpush1.msra.mxu0 %v2805
    %2827 = vmatprep.subr.mxu0 0.0
    %2828 = vmatpush1.msra.mxu0 %v2806
    %2829 = vmatprep.subr.mxu0 0.0
    %2830 = vmatpush1.msra.mxu0 %v2807
    %2831 = vmatprep.subr.mxu0 0.0
    %2832 = vmatpush1.msra.mxu0 %v2808
    %2833 = vmatprep.subr.mxu0 0.0
    %2834 = vmatpush1.msra.mxu0 %v2809
    %2835 = vmatprep.subr.mxu0 0.0
    %2836 = vmatpush1.msra.mxu0 %v2810
    %2837 = vmatprep.subr.mxu0 0.0
    %2838 = vmatpush1.msra.mxu0 %v2811
    %2839 = vmatprep.subr.mxu0 0.0
    %2840 = vmatpush1.msra.mxu0 %v2812
    %2841 = vmatprep.subr.mxu0 0.0
    %2842 = vmatpush1.msra.mxu0 %v2813
    %2843 = vmatprep.subr.mxu0 0.0
    %2844 = vmatpush1.msra.mxu0 %v2814
    %2845 = vmatprep.subr.mxu0 0.0
    %2846 = vmatpush1.msra.mxu0 %v2815
    %2847 = vmatprep.subr.mxu0 0.0
    %2848 = vmatpush1.msra.mxu0 %v2816
    %2849 = vmatprep.subr.mxu0 0.0
    %2850 = vmatpush1.msra.mxu0 0.0
    %2851 = vmatprep.subr.mxu0 0.0
    %2852 = vmatpush1.msra.mxu0 0.0
    %2853 = vmatprep.subr.mxu0 0.0
    %2854 = vmatpush1.msra.mxu0 0.0
    %2855 = vmatprep.subr.mxu0 0.0
    %2856 = vmatpush1.msra.mxu0 0.0
    %2857 = vmatprep.subr.mxu0 0.0
    %2858 = vmatpush1.msra.mxu0 0.0
    %2859 = vmatprep.subr.mxu0 0.0
    %2860 = vmatpush1.msra.mxu0 0.0
    %2861 = vmatprep.subr.mxu0 0.0
    %2862 = vmatpush1.msra.mxu0 0.0
    %2863 = vmatprep.subr.mxu0 0.0
    %2864 = vmatpush1.msra.mxu0 0.0
    %2865 = vmatprep.subr.mxu0 0.0
    %2866 = vmatpush1.msra.mxu0 0.0
    %2867 = vmatprep.subr.mxu0 0.0
    %2868 = vmatpush1.msra.mxu0 0.0
    %2869 = vmatprep.subr.mxu0 0.0
    %2870 = vmatpush1.msra.mxu0 0.0
    %2871 = vmatprep.subr.mxu0 0.0
    %2872 = vmatpush1.msra.mxu0 0.0
    %2873 = vmatprep.subr.mxu0 0.0
    %2874 = vmatpush1.msra.mxu0 0.0
    %2875 = vmatprep.subr.mxu0 0.0
    %2876 = vmatpush1.msra.mxu0 0.0
    %2877 = vmatprep.subr.mxu0 0.0
    %2878 = vmatpush1.msra.mxu0 0.0
    %2879 = vmatprep.subr.mxu0 0.0
    %2880 = vmatpush1.msra.mxu0 0.0
    %2881 = vmatprep.mubr.f32.mxu0 0.0
    %2882 = vmatmul.mubr.f32.gmra.mrb[0].mxu0 %v2707
    %v2883 = vpop.f32.mrb[0].mxu0
    %v2884 = vadd.f32 0.0, %v2883
    %v2885 = vpop.f32.mrb[0].mxu0
    %2886 = vmatprep.mubr.f32.mxu0 0.0
    %2887 = vmatmul.mubr.f32.gmra.mrb[0].mxu0 %v2708
    %v2888 = vpop.f32.mrb[0].mxu0
    %v2889 = vadd.f32 0.0, %v2888
    %v2890 = vpop.f32.mrb[0].mxu0
    %2891 = vdwg.mxu0
    %v2892 = vmax.f32 %v2792, %v2884
    %v2893 = vmax.f32 %v2797, %v2889
    %v2894 = vld [vmem:[#allocation14] sm:$0xff]
    %v2895 = vld [vmem:[#allocation14 + $0x8] sm:$0xff]
    %vm2896 = vcmask 130048
    %v2898 = vsel %vm2896, %v2894, 0
    %v2901 = vsel %vm2896, %v2895, 0
    %2903 = vmatprep.subr.mxu0 0.0
    %2904 = vmatpush1.msra.mxu0 %v2892
    %2905 = vmatprep.subr.mxu0 0.0
    %2906 = vmatpush1.msra.mxu0 %v2893
    %2907 = vmatprep.subr.mxu0 0.0
    %2908 = vmatpush1.msra.mxu0 0.0
    %2909 = vmatprep.subr.mxu0 0.0
    %2910 = vmatpush1.msra.mxu0 0.0
    %2911 = vmatprep.subr.mxu0 0.0
    %2912 = vmatpush1.msra.mxu0 0.0
    %2913 = vmatprep.subr.mxu0 0.0
    %2914 = vmatpush1.msra.mxu0 0.0
    %2915 = vmatprep.subr.mxu0 0.0
    %2916 = vmatpush1.msra.mxu0 0.0
    %2917 = vmatprep.subr.mxu0 0.0
    %2918 = vmatpush1.msra.mxu0 0.0
    %2919 = vmatprep.subr.mxu0 0.0
    %2920 = vmatpush1.msra.mxu0 0.0
    %2921 = vmatprep.subr.mxu0 0.0
    %2922 = vmatpush1.msra.mxu0 0.0
    %2923 = vmatprep.subr.mxu0 0.0
    %2924 = vmatpush1.msra.mxu0 0.0
    %2925 = vmatprep.subr.mxu0 0.0
    %2926 = vmatpush1.msra.mxu0 0.0
    %2927 = vmatprep.subr.mxu0 0.0
    %2928 = vmatpush1.msra.mxu0 0.0
    %2929 = vmatprep.subr.mxu0 0.0
    %2930 = vmatpush1.msra.mxu0 0.0
    %2931 = vmatprep.subr.mxu0 0.0
    %2932 = vmatpush1.msra.mxu0 0.0
    %2933 = vmatprep.subr.mxu0 0.0
    %2934 = vmatpush1.msra.mxu0 0.0
    %2935 = vmatprep.subr.mxu0 0.0
    %2936 = vmatpush1.msra.mxu0 0.0
    %2937 = vmatprep.subr.mxu0 0.0
    %2938 = vmatpush1.msra.mxu0 0.0
    %2939 = vmatprep.subr.mxu0 0.0
    %2940 = vmatpush1.msra.mxu0 0.0
    %2941 = vmatprep.subr.mxu0 0.0
    %2942 = vmatpush1.msra.mxu0 0.0
    %2943 = vmatprep.subr.mxu0 0.0
    %2944 = vmatpush1.msra.mxu0 0.0
    %2945 = vmatprep.subr.mxu0 0.0
    %2946 = vmatpush1.msra.mxu0 0.0
    %2947 = vmatprep.subr.mxu0 0.0
    %2948 = vmatpush1.msra.mxu0 0.0
    %2949 = vmatprep.subr.mxu0 0.0
    %2950 = vmatpush1.msra.mxu0 0.0
    %2951 = vmatprep.subr.mxu0 0.0
    %2952 = vmatpush1.msra.mxu0 0.0
    %2953 = vmatprep.subr.mxu0 0.0
    %2954 = vmatpush1.msra.mxu0 0.0
    %2955 = vmatprep.subr.mxu0 0.0
    %2956 = vmatpush1.msra.mxu0 0.0
    %2957 = vmatprep.subr.mxu0 0.0
    %2958 = vmatpush1.msra.mxu0 0.0
    %2959 = vmatprep.subr.mxu0 0.0
    %2960 = vmatpush1.msra.mxu0 0.0
    %2961 = vmatprep.subr.mxu0 0.0
    %2962 = vmatpush1.msra.mxu0 0.0
    %2963 = vmatprep.subr.mxu0 0.0
    %2964 = vmatpush1.msra.mxu0 0.0
    %2965 = vmatprep.subr.mxu0 0.0
    %2966 = vmatpush1.msra.mxu0 0.0
    %2967 = vmatprep.mubr.f32.mxu0 0.0
    %2968 = vmatmul.mubr.f32.gmra.mrb[0].mxu0 %v2898
    %v2969 = vpop.f32.mrb[0].mxu0
    %v2970 = vadd.f32 0.0, %v2969
    %v2971 = vpop.f32.mrb[0].mxu0
    %2972 = vmatprep.mubr.f32.mxu0 0.0
    %2973 = vmatmul.mubr.f32.gmra.mrb[0].mxu0 %v2901
    %v2974 = vpop.f32.mrb[0].mxu0
    %v2975 = vadd.f32 0.0, %v2974
    %v2976 = vpop.f32.mrb[0].mxu0
    %2977 = vdwg.mxu0
    %s2978 = scalar_lea.vmem [#allocation14], 16
    %v2979 = vld [vmem:[%s2978] sm:$0xff]
    %v2980 = vld [vmem:[%s2978 + $0x8] sm:$0xff]
    %v2982 = vsel %vm2896, %v2979, 0
    %v2985 = vsel %vm2896, %v2980, 0
    %2987 = vmatprep.subr.mxu0 0.0
    %2988 = vmatpush1.msra.mxu0 %v2892
    %2989 = vmatprep.subr.mxu0 0.0
    %2990 = vmatpush1.msra.mxu0 %v2893
    %2991 = vmatprep.subr.mxu0 0.0
    %2992 = vmatpush1.msra.mxu0 0.0
    %2993 = vmatprep.subr.mxu0 0.0
    %2994 = vmatpush1.msra.mxu0 0.0
    %2995 = vmatprep.subr.mxu0 0.0
    %2996 = vmatpush1.msra.mxu0 0.0
    %2997 = vmatprep.subr.mxu0 0.0
    %2998 = vmatpush1.msra.mxu0 0.0
    %2999 = vmatprep.subr.mxu0 0.0
    %3000 = vmatpush1.msra.mxu0 0.0
    %3001 = vmatprep.subr.mxu0 0.0
    %3002 = vmatpush1.msra.mxu0 0.0
    %3003 = vmatprep.subr.mxu0 0.0
    %3004 = vmatpush1.msra.mxu0 0.0
    %3005 = vmatprep.subr.mxu0 0.0
    %3006 = vmatpush1.msra.mxu0 0.0
    %3007 = vmatprep.subr.mxu0 0.0
    %3008 = vmatpush1.msra.mxu0 0.0
    %3009 = vmatprep.subr.mxu0 0.0
    %3010 = vmatpush1.msra.mxu0 0.0
    %3011 = vmatprep.subr.mxu0 0.0
    %3012 = vmatpush1.msra.mxu0 0.0
    %3013 = vmatprep.subr.mxu0 0.0
    %3014 = vmatpush1.msra.mxu0 0.0
    %3015 = vmatprep.subr.mxu0 0.0
    %3016 = vmatpush1.msra.mxu0 0.0
    %3017 = vmatprep.subr.mxu0 0.0
    %3018 = vmatpush1.msra.mxu0 0.0
    %3019 = vmatprep.subr.mxu0 0.0
    %3020 = vmatpush1.msra.mxu0 0.0
    %3021 = vmatprep.subr.mxu0 0.0
    %3022 = vmatpush1.msra.mxu0 0.0
    %3023 = vmatprep.subr.mxu0 0.0
    %3024 = vmatpush1.msra.mxu0 0.0
    %3025 = vmatprep.subr.mxu0 0.0
    %3026 = vmatpush1.msra.mxu0 0.0
    %3027 = vmatprep.subr.mxu0 0.0
    %3028 = vmatpush1.msra.mxu0 0.0
    %3029 = vmatprep.subr.mxu0 0.0
    %3030 = vmatpush1.msra.mxu0 0.0
    %3031 = vmatprep.subr.mxu0 0.0
    %3032 = vmatpush1.msra.mxu0 0.0
    %3033 = vmatprep.subr.mxu0 0.0
    %3034 = vmatpush1.msra.mxu0 0.0
    %3035 = vmatprep.subr.mxu0 0.0
    %3036 = vmatpush1.msra.mxu0 0.0
    %3037 = vmatprep.subr.mxu0 0.0
    %3038 = vmatpush1.msra.mxu0 0.0
    %3039 = vmatprep.subr.mxu0 0.0
    %3040 = vmatpush1.msra.mxu0 0.0
    %3041 = vmatprep.subr.mxu0 0.0
    %3042 = vmatpush1.msra.mxu0 0.0
    %3043 = vmatprep.subr.mxu0 0.0
    %3044 = vmatpush1.msra.mxu0 0.0
    %3045 = vmatprep.subr.mxu0 0.0
    %3046 = vmatpush1.msra.mxu0 0.0
    %3047 = vmatprep.subr.mxu0 0.0
    %3048 = vmatpush1.msra.mxu0 0.0
    %3049 = vmatprep.subr.mxu0 0.0
    %3050 = vmatpush1.msra.mxu0 0.0
    %3051 = vmatprep.mubr.f32.mxu0 0.0
    %3052 = vmatmul.mubr.f32.gmra.mrb[0].mxu0 %v2982
    %v3053 = vpop.f32.mrb[0].mxu0
    %v3054 = vadd.f32 0.0, %v3053
    %v3055 = vpop.f32.mrb[0].mxu0
    %3056 = vmatprep.mubr.f32.mxu0 0.0
    %3057 = vmatmul.mubr.f32.gmra.mrb[0].mxu0 %v2985
    %v3058 = vpop.f32.mrb[0].mxu0
    %v3059 = vadd.f32 0.0, %v3058
    %v3060 = vpop.f32.mrb[0].mxu0
    %3061 = vdwg.mxu0
    %v3062 = vld [vmem:[%s25] sm:$0xff]
    %v3063 = vld [vmem:[%s25 + $0x8] sm:$0xff]
    %v3064 = vld [vmem:[%s25 + $0x10] sm:$0xff]
    %v3065 = vld [vmem:[%s25 + $0x18] sm:$0xff]
    %v3066 = vld [vmem:[%s25 + $0x20] sm:$0xff]
    %v3067 = vld [vmem:[%s25 + $0x28] sm:$0xff]
    %v3068 = vld [vmem:[%s25 + $0x30] sm:$0xff]
    %v3069 = vld [vmem:[%s25 + $0x38] sm:$0xff]
    %s3070 = scalar_lea.vmem %s25, 64
    %v3071 = vld [vmem:[%s3070] sm:$0xff]
    %v3072 = vld [vmem:[%s3070 + $0x8] sm:$0xff]
    %v3073 = vld [vmem:[%s3070 + $0x10] sm:$0xff]
    %v3074 = vld [vmem:[%s3070 + $0x18] sm:$0xff]
    %v3075 = vld [vmem:[%s3070 + $0x20] sm:$0xff]
    %v3076 = vld [vmem:[%s3070 + $0x28] sm:$0xff]
    %v3077 = vld [vmem:[%s3070 + $0x30] sm:$0xff]
    %v3078 = vld [vmem:[%s3070 + $0x38] sm:$0xff]
    %v3080 = vsel %vm469, %v2892, 0
    %v3083 = vsel %vm469, %v2893, 0
    %3085 = vmatprep.subr.mxu0 0.0
    %3086 = vmatpush1.msra.mxu0 %v3071
    %3087 = vmatprep.subr.mxu0 0.0
    %3088 = vmatpush1.msra.mxu0 %v3072
    %3089 = vmatprep.subr.mxu0 0.0
    %3090 = vmatpush1.msra.mxu0 %v3073
    %3091 = vmatprep.subr.mxu0 0.0
    %3092 = vmatpush1.msra.mxu0 %v3074
    %3093 = vmatprep.subr.mxu0 0.0
    %3094 = vmatpush1.msra.mxu0 %v3075
    %3095 = vmatprep.subr.mxu0 0.0
    %3096 = vmatpush1.msra.mxu0 %v3076
    %3097 = vmatprep.subr.mxu0 0.0
    %3098 = vmatpush1.msra.mxu0 %v3077
    %3099 = vmatprep.subr.mxu0 0.0
    %3100 = vmatpush1.msra.mxu0 %v3078
    %3101 = vmatprep.subr.mxu0 0.0
    %3102 = vmatpush1.msra.mxu0 0.0
    %3103 = vmatprep.subr.mxu0 0.0
    %3104 = vmatpush1.msra.mxu0 0.0
    %3105 = vmatprep.subr.mxu0 0.0
    %3106 = vmatpush1.msra.mxu0 0.0
    %3107 = vmatprep.subr.mxu0 0.0
    %3108 = vmatpush1.msra.mxu0 0.0
    %3109 = vmatprep.subr.mxu0 0.0
    %3110 = vmatpush1.msra.mxu0 0.0
    %3111 = vmatprep.subr.mxu0 0.0
    %3112 = vmatpush1.msra.mxu0 0.0
    %3113 = vmatprep.subr.mxu0 0.0
    %3114 = vmatpush1.msra.mxu0 0.0
    %3115 = vmatprep.subr.mxu0 0.0
    %3116 = vmatpush1.msra.mxu0 0.0
    %3117 = vmatprep.subr.mxu0 0.0
    %3118 = vmatpush1.msra.mxu0 0.0
    %3119 = vmatprep.subr.mxu0 0.0
    %3120 = vmatpush1.msra.mxu0 0.0
    %3121 = vmatprep.subr.mxu0 0.0
    %3122 = vmatpush1.msra.mxu0 0.0
    %3123 = vmatprep.subr.mxu0 0.0
    %3124 = vmatpush1.msra.mxu0 0.0
    %3125 = vmatprep.subr.mxu0 0.0
    %3126 = vmatpush1.msra.mxu0 0.0
    %3127 = vmatprep.subr.mxu0 0.0
    %3128 = vmatpush1.msra.mxu0 0.0
    %3129 = vmatprep.subr.mxu0 0.0
    %3130 = vmatpush1.msra.mxu0 0.0
    %3131 = vmatprep.subr.mxu0 0.0
    %3132 = vmatpush1.msra.mxu0 0.0
    %3133 = vmatprep.subr.mxu0 0.0
    %3134 = vmatpush1.msra.mxu0 0.0
    %3135 = vmatprep.subr.mxu0 0.0
    %3136 = vmatpush1.msra.mxu0 0.0
    %3137 = vmatprep.subr.mxu0 0.0
    %3138 = vmatpush1.msra.mxu0 0.0
    %3139 = vmatprep.subr.mxu0 0.0
    %3140 = vmatpush1.msra.mxu0 0.0
    %3141 = vmatprep.subr.mxu0 0.0
    %3142 = vmatpush1.msra.mxu0 0.0
    %3143 = vmatprep.subr.mxu0 0.0
    %3144 = vmatpush1.msra.mxu0 0.0
    %3145 = vmatprep.subr.mxu0 0.0
    %3146 = vmatpush1.msra.mxu0 0.0
    %3147 = vmatprep.subr.mxu0 0.0
    %3148 = vmatpush1.msra.mxu0 0.0
    %3149 = vmatprep.mubr.f32.mxu0 0.0
    %3150 = vmatmul.mubr.f32.gmra.mrb[0].mxu0 %v3080
    %v3151 = vpop.f32.mrb[0].mxu0
    %v3152 = vadd.f32 0.0, %v3151
    %v3153 = vpop.f32.mrb[0].mxu0
    %3154 = vmatprep.mubr.f32.mxu0 0.0
    %3155 = vmatmul.mubr.f32.gmra.mrb[0].mxu0 %v3083
    %v3156 = vpop.f32.mrb[0].mxu0
    %v3157 = vadd.f32 0.0, %v3156
    %v3158 = vpop.f32.mrb[0].mxu0
    %3159 = vdwg.mxu0
    %v3161 = vsel %vm469, %v2970, 0
    %v3164 = vsel %vm469, %v2975, 0
    %3166 = vmatprep.subr.mxu0 0.0
    %3167 = vmatpush1.msra.mxu0 %v3062
    %3168 = vmatprep.subr.mxu0 0.0
    %3169 = vmatpush1.msra.mxu0 %v3063
    %3170 = vmatprep.subr.mxu0 0.0
    %3171 = vmatpush1.msra.mxu0 %v3064
    %3172 = vmatprep.subr.mxu0 0.0
    %3173 = vmatpush1.msra.mxu0 %v3065
    %3174 = vmatprep.subr.mxu0 0.0
    %3175 = vmatpush1.msra.mxu0 %v3066
    %3176 = vmatprep.subr.mxu0 0.0
    %3177 = vmatpush1.msra.mxu0 %v3067
    %3178 = vmatprep.subr.mxu0 0.0
    %3179 = vmatpush1.msra.mxu0 %v3068
    %3180 = vmatprep.subr.mxu0 0.0
    %3181 = vmatpush1.msra.mxu0 %v3069
    %3182 = vmatprep.subr.mxu0 0.0
    %3183 = vmatpush1.msra.mxu0 0.0
    %3184 = vmatprep.subr.mxu0 0.0
    %3185 = vmatpush1.msra.mxu0 0.0
    %3186 = vmatprep.subr.mxu0 0.0
    %3187 = vmatpush1.msra.mxu0 0.0
    %3188 = vmatprep.subr.mxu0 0.0
    %3189 = vmatpush1.msra.mxu0 0.0
    %3190 = vmatprep.subr.mxu0 0.0
    %3191 = vmatpush1.msra.mxu0 0.0
    %3192 = vmatprep.subr.mxu0 0.0
    %3193 = vmatpush1.msra.mxu0 0.0
    %3194 = vmatprep.subr.mxu0 0.0
    %3195 = vmatpush1.msra.mxu0 0.0
    %3196 = vmatprep.subr.mxu0 0.0
    %3197 = vmatpush1.msra.mxu0 0.0
    %3198 = vmatprep.subr.mxu0 0.0
    %3199 = vmatpush1.msra.mxu0 0.0
    %3200 = vmatprep.subr.mxu0 0.0
    %3201 = vmatpush1.msra.mxu0 0.0
    %3202 = vmatprep.subr.mxu0 0.0
    %3203 = vmatpush1.msra.mxu0 0.0
    %3204 = vmatprep.subr.mxu0 0.0
    %3205 = vmatpush1.msra.mxu0 0.0
    %3206 = vmatprep.subr.mxu0 0.0
    %3207 = vmatpush1.msra.mxu0 0.0
    %3208 = vmatprep.subr.mxu0 0.0
    %3209 = vmatpush1.msra.mxu0 0.0
    %3210 = vmatprep.subr.mxu0 0.0
    %3211 = vmatpush1.msra.mxu0 0.0
    %3212 = vmatprep.subr.mxu0 0.0
    %3213 = vmatpush1.msra.mxu0 0.0
    %3214 = vmatprep.subr.mxu0 0.0
    %3215 = vmatpush1.msra.mxu0 0.0
    %3216 = vmatprep.subr.mxu0 0.0
    %3217 = vmatpush1.msra.mxu0 0.0
    %3218 = vmatprep.subr.mxu0 0.0
    %3219 = vmatpush1.msra.mxu0 0.0
    %3220 = vmatprep.subr.mxu0 0.0
    %3221 = vmatpush1.msra.mxu0 0.0
    %3222 = vmatprep.subr.mxu0 0.0
    %3223 = vmatpush1.msra.mxu0 0.0
    %3224 = vmatprep.subr.mxu0 0.0
    %3225 = vmatpush1.msra.mxu0 0.0
    %3226 = vmatprep.subr.mxu0 0.0
    %3227 = vmatpush1.msra.mxu0 0.0
    %3228 = vmatprep.subr.mxu0 0.0
    %3229 = vmatpush1.msra.mxu0 0.0
    %3230 = vmatprep.mubr.f32.mxu0 0.0
    %3231 = vmatmul.mubr.f32.gmra.mrb[0].mxu0 %v3161
    %v3232 = vpop.f32.mrb[0].mxu0
    %v3233 = vadd.f32 %v3152, %v3232
    %v3234 = vpop.f32.mrb[0].mxu0
    %3235 = vmatprep.mubr.f32.mxu0 0.0
    %3236 = vmatmul.mubr.f32.gmra.mrb[0].mxu0 %v3164
    %v3237 = vpop.f32.mrb[0].mxu0
    %v3238 = vadd.f32 %v3157, %v3237
    %v3239 = vpop.f32.mrb[0].mxu0
    %3240 = vdwg.mxu0
    %s3241 = scalar_lea.vmem %s25, 128
    %v3242 = vld [vmem:[%s3241] sm:$0xff]
    %v3243 = vld [vmem:[%s3241 + $0x8] sm:$0xff]
    %v3244 = vld [vmem:[%s3241 + $0x10] sm:$0xff]
    %v3245 = vld [vmem:[%s3241 + $0x18] sm:$0xff]
    %v3246 = vld [vmem:[%s3241 + $0x20] sm:$0xff]
    %v3247 = vld [vmem:[%s3241 + $0x28] sm:$0xff]
    %v3248 = vld [vmem:[%s3241 + $0x30] sm:$0xff]
    %v3249 = vld [vmem:[%s3241 + $0x38] sm:$0xff]
    %v3251 = vsel %vm469, %v3054, 0
    %v3254 = vsel %vm469, %v3059, 0
    %3256 = vmatprep.subr.mxu0 0.0
    %3257 = vmatpush1.msra.mxu0 %v3242
    %3258 = vmatprep.subr.mxu0 0.0
    %3259 = vmatpush1.msra.mxu0 %v3243
    %3260 = vmatprep.subr.mxu0 0.0
    %3261 = vmatpush1.msra.mxu0 %v3244
    %3262 = vmatprep.subr.mxu0 0.0
    %3263 = vmatpush1.msra.mxu0 %v3245
    %3264 = vmatprep.subr.mxu0 0.0
    %3265 = vmatpush1.msra.mxu0 %v3246
    %3266 = vmatprep.subr.mxu0 0.0
    %3267 = vmatpush1.msra.mxu0 %v3247
    %3268 = vmatprep.subr.mxu0 0.0
    %3269 = vmatpush1.msra.mxu0 %v3248
    %3270 = vmatprep.subr.mxu0 0.0
    %3271 = vmatpush1.msra.mxu0 %v3249
    %3272 = vmatprep.subr.mxu0 0.0
    %3273 = vmatpush1.msra.mxu0 0.0
    %3274 = vmatprep.subr.mxu0 0.0
    %3275 = vmatpush1.msra.mxu0 0.0
    %3276 = vmatprep.subr.mxu0 0.0
    %3277 = vmatpush1.msra.mxu0 0.0
    %3278 = vmatprep.subr.mxu0 0.0
    %3279 = vmatpush1.msra.mxu0 0.0
    %3280 = vmatprep.subr.mxu0 0.0
    %3281 = vmatpush1.msra.mxu0 0.0
    %3282 = vmatprep.subr.mxu0 0.0
    %3283 = vmatpush1.msra.mxu0 0.0
    %3284 = vmatprep.subr.mxu0 0.0
    %3285 = vmatpush1.msra.mxu0 0.0
    %3286 = vmatprep.subr.mxu0 0.0
    %3287 = vmatpush1.msra.mxu0 0.0
    %3288 = vmatprep.subr.mxu0 0.0
    %3289 = vmatpush1.msra.mxu0 0.0
    %3290 = vmatprep.subr.mxu0 0.0
    %3291 = vmatpush1.msra.mxu0 0.0
    %3292 = vmatprep.subr.mxu0 0.0
    %3293 = vmatpush1.msra.mxu0 0.0
    %3294 = vmatprep.subr.mxu0 0.0
    %3295 = vmatpush1.msra.mxu0 0.0
    %3296 = vmatprep.subr.mxu0 0.0
    %3297 = vmatpush1.msra.mxu0 0.0
    %3298 = vmatprep.subr.mxu0 0.0
    %3299 = vmatpush1.msra.mxu0 0.0
    %3300 = vmatprep.subr.mxu0 0.0
    %3301 = vmatpush1.msra.mxu0 0.0
    %3302 = vmatprep.subr.mxu0 0.0
    %3303 = vmatpush1.msra.mxu0 0.0
    %3304 = vmatprep.subr.mxu0 0.0
    %3305 = vmatpush1.msra.mxu0 0.0
    %3306 = vmatprep.subr.mxu0 0.0
    %3307 = vmatpush1.msra.mxu0 0.0
    %3308 = vmatprep.subr.mxu0 0.0
    %3309 = vmatpush1.msra.mxu0 0.0
    %3310 = vmatprep.subr.mxu0 0.0
    %3311 = vmatpush1.msra.mxu0 0.0
    %3312 = vmatprep.subr.mxu0 0.0
    %3313 = vmatpush1.msra.mxu0 0.0
    %3314 = vmatprep.subr.mxu0 0.0
    %3315 = vmatpush1.msra.mxu0 0.0
    %3316 = vmatprep.subr.mxu0 0.0
    %3317 = vmatpush1.msra.mxu0 0.0
    %3318 = vmatprep.subr.mxu0 0.0
    %3319 = vmatpush1.msra.mxu0 0.0
    %3320 = vmatprep.mubr.f32.mxu0 0.0
    %3321 = vmatmul.mubr.f32.gmra.mrb[0].mxu0 %v3251
    %v3322 = vpop.f32.mrb[0].mxu0
    %v3323 = vadd.f32 0.0, %v3322
    %v3324 = vpop.f32.mrb[0].mxu0
    %3325 = vmatprep.mubr.f32.mxu0 0.0
    %3326 = vmatmul.mubr.f32.gmra.mrb[0].mxu0 %v3254
    %v3327 = vpop.f32.mrb[0].mxu0
    %v3328 = vadd.f32 0.0, %v3327
    %v3329 = vpop.f32.mrb[0].mxu0
    %3330 = vdwg.mxu0
    %v3331 = vadd.f32 %v3233, %v3323
    %v3332 = vadd.f32 %v3238, %v3328
    %v3333 = vadd.f32 %v3331, %v3332
    %v3334 = vrot.slane %v3333, 4
    %v3335 = vadd.f32 %v3333, %v3334
    %v3336 = vrot.slane %v3335, 2
    %v3337 = vadd.f32 %v3335, %v3336
    %v3338 = vrot.slane %v3337, 1
    %v3339 = vadd.f32 %v3337, %v3338
    %v3340 = vmul.f32 %v3331, %v3331
    %v3341 = vmul.f32 %v3332, %v3332
    %v3342 = vadd.f32 %v3340, %v3341
    %v3343 = vrot.slane %v3342, 4
    %v3344 = vadd.f32 %v3342, %v3343
    %v3345 = vrot.slane %v3344, 2
    %v3346 = vadd.f32 %v3344, %v3345
    %v3347 = vrot.slane %v3346, 1
    %v3348 = vadd.f32 %v3346, %v3347
    %v3349 = vld [vmem:[#allocation16] sm:$0xff]
    %v3350 = vld [vmem:[#allocation16 + $0x8] sm:$0xff]
    %v3351 = vld [vmem:[#allocation16 + $0x10] sm:$0xff]
    %v3352 = vld [vmem:[#allocation16 + $0x18] sm:$0xff]
    %v3353 = vld [vmem:[#allocation16 + $0x20] sm:$0xff]
    %v3354 = vld [vmem:[#allocation16 + $0x28] sm:$0xff]
    %v3355 = vld [vmem:[#allocation16 + $0x30] sm:$0xff]
    %v3356 = vld [vmem:[#allocation16 + $0x38] sm:$0xff]
    %v3357 = vld [vmem:[#allocation16 + $0x40] sm:$0xff]
    %v3358 = vld [vmem:[#allocation16 + $0x48] sm:$0xff]
    %v3359 = vld [vmem:[#allocation16 + $0x50] sm:$0xff]
    %v3360 = vld [vmem:[#allocation16 + $0x58] sm:$0xff]
    %v3361 = vld [vmem:[#allocation16 + $0x60] sm:$0xff]
    %v3362 = vld [vmem:[#allocation16 + $0x68] sm:$0xff]
    %v3363 = vld [vmem:[#allocation16 + $0x70] sm:$0xff]
    %v3364 = vld [vmem:[#allocation16 + $0x78] sm:$0xff]
    %3365 = vmatprep.subr.mxu0 0.0
    %3366 = vmatpush1.msra.mxu0 %v3349
    %3367 = vmatprep.subr.mxu0 0.0
    %3368 = vmatpush1.msra.mxu0 %v3350
    %3369 = vmatprep.subr.mxu0 0.0
    %3370 = vmatpush1.msra.mxu0 %v3351
    %3371 = vmatprep.subr.mxu0 0.0
    %3372 = vmatpush1.msra.mxu0 %v3352
    %3373 = vmatprep.subr.mxu0 0.0
    %3374 = vmatpush1.msra.mxu0 %v3353
    %3375 = vmatprep.subr.mxu0 0.0
    %3376 = vmatpush1.msra.mxu0 %v3354
    %3377 = vmatprep.subr.mxu0 0.0
    %3378 = vmatpush1.msra.mxu0 %v3355
    %3379 = vmatprep.subr.mxu0 0.0
    %3380 = vmatpush1.msra.mxu0 %v3356
    %3381 = vmatprep.subr.mxu0 0.0
    %3382 = vmatpush1.msra.mxu0 %v3357
    %3383 = vmatprep.subr.mxu0 0.0
    %3384 = vmatpush1.msra.mxu0 %v3358
    %3385 = vmatprep.subr.mxu0 0.0
    %3386 = vmatpush1.msra.mxu0 %v3359
    %3387 = vmatprep.subr.mxu0 0.0
    %3388 = vmatpush1.msra.mxu0 %v3360
    %3389 = vmatprep.subr.mxu0 0.0
    %3390 = vmatpush1.msra.mxu0 %v3361
    %3391 = vmatprep.subr.mxu0 0.0
    %3392 = vmatpush1.msra.mxu0 %v3362
    %3393 = vmatprep.subr.mxu0 0.0
    %3394 = vmatpush1.msra.mxu0 %v3363
    %3395 = vmatprep.subr.mxu0 0.0
    %3396 = vmatpush1.msra.mxu0 %v3364
    %3397 = vmatprep.subr.mxu0 0.0
    %3398 = vmatpush1.msra.mxu0 0.0
    %3399 = vmatprep.subr.mxu0 0.0
    %3400 = vmatpush1.msra.mxu0 0.0
    %3401 = vmatprep.subr.mxu0 0.0
    %3402 = vmatpush1.msra.mxu0 0.0
    %3403 = vmatprep.subr.mxu0 0.0
    %3404 = vmatpush1.msra.mxu0 0.0
    %3405 = vmatprep.subr.mxu0 0.0
    %3406 = vmatpush1.msra.mxu0 0.0
    %3407 = vmatprep.subr.mxu0 0.0
    %3408 = vmatpush1.msra.mxu0 0.0
    %3409 = vmatprep.subr.mxu0 0.0
    %3410 = vmatpush1.msra.mxu0 0.0
    %3411 = vmatprep.subr.mxu0 0.0
    %3412 = vmatpush1.msra.mxu0 0.0
    %3413 = vmatprep.subr.mxu0 0.0
    %3414 = vmatpush1.msra.mxu0 0.0
    %3415 = vmatprep.subr.mxu0 0.0
    %3416 = vmatpush1.msra.mxu0 0.0
    %3417 = vmatprep.subr.mxu0 0.0
    %3418 = vmatpush1.msra.mxu0 0.0
    %3419 = vmatprep.subr.mxu0 0.0
    %3420 = vmatpush1.msra.mxu0 0.0
    %3421 = vmatprep.subr.mxu0 0.0
    %3422 = vmatpush1.msra.mxu0 0.0
    %3423 = vmatprep.subr.mxu0 0.0
    %3424 = vmatpush1.msra.mxu0 0.0
    %3425 = vmatprep.subr.mxu0 0.0
    %3426 = vmatpush1.msra.mxu0 0.0
    %3427 = vmatprep.subr.mxu0 0.0
    %3428 = vmatpush1.msra.mxu0 0.0
    %3429 = vmatprep.mubr.f32.mxu0 0.0
    %3430 = vmatmul.mubr.f32.gmra.mrb[0].mxu0 %v3339
    %v3431 = vpop.f32.mrb[0].mxu0
    %v3432 = vadd.f32 0.0, %v3431
    %v3433 = vpop.f32.mrb[0].mxu0
    %3434 = vdwg.mxu0
    %3435 = vmatprep.subr.mxu0 0.0
    %3436 = vmatpush1.msra.mxu0 %v3349
    %3437 = vmatprep.subr.mxu0 0.0
    %3438 = vmatpush1.msra.mxu0 %v3350
    %3439 = vmatprep.subr.mxu0 0.0
    %3440 = vmatpush1.msra.mxu0 %v3351
    %3441 = vmatprep.subr.mxu0 0.0
    %3442 = vmatpush1.msra.mxu0 %v3352
    %3443 = vmatprep.subr.mxu0 0.0
    %3444 = vmatpush1.msra.mxu0 %v3353
    %3445 = vmatprep.subr.mxu0 0.0
    %3446 = vmatpush1.msra.mxu0 %v3354
    %3447 = vmatprep.subr.mxu0 0.0
    %3448 = vmatpush1.msra.mxu0 %v3355
    %3449 = vmatprep.subr.mxu0 0.0
    %3450 = vmatpush1.msra.mxu0 %v3356
    %3451 = vmatprep.subr.mxu0 0.0
    %3452 = vmatpush1.msra.mxu0 %v3357
    %3453 = vmatprep.subr.mxu0 0.0
    %3454 = vmatpush1.msra.mxu0 %v3358
    %3455 = vmatprep.subr.mxu0 0.0
    %3456 = vmatpush1.msra.mxu0 %v3359
    %3457 = vmatprep.subr.mxu0 0.0
    %3458 = vmatpush1.msra.mxu0 %v3360
    %3459 = vmatprep.subr.mxu0 0.0
    %3460 = vmatpush1.msra.mxu0 %v3361
    %3461 = vmatprep.subr.mxu0 0.0
    %3462 = vmatpush1.msra.mxu0 %v3362
    %3463 = vmatprep.subr.mxu0 0.0
    %3464 = vmatpush1.msra.mxu0 %v3363
    %3465 = vmatprep.subr.mxu0 0.0
    %3466 = vmatpush1.msra.mxu0 %v3364
    %3467 = vmatprep.subr.mxu0 0.0
    %3468 = vmatpush1.msra.mxu0 0.0
    %3469 = vmatprep.subr.mxu0 0.0
    %3470 = vmatpush1.msra.mxu0 0.0
    %3471 = vmatprep.subr.mxu0 0.0
    %3472 = vmatpush1.msra.mxu0 0.0
    %3473 = vmatprep.subr.mxu0 0.0
    %3474 = vmatpush1.msra.mxu0 0.0
    %3475 = vmatprep.subr.mxu0 0.0
    %3476 = vmatpush1.msra.mxu0 0.0
    %3477 = vmatprep.subr.mxu0 0.0
    %3478 = vmatpush1.msra.mxu0 0.0
    %3479 = vmatprep.subr.mxu0 0.0
    %3480 = vmatpush1.msra.mxu0 0.0
    %3481 = vmatprep.subr.mxu0 0.0
    %3482 = vmatpush1.msra.mxu0 0.0
    %3483 = vmatprep.subr.mxu0 0.0
    %3484 = vmatpush1.msra.mxu0 0.0
    %3485 = vmatprep.subr.mxu0 0.0
    %3486 = vmatpush1.msra.mxu0 0.0
    %3487 = vmatprep.subr.mxu0 0.0
    %3488 = vmatpush1.msra.mxu0 0.0
    %3489 = vmatprep.subr.mxu0 0.0
    %3490 = vmatpush1.msra.mxu0 0.0
    %3491 = vmatprep.subr.mxu0 0.0
    %3492 = vmatpush1.msra.mxu0 0.0
    %3493 = vmatprep.subr.mxu0 0.0
    %3494 = vmatpush1.msra.mxu0 0.0
    %3495 = vmatprep.subr.mxu0 0.0
    %3496 = vmatpush1.msra.mxu0 0.0
    %3497 = vmatprep.subr.mxu0 0.0
    %3498 = vmatpush1.msra.mxu0 0.0
    %3499 = vmatprep.mubr.f32.mxu0 0.0
    %3500 = vmatmul.mubr.f32.gmra.mrb[0].mxu0 %v3348
    %v3501 = vpop.f32.mrb[0].mxu0
    %v3502 = vadd.f32 0.0, %v3501
    %v3503 = vpop.f32.mrb[0].mxu0
    %3504 = vdwg.mxu0
    %v3505 = vmul.f32 %v3432, %v3432
    %v3506 = vsub.f32 %v3502, %v3505
    %v3507 = vmax.f32 %v3506, 0.0
    %v3508 = vlaneseq
    %v3509 = vshrl.u32 %v3508, 7
    %v3510 = vsub.s32 0, %v3509
    %v3511 = vrot.slane %v3432, %v3510
    %v3512 = vsub.f32 %v3331, %v3511
    %v3513 = vsub.f32 %v3332, %v3511
    %v3514 = vadd.f32 %v3507, 1e-05
    %v3515 = vrsqrt.pop %v3514
    %v3516 = vlaneseq
    %v3517 = vshrl.u32 %v3516, 7
    %v3518 = vsub.s32 0, %v3517
    %v3519 = vrot.slane %v3515, %v3518
    %v3520 = vmul.f32 %v3512, %v3519
    %v3521 = vmul.f32 %v3513, %v3519
    %v3522 = vmax.f32 %v3520, 0.0
    %v3523 = vmax.f32 %v3521, 0.0
    %v3524 = vld [vmem:[#allocation17] sm:$0xff]
    %v3525 = vld [vmem:[#allocation17 + $0x8] sm:$0xff]
    %v3527 = vsel %vm2896, %v3524, 0
    %v3530 = vsel %vm2896, %v3525, 0
    %3532 = vmatprep.subr.mxu0 0.0
    %3533 = vmatpush1.msra.mxu0 %v3522
    %3534 = vmatprep.subr.mxu0 0.0
    %3535 = vmatpush1.msra.mxu0 %v3523
    %3536 = vmatprep.subr.mxu0 0.0
    %3537 = vmatpush1.msra.mxu0 0.0
    %3538 = vmatprep.subr.mxu0 0.0
    %3539 = vmatpush1.msra.mxu0 0.0
    %3540 = vmatprep.subr.mxu0 0.0
    %3541 = vmatpush1.msra.mxu0 0.0
    %3542 = vmatprep.subr.mxu0 0.0
    %3543 = vmatpush1.msra.mxu0 0.0
    %3544 = vmatprep.subr.mxu0 0.0
    %3545 = vmatpush1.msra.mxu0 0.0
    %3546 = vmatprep.subr.mxu0 0.0
    %3547 = vmatpush1.msra.mxu0 0.0
    %3548 = vmatprep.subr.mxu0 0.0
    %3549 = vmatpush1.msra.mxu0 0.0
    %3550 = vmatprep.subr.mxu0 0.0
    %3551 = vmatpush1.msra.mxu0 0.0
    %3552 = vmatprep.subr.mxu0 0.0
    %3553 = vmatpush1.msra.mxu0 0.0
    %3554 = vmatprep.subr.mxu0 0.0
    %3555 = vmatpush1.msra.mxu0 0.0
    %3556 = vmatprep.subr.mxu0 0.0
    %3557 = vmatpush1.msra.mxu0 0.0
    %3558 = vmatprep.subr.mxu0 0.0
    %3559 = vmatpush1.msra.mxu0 0.0
    %3560 = vmatprep.subr.mxu0 0.0
    %3561 = vmatpush1.msra.mxu0 0.0
    %3562 = vmatprep.subr.mxu0 0.0
    %3563 = vmatpush1.msra.mxu0 0.0
    %3564 = vmatprep.subr.mxu0 0.0
    %3565 = vmatpush1.msra.mxu0 0.0
    %3566 = vmatprep.subr.mxu0 0.0
    %3567 = vmatpush1.msra.mxu0 0.0
    %3568 = vmatprep.subr.mxu0 0.0
    %3569 = vmatpush1.msra.mxu0 0.0
    %3570 = vmatprep.subr.mxu0 0.0
    %3571 = vmatpush1.msra.mxu0 0.0
    %3572 = vmatprep.subr.mxu0 0.0
    %3573 = vmatpush1.msra.mxu0 0.0
    %3574 = vmatprep.subr.mxu0 0.0
    %3575 = vmatpush1.msra.mxu0 0.0
    %3576 = vmatprep.subr.mxu0 0.0
    %3577 = vmatpush1.msra.mxu0 0.0
    %3578 = vmatprep.subr.mxu0 0.0
    %3579 = vmatpush1.msra.mxu0 0.0
    %3580 = vmatprep.subr.mxu0 0.0
    %3581 = vmatpush1.msra.mxu0 0.0
    %3582 = vmatprep.subr.mxu0 0.0
    %3583 = vmatpush1.msra.mxu0 0.0
    %3584 = vmatprep.subr.mxu0 0.0
    %3585 = vmatpush1.msra.mxu0 0.0
    %3586 = vmatprep.subr.mxu0 0.0
    %3587 = vmatpush1.msra.mxu0 0.0
    %3588 = vmatprep.subr.mxu0 0.0
    %3589 = vmatpush1.msra.mxu0 0.0
    %3590 = vmatprep.subr.mxu0 0.0
    %3591 = vmatpush1.msra.mxu0 0.0
    %3592 = vmatprep.subr.mxu0 0.0
    %3593 = vmatpush1.msra.mxu0 0.0
    %3594 = vmatprep.subr.mxu0 0.0
    %3595 = vmatpush1.msra.mxu0 0.0
    %3596 = vmatprep.mubr.f32.mxu0 0.0
    %3597 = vmatmul.mubr.f32.gmra.mrb[0].mxu0 %v3527
    %v3598 = vpop.f32.mrb[0].mxu0
    %v3599 = vadd.f32 0.0, %v3598
    %v3600 = vpop.f32.mrb[0].mxu0
    %3601 = vmatprep.mubr.f32.mxu0 0.0
    %3602 = vmatmul.mubr.f32.gmra.mrb[0].mxu0 %v3530
    %v3603 = vpop.f32.mrb[0].mxu0
    %v3604 = vadd.f32 0.0, %v3603
    %v3605 = vpop.f32.mrb[0].mxu0
    %3606 = vdwg.mxu0
    %s3607 = scalar_lea.vmem [#allocation17], 16
    %v3608 = vld [vmem:[%s3607] sm:$0xff]
    %v3609 = vld [vmem:[%s3607 + $0x8] sm:$0xff]
    %v3611 = vsel %vm2896, %v3608, 0
    %v3614 = vsel %vm2896, %v3609, 0
    %3616 = vmatprep.subr.mxu0 0.0
    %3617 = vmatpush1.msra.mxu0 %v3522
    %3618 = vmatprep.subr.mxu0 0.0
    %3619 = vmatpush1.msra.mxu0 %v3523
    %3620 = vmatprep.subr.mxu0 0.0
    %3621 = vmatpush1.msra.mxu0 0.0
    %3622 = vmatprep.subr.mxu0 0.0
    %3623 = vmatpush1.msra.mxu0 0.0
    %3624 = vmatprep.subr.mxu0 0.0
    %3625 = vmatpush1.msra.mxu0 0.0
    %3626 = vmatprep.subr.mxu0 0.0
    %3627 = vmatpush1.msra.mxu0 0.0
    %3628 = vmatprep.subr.mxu0 0.0
    %3629 = vmatpush1.msra.mxu0 0.0
    %3630 = vmatprep.subr.mxu0 0.0
    %3631 = vmatpush1.msra.mxu0 0.0
    %3632 = vmatprep.subr.mxu0 0.0
    %3633 = vmatpush1.msra.mxu0 0.0
    %3634 = vmatprep.subr.mxu0 0.0
    %3635 = vmatpush1.msra.mxu0 0.0
    %3636 = vmatprep.subr.mxu0 0.0
    %3637 = vmatpush1.msra.mxu0 0.0
    %3638 = vmatprep.subr.mxu0 0.0
    %3639 = vmatpush1.msra.mxu0 0.0
    %3640 = vmatprep.subr.mxu0 0.0
    %3641 = vmatpush1.msra.mxu0 0.0
    %3642 = vmatprep.subr.mxu0 0.0
    %3643 = vmatpush1.msra.mxu0 0.0
    %3644 = vmatprep.subr.mxu0 0.0
    %3645 = vmatpush1.msra.mxu0 0.0
    %3646 = vmatprep.subr.mxu0 0.0
    %3647 = vmatpush1.msra.mxu0 0.0
    %3648 = vmatprep.subr.mxu0 0.0
    %3649 = vmatpush1.msra.mxu0 0.0
    %3650 = vmatprep.subr.mxu0 0.0
    %3651 = vmatpush1.msra.mxu0 0.0
    %3652 = vmatprep.subr.mxu0 0.0
    %3653 = vmatpush1.msra.mxu0 0.0
    %3654 = vmatprep.subr.mxu0 0.0
    %3655 = vmatpush1.msra.mxu0 0.0
    %3656 = vmatprep.subr.mxu0 0.0
    %3657 = vmatpush1.msra.mxu0 0.0
    %3658 = vmatprep.subr.mxu0 0.0
    %3659 = vmatpush1.msra.mxu0 0.0
    %3660 = vmatprep.subr.mxu0 0.0
    %3661 = vmatpush1.msra.mxu0 0.0
    %3662 = vmatprep.subr.mxu0 0.0
    %3663 = vmatpush1.msra.mxu0 0.0
    %3664 = vmatprep.subr.mxu0 0.0
    %3665 = vmatpush1.msra.mxu0 0.0
    %3666 = vmatprep.subr.mxu0 0.0
    %3667 = vmatpush1.msra.mxu0 0.0
    %3668 = vmatprep.subr.mxu0 0.0
    %3669 = vmatpush1.msra.mxu0 0.0
    %3670 = vmatprep.subr.mxu0 0.0
    %3671 = vmatpush1.msra.mxu0 0.0
    %3672 = vmatprep.subr.mxu0 0.0
    %3673 = vmatpush1.msra.mxu0 0.0
    %3674 = vmatprep.subr.mxu0 0.0
    %3675 = vmatpush1.msra.mxu0 0.0
    %3676 = vmatprep.subr.mxu0 0.0
    %3677 = vmatpush1.msra.mxu0 0.0
    %3678 = vmatprep.subr.mxu0 0.0
    %3679 = vmatpush1.msra.mxu0 0.0
    %3680 = vmatprep.mubr.f32.mxu0 0.0
    %3681 = vmatmul.mubr.f32.gmra.mrb[0].mxu0 %v3611
    %v3682 = vpop.f32.mrb[0].mxu0
    %v3683 = vadd.f32 0.0, %v3682
    %v3684 = vpop.f32.mrb[0].mxu0
    %3685 = vmatprep.mubr.f32.mxu0 0.0
    %3686 = vmatmul.mubr.f32.gmra.mrb[0].mxu0 %v3614
    %v3687 = vpop.f32.mrb[0].mxu0
    %v3688 = vadd.f32 0.0, %v3687
    %v3689 = vpop.f32.mrb[0].mxu0
    %3690 = vdwg.mxu0
    %v3691 = vld [vmem:[%s31] sm:$0xff]
    %v3692 = vld [vmem:[%s31 + $0x8] sm:$0xff]
    %v3693 = vld [vmem:[%s31 + $0x10] sm:$0xff]
    %v3694 = vld [vmem:[%s31 + $0x18] sm:$0xff]
    %v3695 = vld [vmem:[%s31 + $0x20] sm:$0xff]
    %v3696 = vld [vmem:[%s31 + $0x28] sm:$0xff]
    %v3697 = vld [vmem:[%s31 + $0x30] sm:$0xff]
    %v3698 = vld [vmem:[%s31 + $0x38] sm:$0xff]
    %v3699 = vld [vmem:[%s31 + $0x40] sm:$0xff]
    %v3700 = vld [vmem:[%s31 + $0x48] sm:$0xff]
    %v3701 = vld [vmem:[%s31 + $0x50] sm:$0xff]
    %v3702 = vld [vmem:[%s31 + $0x58] sm:$0xff]
    %v3703 = vld [vmem:[%s31 + $0x60] sm:$0xff]
    %v3704 = vld [vmem:[%s31 + $0x68] sm:$0xff]
    %v3705 = vld [vmem:[%s31 + $0x70] sm:$0xff]
    %v3706 = vld [vmem:[%s31 + $0x78] sm:$0xff]
    %s3707 = scalar_lea.vmem %s31, 128
    %v3708 = vld [vmem:[%s3707] sm:$0xff]
    %v3709 = vld [vmem:[%s3707 + $0x8] sm:$0xff]
    %v3710 = vld [vmem:[%s3707 + $0x10] sm:$0xff]
    %v3711 = vld [vmem:[%s3707 + $0x18] sm:$0xff]
    %v3712 = vld [vmem:[%s3707 + $0x20] sm:$0xff]
    %v3713 = vld [vmem:[%s3707 + $0x28] sm:$0xff]
    %v3714 = vld [vmem:[%s3707 + $0x30] sm:$0xff]
    %v3715 = vld [vmem:[%s3707 + $0x38] sm:$0xff]
    %v3716 = vld [vmem:[%s3707 + $0x40] sm:$0xff]
    %v3717 = vld [vmem:[%s3707 + $0x48] sm:$0xff]
    %v3718 = vld [vmem:[%s3707 + $0x50] sm:$0xff]
    %v3719 = vld [vmem:[%s3707 + $0x58] sm:$0xff]
    %v3720 = vld [vmem:[%s3707 + $0x60] sm:$0xff]
    %v3721 = vld [vmem:[%s3707 + $0x68] sm:$0xff]
    %v3722 = vld [vmem:[%s3707 + $0x70] sm:$0xff]
    %v3723 = vld [vmem:[%s3707 + $0x78] sm:$0xff]
    %3724 = vmatprep.subr.mxu0 0.0
    %3725 = vmatpush1.msra.mxu0 %v3708
    %3726 = vmatprep.subr.mxu0 0.0
    %3727 = vmatpush1.msra.mxu0 %v3709
    %3728 = vmatprep.subr.mxu0 0.0
    %3729 = vmatpush1.msra.mxu0 %v3710
    %3730 = vmatprep.subr.mxu0 0.0
    %3731 = vmatpush1.msra.mxu0 %v3711
    %3732 = vmatprep.subr.mxu0 0.0
    %3733 = vmatpush1.msra.mxu0 %v3712
    %3734 = vmatprep.subr.mxu0 0.0
    %3735 = vmatpush1.msra.mxu0 %v3713
    %3736 = vmatprep.subr.mxu0 0.0
    %3737 = vmatpush1.msra.mxu0 %v3714
    %3738 = vmatprep.subr.mxu0 0.0
    %3739 = vmatpush1.msra.mxu0 %v3715
    %3740 = vmatprep.subr.mxu0 0.0
    %3741 = vmatpush1.msra.mxu0 %v3716
    %3742 = vmatprep.subr.mxu0 0.0
    %3743 = vmatpush1.msra.mxu0 %v3717
    %3744 = vmatprep.subr.mxu0 0.0
    %3745 = vmatpush1.msra.mxu0 %v3718
    %3746 = vmatprep.subr.mxu0 0.0
    %3747 = vmatpush1.msra.mxu0 %v3719
    %3748 = vmatprep.subr.mxu0 0.0
    %3749 = vmatpush1.msra.mxu0 %v3720
    %3750 = vmatprep.subr.mxu0 0.0
    %3751 = vmatpush1.msra.mxu0 %v3721
    %3752 = vmatprep.subr.mxu0 0.0
    %3753 = vmatpush1.msra.mxu0 %v3722
    %3754 = vmatprep.subr.mxu0 0.0
    %3755 = vmatpush1.msra.mxu0 %v3723
    %3756 = vmatprep.subr.mxu0 0.0
    %3757 = vmatpush1.msra.mxu0 0.0
    %3758 = vmatprep.subr.mxu0 0.0
    %3759 = vmatpush1.msra.mxu0 0.0
    %3760 = vmatprep.subr.mxu0 0.0
    %3761 = vmatpush1.msra.mxu0 0.0
    %3762 = vmatprep.subr.mxu0 0.0
    %3763 = vmatpush1.msra.mxu0 0.0
    %3764 = vmatprep.subr.mxu0 0.0
    %3765 = vmatpush1.msra.mxu0 0.0
    %3766 = vmatprep.subr.mxu0 0.0
    %3767 = vmatpush1.msra.mxu0 0.0
    %3768 = vmatprep.subr.mxu0 0.0
    %3769 = vmatpush1.msra.mxu0 0.0
    %3770 = vmatprep.subr.mxu0 0.0
    %3771 = vmatpush1.msra.mxu0 0.0
    %3772 = vmatprep.subr.mxu0 0.0
    %3773 = vmatpush1.msra.mxu0 0.0
    %3774 = vmatprep.subr.mxu0 0.0
    %3775 = vmatpush1.msra.mxu0 0.0
    %3776 = vmatprep.subr.mxu0 0.0
    %3777 = vmatpush1.msra.mxu0 0.0
    %3778 = vmatprep.subr.mxu0 0.0
    %3779 = vmatpush1.msra.mxu0 0.0
    %3780 = vmatprep.subr.mxu0 0.0
    %3781 = vmatpush1.msra.mxu0 0.0
    %3782 = vmatprep.subr.mxu0 0.0
    %3783 = vmatpush1.msra.mxu0 0.0
    %3784 = vmatprep.subr.mxu0 0.0
    %3785 = vmatpush1.msra.mxu0 0.0
    %3786 = vmatprep.subr.mxu0 0.0
    %3787 = vmatpush1.msra.mxu0 0.0
    %3788 = vmatprep.mubr.f32.mxu0 0.0
    %3789 = vmatmul.mubr.f32.gmra.mrb[0].mxu0 %v3522
    %v3790 = vpop.f32.mrb[0].mxu0
    %v3791 = vadd.f32 0.0, %v3790
    %v3792 = vpop.f32.mrb[0].mxu0
    %3793 = vmatprep.mubr.f32.mxu0 0.0
    %3794 = vmatmul.mubr.f32.gmra.mrb[0].mxu0 %v3523
    %v3795 = vpop.f32.mrb[0].mxu0
    %v3796 = vadd.f32 0.0, %v3795
    %v3797 = vpop.f32.mrb[0].mxu0
    %3798 = vdwg.mxu0
    %3799 = vmatprep.subr.mxu0 0.0
    %3800 = vmatpush1.msra.mxu0 %v3691
    %3801 = vmatprep.subr.mxu0 0.0
    %3802 = vmatpush1.msra.mxu0 %v3692
    %3803 = vmatprep.subr.mxu0 0.0
    %3804 = vmatpush1.msra.mxu0 %v3693
    %3805 = vmatprep.subr.mxu0 0.0
    %3806 = vmatpush1.msra.mxu0 %v3694
    %3807 = vmatprep.subr.mxu0 0.0
    %3808 = vmatpush1.msra.mxu0 %v3695
    %3809 = vmatprep.subr.mxu0 0.0
    %3810 = vmatpush1.msra.mxu0 %v3696
    %3811 = vmatprep.subr.mxu0 0.0
    %3812 = vmatpush1.msra.mxu0 %v3697
    %3813 = vmatprep.subr.mxu0 0.0
    %3814 = vmatpush1.msra.mxu0 %v3698
    %3815 = vmatprep.subr.mxu0 0.0
    %3816 = vmatpush1.msra.mxu0 %v3699
    %3817 = vmatprep.subr.mxu0 0.0
    %3818 = vmatpush1.msra.mxu0 %v3700
    %3819 = vmatprep.subr.mxu0 0.0
    %3820 = vmatpush1.msra.mxu0 %v3701
    %3821 = vmatprep.subr.mxu0 0.0
    %3822 = vmatpush1.msra.mxu0 %v3702
    %3823 = vmatprep.subr.mxu0 0.0
    %3824 = vmatpush1.msra.mxu0 %v3703
    %3825 = vmatprep.subr.mxu0 0.0
    %3826 = vmatpush1.msra.mxu0 %v3704
    %3827 = vmatprep.subr.mxu0 0.0
    %3828 = vmatpush1.msra.mxu0 %v3705
    %3829 = vmatprep.subr.mxu0 0.0
    %3830 = vmatpush1.msra.mxu0 %v3706
    %3831 = vmatprep.subr.mxu0 0.0
    %3832 = vmatpush1.msra.mxu0 0.0
    %3833 = vmatprep.subr.mxu0 0.0
    %3834 = vmatpush1.msra.mxu0 0.0
    %3835 = vmatprep.subr.mxu0 0.0
    %3836 = vmatpush1.msra.mxu0 0.0
    %3837 = vmatprep.subr.mxu0 0.0
    %3838 = vmatpush1.msra.mxu0 0.0
    %3839 = vmatprep.subr.mxu0 0.0
    %3840 = vmatpush1.msra.mxu0 0.0
    %3841 = vmatprep.subr.mxu0 0.0
    %3842 = vmatpush1.msra.mxu0 0.0
    %3843 = vmatprep.subr.mxu0 0.0
    %3844 = vmatpush1.msra.mxu0 0.0
    %3845 = vmatprep.subr.mxu0 0.0
    %3846 = vmatpush1.msra.mxu0 0.0
    %3847 = vmatprep.subr.mxu0 0.0
    %3848 = vmatpush1.msra.mxu0 0.0
    %3849 = vmatprep.subr.mxu0 0.0
    %3850 = vmatpush1.msra.mxu0 0.0
    %3851 = vmatprep.subr.mxu0 0.0
    %3852 = vmatpush1.msra.mxu0 0.0
    %3853 = vmatprep.subr.mxu0 0.0
    %3854 = vmatpush1.msra.mxu0 0.0
    %3855 = vmatprep.subr.mxu0 0.0
    %3856 = vmatpush1.msra.mxu0 0.0
    %3857 = vmatprep.subr.mxu0 0.0
    %3858 = vmatpush1.msra.mxu0 0.0
    %3859 = vmatprep.subr.mxu0 0.0
    %3860 = vmatpush1.msra.mxu0 0.0
    %3861 = vmatprep.subr.mxu0 0.0
    %3862 = vmatpush1.msra.mxu0 0.0
    %3863 = vmatprep.mubr.f32.mxu0 0.0
    %3864 = vmatmul.mubr.f32.gmra.mrb[0].mxu0 %v3599
    %v3865 = vpop.f32.mrb[0].mxu0
    %v3866 = vadd.f32 %v3791, %v3865
    %v3867 = vpop.f32.mrb[0].mxu0
    %3868 = vmatprep.mubr.f32.mxu0 0.0
    %3869 = vmatmul.mubr.f32.gmra.mrb[0].mxu0 %v3604
    %v3870 = vpop.f32.mrb[0].mxu0
    %v3871 = vadd.f32 %v3796, %v3870
    %v3872 = vpop.f32.mrb[0].mxu0
    %3873 = vdwg.mxu0
    %s3874 = scalar_lea.vmem %s31, 256
    %v3875 = vld [vmem:[%s3874] sm:$0xff]
    %v3876 = vld [vmem:[%s3874 + $0x8] sm:$0xff]
    %v3877 = vld [vmem:[%s3874 + $0x10] sm:$0xff]
    %v3878 = vld [vmem:[%s3874 + $0x18] sm:$0xff]
    %v3879 = vld [vmem:[%s3874 + $0x20] sm:$0xff]
    %v3880 = vld [vmem:[%s3874 + $0x28] sm:$0xff]
    %v3881 = vld [vmem:[%s3874 + $0x30] sm:$0xff]
    %v3882 = vld [vmem:[%s3874 + $0x38] sm:$0xff]
    %v3883 = vld [vmem:[%s3874 + $0x40] sm:$0xff]
    %v3884 = vld [vmem:[%s3874 + $0x48] sm:$0xff]
    %v3885 = vld [vmem:[%s3874 + $0x50] sm:$0xff]
    %v3886 = vld [vmem:[%s3874 + $0x58] sm:$0xff]
    %v3887 = vld [vmem:[%s3874 + $0x60] sm:$0xff]
    %v3888 = vld [vmem:[%s3874 + $0x68] sm:$0xff]
    %v3889 = vld [vmem:[%s3874 + $0x70] sm:$0xff]
    %v3890 = vld [vmem:[%s3874 + $0x78] sm:$0xff]
    %3891 = vmatprep.subr.mxu0 0.0
    %3892 = vmatpush1.msra.mxu0 %v3875
    %3893 = vmatprep.subr.mxu0 0.0
    %3894 = vmatpush1.msra.mxu0 %v3876
    %3895 = vmatprep.subr.mxu0 0.0
    %3896 = vmatpush1.msra.mxu0 %v3877
    %3897 = vmatprep.subr.mxu0 0.0
    %3898 = vmatpush1.msra.mxu0 %v3878
    %3899 = vmatprep.subr.mxu0 0.0
    %3900 = vmatpush1.msra.mxu0 %v3879
    %3901 = vmatprep.subr.mxu0 0.0
    %3902 = vmatpush1.msra.mxu0 %v3880
    %3903 = vmatprep.subr.mxu0 0.0
    %3904 = vmatpush1.msra.mxu0 %v3881
    %3905 = vmatprep.subr.mxu0 0.0
    %3906 = vmatpush1.msra.mxu0 %v3882
    %3907 = vmatprep.subr.mxu0 0.0
    %3908 = vmatpush1.msra.mxu0 %v3883
    %3909 = vmatprep.subr.mxu0 0.0
    %3910 = vmatpush1.msra.mxu0 %v3884
    %3911 = vmatprep.subr.mxu0 0.0
    %3912 = vmatpush1.msra.mxu0 %v3885
    %3913 = vmatprep.subr.mxu0 0.0
    %3914 = vmatpush1.msra.mxu0 %v3886
    %3915 = vmatprep.subr.mxu0 0.0
    %3916 = vmatpush1.msra.mxu0 %v3887
    %3917 = vmatprep.subr.mxu0 0.0
    %3918 = vmatpush1.msra.mxu0 %v3888
    %3919 = vmatprep.subr.mxu0 0.0
    %3920 = vmatpush1.msra.mxu0 %v3889
    %3921 = vmatprep.subr.mxu0 0.0
    %3922 = vmatpush1.msra.mxu0 %v3890
    %3923 = vmatprep.subr.mxu0 0.0
    %3924 = vmatpush1.msra.mxu0 0.0
    %3925 = vmatprep.subr.mxu0 0.0
    %3926 = vmatpush1.msra.mxu0 0.0
    %3927 = vmatprep.subr.mxu0 0.0
    %3928 = vmatpush1.msra.mxu0 0.0
    %3929 = vmatprep.subr.mxu0 0.0
    %3930 = vmatpush1.msra.mxu0 0.0
    %3931 = vmatprep.subr.mxu0 0.0
    %3932 = vmatpush1.msra.mxu0 0.0
    %3933 = vmatprep.subr.mxu0 0.0
    %3934 = vmatpush1.msra.mxu0 0.0
    %3935 = vmatprep.subr.mxu0 0.0
    %3936 = vmatpush1.msra.mxu0 0.0
    %3937 = vmatprep.subr.mxu0 0.0
    %3938 = vmatpush1.msra.mxu0 0.0
    %3939 = vmatprep.subr.mxu0 0.0
    %3940 = vmatpush1.msra.mxu0 0.0
    %3941 = vmatprep.subr.mxu0 0.0
    %3942 = vmatpush1.msra.mxu0 0.0
    %3943 = vmatprep.subr.mxu0 0.0
    %3944 = vmatpush1.msra.mxu0 0.0
    %3945 = vmatprep.subr.mxu0 0.0
    %3946 = vmatpush1.msra.mxu0 0.0
    %3947 = vmatprep.subr.mxu0 0.0
    %3948 = vmatpush1.msra.mxu0 0.0
    %3949 = vmatprep.subr.mxu0 0.0
    %3950 = vmatpush1.msra.mxu0 0.0
    %3951 = vmatprep.subr.mxu0 0.0
    %3952 = vmatpush1.msra.mxu0 0.0
    %3953 = vmatprep.subr.mxu0 0.0
    %3954 = vmatpush1.msra.mxu0 0.0
    %3955 = vmatprep.mubr.f32.mxu0 0.0
    %3956 = vmatmul.mubr.f32.gmra.mrb[0].mxu0 %v3683
    %v3957 = vpop.f32.mrb[0].mxu0
    %v3958 = vadd.f32 0.0, %v3957
    %v3959 = vpop.f32.mrb[0].mxu0
    %3960 = vmatprep.mubr.f32.mxu0 0.0
    %3961 = vmatmul.mubr.f32.gmra.mrb[0].mxu0 %v3688
    %v3962 = vpop.f32.mrb[0].mxu0
    %v3963 = vadd.f32 0.0, %v3962
    %v3964 = vpop.f32.mrb[0].mxu0
    %3965 = vdwg.mxu0
    %v3966 = vadd.f32 %v3866, %v3958
    %v3967 = vadd.f32 %v3871, %v3963
    %v3968 = vadd.f32 %v3966, %v3967
    %v3969 = vrot.slane %v3968, 4
    %v3970 = vadd.f32 %v3968, %v3969
    %v3971 = vrot.slane %v3970, 2
    %v3972 = vadd.f32 %v3970, %v3971
    %v3973 = vrot.slane %v3972, 1
    %v3974 = vadd.f32 %v3972, %v3973
    %v3975 = vmul.f32 %v3966, %v3966
    %v3976 = vmul.f32 %v3967, %v3967
    %v3977 = vadd.f32 %v3975, %v3976
    %v3978 = vrot.slane %v3977, 4
    %v3979 = vadd.f32 %v3977, %v3978
    %v3980 = vrot.slane %v3979, 2
    %v3981 = vadd.f32 %v3979, %v3980
    %v3982 = vrot.slane %v3981, 1
    %v3983 = vadd.f32 %v3981, %v3982
    %v3984 = vld [vmem:[#allocation19] sm:$0xff]
    %v3985 = vld [vmem:[#allocation19 + $0x8] sm:$0xff]
    %v3986 = vld [vmem:[#allocation19 + $0x10] sm:$0xff]
    %v3987 = vld [vmem:[#allocation19 + $0x18] sm:$0xff]
    %v3988 = vld [vmem:[#allocation19 + $0x20] sm:$0xff]
    %v3989 = vld [vmem:[#allocation19 + $0x28] sm:$0xff]
    %v3990 = vld [vmem:[#allocation19 + $0x30] sm:$0xff]
    %v3991 = vld [vmem:[#allocation19 + $0x38] sm:$0xff]
    %v3992 = vld [vmem:[#allocation19 + $0x40] sm:$0xff]
    %v3993 = vld [vmem:[#allocation19 + $0x48] sm:$0xff]
    %v3994 = vld [vmem:[#allocation19 + $0x50] sm:$0xff]
    %v3995 = vld [vmem:[#allocation19 + $0x58] sm:$0xff]
    %v3996 = vld [vmem:[#allocation19 + $0x60] sm:$0xff]
    %v3997 = vld [vmem:[#allocation19 + $0x68] sm:$0xff]
    %v3998 = vld [vmem:[#allocation19 + $0x70] sm:$0xff]
    %v3999 = vld [vmem:[#allocation19 + $0x78] sm:$0xff]
    %4000 = vmatprep.subr.mxu0 0.0
    %4001 = vmatpush1.msra.mxu0 %v3984
    %4002 = vmatprep.subr.mxu0 0.0
    %4003 = vmatpush1.msra.mxu0 %v3985
    %4004 = vmatprep.subr.mxu0 0.0
    %4005 = vmatpush1.msra.mxu0 %v3986
    %4006 = vmatprep.subr.mxu0 0.0
    %4007 = vmatpush1.msra.mxu0 %v3987
    %4008 = vmatprep.subr.mxu0 0.0
    %4009 = vmatpush1.msra.mxu0 %v3988
    %4010 = vmatprep.subr.mxu0 0.0
    %4011 = vmatpush1.msra.mxu0 %v3989
    %4012 = vmatprep.subr.mxu0 0.0
    %4013 = vmatpush1.msra.mxu0 %v3990
    %4014 = vmatprep.subr.mxu0 0.0
    %4015 = vmatpush1.msra.mxu0 %v3991
    %4016 = vmatprep.subr.mxu0 0.0
    %4017 = vmatpush1.msra.mxu0 %v3992
    %4018 = vmatprep.subr.mxu0 0.0
    %4019 = vmatpush1.msra.mxu0 %v3993
    %4020 = vmatprep.subr.mxu0 0.0
    %4021 = vmatpush1.msra.mxu0 %v3994
    %4022 = vmatprep.subr.mxu0 0.0
    %4023 = vmatpush1.msra.mxu0 %v3995
    %4024 = vmatprep.subr.mxu0 0.0
    %4025 = vmatpush1.msra.mxu0 %v3996
    %4026 = vmatprep.subr.mxu0 0.0
    %4027 = vmatpush1.msra.mxu0 %v3997
    %4028 = vmatprep.subr.mxu0 0.0
    %4029 = vmatpush1.msra.mxu0 %v3998
    %4030 = vmatprep.subr.mxu0 0.0
    %4031 = vmatpush1.msra.mxu0 %v3999
    %4032 = vmatprep.subr.mxu0 0.0
    %4033 = vmatpush1.msra.mxu0 0.0
    %4034 = vmatprep.subr.mxu0 0.0
    %4035 = vmatpush1.msra.mxu0 0.0
    %4036 = vmatprep.subr.mxu0 0.0
    %4037 = vmatpush1.msra.mxu0 0.0
    %4038 = vmatprep.subr.mxu0 0.0
    %4039 = vmatpush1.msra.mxu0 0.0
    %4040 = vmatprep.subr.mxu0 0.0
    %4041 = vmatpush1.msra.mxu0 0.0
    %4042 = vmatprep.subr.mxu0 0.0
    %4043 = vmatpush1.msra.mxu0 0.0
    %4044 = vmatprep.subr.mxu0 0.0
    %4045 = vmatpush1.msra.mxu0 0.0
    %4046 = vmatprep.subr.mxu0 0.0
    %4047 = vmatpush1.msra.mxu0 0.0
    %4048 = vmatprep.subr.mxu0 0.0
    %4049 = vmatpush1.msra.mxu0 0.0
    %4050 = vmatprep.subr.mxu0 0.0
    %4051 = vmatpush1.msra.mxu0 0.0
    %4052 = vmatprep.subr.mxu0 0.0
    %4053 = vmatpush1.msra.mxu0 0.0
    %4054 = vmatprep.subr.mxu0 0.0
    %4055 = vmatpush1.msra.mxu0 0.0
    %4056 = vmatprep.subr.mxu0 0.0
    %4057 = vmatpush1.msra.mxu0 0.0
    %4058 = vmatprep.subr.mxu0 0.0
    %4059 = vmatpush1.msra.mxu0 0.0
    %4060 = vmatprep.subr.mxu0 0.0
    %4061 = vmatpush1.msra.mxu0 0.0
    %4062 = vmatprep.subr.mxu0 0.0
    %4063 = vmatpush1.msra.mxu0 0.0
    %4064 = vmatprep.mubr.f32.mxu0 0.0
    %4065 = vmatmul.mubr.f32.gmra.mrb[0].mxu0 %v3974
    %v4066 = vpop.f32.mrb[0].mxu0
    %v4067 = vadd.f32 0.0, %v4066
    %v4068 = vpop.f32.mrb[0].mxu0
    %4069 = vdwg.mxu0
    %4070 = vmatprep.subr.mxu0 0.0
    %4071 = vmatpush1.msra.mxu0 %v3984
    %4072 = vmatprep.subr.mxu0 0.0
    %4073 = vmatpush1.msra.mxu0 %v3985
    %4074 = vmatprep.subr.mxu0 0.0
    %4075 = vmatpush1.msra.mxu0 %v3986
    %4076 = vmatprep.subr.mxu0 0.0
    %4077 = vmatpush1.msra.mxu0 %v3987
    %4078 = vmatprep.subr.mxu0 0.0
    %4079 = vmatpush1.msra.mxu0 %v3988
    %4080 = vmatprep.subr.mxu0 0.0
    %4081 = vmatpush1.msra.mxu0 %v3989
    %4082 = vmatprep.subr.mxu0 0.0
    %4083 = vmatpush1.msra.mxu0 %v3990
    %4084 = vmatprep.subr.mxu0 0.0
    %4085 = vmatpush1.msra.mxu0 %v3991
    %4086 = vmatprep.subr.mxu0 0.0
    %4087 = vmatpush1.msra.mxu0 %v3992
    %4088 = vmatprep.subr.mxu0 0.0
    %4089 = vmatpush1.msra.mxu0 %v3993
    %4090 = vmatprep.subr.mxu0 0.0
    %4091 = vmatpush1.msra.mxu0 %v3994
    %4092 = vmatprep.subr.mxu0 0.0
    %4093 = vmatpush1.msra.mxu0 %v3995
    %4094 = vmatprep.subr.mxu0 0.0
    %4095 = vmatpush1.msra.mxu0 %v3996
    %4096 = vmatprep.subr.mxu0 0.0
    %4097 = vmatpush1.msra.mxu0 %v3997
    %4098 = vmatprep.subr.mxu0 0.0
    %4099 = vmatpush1.msra.mxu0 %v3998
    %4100 = vmatprep.subr.mxu0 0.0
    %4101 = vmatpush1.msra.mxu0 %v3999
    %4102 = vmatprep.subr.mxu0 0.0
    %4103 = vmatpush1.msra.mxu0 0.0
    %4104 = vmatprep.subr.mxu0 0.0
    %4105 = vmatpush1.msra.mxu0 0.0
    %4106 = vmatprep.subr.mxu0 0.0
    %4107 = vmatpush1.msra.mxu0 0.0
    %4108 = vmatprep.subr.mxu0 0.0
    %4109 = vmatpush1.msra.mxu0 0.0
    %4110 = vmatprep.subr.mxu0 0.0
    %4111 = vmatpush1.msra.mxu0 0.0
    %4112 = vmatprep.subr.mxu0 0.0
    %4113 = vmatpush1.msra.mxu0 0.0
    %4114 = vmatprep.subr.mxu0 0.0
    %4115 = vmatpush1.msra.mxu0 0.0
    %4116 = vmatprep.subr.mxu0 0.0
    %4117 = vmatpush1.msra.mxu0 0.0
    %4118 = vmatprep.subr.mxu0 0.0
    %4119 = vmatpush1.msra.mxu0 0.0
    %4120 = vmatprep.subr.mxu0 0.0
    %4121 = vmatpush1.msra.mxu0 0.0
    %4122 = vmatprep.subr.mxu0 0.0
    %4123 = vmatpush1.msra.mxu0 0.0
    %4124 = vmatprep.subr.mxu0 0.0
    %4125 = vmatpush1.msra.mxu0 0.0
    %4126 = vmatprep.subr.mxu0 0.0
    %4127 = vmatpush1.msra.mxu0 0.0
    %4128 = vmatprep.subr.mxu0 0.0
    %4129 = vmatpush1.msra.mxu0 0.0
    %4130 = vmatprep.subr.mxu0 0.0
    %4131 = vmatpush1.msra.mxu0 0.0
    %4132 = vmatprep.subr.mxu0 0.0
    %4133 = vmatpush1.msra.mxu0 0.0
    %4134 = vmatprep.mubr.f32.mxu0 0.0
    %4135 = vmatmul.mubr.f32.gmra.mrb[0].mxu0 %v3983
    %v4136 = vpop.f32.mrb[0].mxu0
    %v4137 = vadd.f32 0.0, %v4136
    %v4138 = vpop.f32.mrb[0].mxu0
    %4139 = vdwg.mxu0
    %v4140 = vmul.f32 %v4067, %v4067
    %v4141 = vsub.f32 %v4137, %v4140
    %v4142 = vmax.f32 %v4141, 0.0
    %v4143 = vlaneseq
    %v4144 = vshrl.u32 %v4143, 7
    %v4145 = vsub.s32 0, %v4144
    %v4146 = vrot.slane %v4067, %v4145
    %v4147 = vsub.f32 %v3966, %v4146
    %v4148 = vsub.f32 %v3967, %v4146
    %v4149 = vadd.f32 %v4142, 1e-05
    %v4150 = vrsqrt.pop %v4149
    %v4151 = vlaneseq
    %v4152 = vshrl.u32 %v4151, 7
    %v4153 = vsub.s32 0, %v4152
    %v4154 = vrot.slane %v4150, %v4153
    %v4155 = vmul.f32 %v4147, %v4154
    %v4156 = vmul.f32 %v4148, %v4154
    %v4157 = vmax.f32 %v4155, 0.0
    %v4158 = vmax.f32 %v4156, 0.0
    %v4159 = vld [vmem:[#allocation20] sm:$0xff]
    %v4161 = vsel %vm2896, %v4159, 0
    %4163 = vmatprep.subr.mxu0 0.0
    %4164 = vmatpush1.msra.mxu0 %v4157
    %4165 = vmatprep.subr.mxu0 0.0
    %4166 = vmatpush1.msra.mxu0 %v4158
    %4167 = vmatprep.subr.mxu0 0.0
    %4168 = vmatpush1.msra.mxu0 0.0
    %4169 = vmatprep.subr.mxu0 0.0
    %4170 = vmatpush1.msra.mxu0 0.0
    %4171 = vmatprep.subr.mxu0 0.0
    %4172 = vmatpush1.msra.mxu0 0.0
    %4173 = vmatprep.subr.mxu0 0.0
    %4174 = vmatpush1.msra.mxu0 0.0
    %4175 = vmatprep.subr.mxu0 0.0
    %4176 = vmatpush1.msra.mxu0 0.0
    %4177 = vmatprep.subr.mxu0 0.0
    %4178 = vmatpush1.msra.mxu0 0.0
    %4179 = vmatprep.subr.mxu0 0.0
    %4180 = vmatpush1.msra.mxu0 0.0
    %4181 = vmatprep.subr.mxu0 0.0
    %4182 = vmatpush1.msra.mxu0 0.0
    %4183 = vmatprep.subr.mxu0 0.0
    %4184 = vmatpush1.msra.mxu0 0.0
    %4185 = vmatprep.subr.mxu0 0.0
    %4186 = vmatpush1.msra.mxu0 0.0
    %4187 = vmatprep.subr.mxu0 0.0
    %4188 = vmatpush1.msra.mxu0 0.0
    %4189 = vmatprep.subr.mxu0 0.0
    %4190 = vmatpush1.msra.mxu0 0.0
    %4191 = vmatprep.subr.mxu0 0.0
    %4192 = vmatpush1.msra.mxu0 0.0
    %4193 = vmatprep.subr.mxu0 0.0
    %4194 = vmatpush1.msra.mxu0 0.0
    %4195 = vmatprep.subr.mxu0 0.0
    %4196 = vmatpush1.msra.mxu0 0.0
    %4197 = vmatprep.subr.mxu0 0.0
    %4198 = vmatpush1.msra.mxu0 0.0
    %4199 = vmatprep.subr.mxu0 0.0
    %4200 = vmatpush1.msra.mxu0 0.0
    %4201 = vmatprep.subr.mxu0 0.0
    %4202 = vmatpush1.msra.mxu0 0.0
    %4203 = vmatprep.subr.mxu0 0.0
    %4204 = vmatpush1.msra.mxu0 0.0
    %4205 = vmatprep.subr.mxu0 0.0
    %4206 = vmatpush1.msra.mxu0 0.0
    %4207 = vmatprep.subr.mxu0 0.0
    %4208 = vmatpush1.msra.mxu0 0.0
    %4209 = vmatprep.subr.mxu0 0.0
    %4210 = vmatpush1.msra.mxu0 0.0
    %4211 = vmatprep.subr.mxu0 0.0
    %4212 = vmatpush1.msra.mxu0 0.0
    %4213 = vmatprep.subr.mxu0 0.0
    %4214 = vmatpush1.msra.mxu0 0.0
    %4215 = vmatprep.subr.mxu0 0.0
    %4216 = vmatpush1.msra.mxu0 0.0
    %4217 = vmatprep.subr.mxu0 0.0
    %4218 = vmatpush1.msra.mxu0 0.0
    %4219 = vmatprep.subr.mxu0 0.0
    %4220 = vmatpush1.msra.mxu0 0.0
    %4221 = vmatprep.subr.mxu0 0.0
    %4222 = vmatpush1.msra.mxu0 0.0
    %4223 = vmatprep.subr.mxu0 0.0
    %4224 = vmatpush1.msra.mxu0 0.0
    %4225 = vmatprep.subr.mxu0 0.0
    %4226 = vmatpush1.msra.mxu0 0.0
    %4227 = vmatprep.mubr.f32.mxu0 0.0
    %4228 = vmatmul.mubr.f32.gmra.mrb[0].mxu0 %v4161
    %v4229 = vpop.f32.mrb[0].mxu0
    %v4230 = vadd.f32 0.0, %v4229
    %v4231 = vpop.f32.mrb[0].mxu0
    %4232 = vdwg.mxu0
    %s4233 = scalar_lea.vmem [#allocation20], 8
    %v4234 = vld [vmem:[%s4233] sm:$0xff]
    %v4236 = vsel %vm2896, %v4234, 0
    %4238 = vmatprep.subr.mxu0 0.0
    %4239 = vmatpush1.msra.mxu0 %v4157
    %4240 = vmatprep.subr.mxu0 0.0
    %4241 = vmatpush1.msra.mxu0 %v4158
    %4242 = vmatprep.subr.mxu0 0.0
    %4243 = vmatpush1.msra.mxu0 0.0
    %4244 = vmatprep.subr.mxu0 0.0
    %4245 = vmatpush1.msra.mxu0 0.0
    %4246 = vmatprep.subr.mxu0 0.0
    %4247 = vmatpush1.msra.mxu0 0.0
    %4248 = vmatprep.subr.mxu0 0.0
    %4249 = vmatpush1.msra.mxu0 0.0
    %4250 = vmatprep.subr.mxu0 0.0
    %4251 = vmatpush1.msra.mxu0 0.0
    %4252 = vmatprep.subr.mxu0 0.0
    %4253 = vmatpush1.msra.mxu0 0.0
    %4254 = vmatprep.subr.mxu0 0.0
    %4255 = vmatpush1.msra.mxu0 0.0
    %4256 = vmatprep.subr.mxu0 0.0
    %4257 = vmatpush1.msra.mxu0 0.0
    %4258 = vmatprep.subr.mxu0 0.0
    %4259 = vmatpush1.msra.mxu0 0.0
    %4260 = vmatprep.subr.mxu0 0.0
    %4261 = vmatpush1.msra.mxu0 0.0
    %4262 = vmatprep.subr.mxu0 0.0
    %4263 = vmatpush1.msra.mxu0 0.0
    %4264 = vmatprep.subr.mxu0 0.0
    %4265 = vmatpush1.msra.mxu0 0.0
    %4266 = vmatprep.subr.mxu0 0.0
    %4267 = vmatpush1.msra.mxu0 0.0
    %4268 = vmatprep.subr.mxu0 0.0
    %4269 = vmatpush1.msra.mxu0 0.0
    %4270 = vmatprep.subr.mxu0 0.0
    %4271 = vmatpush1.msra.mxu0 0.0
    %4272 = vmatprep.subr.mxu0 0.0
    %4273 = vmatpush1.msra.mxu0 0.0
    %4274 = vmatprep.subr.mxu0 0.0
    %4275 = vmatpush1.msra.mxu0 0.0
    %4276 = vmatprep.subr.mxu0 0.0
    %4277 = vmatpush1.msra.mxu0 0.0
    %4278 = vmatprep.subr.mxu0 0.0
    %4279 = vmatpush1.msra.mxu0 0.0
    %4280 = vmatprep.subr.mxu0 0.0
    %4281 = vmatpush1.msra.mxu0 0.0
    %4282 = vmatprep.subr.mxu0 0.0
    %4283 = vmatpush1.msra.mxu0 0.0
    %4284 = vmatprep.subr.mxu0 0.0
    %4285 = vmatpush1.msra.mxu0 0.0
    %4286 = vmatprep.subr.mxu0 0.0
    %4287 = vmatpush1.msra.mxu0 0.0
    %4288 = vmatprep.subr.mxu0 0.0
    %4289 = vmatpush1.msra.mxu0 0.0
    %4290 = vmatprep.subr.mxu0 0.0
    %4291 = vmatpush1.msra.mxu0 0.0
    %4292 = vmatprep.subr.mxu0 0.0
    %4293 = vmatpush1.msra.mxu0 0.0
    %4294 = vmatprep.subr.mxu0 0.0
    %4295 = vmatpush1.msra.mxu0 0.0
    %4296 = vmatprep.subr.mxu0 0.0
    %4297 = vmatpush1.msra.mxu0 0.0
    %4298 = vmatprep.subr.mxu0 0.0
    %4299 = vmatpush1.msra.mxu0 0.0
    %4300 = vmatprep.subr.mxu0 0.0
    %4301 = vmatpush1.msra.mxu0 0.0
    %4302 = vmatprep.mubr.f32.mxu0 0.0
    %4303 = vmatmul.mubr.f32.gmra.mrb[0].mxu0 %v4236
    %v4304 = vpop.f32.mrb[0].mxu0
    %v4305 = vadd.f32 0.0, %v4304
    %v4306 = vpop.f32.mrb[0].mxu0
    %4307 = vdwg.mxu0
    %v4308 = vmax.f32 %v4230, %v4305
    %v4309 = vld [vmem:[%s37] sm:$0xff]
    %v4310 = vld [vmem:[%s37 + $0x8] sm:$0xff]
    %v4311 = vld [vmem:[%s37 + $0x10] sm:$0xff]
    %v4312 = vld [vmem:[%s37 + $0x18] sm:$0xff]
    %v4313 = vld [vmem:[%s37 + $0x20] sm:$0xff]
    %v4314 = vld [vmem:[%s37 + $0x28] sm:$0xff]
    %v4315 = vld [vmem:[%s37 + $0x30] sm:$0xff]
    %v4316 = vld [vmem:[%s37 + $0x38] sm:$0xff]
    %v4317 = vld [vmem:[%s37 + $0x40] sm:$0xff]
    %v4318 = vld [vmem:[%s37 + $0x48] sm:$0xff]
    %v4319 = vld [vmem:[%s37 + $0x50] sm:$0xff]
    %v4320 = vld [vmem:[%s37 + $0x58] sm:$0xff]
    %v4321 = vld [vmem:[%s37 + $0x60] sm:$0xff]
    %v4322 = vld [vmem:[%s37 + $0x68] sm:$0xff]
    %v4323 = vld [vmem:[%s37 + $0x70] sm:$0xff]
    %v4324 = vld [vmem:[%s37 + $0x78] sm:$0xff]
    %4325 = vmatprep.subr.mxu0 0.0
    %4326 = vmatpush1.msra.mxu0 %v4309
    %4327 = vmatprep.subr.mxu0 0.0
    %4328 = vmatpush1.msra.mxu0 %v4310
    %4329 = vmatprep.subr.mxu0 0.0
    %4330 = vmatpush1.msra.mxu0 %v4311
    %4331 = vmatprep.subr.mxu0 0.0
    %4332 = vmatpush1.msra.mxu0 %v4312
    %4333 = vmatprep.subr.mxu0 0.0
    %4334 = vmatpush1.msra.mxu0 %v4313
    %4335 = vmatprep.subr.mxu0 0.0
    %4336 = vmatpush1.msra.mxu0 %v4314
    %4337 = vmatprep.subr.mxu0 0.0
    %4338 = vmatpush1.msra.mxu0 %v4315
    %4339 = vmatprep.subr.mxu0 0.0
    %4340 = vmatpush1.msra.mxu0 %v4316
    %4341 = vmatprep.subr.mxu0 0.0
    %4342 = vmatpush1.msra.mxu0 %v4317
    %4343 = vmatprep.subr.mxu0 0.0
    %4344 = vmatpush1.msra.mxu0 %v4318
    %4345 = vmatprep.subr.mxu0 0.0
    %4346 = vmatpush1.msra.mxu0 %v4319
    %4347 = vmatprep.subr.mxu0 0.0
    %4348 = vmatpush1.msra.mxu0 %v4320
    %4349 = vmatprep.subr.mxu0 0.0
    %4350 = vmatpush1.msra.mxu0 %v4321
    %4351 = vmatprep.subr.mxu0 0.0
    %4352 = vmatpush1.msra.mxu0 %v4322
    %4353 = vmatprep.subr.mxu0 0.0
    %4354 = vmatpush1.msra.mxu0 %v4323
    %4355 = vmatprep.subr.mxu0 0.0
    %4356 = vmatpush1.msra.mxu0 %v4324
    %4357 = vmatprep.subr.mxu0 0.0
    %4358 = vmatpush1.msra.mxu0 0.0
    %4359 = vmatprep.subr.mxu0 0.0
    %4360 = vmatpush1.msra.mxu0 0.0
    %4361 = vmatprep.subr.mxu0 0.0
    %4362 = vmatpush1.msra.mxu0 0.0
    %4363 = vmatprep.subr.mxu0 0.0
    %4364 = vmatpush1.msra.mxu0 0.0
    %4365 = vmatprep.subr.mxu0 0.0
    %4366 = vmatpush1.msra.mxu0 0.0
    %4367 = vmatprep.subr.mxu0 0.0
    %4368 = vmatpush1.msra.mxu0 0.0
    %4369 = vmatprep.subr.mxu0 0.0
    %4370 = vmatpush1.msra.mxu0 0.0
    %4371 = vmatprep.subr.mxu0 0.0
    %4372 = vmatpush1.msra.mxu0 0.0
    %4373 = vmatprep.subr.mxu0 0.0
    %4374 = vmatpush1.msra.mxu0 0.0
    %4375 = vmatprep.subr.mxu0 0.0
    %4376 = vmatpush1.msra.mxu0 0.0
    %4377 = vmatprep.subr.mxu0 0.0
    %4378 = vmatpush1.msra.mxu0 0.0
    %4379 = vmatprep.subr.mxu0 0.0
    %4380 = vmatpush1.msra.mxu0 0.0
    %4381 = vmatprep.subr.mxu0 0.0
    %4382 = vmatpush1.msra.mxu0 0.0
    %4383 = vmatprep.subr.mxu0 0.0
    %4384 = vmatpush1.msra.mxu0 0.0
    %4385 = vmatprep.subr.mxu0 0.0
    %4386 = vmatpush1.msra.mxu0 0.0
    %4387 = vmatprep.subr.mxu0 0.0
    %4388 = vmatpush1.msra.mxu0 0.0
    %4389 = vmatprep.mubr.f32.mxu0 0.0
    %4390 = vmatmul.mubr.f32.gmra.mrb[0].mxu0 %v4308
    %v4391 = vpop.f32.mrb[0].mxu0
    %v4392 = vadd.f32 0.0, %v4391
    %v4393 = vpop.f32.mrb[0].mxu0
    %4394 = vdwg.mxu0
    %s4395 = scalar_lea.vmem %s37, 128
    %v4396 = vld [vmem:[%s4395] sm:$0xff]
    %v4397 = vld [vmem:[%s4395 + $0x8] sm:$0xff]
    %v4398 = vld [vmem:[%s4395 + $0x10] sm:$0xff]
    %v4399 = vld [vmem:[%s4395 + $0x18] sm:$0xff]
    %v4400 = vld [vmem:[%s4395 + $0x20] sm:$0xff]
    %v4401 = vld [vmem:[%s4395 + $0x28] sm:$0xff]
    %v4402 = vld [vmem:[%s4395 + $0x30] sm:$0xff]
    %v4403 = vld [vmem:[%s4395 + $0x38] sm:$0xff]
    %v4404 = vld [vmem:[%s4395 + $0x40] sm:$0xff]
    %v4405 = vld [vmem:[%s4395 + $0x48] sm:$0xff]
    %v4406 = vld [vmem:[%s4395 + $0x50] sm:$0xff]
    %v4407 = vld [vmem:[%s4395 + $0x58] sm:$0xff]
    %v4408 = vld [vmem:[%s4395 + $0x60] sm:$0xff]
    %v4409 = vld [vmem:[%s4395 + $0x68] sm:$0xff]
    %v4410 = vld [vmem:[%s4395 + $0x70] sm:$0xff]
    %v4411 = vld [vmem:[%s4395 + $0x78] sm:$0xff]
    %4412 = vmatprep.subr.mxu0 0.0
    %4413 = vmatpush1.msra.mxu0 %v4396
    %4414 = vmatprep.subr.mxu0 0.0
    %4415 = vmatpush1.msra.mxu0 %v4397
    %4416 = vmatprep.subr.mxu0 0.0
    %4417 = vmatpush1.msra.mxu0 %v4398
    %4418 = vmatprep.subr.mxu0 0.0
    %4419 = vmatpush1.msra.mxu0 %v4399
    %4420 = vmatprep.subr.mxu0 0.0
    %4421 = vmatpush1.msra.mxu0 %v4400
    %4422 = vmatprep.subr.mxu0 0.0
    %4423 = vmatpush1.msra.mxu0 %v4401
    %4424 = vmatprep.subr.mxu0 0.0
    %4425 = vmatpush1.msra.mxu0 %v4402
    %4426 = vmatprep.subr.mxu0 0.0
    %4427 = vmatpush1.msra.mxu0 %v4403
    %4428 = vmatprep.subr.mxu0 0.0
    %4429 = vmatpush1.msra.mxu0 %v4404
    %4430 = vmatprep.subr.mxu0 0.0
    %4431 = vmatpush1.msra.mxu0 %v4405
    %4432 = vmatprep.subr.mxu0 0.0
    %4433 = vmatpush1.msra.mxu0 %v4406
    %4434 = vmatprep.subr.mxu0 0.0
    %4435 = vmatpush1.msra.mxu0 %v4407
    %4436 = vmatprep.subr.mxu0 0.0
    %4437 = vmatpush1.msra.mxu0 %v4408
    %4438 = vmatprep.subr.mxu0 0.0
    %4439 = vmatpush1.msra.mxu0 %v4409
    %4440 = vmatprep.subr.mxu0 0.0
    %4441 = vmatpush1.msra.mxu0 %v4410
    %4442 = vmatprep.subr.mxu0 0.0
    %4443 = vmatpush1.msra.mxu0 %v4411
    %4444 = vmatprep.subr.mxu0 0.0
    %4445 = vmatpush1.msra.mxu0 0.0
    %4446 = vmatprep.subr.mxu0 0.0
    %4447 = vmatpush1.msra.mxu0 0.0
    %4448 = vmatprep.subr.mxu0 0.0
    %4449 = vmatpush1.msra.mxu0 0.0
    %4450 = vmatprep.subr.mxu0 0.0
    %4451 = vmatpush1.msra.mxu0 0.0
    %4452 = vmatprep.subr.mxu0 0.0
    %4453 = vmatpush1.msra.mxu0 0.0
    %4454 = vmatprep.subr.mxu0 0.0
    %4455 = vmatpush1.msra.mxu0 0.0
    %4456 = vmatprep.subr.mxu0 0.0
    %4457 = vmatpush1.msra.mxu0 0.0
    %4458 = vmatprep.subr.mxu0 0.0
    %4459 = vmatpush1.msra.mxu0 0.0
    %4460 = vmatprep.subr.mxu0 0.0
    %4461 = vmatpush1.msra.mxu0 0.0
    %4462 = vmatprep.subr.mxu0 0.0
    %4463 = vmatpush1.msra.mxu0 0.0
    %4464 = vmatprep.subr.mxu0 0.0
    %4465 = vmatpush1.msra.mxu0 0.0
    %4466 = vmatprep.subr.mxu0 0.0
    %4467 = vmatpush1.msra.mxu0 0.0
    %4468 = vmatprep.subr.mxu0 0.0
    %4469 = vmatpush1.msra.mxu0 0.0
    %4470 = vmatprep.subr.mxu0 0.0
    %4471 = vmatpush1.msra.mxu0 0.0
    %4472 = vmatprep.subr.mxu0 0.0
    %4473 = vmatpush1.msra.mxu0 0.0
    %4474 = vmatprep.subr.mxu0 0.0
    %4475 = vmatpush1.msra.mxu0 0.0
    %4476 = vmatprep.mubr.f32.mxu0 0.0
    %4477 = vmatmul.mubr.f32.gmra.mrb[0].mxu0 %v4308
    %v4478 = vpop.f32.mrb[0].mxu0
    %v4479 = vadd.f32 0.0, %v4478
    %v4480 = vpop.f32.mrb[0].mxu0
    %4481 = vdwg.mxu0
    %v4482 = vmax.f32 %v4392, %v4479
    %v4483 = vld [vmem:[#allocation22] sm:$0xff]
    %vm4484 = vcmask 64512
    %v4486 = vsel %vm4484, %v4483, 0
    %4488 = vmatprep.subr.mxu0 0.0
    %4489 = vmatpush1.msra.mxu0 %v4482
    %4490 = vmatprep.subr.mxu0 0.0
    %4491 = vmatpush1.msra.mxu0 0.0
    %4492 = vmatprep.subr.mxu0 0.0
    %4493 = vmatpush1.msra.mxu0 0.0
    %4494 = vmatprep.subr.mxu0 0.0
    %4495 = vmatpush1.msra.mxu0 0.0
    %4496 = vmatprep.subr.mxu0 0.0
    %4497 = vmatpush1.msra.mxu0 0.0
    %4498 = vmatprep.subr.mxu0 0.0
    %4499 = vmatpush1.msra.mxu0 0.0
    %4500 = vmatprep.subr.mxu0 0.0
    %4501 = vmatpush1.msra.mxu0 0.0
    %4502 = vmatprep.subr.mxu0 0.0
    %4503 = vmatpush1.msra.mxu0 0.0
    %4504 = vmatprep.subr.mxu0 0.0
    %4505 = vmatpush1.msra.mxu0 0.0
    %4506 = vmatprep.subr.mxu0 0.0
    %4507 = vmatpush1.msra.mxu0 0.0
    %4508 = vmatprep.subr.mxu0 0.0
    %4509 = vmatpush1.msra.mxu0 0.0
    %4510 = vmatprep.subr.mxu0 0.0
    %4511 = vmatpush1.msra.mxu0 0.0
    %4512 = vmatprep.subr.mxu0 0.0
    %4513 = vmatpush1.msra.mxu0 0.0
    %4514 = vmatprep.subr.mxu0 0.0
    %4515 = vmatpush1.msra.mxu0 0.0
    %4516 = vmatprep.subr.mxu0 0.0
    %4517 = vmatpush1.msra.mxu0 0.0
    %4518 = vmatprep.subr.mxu0 0.0
    %4519 = vmatpush1.msra.mxu0 0.0
    %4520 = vmatprep.subr.mxu0 0.0
    %4521 = vmatpush1.msra.mxu0 0.0
    %4522 = vmatprep.subr.mxu0 0.0
    %4523 = vmatpush1.msra.mxu0 0.0
    %4524 = vmatprep.subr.mxu0 0.0
    %4525 = vmatpush1.msra.mxu0 0.0
    %4526 = vmatprep.subr.mxu0 0.0
    %4527 = vmatpush1.msra.mxu0 0.0
    %4528 = vmatprep.subr.mxu0 0.0
    %4529 = vmatpush1.msra.mxu0 0.0
    %4530 = vmatprep.subr.mxu0 0.0
    %4531 = vmatpush1.msra.mxu0 0.0
    %4532 = vmatprep.subr.mxu0 0.0
    %4533 = vmatpush1.msra.mxu0 0.0
    %4534 = vmatprep.subr.mxu0 0.0
    %4535 = vmatpush1.msra.mxu0 0.0
    %4536 = vmatprep.subr.mxu0 0.0
    %4537 = vmatpush1.msra.mxu0 0.0
    %4538 = vmatprep.subr.mxu0 0.0
    %4539 = vmatpush1.msra.mxu0 0.0
    %4540 = vmatprep.subr.mxu0 0.0
    %4541 = vmatpush1.msra.mxu0 0.0
    %4542 = vmatprep.subr.mxu0 0.0
    %4543 = vmatpush1.msra.mxu0 0.0
    %4544 = vmatprep.subr.mxu0 0.0
    %4545 = vmatpush1.msra.mxu0 0.0
    %4546 = vmatprep.subr.mxu0 0.0
    %4547 = vmatpush1.msra.mxu0 0.0
    %4548 = vmatprep.subr.mxu0 0.0
    %4549 = vmatpush1.msra.mxu0 0.0
    %4550 = vmatprep.subr.mxu0 0.0
    %4551 = vmatpush1.msra.mxu0 0.0
    %4552 = vmatprep.mubr.f32.mxu0 0.0
    %4553 = vmatmul.mubr.f32.gmra.mrb[0].mxu0 %v4486
    %v4554 = vpop.f32.mrb[0].mxu0
    %v4555 = vadd.f32 0.0, %v4554
    %v4556 = vpop.f32.mrb[0].mxu0
    %4557 = vdwg.mxu0
    %s4558 = scalar_lea.vmem [#allocation22], 8
    %v4559 = vld [vmem:[%s4558] sm:$0xff]
    %v4561 = vsel %vm4484, %v4559, 0
    %4563 = vmatprep.subr.mxu0 0.0
    %4564 = vmatpush1.msra.mxu0 %v4482
    %4565 = vmatprep.subr.mxu0 0.0
    %4566 = vmatpush1.msra.mxu0 0.0
    %4567 = vmatprep.subr.mxu0 0.0
    %4568 = vmatpush1.msra.mxu0 0.0
    %4569 = vmatprep.subr.mxu0 0.0
    %4570 = vmatpush1.msra.mxu0 0.0
    %4571 = vmatprep.subr.mxu0 0.0
    %4572 = vmatpush1.msra.mxu0 0.0
    %4573 = vmatprep.subr.mxu0 0.0
    %4574 = vmatpush1.msra.mxu0 0.0
    %4575 = vmatprep.subr.mxu0 0.0
    %4576 = vmatpush1.msra.mxu0 0.0
    %4577 = vmatprep.subr.mxu0 0.0
    %4578 = vmatpush1.msra.mxu0 0.0
    %4579 = vmatprep.subr.mxu0 0.0
    %4580 = vmatpush1.msra.mxu0 0.0
    %4581 = vmatprep.subr.mxu0 0.0
    %4582 = vmatpush1.msra.mxu0 0.0
    %4583 = vmatprep.subr.mxu0 0.0
    %4584 = vmatpush1.msra.mxu0 0.0
    %4585 = vmatprep.subr.mxu0 0.0
    %4586 = vmatpush1.msra.mxu0 0.0
    %4587 = vmatprep.subr.mxu0 0.0
    %4588 = vmatpush1.msra.mxu0 0.0
    %4589 = vmatprep.subr.mxu0 0.0
    %4590 = vmatpush1.msra.mxu0 0.0
    %4591 = vmatprep.subr.mxu0 0.0
    %4592 = vmatpush1.msra.mxu0 0.0
    %4593 = vmatprep.subr.mxu0 0.0
    %4594 = vmatpush1.msra.mxu0 0.0
    %4595 = vmatprep.subr.mxu0 0.0
    %4596 = vmatpush1.msra.mxu0 0.0
    %4597 = vmatprep.subr.mxu0 0.0
    %4598 = vmatpush1.msra.mxu0 0.0
    %4599 = vmatprep.subr.mxu0 0.0
    %4600 = vmatpush1.msra.mxu0 0.0
    %4601 = vmatprep.subr.mxu0 0.0
    %4602 = vmatpush1.msra.mxu0 0.0
    %4603 = vmatprep.subr.mxu0 0.0
    %4604 = vmatpush1.msra.mxu0 0.0
    %4605 = vmatprep.subr.mxu0 0.0
    %4606 = vmatpush1.msra.mxu0 0.0
    %4607 = vmatprep.subr.mxu0 0.0
    %4608 = vmatpush1.msra.mxu0 0.0
    %4609 = vmatprep.subr.mxu0 0.0
    %4610 = vmatpush1.msra.mxu0 0.0
    %4611 = vmatprep.subr.mxu0 0.0
    %4612 = vmatpush1.msra.mxu0 0.0
    %4613 = vmatprep.subr.mxu0 0.0
    %4614 = vmatpush1.msra.mxu0 0.0
    %4615 = vmatprep.subr.mxu0 0.0
    %4616 = vmatpush1.msra.mxu0 0.0
    %4617 = vmatprep.subr.mxu0 0.0
    %4618 = vmatpush1.msra.mxu0 0.0
    %4619 = vmatprep.subr.mxu0 0.0
    %4620 = vmatpush1.msra.mxu0 0.0
    %4621 = vmatprep.subr.mxu0 0.0
    %4622 = vmatpush1.msra.mxu0 0.0
    %4623 = vmatprep.subr.mxu0 0.0
    %4624 = vmatpush1.msra.mxu0 0.0
    %4625 = vmatprep.subr.mxu0 0.0
    %4626 = vmatpush1.msra.mxu0 0.0
    %4627 = vmatprep.mubr.f32.mxu0 0.0
    %4628 = vmatmul.mubr.f32.gmra.mrb[0].mxu0 %v4561
    %v4629 = vpop.f32.mrb[0].mxu0
    %v4630 = vadd.f32 0.0, %v4629
    %v4631 = vpop.f32.mrb[0].mxu0
    %4632 = vdwg.mxu0
    %v4633 = vld [vmem:[%s41] sm:$0xff]
    %v4634 = vld [vmem:[%s41 + $0x8] sm:$0xff]
    %v4635 = vld [vmem:[%s41 + $0x10] sm:$0xff]
    %v4636 = vld [vmem:[%s41 + $0x18] sm:$0xff]
    %v4637 = vld [vmem:[%s41 + $0x20] sm:$0xff]
    %v4638 = vld [vmem:[%s41 + $0x28] sm:$0xff]
    %v4639 = vld [vmem:[%s41 + $0x30] sm:$0xff]
    %v4640 = vld [vmem:[%s41 + $0x38] sm:$0xff]
    %s4641 = scalar_lea.vmem %s41, 64
    %v4642 = vld [vmem:[%s4641] sm:$0xff]
    %v4643 = vld [vmem:[%s4641 + $0x8] sm:$0xff]
    %v4644 = vld [vmem:[%s4641 + $0x10] sm:$0xff]
    %v4645 = vld [vmem:[%s4641 + $0x18] sm:$0xff]
    %v4646 = vld [vmem:[%s4641 + $0x20] sm:$0xff]
    %v4647 = vld [vmem:[%s4641 + $0x28] sm:$0xff]
    %v4648 = vld [vmem:[%s4641 + $0x30] sm:$0xff]
    %v4649 = vld [vmem:[%s4641 + $0x38] sm:$0xff]
    %v4651 = vsel %vm469, %v4482, 0
    %4653 = vmatprep.subr.mxu0 0.0
    %4654 = vmatpush1.msra.mxu0 %v4642
    %4655 = vmatprep.subr.mxu0 0.0
    %4656 = vmatpush1.msra.mxu0 %v4643
    %4657 = vmatprep.subr.mxu0 0.0
    %4658 = vmatpush1.msra.mxu0 %v4644
    %4659 = vmatprep.subr.mxu0 0.0
    %4660 = vmatpush1.msra.mxu0 %v4645
    %4661 = vmatprep.subr.mxu0 0.0
    %4662 = vmatpush1.msra.mxu0 %v4646
    %4663 = vmatprep.subr.mxu0 0.0
    %4664 = vmatpush1.msra.mxu0 %v4647
    %4665 = vmatprep.subr.mxu0 0.0
    %4666 = vmatpush1.msra.mxu0 %v4648
    %4667 = vmatprep.subr.mxu0 0.0
    %4668 = vmatpush1.msra.mxu0 %v4649
    %4669 = vmatprep.subr.mxu0 0.0
    %4670 = vmatpush1.msra.mxu0 0.0
    %4671 = vmatprep.subr.mxu0 0.0
    %4672 = vmatpush1.msra.mxu0 0.0
    %4673 = vmatprep.subr.mxu0 0.0
    %4674 = vmatpush1.msra.mxu0 0.0
    %4675 = vmatprep.subr.mxu0 0.0
    %4676 = vmatpush1.msra.mxu0 0.0
    %4677 = vmatprep.subr.mxu0 0.0
    %4678 = vmatpush1.msra.mxu0 0.0
    %4679 = vmatprep.subr.mxu0 0.0
    %4680 = vmatpush1.msra.mxu0 0.0
    %4681 = vmatprep.subr.mxu0 0.0
    %4682 = vmatpush1.msra.mxu0 0.0
    %4683 = vmatprep.subr.mxu0 0.0
    %4684 = vmatpush1.msra.mxu0 0.0
    %4685 = vmatprep.subr.mxu0 0.0
    %4686 = vmatpush1.msra.mxu0 0.0
    %4687 = vmatprep.subr.mxu0 0.0
    %4688 = vmatpush1.msra.mxu0 0.0
    %4689 = vmatprep.subr.mxu0 0.0
    %4690 = vmatpush1.msra.mxu0 0.0
    %4691 = vmatprep.subr.mxu0 0.0
    %4692 = vmatpush1.msra.mxu0 0.0
    %4693 = vmatprep.subr.mxu0 0.0
    %4694 = vmatpush1.msra.mxu0 0.0
    %4695 = vmatprep.subr.mxu0 0.0
    %4696 = vmatpush1.msra.mxu0 0.0
    %4697 = vmatprep.subr.mxu0 0.0
    %4698 = vmatpush1.msra.mxu0 0.0
    %4699 = vmatprep.subr.mxu0 0.0
    %4700 = vmatpush1.msra.mxu0 0.0
    %4701 = vmatprep.subr.mxu0 0.0
    %4702 = vmatpush1.msra.mxu0 0.0
    %4703 = vmatprep.subr.mxu0 0.0
    %4704 = vmatpush1.msra.mxu0 0.0
    %4705 = vmatprep.subr.mxu0 0.0
    %4706 = vmatpush1.msra.mxu0 0.0
    %4707 = vmatprep.subr.mxu0 0.0
    %4708 = vmatpush1.msra.mxu0 0.0
    %4709 = vmatprep.subr.mxu0 0.0
    %4710 = vmatpush1.msra.mxu0 0.0
    %4711 = vmatprep.subr.mxu0 0.0
    %4712 = vmatpush1.msra.mxu0 0.0
    %4713 = vmatprep.subr.mxu0 0.0
    %4714 = vmatpush1.msra.mxu0 0.0
    %4715 = vmatprep.subr.mxu0 0.0
    %4716 = vmatpush1.msra.mxu0 0.0
    %4717 = vmatprep.mubr.f32.mxu0 0.0
    %4718 = vmatmul.mubr.f32.gmra.mrb[0].mxu0 %v4651
    %v4719 = vpop.f32.mrb[0].mxu0
    %v4720 = vadd.f32 0.0, %v4719
    %v4721 = vpop.f32.mrb[0].mxu0
    %4722 = vdwg.mxu0
    %v4724 = vsel %vm469, %v4555, 0
    %4726 = vmatprep.subr.mxu0 0.0
    %4727 = vmatpush1.msra.mxu0 %v4633
    %4728 = vmatprep.subr.mxu0 0.0
    %4729 = vmatpush1.msra.mxu0 %v4634
    %4730 = vmatprep.subr.mxu0 0.0
    %4731 = vmatpush1.msra.mxu0 %v4635
    %4732 = vmatprep.subr.mxu0 0.0
    %4733 = vmatpush1.msra.mxu0 %v4636
    %4734 = vmatprep.subr.mxu0 0.0
    %4735 = vmatpush1.msra.mxu0 %v4637
    %4736 = vmatprep.subr.mxu0 0.0
    %4737 = vmatpush1.msra.mxu0 %v4638
    %4738 = vmatprep.subr.mxu0 0.0
    %4739 = vmatpush1.msra.mxu0 %v4639
    %4740 = vmatprep.subr.mxu0 0.0
    %4741 = vmatpush1.msra.mxu0 %v4640
    %4742 = vmatprep.subr.mxu0 0.0
    %4743 = vmatpush1.msra.mxu0 0.0
    %4744 = vmatprep.subr.mxu0 0.0
    %4745 = vmatpush1.msra.mxu0 0.0
    %4746 = vmatprep.subr.mxu0 0.0
    %4747 = vmatpush1.msra.mxu0 0.0
    %4748 = vmatprep.subr.mxu0 0.0
    %4749 = vmatpush1.msra.mxu0 0.0
    %4750 = vmatprep.subr.mxu0 0.0
    %4751 = vmatpush1.msra.mxu0 0.0
    %4752 = vmatprep.subr.mxu0 0.0
    %4753 = vmatpush1.msra.mxu0 0.0
    %4754 = vmatprep.subr.mxu0 0.0
    %4755 = vmatpush1.msra.mxu0 0.0
    %4756 = vmatprep.subr.mxu0 0.0
    %4757 = vmatpush1.msra.mxu0 0.0
    %4758 = vmatprep.subr.mxu0 0.0
    %4759 = vmatpush1.msra.mxu0 0.0
    %4760 = vmatprep.subr.mxu0 0.0
    %4761 = vmatpush1.msra.mxu0 0.0
    %4762 = vmatprep.subr.mxu0 0.0
    %4763 = vmatpush1.msra.mxu0 0.0
    %4764 = vmatprep.subr.mxu0 0.0
    %4765 = vmatpush1.msra.mxu0 0.0
    %4766 = vmatprep.subr.mxu0 0.0
    %4767 = vmatpush1.msra.mxu0 0.0
    %4768 = vmatprep.subr.mxu0 0.0
    %4769 = vmatpush1.msra.mxu0 0.0
    %4770 = vmatprep.subr.mxu0 0.0
    %4771 = vmatpush1.msra.mxu0 0.0
    %4772 = vmatprep.subr.mxu0 0.0
    %4773 = vmatpush1.msra.mxu0 0.0
    %4774 = vmatprep.subr.mxu0 0.0
    %4775 = vmatpush1.msra.mxu0 0.0
    %4776 = vmatprep.subr.mxu0 0.0
    %4777 = vmatpush1.msra.mxu0 0.0
    %4778 = vmatprep.subr.mxu0 0.0
    %4779 = vmatpush1.msra.mxu0 0.0
    %4780 = vmatprep.subr.mxu0 0.0
    %4781 = vmatpush1.msra.mxu0 0.0
    %4782 = vmatprep.subr.mxu0 0.0
    %4783 = vmatpush1.msra.mxu0 0.0
    %4784 = vmatprep.subr.mxu0 0.0
    %4785 = vmatpush1.msra.mxu0 0.0
    %4786 = vmatprep.subr.mxu0 0.0
    %4787 = vmatpush1.msra.mxu0 0.0
    %4788 = vmatprep.subr.mxu0 0.0
    %4789 = vmatpush1.msra.mxu0 0.0
    %4790 = vmatprep.mubr.f32.mxu0 0.0
    %4791 = vmatmul.mubr.f32.gmra.mrb[0].mxu0 %v4724
    %v4792 = vpop.f32.mrb[0].mxu0
    %v4793 = vadd.f32 %v4720, %v4792
    %v4794 = vpop.f32.mrb[0].mxu0
    %4795 = vdwg.mxu0
    %s4796 = scalar_lea.vmem %s41, 128
    %v4797 = vld [vmem:[%s4796] sm:$0xff]
    %v4798 = vld [vmem:[%s4796 + $0x8] sm:$0xff]
    %v4799 = vld [vmem:[%s4796 + $0x10] sm:$0xff]
    %v4800 = vld [vmem:[%s4796 + $0x18] sm:$0xff]
    %v4801 = vld [vmem:[%s4796 + $0x20] sm:$0xff]
    %v4802 = vld [vmem:[%s4796 + $0x28] sm:$0xff]
    %v4803 = vld [vmem:[%s4796 + $0x30] sm:$0xff]
    %v4804 = vld [vmem:[%s4796 + $0x38] sm:$0xff]
    %v4806 = vsel %vm469, %v4630, 0
    %4808 = vmatprep.subr.mxu0 0.0
    %4809 = vmatpush1.msra.mxu0 %v4797
    %4810 = vmatprep.subr.mxu0 0.0
    %4811 = vmatpush1.msra.mxu0 %v4798
    %4812 = vmatprep.subr.mxu0 0.0
    %4813 = vmatpush1.msra.mxu0 %v4799
    %4814 = vmatprep.subr.mxu0 0.0
    %4815 = vmatpush1.msra.mxu0 %v4800
    %4816 = vmatprep.subr.mxu0 0.0
    %4817 = vmatpush1.msra.mxu0 %v4801
    %4818 = vmatprep.subr.mxu0 0.0
    %4819 = vmatpush1.msra.mxu0 %v4802
    %4820 = vmatprep.subr.mxu0 0.0
    %4821 = vmatpush1.msra.mxu0 %v4803
    %4822 = vmatprep.subr.mxu0 0.0
    %4823 = vmatpush1.msra.mxu0 %v4804
    %4824 = vmatprep.subr.mxu0 0.0
    %4825 = vmatpush1.msra.mxu0 0.0
    %4826 = vmatprep.subr.mxu0 0.0
    %4827 = vmatpush1.msra.mxu0 0.0
    %4828 = vmatprep.subr.mxu0 0.0
    %4829 = vmatpush1.msra.mxu0 0.0
    %4830 = vmatprep.subr.mxu0 0.0
    %4831 = vmatpush1.msra.mxu0 0.0
    %4832 = vmatprep.subr.mxu0 0.0
    %4833 = vmatpush1.msra.mxu0 0.0
    %4834 = vmatprep.subr.mxu0 0.0
    %4835 = vmatpush1.msra.mxu0 0.0
    %4836 = vmatprep.subr.mxu0 0.0
    %4837 = vmatpush1.msra.mxu0 0.0
    %4838 = vmatprep.subr.mxu0 0.0
    %4839 = vmatpush1.msra.mxu0 0.0
    %4840 = vmatprep.subr.mxu0 0.0
    %4841 = vmatpush1.msra.mxu0 0.0
    %4842 = vmatprep.subr.mxu0 0.0
    %4843 = vmatpush1.msra.mxu0 0.0
    %4844 = vmatprep.subr.mxu0 0.0
    %4845 = vmatpush1.msra.mxu0 0.0
    %4846 = vmatprep.subr.mxu0 0.0
    %4847 = vmatpush1.msra.mxu0 0.0
    %4848 = vmatprep.subr.mxu0 0.0
    %4849 = vmatpush1.msra.mxu0 0.0
    %4850 = vmatprep.subr.mxu0 0.0
    %4851 = vmatpush1.msra.mxu0 0.0
    %4852 = vmatprep.subr.mxu0 0.0
    %4853 = vmatpush1.msra.mxu0 0.0
    %4854 = vmatprep.subr.mxu0 0.0
    %4855 = vmatpush1.msra.mxu0 0.0
    %4856 = vmatprep.subr.mxu0 0.0
    %4857 = vmatpush1.msra.mxu0 0.0
    %4858 = vmatprep.subr.mxu0 0.0
    %4859 = vmatpush1.msra.mxu0 0.0
    %4860 = vmatprep.subr.mxu0 0.0
    %4861 = vmatpush1.msra.mxu0 0.0
    %4862 = vmatprep.subr.mxu0 0.0
    %4863 = vmatpush1.msra.mxu0 0.0
    %4864 = vmatprep.subr.mxu0 0.0
    %4865 = vmatpush1.msra.mxu0 0.0
    %4866 = vmatprep.subr.mxu0 0.0
    %4867 = vmatpush1.msra.mxu0 0.0
    %4868 = vmatprep.subr.mxu0 0.0
    %4869 = vmatpush1.msra.mxu0 0.0
    %4870 = vmatprep.subr.mxu0 0.0
    %4871 = vmatpush1.msra.mxu0 0.0
    %4872 = vmatprep.mubr.f32.mxu0 0.0
    %4873 = vmatmul.mubr.f32.gmra.mrb[0].mxu0 %v4806
    %v4874 = vpop.f32.mrb[0].mxu0
    %v4875 = vadd.f32 0.0, %v4874
    %v4876 = vpop.f32.mrb[0].mxu0
    %4877 = vdwg.mxu0
    %v4878 = vadd.f32 %v4793, %v4875
    %v4879 = vrot.slane %v4878, 4
    %v4880 = vadd.f32 %v4878, %v4879
    %v4881 = vrot.slane %v4880, 2
    %v4882 = vadd.f32 %v4880, %v4881
    %v4883 = vrot.slane %v4882, 1
    %v4884 = vadd.f32 %v4882, %v4883
    %v4885 = vmul.f32 %v4878, %v4878
    %v4886 = vrot.slane %v4885, 4
    %v4887 = vadd.f32 %v4885, %v4886
    %v4888 = vrot.slane %v4887, 2
    %v4889 = vadd.f32 %v4887, %v4888
    %v4890 = vrot.slane %v4889, 1
    %v4891 = vadd.f32 %v4889, %v4890
    %v4892 = vld [vmem:[#allocation23] sm:$0xff]
    %v4893 = vld [vmem:[#allocation23 + $0x8] sm:$0xff]
    %v4894 = vld [vmem:[#allocation23 + $0x10] sm:$0xff]
    %v4895 = vld [vmem:[#allocation23 + $0x18] sm:$0xff]
    %v4896 = vld [vmem:[#allocation23 + $0x20] sm:$0xff]
    %v4897 = vld [vmem:[#allocation23 + $0x28] sm:$0xff]
    %v4898 = vld [vmem:[#allocation23 + $0x30] sm:$0xff]
    %v4899 = vld [vmem:[#allocation23 + $0x38] sm:$0xff]
    %v4900 = vld [vmem:[#allocation23 + $0x40] sm:$0xff]
    %v4901 = vld [vmem:[#allocation23 + $0x48] sm:$0xff]
    %v4902 = vld [vmem:[#allocation23 + $0x50] sm:$0xff]
    %v4903 = vld [vmem:[#allocation23 + $0x58] sm:$0xff]
    %v4904 = vld [vmem:[#allocation23 + $0x60] sm:$0xff]
    %v4905 = vld [vmem:[#allocation23 + $0x68] sm:$0xff]
    %v4906 = vld [vmem:[#allocation23 + $0x70] sm:$0xff]
    %v4907 = vld [vmem:[#allocation23 + $0x78] sm:$0xff]
    %4908 = vmatprep.subr.mxu0 0.0
    %4909 = vmatpush1.msra.mxu0 %v4892
    %4910 = vmatprep.subr.mxu0 0.0
    %4911 = vmatpush1.msra.mxu0 %v4893
    %4912 = vmatprep.subr.mxu0 0.0
    %4913 = vmatpush1.msra.mxu0 %v4894
    %4914 = vmatprep.subr.mxu0 0.0
    %4915 = vmatpush1.msra.mxu0 %v4895
    %4916 = vmatprep.subr.mxu0 0.0
    %4917 = vmatpush1.msra.mxu0 %v4896
    %4918 = vmatprep.subr.mxu0 0.0
    %4919 = vmatpush1.msra.mxu0 %v4897
    %4920 = vmatprep.subr.mxu0 0.0
    %4921 = vmatpush1.msra.mxu0 %v4898
    %4922 = vmatprep.subr.mxu0 0.0
    %4923 = vmatpush1.msra.mxu0 %v4899
    %4924 = vmatprep.subr.mxu0 0.0
    %4925 = vmatpush1.msra.mxu0 %v4900
    %4926 = vmatprep.subr.mxu0 0.0
    %4927 = vmatpush1.msra.mxu0 %v4901
    %4928 = vmatprep.subr.mxu0 0.0
    %4929 = vmatpush1.msra.mxu0 %v4902
    %4930 = vmatprep.subr.mxu0 0.0
    %4931 = vmatpush1.msra.mxu0 %v4903
    %4932 = vmatprep.subr.mxu0 0.0
    %4933 = vmatpush1.msra.mxu0 %v4904
    %4934 = vmatprep.subr.mxu0 0.0
    %4935 = vmatpush1.msra.mxu0 %v4905
    %4936 = vmatprep.subr.mxu0 0.0
    %4937 = vmatpush1.msra.mxu0 %v4906
    %4938 = vmatprep.subr.mxu0 0.0
    %4939 = vmatpush1.msra.mxu0 %v4907
    %4940 = vmatprep.subr.mxu0 0.0
    %4941 = vmatpush1.msra.mxu0 0.0
    %4942 = vmatprep.subr.mxu0 0.0
    %4943 = vmatpush1.msra.mxu0 0.0
    %4944 = vmatprep.subr.mxu0 0.0
    %4945 = vmatpush1.msra.mxu0 0.0
    %4946 = vmatprep.subr.mxu0 0.0
    %4947 = vmatpush1.msra.mxu0 0.0
    %4948 = vmatprep.subr.mxu0 0.0
    %4949 = vmatpush1.msra.mxu0 0.0
    %4950 = vmatprep.subr.mxu0 0.0
    %4951 = vmatpush1.msra.mxu0 0.0
    %4952 = vmatprep.subr.mxu0 0.0
    %4953 = vmatpush1.msra.mxu0 0.0
    %4954 = vmatprep.subr.mxu0 0.0
    %4955 = vmatpush1.msra.mxu0 0.0
    %4956 = vmatprep.subr.mxu0 0.0
    %4957 = vmatpush1.msra.mxu0 0.0
    %4958 = vmatprep.subr.mxu0 0.0
    %4959 = vmatpush1.msra.mxu0 0.0
    %4960 = vmatprep.subr.mxu0 0.0
    %4961 = vmatpush1.msra.mxu0 0.0
    %4962 = vmatprep.subr.mxu0 0.0
    %4963 = vmatpush1.msra.mxu0 0.0
    %4964 = vmatprep.subr.mxu0 0.0
    %4965 = vmatpush1.msra.mxu0 0.0
    %4966 = vmatprep.subr.mxu0 0.0
    %4967 = vmatpush1.msra.mxu0 0.0
    %4968 = vmatprep.subr.mxu0 0.0
    %4969 = vmatpush1.msra.mxu0 0.0
    %4970 = vmatprep.subr.mxu0 0.0
    %4971 = vmatpush1.msra.mxu0 0.0
    %4972 = vmatprep.mubr.f32.mxu0 0.0
    %4973 = vmatmul.mubr.f32.gmra.mrb[0].mxu0 %v4884
    %v4974 = vpop.f32.mrb[0].mxu0
    %v4975 = vadd.f32 0.0, %v4974
    %v4976 = vpop.f32.mrb[0].mxu0
    %4977 = vdwg.mxu0
    %4978 = vmatprep.subr.mxu0 0.0
    %4979 = vmatpush1.msra.mxu0 %v4892
    %4980 = vmatprep.subr.mxu0 0.0
    %4981 = vmatpush1.msra.mxu0 %v4893
    %4982 = vmatprep.subr.mxu0 0.0
    %4983 = vmatpush1.msra.mxu0 %v4894
    %4984 = vmatprep.subr.mxu0 0.0
    %4985 = vmatpush1.msra.mxu0 %v4895
    %4986 = vmatprep.subr.mxu0 0.0
    %4987 = vmatpush1.msra.mxu0 %v4896
    %4988 = vmatprep.subr.mxu0 0.0
    %4989 = vmatpush1.msra.mxu0 %v4897
    %4990 = vmatprep.subr.mxu0 0.0
    %4991 = vmatpush1.msra.mxu0 %v4898
    %4992 = vmatprep.subr.mxu0 0.0
    %4993 = vmatpush1.msra.mxu0 %v4899
    %4994 = vmatprep.subr.mxu0 0.0
    %4995 = vmatpush1.msra.mxu0 %v4900
    %4996 = vmatprep.subr.mxu0 0.0
    %4997 = vmatpush1.msra.mxu0 %v4901
    %4998 = vmatprep.subr.mxu0 0.0
    %4999 = vmatpush1.msra.mxu0 %v4902
    %5000 = vmatprep.subr.mxu0 0.0
    %5001 = vmatpush1.msra.mxu0 %v4903
    %5002 = vmatprep.subr.mxu0 0.0
    %5003 = vmatpush1.msra.mxu0 %v4904
    %5004 = vmatprep.subr.mxu0 0.0
    %5005 = vmatpush1.msra.mxu0 %v4905
    %5006 = vmatprep.subr.mxu0 0.0
    %5007 = vmatpush1.msra.mxu0 %v4906
    %5008 = vmatprep.subr.mxu0 0.0
    %5009 = vmatpush1.msra.mxu0 %v4907
    %5010 = vmatprep.subr.mxu0 0.0
    %5011 = vmatpush1.msra.mxu0 0.0
    %5012 = vmatprep.subr.mxu0 0.0
    %5013 = vmatpush1.msra.mxu0 0.0
    %5014 = vmatprep.subr.mxu0 0.0
    %5015 = vmatpush1.msra.mxu0 0.0
    %5016 = vmatprep.subr.mxu0 0.0
    %5017 = vmatpush1.msra.mxu0 0.0
    %5018 = vmatprep.subr.mxu0 0.0
    %5019 = vmatpush1.msra.mxu0 0.0
    %5020 = vmatprep.subr.mxu0 0.0
    %5021 = vmatpush1.msra.mxu0 0.0
    %5022 = vmatprep.subr.mxu0 0.0
    %5023 = vmatpush1.msra.mxu0 0.0
    %5024 = vmatprep.subr.mxu0 0.0
    %5025 = vmatpush1.msra.mxu0 0.0
    %5026 = vmatprep.subr.mxu0 0.0
    %5027 = vmatpush1.msra.mxu0 0.0
    %5028 = vmatprep.subr.mxu0 0.0
    %5029 = vmatpush1.msra.mxu0 0.0
    %5030 = vmatprep.subr.mxu0 0.0
    %5031 = vmatpush1.msra.mxu0 0.0
    %5032 = vmatprep.subr.mxu0 0.0
    %5033 = vmatpush1.msra.mxu0 0.0
    %5034 = vmatprep.subr.mxu0 0.0
    %5035 = vmatpush1.msra.mxu0 0.0
    %5036 = vmatprep.subr.mxu0 0.0
    %5037 = vmatpush1.msra.mxu0 0.0
    %5038 = vmatprep.subr.mxu0 0.0
    %5039 = vmatpush1.msra.mxu0 0.0
    %5040 = vmatprep.subr.mxu0 0.0
    %5041 = vmatpush1.msra.mxu0 0.0
    %5042 = vmatprep.mubr.f32.mxu0 0.0
    %5043 = vmatmul.mubr.f32.gmra.mrb[0].mxu0 %v4891
    %v5044 = vpop.f32.mrb[0].mxu0
    %v5045 = vadd.f32 0.0, %v5044
    %v5046 = vpop.f32.mrb[0].mxu0
    %5047 = vdwg.mxu0
    %v5048 = vmul.f32 %v4975, %v4975
    %v5049 = vsub.f32 %v5045, %v5048
    %v5050 = vmax.f32 %v5049, 0.0
    %v5051 = vlaneseq
    %v5052 = vshrl.u32 %v5051, 7
    %v5053 = vsub.s32 0, %v5052
    %v5054 = vrot.slane %v4975, %v5053
    %v5055 = vsub.f32 %v4878, %v5054
    %v5056 = vadd.f32 %v5050, 1e-05
    %v5057 = vrsqrt.pop %v5056
    %v5058 = vlaneseq
    %v5059 = vshrl.u32 %v5058, 7
    %v5060 = vsub.s32 0, %v5059
    %v5061 = vrot.slane %v5057, %v5060
    %v5062 = vmul.f32 %v5055, %v5061
    %v5063 = vmax.f32 %v5062, 0.0
    %v5064 = vld [vmem:[#allocation25] sm:$0xff]
    %v5066 = vsel %vm4484, %v5064, 0
    %5068 = vmatprep.subr.mxu0 0.0
    %5069 = vmatpush1.msra.mxu0 %v5063
    %5070 = vmatprep.subr.mxu0 0.0
    %5071 = vmatpush1.msra.mxu0 0.0
    %5072 = vmatprep.subr.mxu0 0.0
    %5073 = vmatpush1.msra.mxu0 0.0
    %5074 = vmatprep.subr.mxu0 0.0
    %5075 = vmatpush1.msra.mxu0 0.0
    %5076 = vmatprep.subr.mxu0 0.0
    %5077 = vmatpush1.msra.mxu0 0.0
    %5078 = vmatprep.subr.mxu0 0.0
    %5079 = vmatpush1.msra.mxu0 0.0
    %5080 = vmatprep.subr.mxu0 0.0
    %5081 = vmatpush1.msra.mxu0 0.0
    %5082 = vmatprep.subr.mxu0 0.0
    %5083 = vmatpush1.msra.mxu0 0.0
    %5084 = vmatprep.subr.mxu0 0.0
    %5085 = vmatpush1.msra.mxu0 0.0
    %5086 = vmatprep.subr.mxu0 0.0
    %5087 = vmatpush1.msra.mxu0 0.0
    %5088 = vmatprep.subr.mxu0 0.0
    %5089 = vmatpush1.msra.mxu0 0.0
    %5090 = vmatprep.subr.mxu0 0.0
    %5091 = vmatpush1.msra.mxu0 0.0
    %5092 = vmatprep.subr.mxu0 0.0
    %5093 = vmatpush1.msra.mxu0 0.0
    %5094 = vmatprep.subr.mxu0 0.0
    %5095 = vmatpush1.msra.mxu0 0.0
    %5096 = vmatprep.subr.mxu0 0.0
    %5097 = vmatpush1.msra.mxu0 0.0
    %5098 = vmatprep.subr.mxu0 0.0
    %5099 = vmatpush1.msra.mxu0 0.0
    %5100 = vmatprep.subr.mxu0 0.0
    %5101 = vmatpush1.msra.mxu0 0.0
    %5102 = vmatprep.subr.mxu0 0.0
    %5103 = vmatpush1.msra.mxu0 0.0
    %5104 = vmatprep.subr.mxu0 0.0
    %5105 = vmatpush1.msra.mxu0 0.0
    %5106 = vmatprep.subr.mxu0 0.0
    %5107 = vmatpush1.msra.mxu0 0.0
    %5108 = vmatprep.subr.mxu0 0.0
    %5109 = vmatpush1.msra.mxu0 0.0
    %5110 = vmatprep.subr.mxu0 0.0
    %5111 = vmatpush1.msra.mxu0 0.0
    %5112 = vmatprep.subr.mxu0 0.0
    %5113 = vmatpush1.msra.mxu0 0.0
    %5114 = vmatprep.subr.mxu0 0.0
    %5115 = vmatpush1.msra.mxu0 0.0
    %5116 = vmatprep.subr.mxu0 0.0
    %5117 = vmatpush1.msra.mxu0 0.0
    %5118 = vmatprep.subr.mxu0 0.0
    %5119 = vmatpush1.msra.mxu0 0.0
    %5120 = vmatprep.subr.mxu0 0.0
    %5121 = vmatpush1.msra.mxu0 0.0
    %5122 = vmatprep.subr.mxu0 0.0
    %5123 = vmatpush1.msra.mxu0 0.0
    %5124 = vmatprep.subr.mxu0 0.0
    %5125 = vmatpush1.msra.mxu0 0.0
    %5126 = vmatprep.subr.mxu0 0.0
    %5127 = vmatpush1.msra.mxu0 0.0
    %5128 = vmatprep.subr.mxu0 0.0
    %5129 = vmatpush1.msra.mxu0 0.0
    %5130 = vmatprep.subr.mxu0 0.0
    %5131 = vmatpush1.msra.mxu0 0.0
    %5132 = vmatprep.mubr.f32.mxu0 0.0
    %5133 = vmatmul.mubr.f32.gmra.mrb[0].mxu0 %v5066
    %v5134 = vpop.f32.mrb[0].mxu0
    %v5135 = vadd.f32 0.0, %v5134
    %v5136 = vpop.f32.mrb[0].mxu0
    %5137 = vdwg.mxu0
    %s5138 = scalar_lea.vmem [#allocation25], 8
    %v5139 = vld [vmem:[%s5138] sm:$0xff]
    %v5141 = vsel %vm4484, %v5139, 0
    %5143 = vmatprep.subr.mxu0 0.0
    %5144 = vmatpush1.msra.mxu0 %v5063
    %5145 = vmatprep.subr.mxu0 0.0
    %5146 = vmatpush1.msra.mxu0 0.0
    %5147 = vmatprep.subr.mxu0 0.0
    %5148 = vmatpush1.msra.mxu0 0.0
    %5149 = vmatprep.subr.mxu0 0.0
    %5150 = vmatpush1.msra.mxu0 0.0
    %5151 = vmatprep.subr.mxu0 0.0
    %5152 = vmatpush1.msra.mxu0 0.0
    %5153 = vmatprep.subr.mxu0 0.0
    %5154 = vmatpush1.msra.mxu0 0.0
    %5155 = vmatprep.subr.mxu0 0.0
    %5156 = vmatpush1.msra.mxu0 0.0
    %5157 = vmatprep.subr.mxu0 0.0
    %5158 = vmatpush1.msra.mxu0 0.0
    %5159 = vmatprep.subr.mxu0 0.0
    %5160 = vmatpush1.msra.mxu0 0.0
    %5161 = vmatprep.subr.mxu0 0.0
    %5162 = vmatpush1.msra.mxu0 0.0
    %5163 = vmatprep.subr.mxu0 0.0
    %5164 = vmatpush1.msra.mxu0 0.0
    %5165 = vmatprep.subr.mxu0 0.0
    %5166 = vmatpush1.msra.mxu0 0.0
    %5167 = vmatprep.subr.mxu0 0.0
    %5168 = vmatpush1.msra.mxu0 0.0
    %5169 = vmatprep.subr.mxu0 0.0
    %5170 = vmatpush1.msra.mxu0 0.0
    %5171 = vmatprep.subr.mxu0 0.0
    %5172 = vmatpush1.msra.mxu0 0.0
    %5173 = vmatprep.subr.mxu0 0.0
    %5174 = vmatpush1.msra.mxu0 0.0
    %5175 = vmatprep.subr.mxu0 0.0
    %5176 = vmatpush1.msra.mxu0 0.0
    %5177 = vmatprep.subr.mxu0 0.0
    %5178 = vmatpush1.msra.mxu0 0.0
    %5179 = vmatprep.subr.mxu0 0.0
    %5180 = vmatpush1.msra.mxu0 0.0
    %5181 = vmatprep.subr.mxu0 0.0
    %5182 = vmatpush1.msra.mxu0 0.0
    %5183 = vmatprep.subr.mxu0 0.0
    %5184 = vmatpush1.msra.mxu0 0.0
    %5185 = vmatprep.subr.mxu0 0.0
    %5186 = vmatpush1.msra.mxu0 0.0
    %5187 = vmatprep.subr.mxu0 0.0
    %5188 = vmatpush1.msra.mxu0 0.0
    %5189 = vmatprep.subr.mxu0 0.0
    %5190 = vmatpush1.msra.mxu0 0.0
    %5191 = vmatprep.subr.mxu0 0.0
    %5192 = vmatpush1.msra.mxu0 0.0
    %5193 = vmatprep.subr.mxu0 0.0
    %5194 = vmatpush1.msra.mxu0 0.0
    %5195 = vmatprep.subr.mxu0 0.0
    %5196 = vmatpush1.msra.mxu0 0.0
    %5197 = vmatprep.subr.mxu0 0.0
    %5198 = vmatpush1.msra.mxu0 0.0
    %5199 = vmatprep.subr.mxu0 0.0
    %5200 = vmatpush1.msra.mxu0 0.0
    %5201 = vmatprep.subr.mxu0 0.0
    %5202 = vmatpush1.msra.mxu0 0.0
    %5203 = vmatprep.subr.mxu0 0.0
    %5204 = vmatpush1.msra.mxu0 0.0
    %5205 = vmatprep.subr.mxu0 0.0
    %5206 = vmatpush1.msra.mxu0 0.0
    %5207 = vmatprep.mubr.f32.mxu0 0.0
    %5208 = vmatmul.mubr.f32.gmra.mrb[0].mxu0 %v5141
    %v5209 = vpop.f32.mrb[0].mxu0
    %v5210 = vadd.f32 0.0, %v5209
    %v5211 = vpop.f32.mrb[0].mxu0
    %5212 = vdwg.mxu0
    %v5213 = vld [vmem:[%s47] sm:$0xff]
    %v5214 = vld [vmem:[%s47 + $0x8] sm:$0xff]
    %v5215 = vld [vmem:[%s47 + $0x10] sm:$0xff]
    %v5216 = vld [vmem:[%s47 + $0x18] sm:$0xff]
    %v5217 = vld [vmem:[%s47 + $0x20] sm:$0xff]
    %v5218 = vld [vmem:[%s47 + $0x28] sm:$0xff]
    %v5219 = vld [vmem:[%s47 + $0x30] sm:$0xff]
    %v5220 = vld [vmem:[%s47 + $0x38] sm:$0xff]
    %v5221 = vld [vmem:[%s47 + $0x40] sm:$0xff]
    %v5222 = vld [vmem:[%s47 + $0x48] sm:$0xff]
    %v5223 = vld [vmem:[%s47 + $0x50] sm:$0xff]
    %v5224 = vld [vmem:[%s47 + $0x58] sm:$0xff]
    %v5225 = vld [vmem:[%s47 + $0x60] sm:$0xff]
    %v5226 = vld [vmem:[%s47 + $0x68] sm:$0xff]
    %v5227 = vld [vmem:[%s47 + $0x70] sm:$0xff]
    %v5228 = vld [vmem:[%s47 + $0x78] sm:$0xff]
    %s5229 = scalar_lea.vmem %s47, 128
    %v5230 = vld [vmem:[%s5229] sm:$0xff]
    %v5231 = vld [vmem:[%s5229 + $0x8] sm:$0xff]
    %v5232 = vld [vmem:[%s5229 + $0x10] sm:$0xff]
    %v5233 = vld [vmem:[%s5229 + $0x18] sm:$0xff]
    %v5234 = vld [vmem:[%s5229 + $0x20] sm:$0xff]
    %v5235 = vld [vmem:[%s5229 + $0x28] sm:$0xff]
    %v5236 = vld [vmem:[%s5229 + $0x30] sm:$0xff]
    %v5237 = vld [vmem:[%s5229 + $0x38] sm:$0xff]
    %v5238 = vld [vmem:[%s5229 + $0x40] sm:$0xff]
    %v5239 = vld [vmem:[%s5229 + $0x48] sm:$0xff]
    %v5240 = vld [vmem:[%s5229 + $0x50] sm:$0xff]
    %v5241 = vld [vmem:[%s5229 + $0x58] sm:$0xff]
    %v5242 = vld [vmem:[%s5229 + $0x60] sm:$0xff]
    %v5243 = vld [vmem:[%s5229 + $0x68] sm:$0xff]
    %v5244 = vld [vmem:[%s5229 + $0x70] sm:$0xff]
    %v5245 = vld [vmem:[%s5229 + $0x78] sm:$0xff]
    %5246 = vmatprep.subr.mxu0 0.0
    %5247 = vmatpush1.msra.mxu0 %v5230
    %5248 = vmatprep.subr.mxu0 0.0
    %5249 = vmatpush1.msra.mxu0 %v5231
    %5250 = vmatprep.subr.mxu0 0.0
    %5251 = vmatpush1.msra.mxu0 %v5232
    %5252 = vmatprep.subr.mxu0 0.0
    %5253 = vmatpush1.msra.mxu0 %v5233
    %5254 = vmatprep.subr.mxu0 0.0
    %5255 = vmatpush1.msra.mxu0 %v5234
    %5256 = vmatprep.subr.mxu0 0.0
    %5257 = vmatpush1.msra.mxu0 %v5235
    %5258 = vmatprep.subr.mxu0 0.0
    %5259 = vmatpush1.msra.mxu0 %v5236
    %5260 = vmatprep.subr.mxu0 0.0
    %5261 = vmatpush1.msra.mxu0 %v5237
    %5262 = vmatprep.subr.mxu0 0.0
    %5263 = vmatpush1.msra.mxu0 %v5238
    %5264 = vmatprep.subr.mxu0 0.0
    %5265 = vmatpush1.msra.mxu0 %v5239
    %5266 = vmatprep.subr.mxu0 0.0
    %5267 = vmatpush1.msra.mxu0 %v5240
    %5268 = vmatprep.subr.mxu0 0.0
    %5269 = vmatpush1.msra.mxu0 %v5241
    %5270 = vmatprep.subr.mxu0 0.0
    %5271 = vmatpush1.msra.mxu0 %v5242
    %5272 = vmatprep.subr.mxu0 0.0
    %5273 = vmatpush1.msra.mxu0 %v5243
    %5274 = vmatprep.subr.mxu0 0.0
    %5275 = vmatpush1.msra.mxu0 %v5244
    %5276 = vmatprep.subr.mxu0 0.0
    %5277 = vmatpush1.msra.mxu0 %v5245
    %5278 = vmatprep.subr.mxu0 0.0
    %5279 = vmatpush1.msra.mxu0 0.0
    %5280 = vmatprep.subr.mxu0 0.0
    %5281 = vmatpush1.msra.mxu0 0.0
    %5282 = vmatprep.subr.mxu0 0.0
    %5283 = vmatpush1.msra.mxu0 0.0
    %5284 = vmatprep.subr.mxu0 0.0
    %5285 = vmatpush1.msra.mxu0 0.0
    %5286 = vmatprep.subr.mxu0 0.0
    %5287 = vmatpush1.msra.mxu0 0.0
    %5288 = vmatprep.subr.mxu0 0.0
    %5289 = vmatpush1.msra.mxu0 0.0
    %5290 = vmatprep.subr.mxu0 0.0
    %5291 = vmatpush1.msra.mxu0 0.0
    %5292 = vmatprep.subr.mxu0 0.0
    %5293 = vmatpush1.msra.mxu0 0.0
    %5294 = vmatprep.subr.mxu0 0.0
    %5295 = vmatpush1.msra.mxu0 0.0
    %5296 = vmatprep.subr.mxu0 0.0
    %5297 = vmatpush1.msra.mxu0 0.0
    %5298 = vmatprep.subr.mxu0 0.0
    %5299 = vmatpush1.msra.mxu0 0.0
    %5300 = vmatprep.subr.mxu0 0.0
    %5301 = vmatpush1.msra.mxu0 0.0
    %5302 = vmatprep.subr.mxu0 0.0
    %5303 = vmatpush1.msra.mxu0 0.0
    %5304 = vmatprep.subr.mxu0 0.0
    %5305 = vmatpush1.msra.mxu0 0.0
    %5306 = vmatprep.subr.mxu0 0.0
    %5307 = vmatpush1.msra.mxu0 0.0
    %5308 = vmatprep.subr.mxu0 0.0
    %5309 = vmatpush1.msra.mxu0 0.0
    %5310 = vmatprep.mubr.f32.mxu0 0.0
    %5311 = vmatmul.mubr.f32.gmra.mrb[0].mxu0 %v5063
    %v5312 = vpop.f32.mrb[0].mxu0
    %v5313 = vadd.f32 0.0, %v5312
    %v5314 = vpop.f32.mrb[0].mxu0
    %5315 = vdwg.mxu0
    %5316 = vmatprep.subr.mxu0 0.0
    %5317 = vmatpush1.msra.mxu0 %v5213
    %5318 = vmatprep.subr.mxu0 0.0
    %5319 = vmatpush1.msra.mxu0 %v5214
    %5320 = vmatprep.subr.mxu0 0.0
    %5321 = vmatpush1.msra.mxu0 %v5215
    %5322 = vmatprep.subr.mxu0 0.0
    %5323 = vmatpush1.msra.mxu0 %v5216
    %5324 = vmatprep.subr.mxu0 0.0
    %5325 = vmatpush1.msra.mxu0 %v5217
    %5326 = vmatprep.subr.mxu0 0.0
    %5327 = vmatpush1.msra.mxu0 %v5218
    %5328 = vmatprep.subr.mxu0 0.0
    %5329 = vmatpush1.msra.mxu0 %v5219
    %5330 = vmatprep.subr.mxu0 0.0
    %5331 = vmatpush1.msra.mxu0 %v5220
    %5332 = vmatprep.subr.mxu0 0.0
    %5333 = vmatpush1.msra.mxu0 %v5221
    %5334 = vmatprep.subr.mxu0 0.0
    %5335 = vmatpush1.msra.mxu0 %v5222
    %5336 = vmatprep.subr.mxu0 0.0
    %5337 = vmatpush1.msra.mxu0 %v5223
    %5338 = vmatprep.subr.mxu0 0.0
    %5339 = vmatpush1.msra.mxu0 %v5224
    %5340 = vmatprep.subr.mxu0 0.0
    %5341 = vmatpush1.msra.mxu0 %v5225
    %5342 = vmatprep.subr.mxu0 0.0
    %5343 = vmatpush1.msra.mxu0 %v5226
    %5344 = vmatprep.subr.mxu0 0.0
    %5345 = vmatpush1.msra.mxu0 %v5227
    %5346 = vmatprep.subr.mxu0 0.0
    %5347 = vmatpush1.msra.mxu0 %v5228
    %5348 = vmatprep.subr.mxu0 0.0
    %5349 = vmatpush1.msra.mxu0 0.0
    %5350 = vmatprep.subr.mxu0 0.0
    %5351 = vmatpush1.msra.mxu0 0.0
    %5352 = vmatprep.subr.mxu0 0.0
    %5353 = vmatpush1.msra.mxu0 0.0
    %5354 = vmatprep.subr.mxu0 0.0
    %5355 = vmatpush1.msra.mxu0 0.0
    %5356 = vmatprep.subr.mxu0 0.0
    %5357 = vmatpush1.msra.mxu0 0.0
    %5358 = vmatprep.subr.mxu0 0.0
    %5359 = vmatpush1.msra.mxu0 0.0
    %5360 = vmatprep.subr.mxu0 0.0
    %5361 = vmatpush1.msra.mxu0 0.0
    %5362 = vmatprep.subr.mxu0 0.0
    %5363 = vmatpush1.msra.mxu0 0.0
    %5364 = vmatprep.subr.mxu0 0.0
    %5365 = vmatpush1.msra.mxu0 0.0
    %5366 = vmatprep.subr.mxu0 0.0
    %5367 = vmatpush1.msra.mxu0 0.0
    %5368 = vmatprep.subr.mxu0 0.0
    %5369 = vmatpush1.msra.mxu0 0.0
    %5370 = vmatprep.subr.mxu0 0.0
    %5371 = vmatpush1.msra.mxu0 0.0
    %5372 = vmatprep.subr.mxu0 0.0
    %5373 = vmatpush1.msra.mxu0 0.0
    %5374 = vmatprep.subr.mxu0 0.0
    %5375 = vmatpush1.msra.mxu0 0.0
    %5376 = vmatprep.subr.mxu0 0.0
    %5377 = vmatpush1.msra.mxu0 0.0
    %5378 = vmatprep.subr.mxu0 0.0
    %5379 = vmatpush1.msra.mxu0 0.0
    %5380 = vmatprep.mubr.f32.mxu0 0.0
    %5381 = vmatmul.mubr.f32.gmra.mrb[0].mxu0 %v5135
    %v5382 = vpop.f32.mrb[0].mxu0
    %v5383 = vadd.f32 %v5313, %v5382
    %v5384 = vpop.f32.mrb[0].mxu0
    %5385 = vdwg.mxu0
    %s5386 = scalar_lea.vmem %s47, 256
    %v5387 = vld [vmem:[%s5386] sm:$0xff]
    %v5388 = vld [vmem:[%s5386 + $0x8] sm:$0xff]
    %v5389 = vld [vmem:[%s5386 + $0x10] sm:$0xff]
    %v5390 = vld [vmem:[%s5386 + $0x18] sm:$0xff]
    %v5391 = vld [vmem:[%s5386 + $0x20] sm:$0xff]
    %v5392 = vld [vmem:[%s5386 + $0x28] sm:$0xff]
    %v5393 = vld [vmem:[%s5386 + $0x30] sm:$0xff]
    %v5394 = vld [vmem:[%s5386 + $0x38] sm:$0xff]
    %v5395 = vld [vmem:[%s5386 + $0x40] sm:$0xff]
    %v5396 = vld [vmem:[%s5386 + $0x48] sm:$0xff]
    %v5397 = vld [vmem:[%s5386 + $0x50] sm:$0xff]
    %v5398 = vld [vmem:[%s5386 + $0x58] sm:$0xff]
    %v5399 = vld [vmem:[%s5386 + $0x60] sm:$0xff]
    %v5400 = vld [vmem:[%s5386 + $0x68] sm:$0xff]
    %v5401 = vld [vmem:[%s5386 + $0x70] sm:$0xff]
    %v5402 = vld [vmem:[%s5386 + $0x78] sm:$0xff]
    %5403 = vmatprep.subr.mxu0 0.0
    %5404 = vmatpush1.msra.mxu0 %v5387
    %5405 = vmatprep.subr.mxu0 0.0
    %5406 = vmatpush1.msra.mxu0 %v5388
    %5407 = vmatprep.subr.mxu0 0.0
    %5408 = vmatpush1.msra.mxu0 %v5389
    %5409 = vmatprep.subr.mxu0 0.0
    %5410 = vmatpush1.msra.mxu0 %v5390
    %5411 = vmatprep.subr.mxu0 0.0
    %5412 = vmatpush1.msra.mxu0 %v5391
    %5413 = vmatprep.subr.mxu0 0.0
    %5414 = vmatpush1.msra.mxu0 %v5392
    %5415 = vmatprep.subr.mxu0 0.0
    %5416 = vmatpush1.msra.mxu0 %v5393
    %5417 = vmatprep.subr.mxu0 0.0
    %5418 = vmatpush1.msra.mxu0 %v5394
    %5419 = vmatprep.subr.mxu0 0.0
    %5420 = vmatpush1.msra.mxu0 %v5395
    %5421 = vmatprep.subr.mxu0 0.0
    %5422 = vmatpush1.msra.mxu0 %v5396
    %5423 = vmatprep.subr.mxu0 0.0
    %5424 = vmatpush1.msra.mxu0 %v5397
    %5425 = vmatprep.subr.mxu0 0.0
    %5426 = vmatpush1.msra.mxu0 %v5398
    %5427 = vmatprep.subr.mxu0 0.0
    %5428 = vmatpush1.msra.mxu0 %v5399
    %5429 = vmatprep.subr.mxu0 0.0
    %5430 = vmatpush1.msra.mxu0 %v5400
    %5431 = vmatprep.subr.mxu0 0.0
    %5432 = vmatpush1.msra.mxu0 %v5401
    %5433 = vmatprep.subr.mxu0 0.0
    %5434 = vmatpush1.msra.mxu0 %v5402
    %5435 = vmatprep.subr.mxu0 0.0
    %5436 = vmatpush1.msra.mxu0 0.0
    %5437 = vmatprep.subr.mxu0 0.0
    %5438 = vmatpush1.msra.mxu0 0.0
    %5439 = vmatprep.subr.mxu0 0.0
    %5440 = vmatpush1.msra.mxu0 0.0
    %5441 = vmatprep.subr.mxu0 0.0
    %5442 = vmatpush1.msra.mxu0 0.0
    %5443 = vmatprep.subr.mxu0 0.0
    %5444 = vmatpush1.msra.mxu0 0.0
    %5445 = vmatprep.subr.mxu0 0.0
    %5446 = vmatpush1.msra.mxu0 0.0
    %5447 = vmatprep.subr.mxu0 0.0
    %5448 = vmatpush1.msra.mxu0 0.0
    %5449 = vmatprep.subr.mxu0 0.0
    %5450 = vmatpush1.msra.mxu0 0.0
    %5451 = vmatprep.subr.mxu0 0.0
    %5452 = vmatpush1.msra.mxu0 0.0
    %5453 = vmatprep.subr.mxu0 0.0
    %5454 = vmatpush1.msra.mxu0 0.0
    %5455 = vmatprep.subr.mxu0 0.0
    %5456 = vmatpush1.msra.mxu0 0.0
    %5457 = vmatprep.subr.mxu0 0.0
    %5458 = vmatpush1.msra.mxu0 0.0
    %5459 = vmatprep.subr.mxu0 0.0
    %5460 = vmatpush1.msra.mxu0 0.0
    %5461 = vmatprep.subr.mxu0 0.0
    %5462 = vmatpush1.msra.mxu0 0.0
    %5463 = vmatprep.subr.mxu0 0.0
    %5464 = vmatpush1.msra.mxu0 0.0
    %5465 = vmatprep.subr.mxu0 0.0
    %5466 = vmatpush1.msra.mxu0 0.0
    %5467 = vmatprep.mubr.f32.mxu0 0.0
    %5468 = vmatmul.mubr.f32.gmra.mrb[0].mxu0 %v5210
    %v5469 = vpop.f32.mrb[0].mxu0
    %v5470 = vadd.f32 0.0, %v5469
    %v5471 = vpop.f32.mrb[0].mxu0
    %5472 = vdwg.mxu0
    %v5473 = vadd.f32 %v5383, %v5470
    %v5474 = vrot.slane %v5473, 4
    %v5475 = vadd.f32 %v5473, %v5474
    %v5476 = vrot.slane %v5475, 2
    %v5477 = vadd.f32 %v5475, %v5476
    %v5478 = vrot.slane %v5477, 1
    %v5479 = vadd.f32 %v5477, %v5478
    %v5480 = vmul.f32 %v5473, %v5473
    %v5481 = vrot.slane %v5480, 4
    %v5482 = vadd.f32 %v5480, %v5481
    %v5483 = vrot.slane %v5482, 2
    %v5484 = vadd.f32 %v5482, %v5483
    %v5485 = vrot.slane %v5484, 1
    %v5486 = vadd.f32 %v5484, %v5485
    %v5487 = vld [vmem:[#allocation26] sm:$0xff]
    %v5488 = vld [vmem:[#allocation26 + $0x8] sm:$0xff]
    %v5489 = vld [vmem:[#allocation26 + $0x10] sm:$0xff]
    %v5490 = vld [vmem:[#allocation26 + $0x18] sm:$0xff]
    %v5491 = vld [vmem:[#allocation26 + $0x20] sm:$0xff]
    %v5492 = vld [vmem:[#allocation26 + $0x28] sm:$0xff]
    %v5493 = vld [vmem:[#allocation26 + $0x30] sm:$0xff]
    %v5494 = vld [vmem:[#allocation26 + $0x38] sm:$0xff]
    %v5495 = vld [vmem:[#allocation26 + $0x40] sm:$0xff]
    %v5496 = vld [vmem:[#allocation26 + $0x48] sm:$0xff]
    %v5497 = vld [vmem:[#allocation26 + $0x50] sm:$0xff]
    %v5498 = vld [vmem:[#allocation26 + $0x58] sm:$0xff]
    %v5499 = vld [vmem:[#allocation26 + $0x60] sm:$0xff]
    %v5500 = vld [vmem:[#allocation26 + $0x68] sm:$0xff]
    %v5501 = vld [vmem:[#allocation26 + $0x70] sm:$0xff]
    %v5502 = vld [vmem:[#allocation26 + $0x78] sm:$0xff]
    %5503 = vmatprep.subr.mxu0 0.0
    %5504 = vmatpush1.msra.mxu0 %v5487
    %5505 = vmatprep.subr.mxu0 0.0
    %5506 = vmatpush1.msra.mxu0 %v5488
    %5507 = vmatprep.subr.mxu0 0.0
    %5508 = vmatpush1.msra.mxu0 %v5489
    %5509 = vmatprep.subr.mxu0 0.0
    %5510 = vmatpush1.msra.mxu0 %v5490
    %5511 = vmatprep.subr.mxu0 0.0
    %5512 = vmatpush1.msra.mxu0 %v5491
    %5513 = vmatprep.subr.mxu0 0.0
    %5514 = vmatpush1.msra.mxu0 %v5492
    %5515 = vmatprep.subr.mxu0 0.0
    %5516 = vmatpush1.msra.mxu0 %v5493
    %5517 = vmatprep.subr.mxu0 0.0
    %5518 = vmatpush1.msra.mxu0 %v5494
    %5519 = vmatprep.subr.mxu0 0.0
    %5520 = vmatpush1.msra.mxu0 %v5495
    %5521 = vmatprep.subr.mxu0 0.0
    %5522 = vmatpush1.msra.mxu0 %v5496
    %5523 = vmatprep.subr.mxu0 0.0
    %5524 = vmatpush1.msra.mxu0 %v5497
    %5525 = vmatprep.subr.mxu0 0.0
    %5526 = vmatpush1.msra.mxu0 %v5498
    %5527 = vmatprep.subr.mxu0 0.0
    %5528 = vmatpush1.msra.mxu0 %v5499
    %5529 = vmatprep.subr.mxu0 0.0
    %5530 = vmatpush1.msra.mxu0 %v5500
    %5531 = vmatprep.subr.mxu0 0.0
    %5532 = vmatpush1.msra.mxu0 %v5501
    %5533 = vmatprep.subr.mxu0 0.0
    %5534 = vmatpush1.msra.mxu0 %v5502
    %5535 = vmatprep.subr.mxu0 0.0
    %5536 = vmatpush1.msra.mxu0 0.0
    %5537 = vmatprep.subr.mxu0 0.0
    %5538 = vmatpush1.msra.mxu0 0.0
    %5539 = vmatprep.subr.mxu0 0.0
    %5540 = vmatpush1.msra.mxu0 0.0
    %5541 = vmatprep.subr.mxu0 0.0
    %5542 = vmatpush1.msra.mxu0 0.0
    %5543 = vmatprep.subr.mxu0 0.0
    %5544 = vmatpush1.msra.mxu0 0.0
    %5545 = vmatprep.subr.mxu0 0.0
    %5546 = vmatpush1.msra.mxu0 0.0
    %5547 = vmatprep.subr.mxu0 0.0
    %5548 = vmatpush1.msra.mxu0 0.0
    %5549 = vmatprep.subr.mxu0 0.0
    %5550 = vmatpush1.msra.mxu0 0.0
    %5551 = vmatprep.subr.mxu0 0.0
    %5552 = vmatpush1.msra.mxu0 0.0
    %5553 = vmatprep.subr.mxu0 0.0
    %5554 = vmatpush1.msra.mxu0 0.0
    %5555 = vmatprep.subr.mxu0 0.0
    %5556 = vmatpush1.msra.mxu0 0.0
    %5557 = vmatprep.subr.mxu0 0.0
    %5558 = vmatpush1.msra.mxu0 0.0
    %5559 = vmatprep.subr.mxu0 0.0
    %5560 = vmatpush1.msra.mxu0 0.0
    %5561 = vmatprep.subr.mxu0 0.0
    %5562 = vmatpush1.msra.mxu0 0.0
    %5563 = vmatprep.subr.mxu0 0.0
    %5564 = vmatpush1.msra.mxu0 0.0
    %5565 = vmatprep.subr.mxu0 0.0
    %5566 = vmatpush1.msra.mxu0 0.0
    %5567 = vmatprep.mubr.f32.mxu0 0.0
    %5568 = vmatmul.mubr.f32.gmra.mrb[0].mxu0 %v5479
    %v5569 = vpop.f32.mrb[0].mxu0
    %v5570 = vadd.f32 0.0, %v5569
    %v5571 = vpop.f32.mrb[0].mxu0
    %5572 = vdwg.mxu0
    %5573 = vmatprep.subr.mxu0 0.0
    %5574 = vmatpush1.msra.mxu0 %v5487
    %5575 = vmatprep.subr.mxu0 0.0
    %5576 = vmatpush1.msra.mxu0 %v5488
    %5577 = vmatprep.subr.mxu0 0.0
    %5578 = vmatpush1.msra.mxu0 %v5489
    %5579 = vmatprep.subr.mxu0 0.0
    %5580 = vmatpush1.msra.mxu0 %v5490
    %5581 = vmatprep.subr.mxu0 0.0
    %5582 = vmatpush1.msra.mxu0 %v5491
    %5583 = vmatprep.subr.mxu0 0.0
    %5584 = vmatpush1.msra.mxu0 %v5492
    %5585 = vmatprep.subr.mxu0 0.0
    %5586 = vmatpush1.msra.mxu0 %v5493
    %5587 = vmatprep.subr.mxu0 0.0
    %5588 = vmatpush1.msra.mxu0 %v5494
    %5589 = vmatprep.subr.mxu0 0.0
    %5590 = vmatpush1.msra.mxu0 %v5495
    %5591 = vmatprep.subr.mxu0 0.0
    %5592 = vmatpush1.msra.mxu0 %v5496
    %5593 = vmatprep.subr.mxu0 0.0
    %5594 = vmatpush1.msra.mxu0 %v5497
    %5595 = vmatprep.subr.mxu0 0.0
    %5596 = vmatpush1.msra.mxu0 %v5498
    %5597 = vmatprep.subr.mxu0 0.0
    %5598 = vmatpush1.msra.mxu0 %v5499
    %5599 = vmatprep.subr.mxu0 0.0
    %5600 = vmatpush1.msra.mxu0 %v5500
    %5601 = vmatprep.subr.mxu0 0.0
    %5602 = vmatpush1.msra.mxu0 %v5501
    %5603 = vmatprep.subr.mxu0 0.0
    %5604 = vmatpush1.msra.mxu0 %v5502
    %5605 = vmatprep.subr.mxu0 0.0
    %5606 = vmatpush1.msra.mxu0 0.0
    %5607 = vmatprep.subr.mxu0 0.0
    %5608 = vmatpush1.msra.mxu0 0.0
    %5609 = vmatprep.subr.mxu0 0.0
    %5610 = vmatpush1.msra.mxu0 0.0
    %5611 = vmatprep.subr.mxu0 0.0
    %5612 = vmatpush1.msra.mxu0 0.0
    %5613 = vmatprep.subr.mxu0 0.0
    %5614 = vmatpush1.msra.mxu0 0.0
    %5615 = vmatprep.subr.mxu0 0.0
    %5616 = vmatpush1.msra.mxu0 0.0
    %5617 = vmatprep.subr.mxu0 0.0
    %5618 = vmatpush1.msra.mxu0 0.0
    %5619 = vmatprep.subr.mxu0 0.0
    %5620 = vmatpush1.msra.mxu0 0.0
    %5621 = vmatprep.subr.mxu0 0.0
    %5622 = vmatpush1.msra.mxu0 0.0
    %5623 = vmatprep.subr.mxu0 0.0
    %5624 = vmatpush1.msra.mxu0 0.0
    %5625 = vmatprep.subr.mxu0 0.0
    %5626 = vmatpush1.msra.mxu0 0.0
    %5627 = vmatprep.subr.mxu0 0.0
    %5628 = vmatpush1.msra.mxu0 0.0
    %5629 = vmatprep.subr.mxu0 0.0
    %5630 = vmatpush1.msra.mxu0 0.0
    %5631 = vmatprep.subr.mxu0 0.0
    %5632 = vmatpush1.msra.mxu0 0.0
    %5633 = vmatprep.subr.mxu0 0.0
    %5634 = vmatpush1.msra.mxu0 0.0
    %5635 = vmatprep.subr.mxu0 0.0
    %5636 = vmatpush1.msra.mxu0 0.0
    %5637 = vmatprep.mubr.f32.mxu0 0.0
    %5638 = vmatmul.mubr.f32.gmra.mrb[0].mxu0 %v5486
    %v5639 = vpop.f32.mrb[0].mxu0
    %v5640 = vadd.f32 0.0, %v5639
    %v5641 = vpop.f32.mrb[0].mxu0
    %5642 = vdwg.mxu0
    %v5643 = vmul.f32 %v5570, %v5570
    %v5644 = vsub.f32 %v5640, %v5643
    %v5645 = vmax.f32 %v5644, 0.0
    %v5646 = vlaneseq
    %v5647 = vshrl.u32 %v5646, 7
    %v5648 = vsub.s32 0, %v5647
    %v5649 = vrot.slane %v5570, %v5648
    %v5650 = vsub.f32 %v5473, %v5649
    %v5651 = vadd.f32 %v5645, 1e-05
    %v5652 = vrsqrt.pop %v5651
    %v5653 = vlaneseq
    %v5654 = vshrl.u32 %v5653, 7
    %v5655 = vsub.s32 0, %v5654
    %v5656 = vrot.slane %v5652, %v5655
    %v5657 = vmul.f32 %v5650, %v5656
    %v5658 = vmax.f32 %v5657, 0.0
    %v5659 = vld [vmem:[#allocation28] sm:$0xf]
    %v5661 = vsel %vm4484, %v5659, 0
    %5663 = vmatprep.subr.mxu0 0.0
    %5664 = vmatpush1.msra.mxu0 %v5658
    %5665 = vmatprep.subr.mxu0 0.0
    %5666 = vmatpush1.msra.mxu0 0.0
    %5667 = vmatprep.subr.mxu0 0.0
    %5668 = vmatpush1.msra.mxu0 0.0
    %5669 = vmatprep.subr.mxu0 0.0
    %5670 = vmatpush1.msra.mxu0 0.0
    %5671 = vmatprep.subr.mxu0 0.0
    %5672 = vmatpush1.msra.mxu0 0.0
    %5673 = vmatprep.subr.mxu0 0.0
    %5674 = vmatpush1.msra.mxu0 0.0
    %5675 = vmatprep.subr.mxu0 0.0
    %5676 = vmatpush1.msra.mxu0 0.0
    %5677 = vmatprep.subr.mxu0 0.0
    %5678 = vmatpush1.msra.mxu0 0.0
    %5679 = vmatprep.subr.mxu0 0.0
    %5680 = vmatpush1.msra.mxu0 0.0
    %5681 = vmatprep.subr.mxu0 0.0
    %5682 = vmatpush1.msra.mxu0 0.0
    %5683 = vmatprep.subr.mxu0 0.0
    %5684 = vmatpush1.msra.mxu0 0.0
    %5685 = vmatprep.subr.mxu0 0.0
    %5686 = vmatpush1.msra.mxu0 0.0
    %5687 = vmatprep.subr.mxu0 0.0
    %5688 = vmatpush1.msra.mxu0 0.0
    %5689 = vmatprep.subr.mxu0 0.0
    %5690 = vmatpush1.msra.mxu0 0.0
    %5691 = vmatprep.subr.mxu0 0.0
    %5692 = vmatpush1.msra.mxu0 0.0
    %5693 = vmatprep.subr.mxu0 0.0
    %5694 = vmatpush1.msra.mxu0 0.0
    %5695 = vmatprep.subr.mxu0 0.0
    %5696 = vmatpush1.msra.mxu0 0.0
    %5697 = vmatprep.subr.mxu0 0.0
    %5698 = vmatpush1.msra.mxu0 0.0
    %5699 = vmatprep.subr.mxu0 0.0
    %5700 = vmatpush1.msra.mxu0 0.0
    %5701 = vmatprep.subr.mxu0 0.0
    %5702 = vmatpush1.msra.mxu0 0.0
    %5703 = vmatprep.subr.mxu0 0.0
    %5704 = vmatpush1.msra.mxu0 0.0
    %5705 = vmatprep.subr.mxu0 0.0
    %5706 = vmatpush1.msra.mxu0 0.0
    %5707 = vmatprep.subr.mxu0 0.0
    %5708 = vmatpush1.msra.mxu0 0.0
    %5709 = vmatprep.subr.mxu0 0.0
    %5710 = vmatpush1.msra.mxu0 0.0
    %5711 = vmatprep.subr.mxu0 0.0
    %5712 = vmatpush1.msra.mxu0 0.0
    %5713 = vmatprep.subr.mxu0 0.0
    %5714 = vmatpush1.msra.mxu0 0.0
    %5715 = vmatprep.subr.mxu0 0.0
    %5716 = vmatpush1.msra.mxu0 0.0
    %5717 = vmatprep.subr.mxu0 0.0
    %5718 = vmatpush1.msra.mxu0 0.0
    %5719 = vmatprep.subr.mxu0 0.0
    %5720 = vmatpush1.msra.mxu0 0.0
    %5721 = vmatprep.subr.mxu0 0.0
    %5722 = vmatpush1.msra.mxu0 0.0
    %5723 = vmatprep.subr.mxu0 0.0
    %5724 = vmatpush1.msra.mxu0 0.0
    %5725 = vmatprep.subr.mxu0 0.0
    %5726 = vmatpush1.msra.mxu0 0.0
    %5727 = vmatprep.mubr.f32.mxu0 0.0
    %5728 = vmatmul.mubr.f32.gmra.mrb[0].mxu0 %v5661
    %v5729 = vpop.f32.mrb[0].mxu0
    %v5730 = vadd.f32 0.0, %v5729
    %v5731 = vpop.f32.mrb[0].mxu0
    %5732 = vdwg.mxu0
    %s5733 = scalar_lea.vmem [#allocation28], 4
    %v5734 = vld [vmem:[%s5733] sm:$0xf]
    %v5736 = vsel %vm4484, %v5734, 0
    %5738 = vmatprep.subr.mxu0 0.0
    %5739 = vmatpush1.msra.mxu0 %v5658
    %5740 = vmatprep.subr.mxu0 0.0
    %5741 = vmatpush1.msra.mxu0 0.0
    %5742 = vmatprep.subr.mxu0 0.0
    %5743 = vmatpush1.msra.mxu0 0.0
    %5744 = vmatprep.subr.mxu0 0.0
    %5745 = vmatpush1.msra.mxu0 0.0
    %5746 = vmatprep.subr.mxu0 0.0
    %5747 = vmatpush1.msra.mxu0 0.0
    %5748 = vmatprep.subr.mxu0 0.0
    %5749 = vmatpush1.msra.mxu0 0.0
    %5750 = vmatprep.subr.mxu0 0.0
    %5751 = vmatpush1.msra.mxu0 0.0
    %5752 = vmatprep.subr.mxu0 0.0
    %5753 = vmatpush1.msra.mxu0 0.0
    %5754 = vmatprep.subr.mxu0 0.0
    %5755 = vmatpush1.msra.mxu0 0.0
    %5756 = vmatprep.subr.mxu0 0.0
    %5757 = vmatpush1.msra.mxu0 0.0
    %5758 = vmatprep.subr.mxu0 0.0
    %5759 = vmatpush1.msra.mxu0 0.0
    %5760 = vmatprep.subr.mxu0 0.0
    %5761 = vmatpush1.msra.mxu0 0.0
    %5762 = vmatprep.subr.mxu0 0.0
    %5763 = vmatpush1.msra.mxu0 0.0
    %5764 = vmatprep.subr.mxu0 0.0
    %5765 = vmatpush1.msra.mxu0 0.0
    %5766 = vmatprep.subr.mxu0 0.0
    %5767 = vmatpush1.msra.mxu0 0.0
    %5768 = vmatprep.subr.mxu0 0.0
    %5769 = vmatpush1.msra.mxu0 0.0
    %5770 = vmatprep.subr.mxu0 0.0
    %5771 = vmatpush1.msra.mxu0 0.0
    %5772 = vmatprep.subr.mxu0 0.0
    %5773 = vmatpush1.msra.mxu0 0.0
    %5774 = vmatprep.subr.mxu0 0.0
    %5775 = vmatpush1.msra.mxu0 0.0
    %5776 = vmatprep.subr.mxu0 0.0
    %5777 = vmatpush1.msra.mxu0 0.0
    %5778 = vmatprep.subr.mxu0 0.0
    %5779 = vmatpush1.msra.mxu0 0.0
    %5780 = vmatprep.subr.mxu0 0.0
    %5781 = vmatpush1.msra.mxu0 0.0
    %5782 = vmatprep.subr.mxu0 0.0
    %5783 = vmatpush1.msra.mxu0 0.0
    %5784 = vmatprep.subr.mxu0 0.0
    %5785 = vmatpush1.msra.mxu0 0.0
    %5786 = vmatprep.subr.mxu0 0.0
    %5787 = vmatpush1.msra.mxu0 0.0
    %5788 = vmatprep.subr.mxu0 0.0
    %5789 = vmatpush1.msra.mxu0 0.0
    %5790 = vmatprep.subr.mxu0 0.0
    %5791 = vmatpush1.msra.mxu0 0.0
    %5792 = vmatprep.subr.mxu0 0.0
    %5793 = vmatpush1.msra.mxu0 0.0
    %5794 = vmatprep.subr.mxu0 0.0
    %5795 = vmatpush1.msra.mxu0 0.0
    %5796 = vmatprep.subr.mxu0 0.0
    %5797 = vmatpush1.msra.mxu0 0.0
    %5798 = vmatprep.subr.mxu0 0.0
    %5799 = vmatpush1.msra.mxu0 0.0
    %5800 = vmatprep.subr.mxu0 0.0
    %5801 = vmatpush1.msra.mxu0 0.0
    %5802 = vmatprep.mubr.f32.mxu0 0.0
    %5803 = vmatmul.mubr.f32.gmra.mrb[0].mxu0 %v5736
    %v5804 = vpop.f32.mrb[0].mxu0
    %v5805 = vadd.f32 0.0, %v5804
    %v5806 = vpop.f32.mrb[0].mxu0
    %5807 = vdwg.mxu0
    %v5808 = vmax.f32 %v5730, %v5805
    %v5809 = vld [vmem:[%s53] sm:$0xff]
    %v5810 = vld [vmem:[%s53 + $0x8] sm:$0xff]
    %v5811 = vld [vmem:[%s53 + $0x10] sm:$0xff]
    %v5812 = vld [vmem:[%s53 + $0x18] sm:$0xff]
    %v5813 = vld [vmem:[%s53 + $0x20] sm:$0xff]
    %v5814 = vld [vmem:[%s53 + $0x28] sm:$0xff]
    %v5815 = vld [vmem:[%s53 + $0x30] sm:$0xff]
    %v5816 = vld [vmem:[%s53 + $0x38] sm:$0xff]
    %v5817 = vld [vmem:[%s53 + $0x40] sm:$0xff]
    %v5818 = vld [vmem:[%s53 + $0x48] sm:$0xff]
    %v5819 = vld [vmem:[%s53 + $0x50] sm:$0xff]
    %v5820 = vld [vmem:[%s53 + $0x58] sm:$0xff]
    %v5821 = vld [vmem:[%s53 + $0x60] sm:$0xff]
    %v5822 = vld [vmem:[%s53 + $0x68] sm:$0xff]
    %v5823 = vld [vmem:[%s53 + $0x70] sm:$0xff]
    %v5824 = vld [vmem:[%s53 + $0x78] sm:$0xff]
    %5825 = vmatprep.subr.mxu0 0.0
    %5826 = vmatpush1.msra.mxu0 %v5809
    %5827 = vmatprep.subr.mxu0 0.0
    %5828 = vmatpush1.msra.mxu0 %v5810
    %5829 = vmatprep.subr.mxu0 0.0
    %5830 = vmatpush1.msra.mxu0 %v5811
    %5831 = vmatprep.subr.mxu0 0.0
    %5832 = vmatpush1.msra.mxu0 %v5812
    %5833 = vmatprep.subr.mxu0 0.0
    %5834 = vmatpush1.msra.mxu0 %v5813
    %5835 = vmatprep.subr.mxu0 0.0
    %5836 = vmatpush1.msra.mxu0 %v5814
    %5837 = vmatprep.subr.mxu0 0.0
    %5838 = vmatpush1.msra.mxu0 %v5815
    %5839 = vmatprep.subr.mxu0 0.0
    %5840 = vmatpush1.msra.mxu0 %v5816
    %5841 = vmatprep.subr.mxu0 0.0
    %5842 = vmatpush1.msra.mxu0 %v5817
    %5843 = vmatprep.subr.mxu0 0.0
    %5844 = vmatpush1.msra.mxu0 %v5818
    %5845 = vmatprep.subr.mxu0 0.0
    %5846 = vmatpush1.msra.mxu0 %v5819
    %5847 = vmatprep.subr.mxu0 0.0
    %5848 = vmatpush1.msra.mxu0 %v5820
    %5849 = vmatprep.subr.mxu0 0.0
    %5850 = vmatpush1.msra.mxu0 %v5821
    %5851 = vmatprep.subr.mxu0 0.0
    %5852 = vmatpush1.msra.mxu0 %v5822
    %5853 = vmatprep.subr.mxu0 0.0
    %5854 = vmatpush1.msra.mxu0 %v5823
    %5855 = vmatprep.subr.mxu0 0.0
    %5856 = vmatpush1.msra.mxu0 %v5824
    %5857 = vmatprep.subr.mxu0 0.0
    %5858 = vmatpush1.msra.mxu0 0.0
    %5859 = vmatprep.subr.mxu0 0.0
    %5860 = vmatpush1.msra.mxu0 0.0
    %5861 = vmatprep.subr.mxu0 0.0
    %5862 = vmatpush1.msra.mxu0 0.0
    %5863 = vmatprep.subr.mxu0 0.0
    %5864 = vmatpush1.msra.mxu0 0.0
    %5865 = vmatprep.subr.mxu0 0.0
    %5866 = vmatpush1.msra.mxu0 0.0
    %5867 = vmatprep.subr.mxu0 0.0
    %5868 = vmatpush1.msra.mxu0 0.0
    %5869 = vmatprep.subr.mxu0 0.0
    %5870 = vmatpush1.msra.mxu0 0.0
    %5871 = vmatprep.subr.mxu0 0.0
    %5872 = vmatpush1.msra.mxu0 0.0
    %5873 = vmatprep.subr.mxu0 0.0
    %5874 = vmatpush1.msra.mxu0 0.0
    %5875 = vmatprep.subr.mxu0 0.0
    %5876 = vmatpush1.msra.mxu0 0.0
    %5877 = vmatprep.subr.mxu0 0.0
    %5878 = vmatpush1.msra.mxu0 0.0
    %5879 = vmatprep.subr.mxu0 0.0
    %5880 = vmatpush1.msra.mxu0 0.0
    %5881 = vmatprep.subr.mxu0 0.0
    %5882 = vmatpush1.msra.mxu0 0.0
    %5883 = vmatprep.subr.mxu0 0.0
    %5884 = vmatpush1.msra.mxu0 0.0
    %5885 = vmatprep.subr.mxu0 0.0
    %5886 = vmatpush1.msra.mxu0 0.0
    %5887 = vmatprep.subr.mxu0 0.0
    %5888 = vmatpush1.msra.mxu0 0.0
    %5889 = vmatprep.mubr.f32.mxu0 0.0
    %5890 = vmatmul.mubr.f32.gmra.mrb[0].mxu0 %v5808
    %v5891 = vpop.f32.mrb[0].mxu0
    %v5892 = vadd.f32 0.0, %v5891
    %v5893 = vpop.f32.mrb[0].mxu0
    %5894 = vdwg.mxu0
    %s5895 = scalar_lea.vmem %s53, 128
    %v5896 = vld [vmem:[%s5895] sm:$0xff]
    %v5897 = vld [vmem:[%s5895 + $0x8] sm:$0xff]
    %v5898 = vld [vmem:[%s5895 + $0x10] sm:$0xff]
    %v5899 = vld [vmem:[%s5895 + $0x18] sm:$0xff]
    %v5900 = vld [vmem:[%s5895 + $0x20] sm:$0xff]
    %v5901 = vld [vmem:[%s5895 + $0x28] sm:$0xff]
    %v5902 = vld [vmem:[%s5895 + $0x30] sm:$0xff]
    %v5903 = vld [vmem:[%s5895 + $0x38] sm:$0xff]
    %v5904 = vld [vmem:[%s5895 + $0x40] sm:$0xff]
    %v5905 = vld [vmem:[%s5895 + $0x48] sm:$0xff]
    %v5906 = vld [vmem:[%s5895 + $0x50] sm:$0xff]
    %v5907 = vld [vmem:[%s5895 + $0x58] sm:$0xff]
    %v5908 = vld [vmem:[%s5895 + $0x60] sm:$0xff]
    %v5909 = vld [vmem:[%s5895 + $0x68] sm:$0xff]
    %v5910 = vld [vmem:[%s5895 + $0x70] sm:$0xff]
    %v5911 = vld [vmem:[%s5895 + $0x78] sm:$0xff]
    %5912 = vmatprep.subr.mxu0 0.0
    %5913 = vmatpush1.msra.mxu0 %v5896
    %5914 = vmatprep.subr.mxu0 0.0
    %5915 = vmatpush1.msra.mxu0 %v5897
    %5916 = vmatprep.subr.mxu0 0.0
    %5917 = vmatpush1.msra.mxu0 %v5898
    %5918 = vmatprep.subr.mxu0 0.0
    %5919 = vmatpush1.msra.mxu0 %v5899
    %5920 = vmatprep.subr.mxu0 0.0
    %5921 = vmatpush1.msra.mxu0 %v5900
    %5922 = vmatprep.subr.mxu0 0.0
    %5923 = vmatpush1.msra.mxu0 %v5901
    %5924 = vmatprep.subr.mxu0 0.0
    %5925 = vmatpush1.msra.mxu0 %v5902
    %5926 = vmatprep.subr.mxu0 0.0
    %5927 = vmatpush1.msra.mxu0 %v5903
    %5928 = vmatprep.subr.mxu0 0.0
    %5929 = vmatpush1.msra.mxu0 %v5904
    %5930 = vmatprep.subr.mxu0 0.0
    %5931 = vmatpush1.msra.mxu0 %v5905
    %5932 = vmatprep.subr.mxu0 0.0
    %5933 = vmatpush1.msra.mxu0 %v5906
    %5934 = vmatprep.subr.mxu0 0.0
    %5935 = vmatpush1.msra.mxu0 %v5907
    %5936 = vmatprep.subr.mxu0 0.0
    %5937 = vmatpush1.msra.mxu0 %v5908
    %5938 = vmatprep.subr.mxu0 0.0
    %5939 = vmatpush1.msra.mxu0 %v5909
    %5940 = vmatprep.subr.mxu0 0.0
    %5941 = vmatpush1.msra.mxu0 %v5910
    %5942 = vmatprep.subr.mxu0 0.0
    %5943 = vmatpush1.msra.mxu0 %v5911
    %5944 = vmatprep.subr.mxu0 0.0
    %5945 = vmatpush1.msra.mxu0 0.0
    %5946 = vmatprep.subr.mxu0 0.0
    %5947 = vmatpush1.msra.mxu0 0.0
    %5948 = vmatprep.subr.mxu0 0.0
    %5949 = vmatpush1.msra.mxu0 0.0
    %5950 = vmatprep.subr.mxu0 0.0
    %5951 = vmatpush1.msra.mxu0 0.0
    %5952 = vmatprep.subr.mxu0 0.0
    %5953 = vmatpush1.msra.mxu0 0.0
    %5954 = vmatprep.subr.mxu0 0.0
    %5955 = vmatpush1.msra.mxu0 0.0
    %5956 = vmatprep.subr.mxu0 0.0
    %5957 = vmatpush1.msra.mxu0 0.0
    %5958 = vmatprep.subr.mxu0 0.0
    %5959 = vmatpush1.msra.mxu0 0.0
    %5960 = vmatprep.subr.mxu0 0.0
    %5961 = vmatpush1.msra.mxu0 0.0
    %5962 = vmatprep.subr.mxu0 0.0
    %5963 = vmatpush1.msra.mxu0 0.0
    %5964 = vmatprep.subr.mxu0 0.0
    %5965 = vmatpush1.msra.mxu0 0.0
    %5966 = vmatprep.subr.mxu0 0.0
    %5967 = vmatpush1.msra.mxu0 0.0
    %5968 = vmatprep.subr.mxu0 0.0
    %5969 = vmatpush1.msra.mxu0 0.0
    %5970 = vmatprep.subr.mxu0 0.0
    %5971 = vmatpush1.msra.mxu0 0.0
    %5972 = vmatprep.subr.mxu0 0.0
    %5973 = vmatpush1.msra.mxu0 0.0
    %5974 = vmatprep.subr.mxu0 0.0
    %5975 = vmatpush1.msra.mxu0 0.0
    %5976 = vmatprep.mubr.f32.mxu0 0.0
    %5977 = vmatmul.mubr.f32.gmra.mrb[0].mxu0 %v5808
    %v5978 = vpop.f32.mrb[0].mxu0
    %v5979 = vadd.f32 0.0, %v5978
    %v5980 = vpop.f32.mrb[0].mxu0
    %5981 = vdwg.mxu0
    %v5982 = vmax.f32 %v5892, %v5979
    %v5983 = vld [vmem:[#allocation29] sm:$0xf]
    %vm5984 = vcmask 31744
    %v5986 = vsel %vm5984, %v5983, 0
    %vm5988 = vcmask 1043456
    %v5990 = vsel %vm5988, %v5982, 0
    %5992 = vmatprep.subr.mxu0 0.0
    %5993 = vmatpush1.msra.mxu0 %v5990
    %5994 = vmatprep.subr.mxu0 0.0
    %5995 = vmatpush1.msra.mxu0 0.0
    %5996 = vmatprep.subr.mxu0 0.0
    %5997 = vmatpush1.msra.mxu0 0.0
    %5998 = vmatprep.subr.mxu0 0.0
    %5999 = vmatpush1.msra.mxu0 0.0
    %6000 = vmatprep.subr.mxu0 0.0
    %6001 = vmatpush1.msra.mxu0 0.0
    %6002 = vmatprep.subr.mxu0 0.0
    %6003 = vmatpush1.msra.mxu0 0.0
    %6004 = vmatprep.subr.mxu0 0.0
    %6005 = vmatpush1.msra.mxu0 0.0
    %6006 = vmatprep.subr.mxu0 0.0
    %6007 = vmatpush1.msra.mxu0 0.0
    %6008 = vmatprep.subr.mxu0 0.0
    %6009 = vmatpush1.msra.mxu0 0.0
    %6010 = vmatprep.subr.mxu0 0.0
    %6011 = vmatpush1.msra.mxu0 0.0
    %6012 = vmatprep.subr.mxu0 0.0
    %6013 = vmatpush1.msra.mxu0 0.0
    %6014 = vmatprep.subr.mxu0 0.0
    %6015 = vmatpush1.msra.mxu0 0.0
    %6016 = vmatprep.subr.mxu0 0.0
    %6017 = vmatpush1.msra.mxu0 0.0
    %6018 = vmatprep.subr.mxu0 0.0
    %6019 = vmatpush1.msra.mxu0 0.0
    %6020 = vmatprep.subr.mxu0 0.0
    %6021 = vmatpush1.msra.mxu0 0.0
    %6022 = vmatprep.subr.mxu0 0.0
    %6023 = vmatpush1.msra.mxu0 0.0
    %6024 = vmatprep.subr.mxu0 0.0
    %6025 = vmatpush1.msra.mxu0 0.0
    %6026 = vmatprep.subr.mxu0 0.0
    %6027 = vmatpush1.msra.mxu0 0.0
    %6028 = vmatprep.subr.mxu0 0.0
    %6029 = vmatpush1.msra.mxu0 0.0
    %6030 = vmatprep.subr.mxu0 0.0
    %6031 = vmatpush1.msra.mxu0 0.0
    %6032 = vmatprep.subr.mxu0 0.0
    %6033 = vmatpush1.msra.mxu0 0.0
    %6034 = vmatprep.subr.mxu0 0.0
    %6035 = vmatpush1.msra.mxu0 0.0
    %6036 = vmatprep.subr.mxu0 0.0
    %6037 = vmatpush1.msra.mxu0 0.0
    %6038 = vmatprep.subr.mxu0 0.0
    %6039 = vmatpush1.msra.mxu0 0.0
    %6040 = vmatprep.subr.mxu0 0.0
    %6041 = vmatpush1.msra.mxu0 0.0
    %6042 = vmatprep.subr.mxu0 0.0
    %6043 = vmatpush1.msra.mxu0 0.0
    %6044 = vmatprep.subr.mxu0 0.0
    %6045 = vmatpush1.msra.mxu0 0.0
    %6046 = vmatprep.subr.mxu0 0.0
    %6047 = vmatpush1.msra.mxu0 0.0
    %6048 = vmatprep.subr.mxu0 0.0
    %6049 = vmatpush1.msra.mxu0 0.0
    %6050 = vmatprep.subr.mxu0 0.0
    %6051 = vmatpush1.msra.mxu0 0.0
    %6052 = vmatprep.subr.mxu0 0.0
    %6053 = vmatpush1.msra.mxu0 0.0
    %6054 = vmatprep.subr.mxu0 0.0
    %6055 = vmatpush1.msra.mxu0 0.0
    %6056 = vmatprep.mubr.f32.mxu0 0.0
    %6057 = vmatmul.mubr.f32.gmra.mrb[0].mxu0 %v5986
    %v6058 = vpop.f32.mrb[0].mxu0
    %v6059 = vadd.f32 0.0, %v6058
    %v6060 = vpop.f32.mrb[0].mxu0
    %6061 = vdwg.mxu0
    %s6062 = scalar_lea.vmem [#allocation29], 4
    %v6063 = vld [vmem:[%s6062] sm:$0xf]
    %v6065 = vsel %vm5984, %v6063, 0
    %6067 = vmatprep.subr.mxu0 0.0
    %6068 = vmatpush1.msra.mxu0 %v5990
    %6069 = vmatprep.subr.mxu0 0.0
    %6070 = vmatpush1.msra.mxu0 0.0
    %6071 = vmatprep.subr.mxu0 0.0
    %6072 = vmatpush1.msra.mxu0 0.0
    %6073 = vmatprep.subr.mxu0 0.0
    %6074 = vmatpush1.msra.mxu0 0.0
    %6075 = vmatprep.subr.mxu0 0.0
    %6076 = vmatpush1.msra.mxu0 0.0
    %6077 = vmatprep.subr.mxu0 0.0
    %6078 = vmatpush1.msra.mxu0 0.0
    %6079 = vmatprep.subr.mxu0 0.0
    %6080 = vmatpush1.msra.mxu0 0.0
    %6081 = vmatprep.subr.mxu0 0.0
    %6082 = vmatpush1.msra.mxu0 0.0
    %6083 = vmatprep.subr.mxu0 0.0
    %6084 = vmatpush1.msra.mxu0 0.0
    %6085 = vmatprep.subr.mxu0 0.0
    %6086 = vmatpush1.msra.mxu0 0.0
    %6087 = vmatprep.subr.mxu0 0.0
    %6088 = vmatpush1.msra.mxu0 0.0
    %6089 = vmatprep.subr.mxu0 0.0
    %6090 = vmatpush1.msra.mxu0 0.0
    %6091 = vmatprep.subr.mxu0 0.0
    %6092 = vmatpush1.msra.mxu0 0.0
    %6093 = vmatprep.subr.mxu0 0.0
    %6094 = vmatpush1.msra.mxu0 0.0
    %6095 = vmatprep.subr.mxu0 0.0
    %6096 = vmatpush1.msra.mxu0 0.0
    %6097 = vmatprep.subr.mxu0 0.0
    %6098 = vmatpush1.msra.mxu0 0.0
    %6099 = vmatprep.subr.mxu0 0.0
    %6100 = vmatpush1.msra.mxu0 0.0
    %6101 = vmatprep.subr.mxu0 0.0
    %6102 = vmatpush1.msra.mxu0 0.0
    %6103 = vmatprep.subr.mxu0 0.0
    %6104 = vmatpush1.msra.mxu0 0.0
    %6105 = vmatprep.subr.mxu0 0.0
    %6106 = vmatpush1.msra.mxu0 0.0
    %6107 = vmatprep.subr.mxu0 0.0
    %6108 = vmatpush1.msra.mxu0 0.0
    %6109 = vmatprep.subr.mxu0 0.0
    %6110 = vmatpush1.msra.mxu0 0.0
    %6111 = vmatprep.subr.mxu0 0.0
    %6112 = vmatpush1.msra.mxu0 0.0
    %6113 = vmatprep.subr.mxu0 0.0
    %6114 = vmatpush1.msra.mxu0 0.0
    %6115 = vmatprep.subr.mxu0 0.0
    %6116 = vmatpush1.msra.mxu0 0.0
    %6117 = vmatprep.subr.mxu0 0.0
    %6118 = vmatpush1.msra.mxu0 0.0
    %6119 = vmatprep.subr.mxu0 0.0
    %6120 = vmatpush1.msra.mxu0 0.0
    %6121 = vmatprep.subr.mxu0 0.0
    %6122 = vmatpush1.msra.mxu0 0.0
    %6123 = vmatprep.subr.mxu0 0.0
    %6124 = vmatpush1.msra.mxu0 0.0
    %6125 = vmatprep.subr.mxu0 0.0
    %6126 = vmatpush1.msra.mxu0 0.0
    %6127 = vmatprep.subr.mxu0 0.0
    %6128 = vmatpush1.msra.mxu0 0.0
    %6129 = vmatprep.subr.mxu0 0.0
    %6130 = vmatpush1.msra.mxu0 0.0
    %6131 = vmatprep.mubr.f32.mxu0 0.0
    %6132 = vmatmul.mubr.f32.gmra.mrb[0].mxu0 %v6065
    %v6133 = vpop.f32.mrb[0].mxu0
    %v6134 = vadd.f32 0.0, %v6133
    %v6135 = vpop.f32.mrb[0].mxu0
    %6136 = vdwg.mxu0
    %v6137 = vld [vmem:[%s57] sm:$0xff]
    %v6138 = vld [vmem:[%s57 + $0x8] sm:$0xff]
    %v6139 = vld [vmem:[%s57 + $0x10] sm:$0xff]
    %v6140 = vld [vmem:[%s57 + $0x18] sm:$0xff]
    %v6141 = vld [vmem:[%s57 + $0x20] sm:$0xff]
    %v6142 = vld [vmem:[%s57 + $0x28] sm:$0xff]
    %v6143 = vld [vmem:[%s57 + $0x30] sm:$0xff]
    %v6144 = vld [vmem:[%s57 + $0x38] sm:$0xff]
    %s6145 = scalar_lea.vmem %s57, 64
    %v6146 = vld [vmem:[%s6145] sm:$0xff]
    %v6147 = vld [vmem:[%s6145 + $0x8] sm:$0xff]
    %v6148 = vld [vmem:[%s6145 + $0x10] sm:$0xff]
    %v6149 = vld [vmem:[%s6145 + $0x18] sm:$0xff]
    %v6150 = vld [vmem:[%s6145 + $0x20] sm:$0xff]
    %v6151 = vld [vmem:[%s6145 + $0x28] sm:$0xff]
    %v6152 = vld [vmem:[%s6145 + $0x30] sm:$0xff]
    %v6153 = vld [vmem:[%s6145 + $0x38] sm:$0xff]
    %v6154 = vsel %vm469, %v5982, 0
    %6156 = vmatprep.subr.mxu0 0.0
    %6157 = vmatpush1.msra.mxu0 %v6146
    %6158 = vmatprep.subr.mxu0 0.0
    %6159 = vmatpush1.msra.mxu0 %v6147
    %6160 = vmatprep.subr.mxu0 0.0
    %6161 = vmatpush1.msra.mxu0 %v6148
    %6162 = vmatprep.subr.mxu0 0.0
    %6163 = vmatpush1.msra.mxu0 %v6149
    %6164 = vmatprep.subr.mxu0 0.0
    %6165 = vmatpush1.msra.mxu0 %v6150
    %6166 = vmatprep.subr.mxu0 0.0
    %6167 = vmatpush1.msra.mxu0 %v6151
    %6168 = vmatprep.subr.mxu0 0.0
    %6169 = vmatpush1.msra.mxu0 %v6152
    %6170 = vmatprep.subr.mxu0 0.0
    %6171 = vmatpush1.msra.mxu0 %v6153
    %6172 = vmatprep.subr.mxu0 0.0
    %6173 = vmatpush1.msra.mxu0 0.0
    %6174 = vmatprep.subr.mxu0 0.0
    %6175 = vmatpush1.msra.mxu0 0.0
    %6176 = vmatprep.subr.mxu0 0.0
    %6177 = vmatpush1.msra.mxu0 0.0
    %6178 = vmatprep.subr.mxu0 0.0
    %6179 = vmatpush1.msra.mxu0 0.0
    %6180 = vmatprep.subr.mxu0 0.0
    %6181 = vmatpush1.msra.mxu0 0.0
    %6182 = vmatprep.subr.mxu0 0.0
    %6183 = vmatpush1.msra.mxu0 0.0
    %6184 = vmatprep.subr.mxu0 0.0
    %6185 = vmatpush1.msra.mxu0 0.0
    %6186 = vmatprep.subr.mxu0 0.0
    %6187 = vmatpush1.msra.mxu0 0.0
    %6188 = vmatprep.subr.mxu0 0.0
    %6189 = vmatpush1.msra.mxu0 0.0
    %6190 = vmatprep.subr.mxu0 0.0
    %6191 = vmatpush1.msra.mxu0 0.0
    %6192 = vmatprep.subr.mxu0 0.0
    %6193 = vmatpush1.msra.mxu0 0.0
    %6194 = vmatprep.subr.mxu0 0.0
    %6195 = vmatpush1.msra.mxu0 0.0
    %6196 = vmatprep.subr.mxu0 0.0
    %6197 = vmatpush1.msra.mxu0 0.0
    %6198 = vmatprep.subr.mxu0 0.0
    %6199 = vmatpush1.msra.mxu0 0.0
    %6200 = vmatprep.subr.mxu0 0.0
    %6201 = vmatpush1.msra.mxu0 0.0
    %6202 = vmatprep.subr.mxu0 0.0
    %6203 = vmatpush1.msra.mxu0 0.0
    %6204 = vmatprep.subr.mxu0 0.0
    %6205 = vmatpush1.msra.mxu0 0.0
    %6206 = vmatprep.subr.mxu0 0.0
    %6207 = vmatpush1.msra.mxu0 0.0
    %6208 = vmatprep.subr.mxu0 0.0
    %6209 = vmatpush1.msra.mxu0 0.0
    %6210 = vmatprep.subr.mxu0 0.0
    %6211 = vmatpush1.msra.mxu0 0.0
    %6212 = vmatprep.subr.mxu0 0.0
    %6213 = vmatpush1.msra.mxu0 0.0
    %6214 = vmatprep.subr.mxu0 0.0
    %6215 = vmatpush1.msra.mxu0 0.0
    %6216 = vmatprep.subr.mxu0 0.0
    %6217 = vmatpush1.msra.mxu0 0.0
    %6218 = vmatprep.subr.mxu0 0.0
    %6219 = vmatpush1.msra.mxu0 0.0
    %6220 = vmatprep.mubr.f32.mxu0 0.0
    %6221 = vmatmul.mubr.f32.gmra.mrb[0].mxu0 %v6154
    %v6222 = vpop.f32.mrb[0].mxu0
    %v6223 = vadd.f32 0.0, %v6222
    %v6224 = vpop.f32.mrb[0].mxu0
    %6225 = vdwg.mxu0
    %v6227 = vsel %vm469, %v6059, 0
    %6229 = vmatprep.subr.mxu0 0.0
    %6230 = vmatpush1.msra.mxu0 %v6137
    %6231 = vmatprep.subr.mxu0 0.0
    %6232 = vmatpush1.msra.mxu0 %v6138
    %6233 = vmatprep.subr.mxu0 0.0
    %6234 = vmatpush1.msra.mxu0 %v6139
    %6235 = vmatprep.subr.mxu0 0.0
    %6236 = vmatpush1.msra.mxu0 %v6140
    %6237 = vmatprep.subr.mxu0 0.0
    %6238 = vmatpush1.msra.mxu0 %v6141
    %6239 = vmatprep.subr.mxu0 0.0
    %6240 = vmatpush1.msra.mxu0 %v6142
    %6241 = vmatprep.subr.mxu0 0.0
    %6242 = vmatpush1.msra.mxu0 %v6143
    %6243 = vmatprep.subr.mxu0 0.0
    %6244 = vmatpush1.msra.mxu0 %v6144
    %6245 = vmatprep.subr.mxu0 0.0
    %6246 = vmatpush1.msra.mxu0 0.0
    %6247 = vmatprep.subr.mxu0 0.0
    %6248 = vmatpush1.msra.mxu0 0.0
    %6249 = vmatprep.subr.mxu0 0.0
    %6250 = vmatpush1.msra.mxu0 0.0
    %6251 = vmatprep.subr.mxu0 0.0
    %6252 = vmatpush1.msra.mxu0 0.0
    %6253 = vmatprep.subr.mxu0 0.0
    %6254 = vmatpush1.msra.mxu0 0.0
    %6255 = vmatprep.subr.mxu0 0.0
    %6256 = vmatpush1.msra.mxu0 0.0
    %6257 = vmatprep.subr.mxu0 0.0
    %6258 = vmatpush1.msra.mxu0 0.0
    %6259 = vmatprep.subr.mxu0 0.0
    %6260 = vmatpush1.msra.mxu0 0.0
    %6261 = vmatprep.subr.mxu0 0.0
    %6262 = vmatpush1.msra.mxu0 0.0
    %6263 = vmatprep.subr.mxu0 0.0
    %6264 = vmatpush1.msra.mxu0 0.0
    %6265 = vmatprep.subr.mxu0 0.0
    %6266 = vmatpush1.msra.mxu0 0.0
    %6267 = vmatprep.subr.mxu0 0.0
    %6268 = vmatpush1.msra.mxu0 0.0
    %6269 = vmatprep.subr.mxu0 0.0
    %6270 = vmatpush1.msra.mxu0 0.0
    %6271 = vmatprep.subr.mxu0 0.0
    %6272 = vmatpush1.msra.mxu0 0.0
    %6273 = vmatprep.subr.mxu0 0.0
    %6274 = vmatpush1.msra.mxu0 0.0
    %6275 = vmatprep.subr.mxu0 0.0
    %6276 = vmatpush1.msra.mxu0 0.0
    %6277 = vmatprep.subr.mxu0 0.0
    %6278 = vmatpush1.msra.mxu0 0.0
    %6279 = vmatprep.subr.mxu0 0.0
    %6280 = vmatpush1.msra.mxu0 0.0
    %6281 = vmatprep.subr.mxu0 0.0
    %6282 = vmatpush1.msra.mxu0 0.0
    %6283 = vmatprep.subr.mxu0 0.0
    %6284 = vmatpush1.msra.mxu0 0.0
    %6285 = vmatprep.subr.mxu0 0.0
    %6286 = vmatpush1.msra.mxu0 0.0
    %6287 = vmatprep.subr.mxu0 0.0
    %6288 = vmatpush1.msra.mxu0 0.0
    %6289 = vmatprep.subr.mxu0 0.0
    %6290 = vmatpush1.msra.mxu0 0.0
    %6291 = vmatprep.subr.mxu0 0.0
    %6292 = vmatpush1.msra.mxu0 0.0
    %6293 = vmatprep.mubr.f32.mxu0 0.0
    %6294 = vmatmul.mubr.f32.gmra.mrb[0].mxu0 %v6227
    %v6295 = vpop.f32.mrb[0].mxu0
    %v6296 = vadd.f32 %v6223, %v6295
    %v6297 = vpop.f32.mrb[0].mxu0
    %6298 = vdwg.mxu0
    %s6299 = scalar_lea.vmem %s57, 128
    %v6300 = vld [vmem:[%s6299] sm:$0xff]
    %v6301 = vld [vmem:[%s6299 + $0x8] sm:$0xff]
    %v6302 = vld [vmem:[%s6299 + $0x10] sm:$0xff]
    %v6303 = vld [vmem:[%s6299 + $0x18] sm:$0xff]
    %v6304 = vld [vmem:[%s6299 + $0x20] sm:$0xff]
    %v6305 = vld [vmem:[%s6299 + $0x28] sm:$0xff]
    %v6306 = vld [vmem:[%s6299 + $0x30] sm:$0xff]
    %v6307 = vld [vmem:[%s6299 + $0x38] sm:$0xff]
    %v6309 = vsel %vm469, %v6134, 0
    %6311 = vmatprep.subr.mxu0 0.0
    %6312 = vmatpush1.msra.mxu0 %v6300
    %6313 = vmatprep.subr.mxu0 0.0
    %6314 = vmatpush1.msra.mxu0 %v6301
    %6315 = vmatprep.subr.mxu0 0.0
    %6316 = vmatpush1.msra.mxu0 %v6302
    %6317 = vmatprep.subr.mxu0 0.0
    %6318 = vmatpush1.msra.mxu0 %v6303
    %6319 = vmatprep.subr.mxu0 0.0
    %6320 = vmatpush1.msra.mxu0 %v6304
    %6321 = vmatprep.subr.mxu0 0.0
    %6322 = vmatpush1.msra.mxu0 %v6305
    %6323 = vmatprep.subr.mxu0 0.0
    %6324 = vmatpush1.msra.mxu0 %v6306
    %6325 = vmatprep.subr.mxu0 0.0
    %6326 = vmatpush1.msra.mxu0 %v6307
    %6327 = vmatprep.subr.mxu0 0.0
    %6328 = vmatpush1.msra.mxu0 0.0
    %6329 = vmatprep.subr.mxu0 0.0
    %6330 = vmatpush1.msra.mxu0 0.0
    %6331 = vmatprep.subr.mxu0 0.0
    %6332 = vmatpush1.msra.mxu0 0.0
    %6333 = vmatprep.subr.mxu0 0.0
    %6334 = vmatpush1.msra.mxu0 0.0
    %6335 = vmatprep.subr.mxu0 0.0
    %6336 = vmatpush1.msra.mxu0 0.0
    %6337 = vmatprep.subr.mxu0 0.0
    %6338 = vmatpush1.msra.mxu0 0.0
    %6339 = vmatprep.subr.mxu0 0.0
    %6340 = vmatpush1.msra.mxu0 0.0
    %6341 = vmatprep.subr.mxu0 0.0
    %6342 = vmatpush1.msra.mxu0 0.0
    %6343 = vmatprep.subr.mxu0 0.0
    %6344 = vmatpush1.msra.mxu0 0.0
    %6345 = vmatprep.subr.mxu0 0.0
    %6346 = vmatpush1.msra.mxu0 0.0
    %6347 = vmatprep.subr.mxu0 0.0
    %6348 = vmatpush1.msra.mxu0 0.0
    %6349 = vmatprep.subr.mxu0 0.0
    %6350 = vmatpush1.msra.mxu0 0.0
    %6351 = vmatprep.subr.mxu0 0.0
    %6352 = vmatpush1.msra.mxu0 0.0
    %6353 = vmatprep.subr.mxu0 0.0
    %6354 = vmatpush1.msra.mxu0 0.0
    %6355 = vmatprep.subr.mxu0 0.0
    %6356 = vmatpush1.msra.mxu0 0.0
    %6357 = vmatprep.subr.mxu0 0.0
    %6358 = vmatpush1.msra.mxu0 0.0
    %6359 = vmatprep.subr.mxu0 0.0
    %6360 = vmatpush1.msra.mxu0 0.0
    %6361 = vmatprep.subr.mxu0 0.0
    %6362 = vmatpush1.msra.mxu0 0.0
    %6363 = vmatprep.subr.mxu0 0.0
    %6364 = vmatpush1.msra.mxu0 0.0
    %6365 = vmatprep.subr.mxu0 0.0
    %6366 = vmatpush1.msra.mxu0 0.0
    %6367 = vmatprep.subr.mxu0 0.0
    %6368 = vmatpush1.msra.mxu0 0.0
    %6369 = vmatprep.subr.mxu0 0.0
    %6370 = vmatpush1.msra.mxu0 0.0
    %6371 = vmatprep.subr.mxu0 0.0
    %6372 = vmatpush1.msra.mxu0 0.0
    %6373 = vmatprep.subr.mxu0 0.0
    %6374 = vmatpush1.msra.mxu0 0.0
    %6375 = vmatprep.mubr.f32.mxu0 0.0
    %6376 = vmatmul.mubr.f32.gmra.mrb[0].mxu0 %v6309
    %v6377 = vpop.f32.mrb[0].mxu0
    %v6378 = vadd.f32 0.0, %v6377
    %v6379 = vpop.f32.mrb[0].mxu0
    %6380 = vdwg.mxu0
    %v6381 = vadd.f32 %v6296, %v6378
    %vm6382 = vcmask 519168
    %v6383 = vsel %vm6382, %v6381, 0.0
    %v6384 = vrot.slane %v6383, 4
    %v6385 = vadd.f32 %v6383, %v6384
    %v6386 = vrot.slane %v6385, 2
    %v6387 = vadd.f32 %v6385, %v6386
    %v6388 = vrot.slane %v6387, 1
    %v6389 = vadd.f32 %v6387, %v6388
    %v6390 = vmul.f32 %v6381, %v6381
    %v6391 = vsel %vm6382, %v6390, 0.0
    %v6392 = vrot.slane %v6391, 4
    %v6393 = vadd.f32 %v6391, %v6392
    %v6394 = vrot.slane %v6393, 2
    %v6395 = vadd.f32 %v6393, %v6394
    %v6396 = vrot.slane %v6395, 1
    %v6397 = vadd.f32 %v6395, %v6396
    %v6398 = vld [vmem:[#allocation31] sm:$0xff]
    %v6399 = vld [vmem:[#allocation31 + $0x8] sm:$0xff]
    %v6400 = vld [vmem:[#allocation31 + $0x10] sm:$0xff]
    %v6401 = vld [vmem:[#allocation31 + $0x18] sm:$0xff]
    %v6402 = vld [vmem:[#allocation31 + $0x20] sm:$0xff]
    %v6403 = vld [vmem:[#allocation31 + $0x28] sm:$0xff]
    %v6404 = vld [vmem:[#allocation31 + $0x30] sm:$0xff]
    %v6405 = vld [vmem:[#allocation31 + $0x38] sm:$0xff]
    %v6407 = vsel %vm469, %v6389, 0
    %6409 = vmatprep.subr.mxu0 0.0
    %6410 = vmatpush1.msra.mxu0 %v6398
    %6411 = vmatprep.subr.mxu0 0.0
    %6412 = vmatpush1.msra.mxu0 %v6399
    %6413 = vmatprep.subr.mxu0 0.0
    %6414 = vmatpush1.msra.mxu0 %v6400
    %6415 = vmatprep.subr.mxu0 0.0
    %6416 = vmatpush1.msra.mxu0 %v6401
    %6417 = vmatprep.subr.mxu0 0.0
    %6418 = vmatpush1.msra.mxu0 %v6402
    %6419 = vmatprep.subr.mxu0 0.0
    %6420 = vmatpush1.msra.mxu0 %v6403
    %6421 = vmatprep.subr.mxu0 0.0
    %6422 = vmatpush1.msra.mxu0 %v6404
    %6423 = vmatprep.subr.mxu0 0.0
    %6424 = vmatpush1.msra.mxu0 %v6405
    %6425 = vmatprep.subr.mxu0 0.0
    %6426 = vmatpush1.msra.mxu0 0.0
    %6427 = vmatprep.subr.mxu0 0.0
    %6428 = vmatpush1.msra.mxu0 0.0
    %6429 = vmatprep.subr.mxu0 0.0
    %6430 = vmatpush1.msra.mxu0 0.0
    %6431 = vmatprep.subr.mxu0 0.0
    %6432 = vmatpush1.msra.mxu0 0.0
    %6433 = vmatprep.subr.mxu0 0.0
    %6434 = vmatpush1.msra.mxu0 0.0
    %6435 = vmatprep.subr.mxu0 0.0
    %6436 = vmatpush1.msra.mxu0 0.0
    %6437 = vmatprep.subr.mxu0 0.0
    %6438 = vmatpush1.msra.mxu0 0.0
    %6439 = vmatprep.subr.mxu0 0.0
    %6440 = vmatpush1.msra.mxu0 0.0
    %6441 = vmatprep.subr.mxu0 0.0
    %6442 = vmatpush1.msra.mxu0 0.0
    %6443 = vmatprep.subr.mxu0 0.0
    %6444 = vmatpush1.msra.mxu0 0.0
    %6445 = vmatprep.subr.mxu0 0.0
    %6446 = vmatpush1.msra.mxu0 0.0
    %6447 = vmatprep.subr.mxu0 0.0
    %6448 = vmatpush1.msra.mxu0 0.0
    %6449 = vmatprep.subr.mxu0 0.0
    %6450 = vmatpush1.msra.mxu0 0.0
    %6451 = vmatprep.subr.mxu0 0.0
    %6452 = vmatpush1.msra.mxu0 0.0
    %6453 = vmatprep.subr.mxu0 0.0
    %6454 = vmatpush1.msra.mxu0 0.0
    %6455 = vmatprep.subr.mxu0 0.0
    %6456 = vmatpush1.msra.mxu0 0.0
    %6457 = vmatprep.subr.mxu0 0.0
    %6458 = vmatpush1.msra.mxu0 0.0
    %6459 = vmatprep.subr.mxu0 0.0
    %6460 = vmatpush1.msra.mxu0 0.0
    %6461 = vmatprep.subr.mxu0 0.0
    %6462 = vmatpush1.msra.mxu0 0.0
    %6463 = vmatprep.subr.mxu0 0.0
    %6464 = vmatpush1.msra.mxu0 0.0
    %6465 = vmatprep.subr.mxu0 0.0
    %6466 = vmatpush1.msra.mxu0 0.0
    %6467 = vmatprep.subr.mxu0 0.0
    %6468 = vmatpush1.msra.mxu0 0.0
    %6469 = vmatprep.subr.mxu0 0.0
    %6470 = vmatpush1.msra.mxu0 0.0
    %6471 = vmatprep.subr.mxu0 0.0
    %6472 = vmatpush1.msra.mxu0 0.0
    %6473 = vmatprep.mubr.f32.mxu0 0.0
    %6474 = vmatmul.mubr.f32.gmra.mrb[0].mxu0 %v6407
    %v6475 = vpop.f32.mrb[0].mxu0
    %v6476 = vadd.f32 0.0, %v6475
    %v6477 = vpop.f32.mrb[0].mxu0
    %6478 = vdwg.mxu0
    %v6480 = vsel %vm469, %v6397, 0
    %6482 = vmatprep.subr.mxu0 0.0
    %6483 = vmatpush1.msra.mxu0 %v6398
    %6484 = vmatprep.subr.mxu0 0.0
    %6485 = vmatpush1.msra.mxu0 %v6399
    %6486 = vmatprep.subr.mxu0 0.0
    %6487 = vmatpush1.msra.mxu0 %v6400
    %6488 = vmatprep.subr.mxu0 0.0
    %6489 = vmatpush1.msra.mxu0 %v6401
    %6490 = vmatprep.subr.mxu0 0.0
    %6491 = vmatpush1.msra.mxu0 %v6402
    %6492 = vmatprep.subr.mxu0 0.0
    %6493 = vmatpush1.msra.mxu0 %v6403
    %6494 = vmatprep.subr.mxu0 0.0
    %6495 = vmatpush1.msra.mxu0 %v6404
    %6496 = vmatprep.subr.mxu0 0.0
    %6497 = vmatpush1.msra.mxu0 %v6405
    %6498 = vmatprep.subr.mxu0 0.0
    %6499 = vmatpush1.msra.mxu0 0.0
    %6500 = vmatprep.subr.mxu0 0.0
    %6501 = vmatpush1.msra.mxu0 0.0
    %6502 = vmatprep.subr.mxu0 0.0
    %6503 = vmatpush1.msra.mxu0 0.0
    %6504 = vmatprep.subr.mxu0 0.0
    %6505 = vmatpush1.msra.mxu0 0.0
    %6506 = vmatprep.subr.mxu0 0.0
    %6507 = vmatpush1.msra.mxu0 0.0
    %6508 = vmatprep.subr.mxu0 0.0
    %6509 = vmatpush1.msra.mxu0 0.0
    %6510 = vmatprep.subr.mxu0 0.0
    %6511 = vmatpush1.msra.mxu0 0.0
    %6512 = vmatprep.subr.mxu0 0.0
    %6513 = vmatpush1.msra.mxu0 0.0
    %6514 = vmatprep.subr.mxu0 0.0
    %6515 = vmatpush1.msra.mxu0 0.0
    %6516 = vmatprep.subr.mxu0 0.0
    %6517 = vmatpush1.msra.mxu0 0.0
    %6518 = vmatprep.subr.mxu0 0.0
    %6519 = vmatpush1.msra.mxu0 0.0
    %6520 = vmatprep.subr.mxu0 0.0
    %6521 = vmatpush1.msra.mxu0 0.0
    %6522 = vmatprep.subr.mxu0 0.0
    %6523 = vmatpush1.msra.mxu0 0.0
    %6524 = vmatprep.subr.mxu0 0.0
    %6525 = vmatpush1.msra.mxu0 0.0
    %6526 = vmatprep.subr.mxu0 0.0
    %6527 = vmatpush1.msra.mxu0 0.0
    %6528 = vmatprep.subr.mxu0 0.0
    %6529 = vmatpush1.msra.mxu0 0.0
    %6530 = vmatprep.subr.mxu0 0.0
    %6531 = vmatpush1.msra.mxu0 0.0
    %6532 = vmatprep.subr.mxu0 0.0
    %6533 = vmatpush1.msra.mxu0 0.0
    %6534 = vmatprep.subr.mxu0 0.0
    %6535 = vmatpush1.msra.mxu0 0.0
    %6536 = vmatprep.subr.mxu0 0.0
    %6537 = vmatpush1.msra.mxu0 0.0
    %6538 = vmatprep.subr.mxu0 0.0
    %6539 = vmatpush1.msra.mxu0 0.0
    %6540 = vmatprep.subr.mxu0 0.0
    %6541 = vmatpush1.msra.mxu0 0.0
    %6542 = vmatprep.subr.mxu0 0.0
    %6543 = vmatpush1.msra.mxu0 0.0
    %6544 = vmatprep.subr.mxu0 0.0
    %6545 = vmatpush1.msra.mxu0 0.0
    %6546 = vmatprep.mubr.f32.mxu0 0.0
    %6547 = vmatmul.mubr.f32.gmra.mrb[0].mxu0 %v6480
    %v6548 = vpop.f32.mrb[0].mxu0
    %v6549 = vadd.f32 0.0, %v6548
    %v6550 = vpop.f32.mrb[0].mxu0
    %6551 = vdwg.mxu0
    %v6552 = vmul.f32 %v6476, %v6476
    %v6553 = vsub.f32 %v6549, %v6552
    %v6554 = vmax.f32 %v6553, 0.0
    %v6555 = vlaneseq
    %v6556 = vshrl.u32 %v6555, 7
    %v6557 = vsub.s32 0, %v6556
    %v6558 = vrot.slane %v6476, %v6557
    %v6559 = vsub.f32 %v6381, %v6558
    %v6560 = vadd.f32 %v6554, 1e-05
    %v6561 = vrsqrt.pop %v6560
    %v6562 = vlaneseq
    %v6563 = vshrl.u32 %v6562, 7
    %v6564 = vsub.s32 0, %v6563
    %v6565 = vrot.slane %v6561, %v6564
    %v6566 = vmul.f32 %v6559, %v6565
    %v6567 = vmax.f32 %v6566, 0.0
    %v6568 = vld [vmem:[#allocation32] sm:$0xf]
    %v6570 = vsel %vm5984, %v6568, 0
    %v6573 = vsel %vm5988, %v6567, 0
    %6575 = vmatprep.subr.mxu0 0.0
    %6576 = vmatpush1.msra.mxu0 %v6573
    %6577 = vmatprep.subr.mxu0 0.0
    %6578 = vmatpush1.msra.mxu0 0.0
    %6579 = vmatprep.subr.mxu0 0.0
    %6580 = vmatpush1.msra.mxu0 0.0
    %6581 = vmatprep.subr.mxu0 0.0
    %6582 = vmatpush1.msra.mxu0 0.0
    %6583 = vmatprep.subr.mxu0 0.0
    %6584 = vmatpush1.msra.mxu0 0.0
    %6585 = vmatprep.subr.mxu0 0.0
    %6586 = vmatpush1.msra.mxu0 0.0
    %6587 = vmatprep.subr.mxu0 0.0
    %6588 = vmatpush1.msra.mxu0 0.0
    %6589 = vmatprep.subr.mxu0 0.0
    %6590 = vmatpush1.msra.mxu0 0.0
    %6591 = vmatprep.subr.mxu0 0.0
    %6592 = vmatpush1.msra.mxu0 0.0
    %6593 = vmatprep.subr.mxu0 0.0
    %6594 = vmatpush1.msra.mxu0 0.0
    %6595 = vmatprep.subr.mxu0 0.0
    %6596 = vmatpush1.msra.mxu0 0.0
    %6597 = vmatprep.subr.mxu0 0.0
    %6598 = vmatpush1.msra.mxu0 0.0
    %6599 = vmatprep.subr.mxu0 0.0
    %6600 = vmatpush1.msra.mxu0 0.0
    %6601 = vmatprep.subr.mxu0 0.0
    %6602 = vmatpush1.msra.mxu0 0.0
    %6603 = vmatprep.subr.mxu0 0.0
    %6604 = vmatpush1.msra.mxu0 0.0
    %6605 = vmatprep.subr.mxu0 0.0
    %6606 = vmatpush1.msra.mxu0 0.0
    %6607 = vmatprep.subr.mxu0 0.0
    %6608 = vmatpush1.msra.mxu0 0.0
    %6609 = vmatprep.subr.mxu0 0.0
    %6610 = vmatpush1.msra.mxu0 0.0
    %6611 = vmatprep.subr.mxu0 0.0
    %6612 = vmatpush1.msra.mxu0 0.0
    %6613 = vmatprep.subr.mxu0 0.0
    %6614 = vmatpush1.msra.mxu0 0.0
    %6615 = vmatprep.subr.mxu0 0.0
    %6616 = vmatpush1.msra.mxu0 0.0
    %6617 = vmatprep.subr.mxu0 0.0
    %6618 = vmatpush1.msra.mxu0 0.0
    %6619 = vmatprep.subr.mxu0 0.0
    %6620 = vmatpush1.msra.mxu0 0.0
    %6621 = vmatprep.subr.mxu0 0.0
    %6622 = vmatpush1.msra.mxu0 0.0
    %6623 = vmatprep.subr.mxu0 0.0
    %6624 = vmatpush1.msra.mxu0 0.0
    %6625 = vmatprep.subr.mxu0 0.0
    %6626 = vmatpush1.msra.mxu0 0.0
    %6627 = vmatprep.subr.mxu0 0.0
    %6628 = vmatpush1.msra.mxu0 0.0
    %6629 = vmatprep.subr.mxu0 0.0
    %6630 = vmatpush1.msra.mxu0 0.0
    %6631 = vmatprep.subr.mxu0 0.0
    %6632 = vmatpush1.msra.mxu0 0.0
    %6633 = vmatprep.subr.mxu0 0.0
    %6634 = vmatpush1.msra.mxu0 0.0
    %6635 = vmatprep.subr.mxu0 0.0
    %6636 = vmatpush1.msra.mxu0 0.0
    %6637 = vmatprep.subr.mxu0 0.0
    %6638 = vmatpush1.msra.mxu0 0.0
    %6639 = vmatprep.mubr.f32.mxu0 0.0
    %6640 = vmatmul.mubr.f32.gmra.mrb[0].mxu0 %v6570
    %v6641 = vpop.f32.mrb[0].mxu0
    %v6642 = vadd.f32 0.0, %v6641
    %v6643 = vpop.f32.mrb[0].mxu0
    %6644 = vdwg.mxu0
    %s6645 = scalar_lea.vmem [#allocation32], 4
    %v6646 = vld [vmem:[%s6645] sm:$0xf]
    %v6648 = vsel %vm5984, %v6646, 0
    %6650 = vmatprep.subr.mxu0 0.0
    %6651 = vmatpush1.msra.mxu0 %v6573
    %6652 = vmatprep.subr.mxu0 0.0
    %6653 = vmatpush1.msra.mxu0 0.0
    %6654 = vmatprep.subr.mxu0 0.0
    %6655 = vmatpush1.msra.mxu0 0.0
    %6656 = vmatprep.subr.mxu0 0.0
    %6657 = vmatpush1.msra.mxu0 0.0
    %6658 = vmatprep.subr.mxu0 0.0
    %6659 = vmatpush1.msra.mxu0 0.0
    %6660 = vmatprep.subr.mxu0 0.0
    %6661 = vmatpush1.msra.mxu0 0.0
    %6662 = vmatprep.subr.mxu0 0.0
    %6663 = vmatpush1.msra.mxu0 0.0
    %6664 = vmatprep.subr.mxu0 0.0
    %6665 = vmatpush1.msra.mxu0 0.0
    %6666 = vmatprep.subr.mxu0 0.0
    %6667 = vmatpush1.msra.mxu0 0.0
    %6668 = vmatprep.subr.mxu0 0.0
    %6669 = vmatpush1.msra.mxu0 0.0
    %6670 = vmatprep.subr.mxu0 0.0
    %6671 = vmatpush1.msra.mxu0 0.0
    %6672 = vmatprep.subr.mxu0 0.0
    %6673 = vmatpush1.msra.mxu0 0.0
    %6674 = vmatprep.subr.mxu0 0.0
    %6675 = vmatpush1.msra.mxu0 0.0
    %6676 = vmatprep.subr.mxu0 0.0
    %6677 = vmatpush1.msra.mxu0 0.0
    %6678 = vmatprep.subr.mxu0 0.0
    %6679 = vmatpush1.msra.mxu0 0.0
    %6680 = vmatprep.subr.mxu0 0.0
    %6681 = vmatpush1.msra.mxu0 0.0
    %6682 = vmatprep.subr.mxu0 0.0
    %6683 = vmatpush1.msra.mxu0 0.0
    %6684 = vmatprep.subr.mxu0 0.0
    %6685 = vmatpush1.msra.mxu0 0.0
    %6686 = vmatprep.subr.mxu0 0.0
    %6687 = vmatpush1.msra.mxu0 0.0
    %6688 = vmatprep.subr.mxu0 0.0
    %6689 = vmatpush1.msra.mxu0 0.0
    %6690 = vmatprep.subr.mxu0 0.0
    %6691 = vmatpush1.msra.mxu0 0.0
    %6692 = vmatprep.subr.mxu0 0.0
    %6693 = vmatpush1.msra.mxu0 0.0
    %6694 = vmatprep.subr.mxu0 0.0
    %6695 = vmatpush1.msra.mxu0 0.0
    %6696 = vmatprep.subr.mxu0 0.0
    %6697 = vmatpush1.msra.mxu0 0.0
    %6698 = vmatprep.subr.mxu0 0.0
    %6699 = vmatpush1.msra.mxu0 0.0
    %6700 = vmatprep.subr.mxu0 0.0
    %6701 = vmatpush1.msra.mxu0 0.0
    %6702 = vmatprep.subr.mxu0 0.0
    %6703 = vmatpush1.msra.mxu0 0.0
    %6704 = vmatprep.subr.mxu0 0.0
    %6705 = vmatpush1.msra.mxu0 0.0
    %6706 = vmatprep.subr.mxu0 0.0
    %6707 = vmatpush1.msra.mxu0 0.0
    %6708 = vmatprep.subr.mxu0 0.0
    %6709 = vmatpush1.msra.mxu0 0.0
    %6710 = vmatprep.subr.mxu0 0.0
    %6711 = vmatpush1.msra.mxu0 0.0
    %6712 = vmatprep.subr.mxu0 0.0
    %6713 = vmatpush1.msra.mxu0 0.0
    %6714 = vmatprep.mubr.f32.mxu0 0.0
    %6715 = vmatmul.mubr.f32.gmra.mrb[0].mxu0 %v6648
    %v6716 = vpop.f32.mrb[0].mxu0
    %v6717 = vadd.f32 0.0, %v6716
    %v6718 = vpop.f32.mrb[0].mxu0
    %6719 = vdwg.mxu0
    %v6720 = vld [vmem:[#allocation34] sm:$0xff]
    %v6721 = vld [vmem:[#allocation34 + $0x8] sm:$0xff]
    %v6722 = vld [vmem:[#allocation34 + $0x10] sm:$0xff]
    %v6723 = vld [vmem:[#allocation34 + $0x18] sm:$0xff]
    %v6724 = vld [vmem:[#allocation34 + $0x20] sm:$0xff]
    %v6725 = vld [vmem:[#allocation34 + $0x28] sm:$0xff]
    %v6726 = vld [vmem:[#allocation34 + $0x30] sm:$0xff]
    %v6727 = vld [vmem:[#allocation34 + $0x38] sm:$0xff]
    %s6728 = scalar_lea.vmem [#allocation34], 64
    %v6729 = vld [vmem:[%s6728] sm:$0xff]
    %v6730 = vld [vmem:[%s6728 + $0x8] sm:$0xff]
    %v6731 = vld [vmem:[%s6728 + $0x10] sm:$0xff]
    %v6732 = vld [vmem:[%s6728 + $0x18] sm:$0xff]
    %v6733 = vld [vmem:[%s6728 + $0x20] sm:$0xff]
    %v6734 = vld [vmem:[%s6728 + $0x28] sm:$0xff]
    %v6735 = vld [vmem:[%s6728 + $0x30] sm:$0xff]
    %v6736 = vld [vmem:[%s6728 + $0x38] sm:$0xff]
    %v6737 = vsel %vm469, %v6567, 0
    %6739 = vmatprep.subr.mxu0 0.0
    %6740 = vmatpush1.msra.mxu0 %v6729
    %6741 = vmatprep.subr.mxu0 0.0
    %6742 = vmatpush1.msra.mxu0 %v6730
    %6743 = vmatprep.subr.mxu0 0.0
    %6744 = vmatpush1.msra.mxu0 %v6731
    %6745 = vmatprep.subr.mxu0 0.0
    %6746 = vmatpush1.msra.mxu0 %v6732
    %6747 = vmatprep.subr.mxu0 0.0
    %6748 = vmatpush1.msra.mxu0 %v6733
    %6749 = vmatprep.subr.mxu0 0.0
    %6750 = vmatpush1.msra.mxu0 %v6734
    %6751 = vmatprep.subr.mxu0 0.0
    %6752 = vmatpush1.msra.mxu0 %v6735
    %6753 = vmatprep.subr.mxu0 0.0
    %6754 = vmatpush1.msra.mxu0 %v6736
    %6755 = vmatprep.subr.mxu0 0.0
    %6756 = vmatpush1.msra.mxu0 0.0
    %6757 = vmatprep.subr.mxu0 0.0
    %6758 = vmatpush1.msra.mxu0 0.0
    %6759 = vmatprep.subr.mxu0 0.0
    %6760 = vmatpush1.msra.mxu0 0.0
    %6761 = vmatprep.subr.mxu0 0.0
    %6762 = vmatpush1.msra.mxu0 0.0
    %6763 = vmatprep.subr.mxu0 0.0
    %6764 = vmatpush1.msra.mxu0 0.0
    %6765 = vmatprep.subr.mxu0 0.0
    %6766 = vmatpush1.msra.mxu0 0.0
    %6767 = vmatprep.subr.mxu0 0.0
    %6768 = vmatpush1.msra.mxu0 0.0
    %6769 = vmatprep.subr.mxu0 0.0
    %6770 = vmatpush1.msra.mxu0 0.0
    %6771 = vmatprep.subr.mxu0 0.0
    %6772 = vmatpush1.msra.mxu0 0.0
    %6773 = vmatprep.subr.mxu0 0.0
    %6774 = vmatpush1.msra.mxu0 0.0
    %6775 = vmatprep.subr.mxu0 0.0
    %6776 = vmatpush1.msra.mxu0 0.0
    %6777 = vmatprep.subr.mxu0 0.0
    %6778 = vmatpush1.msra.mxu0 0.0
    %6779 = vmatprep.subr.mxu0 0.0
    %6780 = vmatpush1.msra.mxu0 0.0
    %6781 = vmatprep.subr.mxu0 0.0
    %6782 = vmatpush1.msra.mxu0 0.0
    %6783 = vmatprep.subr.mxu0 0.0
    %6784 = vmatpush1.msra.mxu0 0.0
    %6785 = vmatprep.subr.mxu0 0.0
    %6786 = vmatpush1.msra.mxu0 0.0
    %6787 = vmatprep.subr.mxu0 0.0
    %6788 = vmatpush1.msra.mxu0 0.0
    %6789 = vmatprep.subr.mxu0 0.0
    %6790 = vmatpush1.msra.mxu0 0.0
    %6791 = vmatprep.subr.mxu0 0.0
    %6792 = vmatpush1.msra.mxu0 0.0
    %6793 = vmatprep.subr.mxu0 0.0
    %6794 = vmatpush1.msra.mxu0 0.0
    %6795 = vmatprep.subr.mxu0 0.0
    %6796 = vmatpush1.msra.mxu0 0.0
    %6797 = vmatprep.subr.mxu0 0.0
    %6798 = vmatpush1.msra.mxu0 0.0
    %6799 = vmatprep.subr.mxu0 0.0
    %6800 = vmatpush1.msra.mxu0 0.0
    %6801 = vmatprep.subr.mxu0 0.0
    %6802 = vmatpush1.msra.mxu0 0.0
    %6803 = vmatprep.mubr.f32.mxu0 0.0
    %6804 = vmatmul.mubr.f32.gmra.mrb[0].mxu0 %v6737
    %v6805 = vpop.f32.mrb[0].mxu0
    %v6806 = vadd.f32 0.0, %v6805
    %v6807 = vpop.f32.mrb[0].mxu0
    %6808 = vdwg.mxu0
    %v6810 = vsel %vm469, %v6642, 0
    %6812 = vmatprep.subr.mxu0 0.0
    %6813 = vmatpush1.msra.mxu0 %v6720
    %6814 = vmatprep.subr.mxu0 0.0
    %6815 = vmatpush1.msra.mxu0 %v6721
    %6816 = vmatprep.subr.mxu0 0.0
    %6817 = vmatpush1.msra.mxu0 %v6722
    %6818 = vmatprep.subr.mxu0 0.0
    %6819 = vmatpush1.msra.mxu0 %v6723
    %6820 = vmatprep.subr.mxu0 0.0
    %6821 = vmatpush1.msra.mxu0 %v6724
    %6822 = vmatprep.subr.mxu0 0.0
    %6823 = vmatpush1.msra.mxu0 %v6725
    %6824 = vmatprep.subr.mxu0 0.0
    %6825 = vmatpush1.msra.mxu0 %v6726
    %6826 = vmatprep.subr.mxu0 0.0
    %6827 = vmatpush1.msra.mxu0 %v6727
    %6828 = vmatprep.subr.mxu0 0.0
    %6829 = vmatpush1.msra.mxu0 0.0
    %6830 = vmatprep.subr.mxu0 0.0
    %6831 = vmatpush1.msra.mxu0 0.0
    %6832 = vmatprep.subr.mxu0 0.0
    %6833 = vmatpush1.msra.mxu0 0.0
    %6834 = vmatprep.subr.mxu0 0.0
    %6835 = vmatpush1.msra.mxu0 0.0
    %6836 = vmatprep.subr.mxu0 0.0
    %6837 = vmatpush1.msra.mxu0 0.0
    %6838 = vmatprep.subr.mxu0 0.0
    %6839 = vmatpush1.msra.mxu0 0.0
    %6840 = vmatprep.subr.mxu0 0.0
    %6841 = vmatpush1.msra.mxu0 0.0
    %6842 = vmatprep.subr.mxu0 0.0
    %6843 = vmatpush1.msra.mxu0 0.0
    %6844 = vmatprep.subr.mxu0 0.0
    %6845 = vmatpush1.msra.mxu0 0.0
    %6846 = vmatprep.subr.mxu0 0.0
    %6847 = vmatpush1.msra.mxu0 0.0
    %6848 = vmatprep.subr.mxu0 0.0
    %6849 = vmatpush1.msra.mxu0 0.0
    %6850 = vmatprep.subr.mxu0 0.0
    %6851 = vmatpush1.msra.mxu0 0.0
    %6852 = vmatprep.subr.mxu0 0.0
    %6853 = vmatpush1.msra.mxu0 0.0
    %6854 = vmatprep.subr.mxu0 0.0
    %6855 = vmatpush1.msra.mxu0 0.0
    %6856 = vmatprep.subr.mxu0 0.0
    %6857 = vmatpush1.msra.mxu0 0.0
    %6858 = vmatprep.subr.mxu0 0.0
    %6859 = vmatpush1.msra.mxu0 0.0
    %6860 = vmatprep.subr.mxu0 0.0
    %6861 = vmatpush1.msra.mxu0 0.0
    %6862 = vmatprep.subr.mxu0 0.0
    %6863 = vmatpush1.msra.mxu0 0.0
    %6864 = vmatprep.subr.mxu0 0.0
    %6865 = vmatpush1.msra.mxu0 0.0
    %6866 = vmatprep.subr.mxu0 0.0
    %6867 = vmatpush1.msra.mxu0 0.0
    %6868 = vmatprep.subr.mxu0 0.0
    %6869 = vmatpush1.msra.mxu0 0.0
    %6870 = vmatprep.subr.mxu0 0.0
    %6871 = vmatpush1.msra.mxu0 0.0
    %6872 = vmatprep.subr.mxu0 0.0
    %6873 = vmatpush1.msra.mxu0 0.0
    %6874 = vmatprep.subr.mxu0 0.0
    %6875 = vmatpush1.msra.mxu0 0.0
    %6876 = vmatprep.mubr.f32.mxu0 0.0
    %6877 = vmatmul.mubr.f32.gmra.mrb[0].mxu0 %v6810
    %v6878 = vpop.f32.mrb[0].mxu0
    %v6879 = vadd.f32 %v6806, %v6878
    %v6880 = vpop.f32.mrb[0].mxu0
    %6881 = vdwg.mxu0
    %s6882 = scalar_lea.vmem [#allocation34], 128
    %v6883 = vld [vmem:[%s6882] sm:$0xff]
    %v6884 = vld [vmem:[%s6882 + $0x8] sm:$0xff]
    %v6885 = vld [vmem:[%s6882 + $0x10] sm:$0xff]
    %v6886 = vld [vmem:[%s6882 + $0x18] sm:$0xff]
    %v6887 = vld [vmem:[%s6882 + $0x20] sm:$0xff]
    %v6888 = vld [vmem:[%s6882 + $0x28] sm:$0xff]
    %v6889 = vld [vmem:[%s6882 + $0x30] sm:$0xff]
    %v6890 = vld [vmem:[%s6882 + $0x38] sm:$0xff]
    %v6892 = vsel %vm469, %v6717, 0
    %6894 = vmatprep.subr.mxu0 0.0
    %6895 = vmatpush1.msra.mxu0 %v6883
    %6896 = vmatprep.subr.mxu0 0.0
    %6897 = vmatpush1.msra.mxu0 %v6884
    %6898 = vmatprep.subr.mxu0 0.0
    %6899 = vmatpush1.msra.mxu0 %v6885
    %6900 = vmatprep.subr.mxu0 0.0
    %6901 = vmatpush1.msra.mxu0 %v6886
    %6902 = vmatprep.subr.mxu0 0.0
    %6903 = vmatpush1.msra.mxu0 %v6887
    %6904 = vmatprep.subr.mxu0 0.0
    %6905 = vmatpush1.msra.mxu0 %v6888
    %6906 = vmatprep.subr.mxu0 0.0
    %6907 = vmatpush1.msra.mxu0 %v6889
    %6908 = vmatprep.subr.mxu0 0.0
    %6909 = vmatpush1.msra.mxu0 %v6890
    %6910 = vmatprep.subr.mxu0 0.0
    %6911 = vmatpush1.msra.mxu0 0.0
    %6912 = vmatprep.subr.mxu0 0.0
    %6913 = vmatpush1.msra.mxu0 0.0
    %6914 = vmatprep.subr.mxu0 0.0
    %6915 = vmatpush1.msra.mxu0 0.0
    %6916 = vmatprep.subr.mxu0 0.0
    %6917 = vmatpush1.msra.mxu0 0.0
    %6918 = vmatprep.subr.mxu0 0.0
    %6919 = vmatpush1.msra.mxu0 0.0
    %6920 = vmatprep.subr.mxu0 0.0
    %6921 = vmatpush1.msra.mxu0 0.0
    %6922 = vmatprep.subr.mxu0 0.0
    %6923 = vmatpush1.msra.mxu0 0.0
    %6924 = vmatprep.subr.mxu0 0.0
    %6925 = vmatpush1.msra.mxu0 0.0
    %6926 = vmatprep.subr.mxu0 0.0
    %6927 = vmatpush1.msra.mxu0 0.0
    %6928 = vmatprep.subr.mxu0 0.0
    %6929 = vmatpush1.msra.mxu0 0.0
    %6930 = vmatprep.subr.mxu0 0.0
    %6931 = vmatpush1.msra.mxu0 0.0
    %6932 = vmatprep.subr.mxu0 0.0
    %6933 = vmatpush1.msra.mxu0 0.0
    %6934 = vmatprep.subr.mxu0 0.0
    %6935 = vmatpush1.msra.mxu0 0.0
    %6936 = vmatprep.subr.mxu0 0.0
    %6937 = vmatpush1.msra.mxu0 0.0
    %6938 = vmatprep.subr.mxu0 0.0
    %6939 = vmatpush1.msra.mxu0 0.0
    %6940 = vmatprep.subr.mxu0 0.0
    %6941 = vmatpush1.msra.mxu0 0.0
    %6942 = vmatprep.subr.mxu0 0.0
    %6943 = vmatpush1.msra.mxu0 0.0
    %6944 = vmatprep.subr.mxu0 0.0
    %6945 = vmatpush1.msra.mxu0 0.0
    %6946 = vmatprep.subr.mxu0 0.0
    %6947 = vmatpush1.msra.mxu0 0.0
    %6948 = vmatprep.subr.mxu0 0.0
    %6949 = vmatpush1.msra.mxu0 0.0
    %6950 = vmatprep.subr.mxu0 0.0
    %6951 = vmatpush1.msra.mxu0 0.0
    %6952 = vmatprep.subr.mxu0 0.0
    %6953 = vmatpush1.msra.mxu0 0.0
    %6954 = vmatprep.subr.mxu0 0.0
    %6955 = vmatpush1.msra.mxu0 0.0
    %6956 = vmatprep.subr.mxu0 0.0
    %6957 = vmatpush1.msra.mxu0 0.0
    %6958 = vmatprep.mubr.f32.mxu0 0.0
    %6959 = vmatmul.mubr.f32.gmra.mrb[0].mxu0 %v6892
    %v6960 = vpop.f32.mrb[0].mxu0
    %v6961 = vadd.f32 0.0, %v6960
    %v6962 = vpop.f32.mrb[0].mxu0
    %6963 = vdwg.mxu0
    %v6964 = vadd.f32 %v6879, %v6961
    %v6965 = vsel %vm6382, %v6964, 0.0
    %v6966 = vrot.slane %v6965, 4
    %v6967 = vadd.f32 %v6965, %v6966
    %v6968 = vrot.slane %v6967, 2
    %v6969 = vadd.f32 %v6967, %v6968
    %v6970 = vrot.slane %v6969, 1
    %v6971 = vadd.f32 %v6969, %v6970
    %v6972 = vmul.f32 %v6964, %v6964
    %v6973 = vsel %vm6382, %v6972, 0.0
    %v6974 = vrot.slane %v6973, 4
    %v6975 = vadd.f32 %v6973, %v6974
    %v6976 = vrot.slane %v6975, 2
    %v6977 = vadd.f32 %v6975, %v6976
    %v6978 = vrot.slane %v6977, 1
    %v6979 = vadd.f32 %v6977, %v6978
    %v6980 = vld [vmem:[%s65] sm:$0xff]
    %v6981 = vld [vmem:[%s65 + $0x8] sm:$0xff]
    %v6982 = vld [vmem:[%s65 + $0x10] sm:$0xff]
    %v6983 = vld [vmem:[%s65 + $0x18] sm:$0xff]
    %v6984 = vld [vmem:[%s65 + $0x20] sm:$0xff]
    %v6985 = vld [vmem:[%s65 + $0x28] sm:$0xff]
    %v6986 = vld [vmem:[%s65 + $0x30] sm:$0xff]
    %v6987 = vld [vmem:[%s65 + $0x38] sm:$0xff]
    %v6989 = vsel %vm469, %v6971, 0
    %6991 = vmatprep.subr.mxu0 0.0
    %6992 = vmatpush1.msra.mxu0 %v6980
    %6993 = vmatprep.subr.mxu0 0.0
    %6994 = vmatpush1.msra.mxu0 %v6981
    %6995 = vmatprep.subr.mxu0 0.0
    %6996 = vmatpush1.msra.mxu0 %v6982
    %6997 = vmatprep.subr.mxu0 0.0
    %6998 = vmatpush1.msra.mxu0 %v6983
    %6999 = vmatprep.subr.mxu0 0.0
    %7000 = vmatpush1.msra.mxu0 %v6984
    %7001 = vmatprep.subr.mxu0 0.0
    %7002 = vmatpush1.msra.mxu0 %v6985
    %7003 = vmatprep.subr.mxu0 0.0
    %7004 = vmatpush1.msra.mxu0 %v6986
    %7005 = vmatprep.subr.mxu0 0.0
    %7006 = vmatpush1.msra.mxu0 %v6987
    %7007 = vmatprep.subr.mxu0 0.0
    %7008 = vmatpush1.msra.mxu0 0.0
    %7009 = vmatprep.subr.mxu0 0.0
    %7010 = vmatpush1.msra.mxu0 0.0
    %7011 = vmatprep.subr.mxu0 0.0
    %7012 = vmatpush1.msra.mxu0 0.0
    %7013 = vmatprep.subr.mxu0 0.0
    %7014 = vmatpush1.msra.mxu0 0.0
    %7015 = vmatprep.subr.mxu0 0.0
    %7016 = vmatpush1.msra.mxu0 0.0
    %7017 = vmatprep.subr.mxu0 0.0
    %7018 = vmatpush1.msra.mxu0 0.0
    %7019 = vmatprep.subr.mxu0 0.0
    %7020 = vmatpush1.msra.mxu0 0.0
    %7021 = vmatprep.subr.mxu0 0.0
    %7022 = vmatpush1.msra.mxu0 0.0
    %7023 = vmatprep.subr.mxu0 0.0
    %7024 = vmatpush1.msra.mxu0 0.0
    %7025 = vmatprep.subr.mxu0 0.0
    %7026 = vmatpush1.msra.mxu0 0.0
    %7027 = vmatprep.subr.mxu0 0.0
    %7028 = vmatpush1.msra.mxu0 0.0
    %7029 = vmatprep.subr.mxu0 0.0
    %7030 = vmatpush1.msra.mxu0 0.0
    %7031 = vmatprep.subr.mxu0 0.0
    %7032 = vmatpush1.msra.mxu0 0.0
    %7033 = vmatprep.subr.mxu0 0.0
    %7034 = vmatpush1.msra.mxu0 0.0
    %7035 = vmatprep.subr.mxu0 0.0
    %7036 = vmatpush1.msra.mxu0 0.0
    %7037 = vmatprep.subr.mxu0 0.0
    %7038 = vmatpush1.msra.mxu0 0.0
    %7039 = vmatprep.subr.mxu0 0.0
    %7040 = vmatpush1.msra.mxu0 0.0
    %7041 = vmatprep.subr.mxu0 0.0
    %7042 = vmatpush1.msra.mxu0 0.0
    %7043 = vmatprep.subr.mxu0 0.0
    %7044 = vmatpush1.msra.mxu0 0.0
    %7045 = vmatprep.subr.mxu0 0.0
    %7046 = vmatpush1.msra.mxu0 0.0
    %7047 = vmatprep.subr.mxu0 0.0
    %7048 = vmatpush1.msra.mxu0 0.0
    %7049 = vmatprep.subr.mxu0 0.0
    %7050 = vmatpush1.msra.mxu0 0.0
    %7051 = vmatprep.subr.mxu0 0.0
    %7052 = vmatpush1.msra.mxu0 0.0
    %7053 = vmatprep.subr.mxu0 0.0
    %7054 = vmatpush1.msra.mxu0 0.0
    %7055 = vmatprep.mubr.f32.mxu0 0.0
    %7056 = vmatmul.mubr.f32.gmra.mrb[0].mxu0 %v6989
    %v7057 = vpop.f32.mrb[0].mxu0
    %v7058 = vadd.f32 0.0, %v7057
    %v7059 = vpop.f32.mrb[0].mxu0
    %7060 = vdwg.mxu0
    %v7062 = vsel %vm469, %v6979, 0
    %7064 = vmatprep.subr.mxu0 0.0
    %7065 = vmatpush1.msra.mxu0 %v6980
    %7066 = vmatprep.subr.mxu0 0.0
    %7067 = vmatpush1.msra.mxu0 %v6981
    %7068 = vmatprep.subr.mxu0 0.0
    %7069 = vmatpush1.msra.mxu0 %v6982
    %7070 = vmatprep.subr.mxu0 0.0
    %7071 = vmatpush1.msra.mxu0 %v6983
    %7072 = vmatprep.subr.mxu0 0.0
    %7073 = vmatpush1.msra.mxu0 %v6984
    %7074 = vmatprep.subr.mxu0 0.0
    %7075 = vmatpush1.msra.mxu0 %v6985
    %7076 = vmatprep.subr.mxu0 0.0
    %7077 = vmatpush1.msra.mxu0 %v6986
    %7078 = vmatprep.subr.mxu0 0.0
    %7079 = vmatpush1.msra.mxu0 %v6987
    %7080 = vmatprep.subr.mxu0 0.0
    %7081 = vmatpush1.msra.mxu0 0.0
    %7082 = vmatprep.subr.mxu0 0.0
    %7083 = vmatpush1.msra.mxu0 0.0
    %7084 = vmatprep.subr.mxu0 0.0
    %7085 = vmatpush1.msra.mxu0 0.0
    %7086 = vmatprep.subr.mxu0 0.0
    %7087 = vmatpush1.msra.mxu0 0.0
    %7088 = vmatprep.subr.mxu0 0.0
    %7089 = vmatpush1.msra.mxu0 0.0
    %7090 = vmatprep.subr.mxu0 0.0
    %7091 = vmatpush1.msra.mxu0 0.0
    %7092 = vmatprep.subr.mxu0 0.0
    %7093 = vmatpush1.msra.mxu0 0.0
    %7094 = vmatprep.subr.mxu0 0.0
    %7095 = vmatpush1.msra.mxu0 0.0
    %7096 = vmatprep.subr.mxu0 0.0
    %7097 = vmatpush1.msra.mxu0 0.0
    %7098 = vmatprep.subr.mxu0 0.0
    %7099 = vmatpush1.msra.mxu0 0.0
    %7100 = vmatprep.subr.mxu0 0.0
    %7101 = vmatpush1.msra.mxu0 0.0
    %7102 = vmatprep.subr.mxu0 0.0
    %7103 = vmatpush1.msra.mxu0 0.0
    %7104 = vmatprep.subr.mxu0 0.0
    %7105 = vmatpush1.msra.mxu0 0.0
    %7106 = vmatprep.subr.mxu0 0.0
    %7107 = vmatpush1.msra.mxu0 0.0
    %7108 = vmatprep.subr.mxu0 0.0
    %7109 = vmatpush1.msra.mxu0 0.0
    %7110 = vmatprep.subr.mxu0 0.0
    %7111 = vmatpush1.msra.mxu0 0.0
    %7112 = vmatprep.subr.mxu0 0.0
    %7113 = vmatpush1.msra.mxu0 0.0
    %7114 = vmatprep.subr.mxu0 0.0
    %7115 = vmatpush1.msra.mxu0 0.0
    %7116 = vmatprep.subr.mxu0 0.0
    %7117 = vmatpush1.msra.mxu0 0.0
    %7118 = vmatprep.subr.mxu0 0.0
    %7119 = vmatpush1.msra.mxu0 0.0
    %7120 = vmatprep.subr.mxu0 0.0
    %7121 = vmatpush1.msra.mxu0 0.0
    %7122 = vmatprep.subr.mxu0 0.0
    %7123 = vmatpush1.msra.mxu0 0.0
    %7124 = vmatprep.subr.mxu0 0.0
    %7125 = vmatpush1.msra.mxu0 0.0
    %7126 = vmatprep.subr.mxu0 0.0
    %7127 = vmatpush1.msra.mxu0 0.0
    %7128 = vmatprep.mubr.f32.mxu0 0.0
    %7129 = vmatmul.mubr.f32.gmra.mrb[0].mxu0 %v7062
    %v7130 = vpop.f32.mrb[0].mxu0
    %v7131 = vadd.f32 0.0, %v7130
    %v7132 = vpop.f32.mrb[0].mxu0
    %7133 = vdwg.mxu0
    %v7134 = vmul.f32 %v7058, %v7058
    %v7135 = vsub.f32 %v7131, %v7134
    %v7136 = vmax.f32 %v7135, 0.0
    %v7137 = vlaneseq
    %v7138 = vshrl.u32 %v7137, 7
    %v7139 = vsub.s32 0, %v7138
    %v7140 = vrot.slane %v7058, %v7139
    %v7141 = vsub.f32 %v6964, %v7140
    %v7142 = vadd.f32 %v7136, 1e-05
    %v7143 = vrsqrt.pop %v7142
    %v7144 = vlaneseq
    %v7145 = vshrl.u32 %v7144, 7
    %v7146 = vsub.s32 0, %v7145
    %v7147 = vrot.slane %v7143, %v7146
    %v7148 = vmul.f32 %v7141, %v7147
    %v7149 = vmax.f32 %v7148, 0.0
    %v7150 = vld [vmem:[#allocation35] sm:$0x3]
    %v7152 = vsel %vm5984, %v7150, 0
    %v7155 = vsel %vm5988, %v7149, 0
    %7157 = vmatprep.subr.mxu0 0.0
    %7158 = vmatpush1.msra.mxu0 %v7155
    %7159 = vmatprep.subr.mxu0 0.0
    %7160 = vmatpush1.msra.mxu0 0.0
    %7161 = vmatprep.subr.mxu0 0.0
    %7162 = vmatpush1.msra.mxu0 0.0
    %7163 = vmatprep.subr.mxu0 0.0
    %7164 = vmatpush1.msra.mxu0 0.0
    %7165 = vmatprep.subr.mxu0 0.0
    %7166 = vmatpush1.msra.mxu0 0.0
    %7167 = vmatprep.subr.mxu0 0.0
    %7168 = vmatpush1.msra.mxu0 0.0
    %7169 = vmatprep.subr.mxu0 0.0
    %7170 = vmatpush1.msra.mxu0 0.0
    %7171 = vmatprep.subr.mxu0 0.0
    %7172 = vmatpush1.msra.mxu0 0.0
    %7173 = vmatprep.subr.mxu0 0.0
    %7174 = vmatpush1.msra.mxu0 0.0
    %7175 = vmatprep.subr.mxu0 0.0
    %7176 = vmatpush1.msra.mxu0 0.0
    %7177 = vmatprep.subr.mxu0 0.0
    %7178 = vmatpush1.msra.mxu0 0.0
    %7179 = vmatprep.subr.mxu0 0.0
    %7180 = vmatpush1.msra.mxu0 0.0
    %7181 = vmatprep.subr.mxu0 0.0
    %7182 = vmatpush1.msra.mxu0 0.0
    %7183 = vmatprep.subr.mxu0 0.0
    %7184 = vmatpush1.msra.mxu0 0.0
    %7185 = vmatprep.subr.mxu0 0.0
    %7186 = vmatpush1.msra.mxu0 0.0
    %7187 = vmatprep.subr.mxu0 0.0
    %7188 = vmatpush1.msra.mxu0 0.0
    %7189 = vmatprep.subr.mxu0 0.0
    %7190 = vmatpush1.msra.mxu0 0.0
    %7191 = vmatprep.subr.mxu0 0.0
    %7192 = vmatpush1.msra.mxu0 0.0
    %7193 = vmatprep.subr.mxu0 0.0
    %7194 = vmatpush1.msra.mxu0 0.0
    %7195 = vmatprep.subr.mxu0 0.0
    %7196 = vmatpush1.msra.mxu0 0.0
    %7197 = vmatprep.subr.mxu0 0.0
    %7198 = vmatpush1.msra.mxu0 0.0
    %7199 = vmatprep.subr.mxu0 0.0
    %7200 = vmatpush1.msra.mxu0 0.0
    %7201 = vmatprep.subr.mxu0 0.0
    %7202 = vmatpush1.msra.mxu0 0.0
    %7203 = vmatprep.subr.mxu0 0.0
    %7204 = vmatpush1.msra.mxu0 0.0
    %7205 = vmatprep.subr.mxu0 0.0
    %7206 = vmatpush1.msra.mxu0 0.0
    %7207 = vmatprep.subr.mxu0 0.0
    %7208 = vmatpush1.msra.mxu0 0.0
    %7209 = vmatprep.subr.mxu0 0.0
    %7210 = vmatpush1.msra.mxu0 0.0
    %7211 = vmatprep.subr.mxu0 0.0
    %7212 = vmatpush1.msra.mxu0 0.0
    %7213 = vmatprep.subr.mxu0 0.0
    %7214 = vmatpush1.msra.mxu0 0.0
    %7215 = vmatprep.subr.mxu0 0.0
    %7216 = vmatpush1.msra.mxu0 0.0
    %7217 = vmatprep.subr.mxu0 0.0
    %7218 = vmatpush1.msra.mxu0 0.0
    %7219 = vmatprep.subr.mxu0 0.0
    %7220 = vmatpush1.msra.mxu0 0.0
    %7221 = vmatprep.mubr.f32.mxu0 0.0
    %7222 = vmatmul.mubr.f32.gmra.mrb[0].mxu0 %v7152
    %v7223 = vpop.f32.mrb[0].mxu0
    %v7224 = vadd.f32 0.0, %v7223
    %v7225 = vpop.f32.mrb[0].mxu0
    %7226 = vdwg.mxu0
    %s7227 = scalar_lea.vmem [#allocation35], 2
    %v7228 = vld [vmem:[%s7227] sm:$0x3]
    %v7230 = vsel %vm5984, %v7228, 0
    %7232 = vmatprep.subr.mxu0 0.0
    %7233 = vmatpush1.msra.mxu0 %v7155
    %7234 = vmatprep.subr.mxu0 0.0
    %7235 = vmatpush1.msra.mxu0 0.0
    %7236 = vmatprep.subr.mxu0 0.0
    %7237 = vmatpush1.msra.mxu0 0.0
    %7238 = vmatprep.subr.mxu0 0.0
    %7239 = vmatpush1.msra.mxu0 0.0
    %7240 = vmatprep.subr.mxu0 0.0
    %7241 = vmatpush1.msra.mxu0 0.0
    %7242 = vmatprep.subr.mxu0 0.0
    %7243 = vmatpush1.msra.mxu0 0.0
    %7244 = vmatprep.subr.mxu0 0.0
    %7245 = vmatpush1.msra.mxu0 0.0
    %7246 = vmatprep.subr.mxu0 0.0
    %7247 = vmatpush1.msra.mxu0 0.0
    %7248 = vmatprep.subr.mxu0 0.0
    %7249 = vmatpush1.msra.mxu0 0.0
    %7250 = vmatprep.subr.mxu0 0.0
    %7251 = vmatpush1.msra.mxu0 0.0
    %7252 = vmatprep.subr.mxu0 0.0
    %7253 = vmatpush1.msra.mxu0 0.0
    %7254 = vmatprep.subr.mxu0 0.0
    %7255 = vmatpush1.msra.mxu0 0.0
    %7256 = vmatprep.subr.mxu0 0.0
    %7257 = vmatpush1.msra.mxu0 0.0
    %7258 = vmatprep.subr.mxu0 0.0
    %7259 = vmatpush1.msra.mxu0 0.0
    %7260 = vmatprep.subr.mxu0 0.0
    %7261 = vmatpush1.msra.mxu0 0.0
    %7262 = vmatprep.subr.mxu0 0.0
    %7263 = vmatpush1.msra.mxu0 0.0
    %7264 = vmatprep.subr.mxu0 0.0
    %7265 = vmatpush1.msra.mxu0 0.0
    %7266 = vmatprep.subr.mxu0 0.0
    %7267 = vmatpush1.msra.mxu0 0.0
    %7268 = vmatprep.subr.mxu0 0.0
    %7269 = vmatpush1.msra.mxu0 0.0
    %7270 = vmatprep.subr.mxu0 0.0
    %7271 = vmatpush1.msra.mxu0 0.0
    %7272 = vmatprep.subr.mxu0 0.0
    %7273 = vmatpush1.msra.mxu0 0.0
    %7274 = vmatprep.subr.mxu0 0.0
    %7275 = vmatpush1.msra.mxu0 0.0
    %7276 = vmatprep.subr.mxu0 0.0
    %7277 = vmatpush1.msra.mxu0 0.0
    %7278 = vmatprep.subr.mxu0 0.0
    %7279 = vmatpush1.msra.mxu0 0.0
    %7280 = vmatprep.subr.mxu0 0.0
    %7281 = vmatpush1.msra.mxu0 0.0
    %7282 = vmatprep.subr.mxu0 0.0
    %7283 = vmatpush1.msra.mxu0 0.0
    %7284 = vmatprep.subr.mxu0 0.0
    %7285 = vmatpush1.msra.mxu0 0.0
    %7286 = vmatprep.subr.mxu0 0.0
    %7287 = vmatpush1.msra.mxu0 0.0
    %7288 = vmatprep.subr.mxu0 0.0
    %7289 = vmatpush1.msra.mxu0 0.0
    %7290 = vmatprep.subr.mxu0 0.0
    %7291 = vmatpush1.msra.mxu0 0.0
    %7292 = vmatprep.subr.mxu0 0.0
    %7293 = vmatpush1.msra.mxu0 0.0
    %7294 = vmatprep.subr.mxu0 0.0
    %7295 = vmatpush1.msra.mxu0 0.0
    %7296 = vmatprep.mubr.f32.mxu0 0.0
    %7297 = vmatmul.mubr.f32.gmra.mrb[0].mxu0 %v7230
    %v7298 = vpop.f32.mrb[0].mxu0
    %v7299 = vadd.f32 0.0, %v7298
    %v7300 = vpop.f32.mrb[0].mxu0
    %7301 = vdwg.mxu0
    %v7302 = vmax.f32 %v7224, %v7299
    %v7303 = vld [vmem:[%s69] sm:$0xff]
    %v7304 = vld [vmem:[%s69 + $0x8] sm:$0xff]
    %v7305 = vld [vmem:[%s69 + $0x10] sm:$0xff]
    %v7306 = vld [vmem:[%s69 + $0x18] sm:$0xff]
    %v7307 = vld [vmem:[%s69 + $0x20] sm:$0xff]
    %v7308 = vld [vmem:[%s69 + $0x28] sm:$0xff]
    %v7309 = vld [vmem:[%s69 + $0x30] sm:$0xff]
    %v7310 = vld [vmem:[%s69 + $0x38] sm:$0xff]
    %v7312 = vsel %vm469, %v7302, 0
    %7314 = vmatprep.subr.mxu0 0.0
    %7315 = vmatpush1.msra.mxu0 %v7303
    %7316 = vmatprep.subr.mxu0 0.0
    %7317 = vmatpush1.msra.mxu0 %v7304
    %7318 = vmatprep.subr.mxu0 0.0
    %7319 = vmatpush1.msra.mxu0 %v7305
    %7320 = vmatprep.subr.mxu0 0.0
    %7321 = vmatpush1.msra.mxu0 %v7306
    %7322 = vmatprep.subr.mxu0 0.0
    %7323 = vmatpush1.msra.mxu0 %v7307
    %7324 = vmatprep.subr.mxu0 0.0
    %7325 = vmatpush1.msra.mxu0 %v7308
    %7326 = vmatprep.subr.mxu0 0.0
    %7327 = vmatpush1.msra.mxu0 %v7309
    %7328 = vmatprep.subr.mxu0 0.0
    %7329 = vmatpush1.msra.mxu0 %v7310
    %7330 = vmatprep.subr.mxu0 0.0
    %7331 = vmatpush1.msra.mxu0 0.0
    %7332 = vmatprep.subr.mxu0 0.0
    %7333 = vmatpush1.msra.mxu0 0.0
    %7334 = vmatprep.subr.mxu0 0.0
    %7335 = vmatpush1.msra.mxu0 0.0
    %7336 = vmatprep.subr.mxu0 0.0
    %7337 = vmatpush1.msra.mxu0 0.0
    %7338 = vmatprep.subr.mxu0 0.0
    %7339 = vmatpush1.msra.mxu0 0.0
    %7340 = vmatprep.subr.mxu0 0.0
    %7341 = vmatpush1.msra.mxu0 0.0
    %7342 = vmatprep.subr.mxu0 0.0
    %7343 = vmatpush1.msra.mxu0 0.0
    %7344 = vmatprep.subr.mxu0 0.0
    %7345 = vmatpush1.msra.mxu0 0.0
    %7346 = vmatprep.subr.mxu0 0.0
    %7347 = vmatpush1.msra.mxu0 0.0
    %7348 = vmatprep.subr.mxu0 0.0
    %7349 = vmatpush1.msra.mxu0 0.0
    %7350 = vmatprep.subr.mxu0 0.0
    %7351 = vmatpush1.msra.mxu0 0.0
    %7352 = vmatprep.subr.mxu0 0.0
    %7353 = vmatpush1.msra.mxu0 0.0
    %7354 = vmatprep.subr.mxu0 0.0
    %7355 = vmatpush1.msra.mxu0 0.0
    %7356 = vmatprep.subr.mxu0 0.0
    %7357 = vmatpush1.msra.mxu0 0.0
    %7358 = vmatprep.subr.mxu0 0.0
    %7359 = vmatpush1.msra.mxu0 0.0
    %7360 = vmatprep.subr.mxu0 0.0
    %7361 = vmatpush1.msra.mxu0 0.0
    %7362 = vmatprep.subr.mxu0 0.0
    %7363 = vmatpush1.msra.mxu0 0.0
    %7364 = vmatprep.subr.mxu0 0.0
    %7365 = vmatpush1.msra.mxu0 0.0
    %7366 = vmatprep.subr.mxu0 0.0
    %7367 = vmatpush1.msra.mxu0 0.0
    %7368 = vmatprep.subr.mxu0 0.0
    %7369 = vmatpush1.msra.mxu0 0.0
    %7370 = vmatprep.subr.mxu0 0.0
    %7371 = vmatpush1.msra.mxu0 0.0
    %7372 = vmatprep.subr.mxu0 0.0
    %7373 = vmatpush1.msra.mxu0 0.0
    %7374 = vmatprep.subr.mxu0 0.0
    %7375 = vmatpush1.msra.mxu0 0.0
    %7376 = vmatprep.subr.mxu0 0.0
    %7377 = vmatpush1.msra.mxu0 0.0
    %7378 = vmatprep.mubr.f32.mxu0 0.0
    %7379 = vmatmul.mubr.f32.gmra.mrb[0].mxu0 %v7312
    %v7380 = vpop.f32.mrb[0].mxu0
    %v7381 = vadd.f32 0.0, %v7380
    %v7382 = vpop.f32.mrb[0].mxu0
    %7383 = vdwg.mxu0
    %s7384 = scalar_lea.vmem %s69, 64
    %v7385 = vld [vmem:[%s7384] sm:$0xff]
    %v7386 = vld [vmem:[%s7384 + $0x8] sm:$0xff]
    %v7387 = vld [vmem:[%s7384 + $0x10] sm:$0xff]
    %v7388 = vld [vmem:[%s7384 + $0x18] sm:$0xff]
    %v7389 = vld [vmem:[%s7384 + $0x20] sm:$0xff]
    %v7390 = vld [vmem:[%s7384 + $0x28] sm:$0xff]
    %v7391 = vld [vmem:[%s7384 + $0x30] sm:$0xff]
    %v7392 = vld [vmem:[%s7384 + $0x38] sm:$0xff]
    %7393 = vmatprep.subr.mxu0 0.0
    %7394 = vmatpush1.msra.mxu0 %v7385
    %7395 = vmatprep.subr.mxu0 0.0
    %7396 = vmatpush1.msra.mxu0 %v7386
    %7397 = vmatprep.subr.mxu0 0.0
    %7398 = vmatpush1.msra.mxu0 %v7387
    %7399 = vmatprep.subr.mxu0 0.0
    %7400 = vmatpush1.msra.mxu0 %v7388
    %7401 = vmatprep.subr.mxu0 0.0
    %7402 = vmatpush1.msra.mxu0 %v7389
    %7403 = vmatprep.subr.mxu0 0.0
    %7404 = vmatpush1.msra.mxu0 %v7390
    %7405 = vmatprep.subr.mxu0 0.0
    %7406 = vmatpush1.msra.mxu0 %v7391
    %7407 = vmatprep.subr.mxu0 0.0
    %7408 = vmatpush1.msra.mxu0 %v7392
    %7409 = vmatprep.subr.mxu0 0.0
    %7410 = vmatpush1.msra.mxu0 0.0
    %7411 = vmatprep.subr.mxu0 0.0
    %7412 = vmatpush1.msra.mxu0 0.0
    %7413 = vmatprep.subr.mxu0 0.0
    %7414 = vmatpush1.msra.mxu0 0.0
    %7415 = vmatprep.subr.mxu0 0.0
    %7416 = vmatpush1.msra.mxu0 0.0
    %7417 = vmatprep.subr.mxu0 0.0
    %7418 = vmatpush1.msra.mxu0 0.0
    %7419 = vmatprep.subr.mxu0 0.0
    %7420 = vmatpush1.msra.mxu0 0.0
    %7421 = vmatprep.subr.mxu0 0.0
    %7422 = vmatpush1.msra.mxu0 0.0
    %7423 = vmatprep.subr.mxu0 0.0
    %7424 = vmatpush1.msra.mxu0 0.0
    %7425 = vmatprep.subr.mxu0 0.0
    %7426 = vmatpush1.msra.mxu0 0.0
    %7427 = vmatprep.subr.mxu0 0.0
    %7428 = vmatpush1.msra.mxu0 0.0
    %7429 = vmatprep.subr.mxu0 0.0
    %7430 = vmatpush1.msra.mxu0 0.0
    %7431 = vmatprep.subr.mxu0 0.0
    %7432 = vmatpush1.msra.mxu0 0.0
    %7433 = vmatprep.subr.mxu0 0.0
    %7434 = vmatpush1.msra.mxu0 0.0
    %7435 = vmatprep.subr.mxu0 0.0
    %7436 = vmatpush1.msra.mxu0 0.0
    %7437 = vmatprep.subr.mxu0 0.0
    %7438 = vmatpush1.msra.mxu0 0.0
    %7439 = vmatprep.subr.mxu0 0.0
    %7440 = vmatpush1.msra.mxu0 0.0
    %7441 = vmatprep.subr.mxu0 0.0
    %7442 = vmatpush1.msra.mxu0 0.0
    %7443 = vmatprep.subr.mxu0 0.0
    %7444 = vmatpush1.msra.mxu0 0.0
    %7445 = vmatprep.subr.mxu0 0.0
    %7446 = vmatpush1.msra.mxu0 0.0
    %7447 = vmatprep.subr.mxu0 0.0
    %7448 = vmatpush1.msra.mxu0 0.0
    %7449 = vmatprep.subr.mxu0 0.0
    %7450 = vmatpush1.msra.mxu0 0.0
    %7451 = vmatprep.subr.mxu0 0.0
    %7452 = vmatpush1.msra.mxu0 0.0
    %7453 = vmatprep.subr.mxu0 0.0
    %7454 = vmatpush1.msra.mxu0 0.0
    %7455 = vmatprep.subr.mxu0 0.0
    %7456 = vmatpush1.msra.mxu0 0.0
    %7457 = vmatprep.mubr.f32.mxu0 0.0
    %7458 = vmatmul.mubr.f32.gmra.mrb[0].mxu0 %v7312
    %v7459 = vpop.f32.mrb[0].mxu0
    %v7460 = vadd.f32 0.0, %v7459
    %v7461 = vpop.f32.mrb[0].mxu0
    %7462 = vdwg.mxu0
    %v7463 = vmax.f32 %v7381, %v7460
    %v7464 = vld [vmem:[%s71] sm:$0xff]
    %v7465 = vld [vmem:[%s71 + $0x8] sm:$0xff]
    %v7466 = vld [vmem:[%s71 + $0x10] sm:$0xff]
    %v7467 = vld [vmem:[%s71 + $0x18] sm:$0xff]
    %v7468 = vld [vmem:[%s73] sm:$0x1]
    %v7470 = vlaneseq
    %v7471 = vshrl.u32 %v7470, 7
    %v7472 = vsub.s32 0, %v7471
    %v7473 = vrot.slane %v7468, %v7472
    %v7476 = vsel %vm1816, %v7463, 0
    %7478 = vmatprep.subr.mxu0 0.0
    %7479 = vmatpush1.msra.mxu0 %v7464
    %7480 = vmatprep.subr.mxu0 0.0
    %7481 = vmatpush1.msra.mxu0 %v7465
    %7482 = vmatprep.subr.mxu0 0.0
    %7483 = vmatpush1.msra.mxu0 %v7466
    %7484 = vmatprep.subr.mxu0 0.0
    %7485 = vmatpush1.msra.mxu0 %v7467
    %7486 = vmatprep.subr.mxu0 0.0
    %7487 = vmatpush1.msra.mxu0 0.0
    %7488 = vmatprep.subr.mxu0 0.0
    %7489 = vmatpush1.msra.mxu0 0.0
    %7490 = vmatprep.subr.mxu0 0.0
    %7491 = vmatpush1.msra.mxu0 0.0
    %7492 = vmatprep.subr.mxu0 0.0
    %7493 = vmatpush1.msra.mxu0 0.0
    %7494 = vmatprep.subr.mxu0 0.0
    %7495 = vmatpush1.msra.mxu0 0.0
    %7496 = vmatprep.subr.mxu0 0.0
    %7497 = vmatpush1.msra.mxu0 0.0
    %7498 = vmatprep.subr.mxu0 0.0
    %7499 = vmatpush1.msra.mxu0 0.0
    %7500 = vmatprep.subr.mxu0 0.0
    %7501 = vmatpush1.msra.mxu0 0.0
    %7502 = vmatprep.subr.mxu0 0.0
    %7503 = vmatpush1.msra.mxu0 0.0
    %7504 = vmatprep.subr.mxu0 0.0
    %7505 = vmatpush1.msra.mxu0 0.0
    %7506 = vmatprep.subr.mxu0 0.0
    %7507 = vmatpush1.msra.mxu0 0.0
    %7508 = vmatprep.subr.mxu0 0.0
    %7509 = vmatpush1.msra.mxu0 0.0
    %7510 = vmatprep.subr.mxu0 0.0
    %7511 = vmatpush1.msra.mxu0 0.0
    %7512 = vmatprep.subr.mxu0 0.0
    %7513 = vmatpush1.msra.mxu0 0.0
    %7514 = vmatprep.subr.mxu0 0.0
    %7515 = vmatpush1.msra.mxu0 0.0
    %7516 = vmatprep.subr.mxu0 0.0
    %7517 = vmatpush1.msra.mxu0 0.0
    %7518 = vmatprep.subr.mxu0 0.0
    %7519 = vmatpush1.msra.mxu0 0.0
    %7520 = vmatprep.subr.mxu0 0.0
    %7521 = vmatpush1.msra.mxu0 0.0
    %7522 = vmatprep.subr.mxu0 0.0
    %7523 = vmatpush1.msra.mxu0 0.0
    %7524 = vmatprep.subr.mxu0 0.0
    %7525 = vmatpush1.msra.mxu0 0.0
    %7526 = vmatprep.subr.mxu0 0.0
    %7527 = vmatpush1.msra.mxu0 0.0
    %7528 = vmatprep.subr.mxu0 0.0
    %7529 = vmatpush1.msra.mxu0 0.0
    %7530 = vmatprep.subr.mxu0 0.0
    %7531 = vmatpush1.msra.mxu0 0.0
    %7532 = vmatprep.subr.mxu0 0.0
    %7533 = vmatpush1.msra.mxu0 0.0
    %7534 = vmatprep.subr.mxu0 0.0
    %7535 = vmatpush1.msra.mxu0 0.0
    %7536 = vmatprep.subr.mxu0 0.0
    %7537 = vmatpush1.msra.mxu0 0.0
    %7538 = vmatprep.subr.mxu0 0.0
    %7539 = vmatpush1.msra.mxu0 0.0
    %7540 = vmatprep.subr.mxu0 0.0
    %7541 = vmatpush1.msra.mxu0 0.0
    %7542 = vmatprep.mubr.f32.mxu0 0.0
    %7543 = vmatmul.mubr.f32.gmra.mrb[0].mxu0 %v7476
    %v7544 = vpop.f32.mrb[0].mxu0
    %v7545 = vadd.f32 %v7473, %v7544
    %v7546 = vpop.f32.mrb[0].mxu0
    %7547 = vdwg.mxu0
    %vm7548 = vcmask 74752
    %7549 = vst.msk [vmem:[#allocation37] sm:$0x3] %vm7548, %v7545
    // Predicated region
    $region238: #{tpu_custom_call.1} parent=1 // pred_check
      _
    $region239: #{tpu_custom_call.1} parent=1 // pred_check_branch
      %7551 = sbr.rel (0) target = $region241
    $region240: #{tpu_custom_call.1} parent=1 // pred_region
      %s7553 = ssub.s32 32, 32
      %7554 = vsyncadd [#allocation4], %s7553
      %s7556 = sshll.u32 [#allocation37], 4
      %s7557 = int_to_ptr.vmem [resolvable:$true] %s7556
      %7559 = dma.vmem_to_hbm [thread:$0]  %s7557, 32, %s75, [#allocation4]
    $region241: #{tpu_custom_call.1} parent=1 // pred_fallthru
      _
    // Predicated region
    $region242: #{tpu_custom_call.1} parent=1 // pred_check
      _
    $region243: #{tpu_custom_call.1} parent=1 // pred_check_branch
      %7561 = sbr.rel (0) target = $region245
    $region244: #{tpu_custom_call.1} parent=1 // pred_region
      %7562 = dma.done [#allocation4], 32
    $region245: #{tpu_custom_call.1} parent=1 // pred_fallthru
      _
    %7563 = vsyncpa [#allocation3], 1
    %7564 = vsyncpa [#allocation6], 1
    %7565 = vsyncpa [#allocation9], 1
    %7566 = vsyncpa [#allocation12], 1
    %7567 = vsyncpa [#allocation15], 1
    %7568 = vsyncpa [#allocation18], 1
    %7569 = vsyncpa [#allocation21], 1
    %7570 = vsyncpa [#allocation24], 1
    %7571 = vsyncpa [#allocation27], 1
    %7572 = vsyncpa [#allocation30], 1
    %7573 = vsyncpa [#allocation33], 1
    %7574 = vsyncpa [#allocation36], 1
    %7575 = vsyncpa [#allocation4], 1

</llo_original>
